<compile_context>
chip_gen: v6e
topology: v6e:2x2x1
jax: 0.10.0
libtpu: 0.0.40
codegen_flags: <defaults>
</compile_context>

<pallas_src>
import functools
import math

import jax
import jax.numpy as jnp
from jax import lax
from jax.experimental import pallas as pl
from jax.experimental.pallas import tpu as pltpu


# ----------------------------- Pallas kernel --------------------------------
def _encoder_block_kernel(
    x_ref,
    wqkv_ref, wo_ref, w1_ref, w2_ref, wh_ref,
    vec_ref, b1_ref,
    o_ref,
    *, num_heads: int,
):
    """One transformer encoder block + head for a block of batch elements."""
    f32 = jnp.float32
    bf16 = jnp.bfloat16

    Bps, S, D = x_ref.shape
    hd = D // num_heads
    M = Bps * S

    x = x_ref[...].astype(f32).reshape(M, D)          # fold batch into tokens (free)

    # packed small vectors: rows = bq, bk, bv, bo, g1, be1, g2, be2, b2, bh
    vecs = vec_ref[...]                               # [10, D] f32
    bq, bk, bv = vecs[0:1, :], vecs[1:2, :], vecs[2:3, :]
    bo = vecs[3:4, :]
    g1, be1 = vecs[4:5, :], vecs[5:6, :]
    g2, be2 = vecs[6:7, :], vecs[7:8, :]
    b2, bh = vecs[8:9, :], vecs[9:10, :]
    b1 = b1_ref[...]                                  # [1, F]

    def layer_norm(t, g, b):
        # one-pass stats: two independent (overlappable) reduces, var = E[x^2]-mu^2
        mu = jnp.mean(t, axis=-1, keepdims=True)
        ms = jnp.mean(t * t, axis=-1, keepdims=True)
        return (t - mu) * lax.rsqrt(ms - mu * mu + 1e-5) * g + b

    # ---- multi-head self-attention (pre-LN) ----
    xn = layer_norm(x, g1, be1).astype(bf16)                              # [M, D]
    qkv = jnp.dot(xn, wqkv_ref[...], preferred_element_type=f32)          # [M, 3D]
    # 1/sqrt(hd) scale is pre-folded into the q columns of wqkv and into bq.
    q = (qkv[:, 0:D] + bq).astype(bf16)
    k = (qkv[:, D:2 * D] + bk).astype(bf16)
    v = (qkv[:, 2 * D:3 * D] + bv).astype(bf16)

    q3 = q.reshape(Bps, S, D)                         # free leading-dim splits
    k3 = k.reshape(Bps, S, D)
    v3 = v.reshape(Bps, S, D)

    dn_qk = (((2,), (2,)), ((0,), (0,)))              # batch over Bps, contract hd
    dn_pv = (((2,), (1,)), ((0,), (0,)))              # batch over Bps, contract keys

    ctx_heads = []
    for h in range(num_heads):                        # static unroll, H small
        lo = h * hd
        qh = q3[:, :, lo:lo + hd]                     # [Bps, S, hd]
        kh = k3[:, :, lo:lo + hd]
        vh = v3[:, :, lo:lo + hd]
        s = lax.dot_general(qh, kh, dn_qk, preferred_element_type=f32)    # [Bps,S,S]
        s = s - jnp.max(s, axis=-1, keepdims=True)
        p = jnp.exp(s)
        p = p * pl.reciprocal(jnp.sum(p, axis=-1, keepdims=True), approx=True)
        ctx_heads.append(
            lax.dot_general(p.astype(bf16), vh, dn_pv, preferred_element_type=f32))

    # rebuild concatenated context with a single lane relayout, then one
    # full-K (K=D) output projection instead of num_heads K=hd matmuls.
    ctx = jnp.concatenate(ctx_heads, axis=-1)         # [Bps, S, D]
    ctx = ctx.reshape(M, D).astype(bf16)
    x = x + jnp.dot(ctx, wo_ref[...], preferred_element_type=f32) + bo    # residual

    # ---- MLP (pre-LN) ----
    xn2 = layer_norm(x, g2, be2).astype(bf16)
    h1 = jnp.dot(xn2, w1_ref[...], preferred_element_type=f32) + b1
    h1 = jax.nn.gelu(h1, approximate=True).astype(bf16)
    x = x + jnp.dot(h1, w2_ref[...], preferred_element_type=f32) + b2     # residual

    # ---- prediction head ----
    out = jnp.dot(x.astype(bf16), wh_ref[...], preferred_element_type=f32) + bh
    o_ref[...] = out.reshape(Bps, S, D).astype(o_ref.dtype)


# ----------------------------- wrapper ---------------------------------------
_WEIGHT_ORDER = ("wqkv", "wo", "w1", "w2", "wh", "vecs", "b1")


def _const_spec(shape):
    # Weight shared across all grid steps: full-array block, constant index map
    # (DMA'd once, stays resident in VMEM).
    nd = len(shape)
    return pl.BlockSpec(shape, lambda b, _nd=nd: (0,) * _nd)


def net_forward(xin, params, *, num_heads, batch_per_step=2):
    """Synthetic AtmoRep core net forward, executed as a Pallas TPU kernel."""
    B, S, D = xin.shape
    assert D % num_heads == 0
    Bps = min(batch_per_step, B)
    assert B % Bps == 0
    F = params["w1"].shape[1]

    x_bf = xin.astype(jnp.bfloat16)                   # halve HBM traffic for x
    weights = [params[name] for name in _WEIGHT_ORDER]

    kernel = functools.partial(_encoder_block_kernel, num_heads=num_heads)

    in_specs = [pl.BlockSpec((Bps, S, D), lambda b: (b, 0, 0))]
    in_specs += [_const_spec(tuple(w.shape)) for w in weights]

    weight_bytes = sum(int(w.size) * w.dtype.itemsize for w in weights)
    cost = pl.CostEstimate(
        flops=int(2 * B * S * D * (5 * D + 2 * F) + 4 * B * S * S * D),
        transcendentals=int(B * (num_heads * S * S + S * F)),
        bytes_accessed=int(2 * B * S * D * 2 + weight_bytes),
    )

    out = pl.pallas_call(
        kernel,
        out_shape=jax.ShapeDtypeStruct((B, S, D), jnp.bfloat16),   # bf16 writeback
        grid_spec=pltpu.PrefetchScalarGridSpec(
            num_scalar_prefetch=0,
            grid=(B // Bps,),
            in_specs=in_specs,
            out_specs=pl.BlockSpec((Bps, S, D), lambda b: (b, 0, 0)),
        ),
        compiler_params=pltpu.CompilerParams(
            dimension_semantics=("parallel",),        # v7x: both TCs take a 256-row block
            vmem_limit_bytes=16 * 1024 * 1024,        # footprint ~1 MiB; leave headroom
        ),
        cost_estimate=cost,
    )(x_bf, *weights)
    return out


class AtmoRepData:
    """JAX/Pallas port of atmorep.core.atmorep_model.AtmoRepData.

    Only the forward pass carries device compute; it delegates to the wrapped
    net, exactly as the PyTorch module does.
    """

    def __init__(self, net_fn, rng_seed=0):
        self.net_fn = net_fn
        self.rng_seed = rng_seed if rng_seed else 12345
        # TODO(synk): data-loader plumbing (set_data / set_global / set_location /
        # mode / len / next / normalizer / create) is host-side I/O with no Pallas
        # equivalent.

    def forward(self, xin):
        pred = self.net_fn(xin)
        return pred

    def __call__(self, xin):
        return self.forward(xin)


# ----------------------------- parameter init --------------------------------
def init_params(key, D, F, num_heads):
    ks = jax.random.split(key, 18)
    hd = D // num_heads
    scale = 1.0 / math.sqrt(hd)

    def lin(k, din, dout):
        return jax.random.normal(k, (din, dout), jnp.float32) / jnp.sqrt(jnp.float32(din))

    def vec(k, n, s=0.1):
        return s * jax.random.normal(k, (1, n), jnp.float32)

    # fused QKV weight; attention scale folded into wq (and bq below)
    wq = lin(ks[0], D, D) * scale
    wk = lin(ks[1], D, D)
    wv = lin(ks[2], D, D)
    wqkv = jnp.concatenate([wq, wk, wv], axis=1).astype(jnp.bfloat16)     # [D, 3D]

    bq = vec(ks[7], D) * scale
    bk, bv, bo = vec(ks[8], D), vec(ks[9], D), vec(ks[10], D)
    g1, be1 = 1.0 + vec(ks[11], D), vec(ks[12], D)
    g2, be2 = 1.0 + vec(ks[13], D), vec(ks[14], D)
    b2, bh = vec(ks[16], D), vec(ks[17], D)
    # pack all [1, D] vectors into one array (one input, one DMA, one VMEM buffer)
    vecs = jnp.concatenate([bq, bk, bv, bo, g1, be1, g2, be2, b2, bh],
                           axis=0).astype(jnp.float32)                    # [10, D]

    return {
        "wqkv": wqkv,
        "wo": lin(ks[3], D, D).astype(jnp.bfloat16),
        "w1": lin(ks[4], D, F).astype(jnp.bfloat16),
        "w2": lin(ks[5], F, D).astype(jnp.bfloat16),
        "wh": lin(ks[6], D, D).astype(jnp.bfloat16),
        "vecs": vecs,
        "b1": vec(ks[15], F),
    }


# ----------------------------- pure-JAX reference ----------------------------
def ref_forward(x_bf16, p, num_heads):
    f32, bf16 = jnp.float32, jnp.bfloat16
    x = x_bf16.astype(f32)
    B, S, D = x.shape
    hd = D // num_heads
    vr = p["vecs"]
    bq, bk, bv, bo, g1, be1, g2, be2, b2, bh = [vr[i:i + 1] for i in range(10)]
    b1 = p["b1"]

    def ln(t, g, b):
        mu = jnp.mean(t, -1, keepdims=True)
        ms = jnp.mean(t * t, -1, keepdims=True)
        return (t - mu) * lax.rsqrt(ms - mu * mu + 1e-5) * g + b

    xn = ln(x, g1, be1).astype(bf16)
    qkv = jnp.einsum("bsd,de->bse", xn, p["wqkv"], preferred_element_type=f32)
    q = (qkv[..., 0:D] + bq).astype(bf16).reshape(B, S, num_heads, hd)
    k = (qkv[..., D:2 * D] + bk).astype(bf16).reshape(B, S, num_heads, hd)
    v = (qkv[..., 2 * D:] + bv).astype(bf16).reshape(B, S, num_heads, hd)
    s = jnp.einsum("bqhd,bkhd->bhqk", q, k, preferred_element_type=f32)
    s = s - jnp.max(s, -1, keepdims=True)
    pm = jnp.exp(s)
    pm = pm / jnp.sum(pm, -1, keepdims=True)
    a = jnp.einsum("bhqk,bkhd->bqhd", pm.astype(bf16), v, preferred_element_type=f32)
    a = a.reshape(B, S, D).astype(bf16)
    x = x + jnp.einsum("bsd,de->bse", a, p["wo"], preferred_element_type=f32) + bo
    xn2 = ln(x, g2, be2).astype(bf16)
    h = jnp.einsum("bsd,df->bsf", xn2, p["w1"], preferred_element_type=f32) + b1
    h = jax.nn.gelu(h, approximate=True).astype(bf16)
    x = x + jnp.einsum("bsf,fd->bsd", h, p["w2"], preferred_element_type=f32) + b2
    return jnp.einsum("bsd,de->bse", x.astype(bf16), p["wh"],
                      preferred_element_type=f32) + bh


# ----------------------------- main -------------------------------------------
if __name__ == "__main__":
    # Lane/sublane-dense toy config: batch=4, seq=128 tokens, embed=128, 4 heads.
    # Two batch elements are folded per grid step -> 256-row matmuls, grid=(2,).
    B, S, D, H = 4, 128, 128, 4
    F = 4 * D
    BPS = 2

    key = jax.random.PRNGKey(0)
    kx, kp = jax.random.split(key)
    xin = jax.random.normal(kx, (B, S, D), jnp.float32)
    params = init_params(kp, D, F, H)

    net_fn = jax.jit(lambda x: net_forward(x, params, num_heads=H, batch_per_step=BPS))
    model = AtmoRepData(net_fn, rng_seed=0)

    out = model(xin)
    out = jax.block_until_ready(out)

    ref = ref_forward(xin.astype(jnp.bfloat16), params, H)
    ref_bf = ref.astype(jnp.bfloat16).astype(jnp.float32)   # match bf16 writeback
    assert out.shape == (B, S, D)
    assert out.dtype == jnp.bfloat16
    assert jnp.allclose(out.astype(jnp.float32), ref_bf, atol=5e-2, rtol=5e-2), \
        "mismatch vs reference"

    print("KERNEL_OK")
</pallas_src>

<mosaic_0001>
module attributes {stable_mosaic.version = 11 : i64} {
  func.func @_encoder_block_kernel(%arg0: i32, %arg1: memref<2x128x128xbf16, #tpu.memory_space<vmem>>, %arg2: memref<128x384xbf16, #tpu.memory_space<vmem>>, %arg3: memref<128x128xbf16, #tpu.memory_space<vmem>>, %arg4: memref<128x512xbf16, #tpu.memory_space<vmem>>, %arg5: memref<512x128xbf16, #tpu.memory_space<vmem>>, %arg6: memref<128x128xbf16, #tpu.memory_space<vmem>>, %arg7: memref<10x128xf32, #tpu.memory_space<vmem>>, %arg8: memref<1x512xf32, #tpu.memory_space<vmem>>, %arg9: memref<2x128x128xbf16, #tpu.memory_space<vmem>>) attributes {dimension_semantics = [#tpu.dimension_semantics<parallel>], iteration_bounds = array<i64: 2>, scalar_prefetch = 0 : i64, scratch_operands = 0 : i64, tpu.core_type = #tpu.core_type<tc>, window_params = [{transform_indices = @transform_0, window_bounds = array<i64: 2, 128, 128>}, {pipeline_mode = #tpu.pipeline_mode<synchronous>, transform_indices = @transform_1, window_bounds = array<i64: 128, 384>}, {pipeline_mode = #tpu.pipeline_mode<synchronous>, transform_indices = @transform_2, window_bounds = array<i64: 128, 128>}, {pipeline_mode = #tpu.pipeline_mode<synchronous>, transform_indices = @transform_3, window_bounds = array<i64: 128, 512>}, {pipeline_mode = #tpu.pipeline_mode<synchronous>, transform_indices = @transform_4, window_bounds = array<i64: 512, 128>}, {pipeline_mode = #tpu.pipeline_mode<synchronous>, transform_indices = @transform_5, window_bounds = array<i64: 128, 128>}, {pipeline_mode = #tpu.pipeline_mode<synchronous>, transform_indices = @transform_6, window_bounds = array<i64: 10, 128>}, {pipeline_mode = #tpu.pipeline_mode<synchronous>, transform_indices = @transform_7, window_bounds = array<i64: 1, 512>}, {transform_indices = @transform_8, window_bounds = array<i64: 2, 128, 128>}]} {
    %c0 = arith.constant 0 : index
    %c0_0 = arith.constant 0 : index
    %c0_1 = arith.constant 0 : index
    %0 = vector.load %arg1[%c0, %c0_0, %c0_1] : memref<2x128x128xbf16, #tpu.memory_space<vmem>>, vector<2x128x128xbf16>
    %1 = arith.extf %0 : vector<2x128x128xbf16> to vector<2x128x128xf32>
    %2 = vector.shape_cast %1 : vector<2x128x128xf32> to vector<256x128xf32>
    %c0_2 = arith.constant 0 : index
    %c0_3 = arith.constant 0 : index
    %3 = vector.load %arg7[%c0_2, %c0_3] : memref<10x128xf32, #tpu.memory_space<vmem>>, vector<10x128xf32>
    %4 = vector.extract_strided_slice %3 {offsets = [0, 0], sizes = [1, 128], strides = [1, 1]} : vector<10x128xf32> to vector<1x128xf32>
    %5 = vector.extract_strided_slice %3 {offsets = [1, 0], sizes = [1, 128], strides = [1, 1]} : vector<10x128xf32> to vector<1x128xf32>
    %6 = vector.extract_strided_slice %3 {offsets = [2, 0], sizes = [1, 128], strides = [1, 1]} : vector<10x128xf32> to vector<1x128xf32>
    %7 = vector.extract_strided_slice %3 {offsets = [3, 0], sizes = [1, 128], strides = [1, 1]} : vector<10x128xf32> to vector<1x128xf32>
    %8 = vector.extract_strided_slice %3 {offsets = [4, 0], sizes = [1, 128], strides = [1, 1]} : vector<10x128xf32> to vector<1x128xf32>
    %9 = vector.extract_strided_slice %3 {offsets = [5, 0], sizes = [1, 128], strides = [1, 1]} : vector<10x128xf32> to vector<1x128xf32>
    %10 = vector.extract_strided_slice %3 {offsets = [6, 0], sizes = [1, 128], strides = [1, 1]} : vector<10x128xf32> to vector<1x128xf32>
    %11 = vector.extract_strided_slice %3 {offsets = [7, 0], sizes = [1, 128], strides = [1, 1]} : vector<10x128xf32> to vector<1x128xf32>
    %12 = vector.extract_strided_slice %3 {offsets = [8, 0], sizes = [1, 128], strides = [1, 1]} : vector<10x128xf32> to vector<1x128xf32>
    %13 = vector.extract_strided_slice %3 {offsets = [9, 0], sizes = [1, 128], strides = [1, 1]} : vector<10x128xf32> to vector<1x128xf32>
    %c0_4 = arith.constant 0 : index
    %c0_5 = arith.constant 0 : index
    %14 = vector.load %arg8[%c0_4, %c0_5] : memref<1x512xf32, #tpu.memory_space<vmem>>, vector<1x512xf32>
    %cst = arith.constant dense<0.000000e+00> : vector<256xf32>
    %15 = vector.multi_reduction <add>, %2, %cst [1] : vector<256x128xf32> to vector<256xf32>
    %16 = vector.shape_cast %15 : vector<256xf32> to vector<256x1xf32>
    %cst_6 = arith.constant 1.280000e+02 : f32
    %17 = vector.broadcast %cst_6 : f32 to vector<256x1xf32>
    %18 = arith.divf %16, %17 : vector<256x1xf32>
    %19 = arith.mulf %2, %2 : vector<256x128xf32>
    %cst_7 = arith.constant dense<0.000000e+00> : vector<256xf32>
    %20 = vector.multi_reduction <add>, %19, %cst_7 [1] : vector<256x128xf32> to vector<256xf32>
    %21 = vector.shape_cast %20 : vector<256xf32> to vector<256x1xf32>
    %cst_8 = arith.constant 1.280000e+02 : f32
    %22 = vector.broadcast %cst_8 : f32 to vector<256x1xf32>
    %23 = arith.divf %21, %22 : vector<256x1xf32>
    %24 = vector.broadcast %18 : vector<256x1xf32> to vector<256x128xf32>
    %25 = arith.subf %2, %24 : vector<256x128xf32>
    %26 = arith.mulf %18, %18 : vector<256x1xf32>
    %27 = arith.subf %23, %26 : vector<256x1xf32>
    %cst_9 = arith.constant 9.99999974E-6 : f32
    %28 = vector.broadcast %cst_9 : f32 to vector<256x1xf32>
    %29 = arith.addf %27, %28 : vector<256x1xf32>
    %30 = math.rsqrt %29 : vector<256x1xf32>
    %31 = vector.broadcast %30 : vector<256x1xf32> to vector<256x128xf32>
    %32 = arith.mulf %25, %31 : vector<256x128xf32>
    %33 = vector.broadcast %8 : vector<1x128xf32> to vector<256x128xf32>
    %34 = arith.mulf %32, %33 : vector<256x128xf32>
    %35 = vector.broadcast %9 : vector<1x128xf32> to vector<256x128xf32>
    %36 = arith.addf %34, %35 : vector<256x128xf32>
    %37 = arith.truncf %36 : vector<256x128xf32> to vector<256x128xbf16>
    %c0_10 = arith.constant 0 : index
    %c0_11 = arith.constant 0 : index
    %38 = vector.load %arg2[%c0_10, %c0_11] : memref<128x384xbf16, #tpu.memory_space<vmem>>, vector<128x384xbf16>
    %cst_12 = arith.constant dense<0.000000e+00> : vector<256x384xf32>
    %39 = tpu.matmul %37, %38, %cst_12 {dimension_numbers = #tpu.dot_dimension_numbers<[1], [0], [0], [1], [0, 0, 1, 1], [], []>} : vector<256x128xbf16>, vector<128x384xbf16>, vector<256x384xf32> -> vector<256x384xf32>
    %40 = vector.extract_strided_slice %39 {offsets = [0, 0], sizes = [256, 128], strides = [1, 1]} : vector<256x384xf32> to vector<256x128xf32>
    %41 = vector.broadcast %4 : vector<1x128xf32> to vector<256x128xf32>
    %42 = arith.addf %40, %41 : vector<256x128xf32>
    %43 = arith.truncf %42 : vector<256x128xf32> to vector<256x128xbf16>
    %44 = vector.extract_strided_slice %39 {offsets = [0, 128], sizes = [256, 128], strides = [1, 1]} : vector<256x384xf32> to vector<256x128xf32>
    %45 = vector.broadcast %5 : vector<1x128xf32> to vector<256x128xf32>
    %46 = arith.addf %44, %45 : vector<256x128xf32>
    %47 = arith.truncf %46 : vector<256x128xf32> to vector<256x128xbf16>
    %48 = vector.extract_strided_slice %39 {offsets = [0, 256], sizes = [256, 128], strides = [1, 1]} : vector<256x384xf32> to vector<256x128xf32>
    %49 = vector.broadcast %6 : vector<1x128xf32> to vector<256x128xf32>
    %50 = arith.addf %48, %49 : vector<256x128xf32>
    %51 = arith.truncf %50 : vector<256x128xf32> to vector<256x128xbf16>
    %52 = vector.shape_cast %43 : vector<256x128xbf16> to vector<2x128x128xbf16>
    %53 = vector.shape_cast %47 : vector<256x128xbf16> to vector<2x128x128xbf16>
    %54 = vector.shape_cast %51 : vector<256x128xbf16> to vector<2x128x128xbf16>
    %55 = vector.extract_strided_slice %52 {offsets = [0, 0, 0], sizes = [2, 128, 32], strides = [1, 1, 1]} : vector<2x128x128xbf16> to vector<2x128x32xbf16>
    %56 = vector.extract_strided_slice %53 {offsets = [0, 0, 0], sizes = [2, 128, 32], strides = [1, 1, 1]} : vector<2x128x128xbf16> to vector<2x128x32xbf16>
    %57 = vector.extract_strided_slice %54 {offsets = [0, 0, 0], sizes = [2, 128, 32], strides = [1, 1, 1]} : vector<2x128x128xbf16> to vector<2x128x32xbf16>
    %cst_13 = arith.constant dense<0.000000e+00> : vector<2x128x128xf32>
    %58 = tpu.matmul %55, %56, %cst_13 {dimension_numbers = #tpu.dot_dimension_numbers<[2], [2], [1], [1], [0, 0, 0, 1, 1, 1], [0], [0]>} : vector<2x128x32xbf16>, vector<2x128x32xbf16>, vector<2x128x128xf32> -> vector<2x128x128xf32>
    %cst_14 = arith.constant dense<0xFF800000> : vector<2x128xf32>
    %59 = vector.multi_reduction <maximumf>, %58, %cst_14 [2] : vector<2x128x128xf32> to vector<2x128xf32>
    %60 = vector.shape_cast %59 : vector<2x128xf32> to vector<2x128x1xf32>
    %61 = vector.broadcast %60 : vector<2x128x1xf32> to vector<2x128x128xf32>
    %62 = arith.subf %58, %61 : vector<2x128x128xf32>
    %63 = math.exp %62 : vector<2x128x128xf32>
    %cst_15 = arith.constant dense<0.000000e+00> : vector<2x128xf32>
    %64 = vector.multi_reduction <add>, %63, %cst_15 [2] : vector<2x128x128xf32> to vector<2x128xf32>
    %65 = vector.shape_cast %64 : vector<2x128xf32> to vector<2x128x1xf32>
    %66 = tpu.reciprocal %65 {approx = true} : vector<2x128x1xf32> -> vector<2x128x1xf32>
    %67 = vector.broadcast %66 : vector<2x128x1xf32> to vector<2x128x128xf32>
    %68 = arith.mulf %63, %67 : vector<2x128x128xf32>
    %69 = arith.truncf %68 : vector<2x128x128xf32> to vector<2x128x128xbf16>
    %cst_16 = arith.constant dense<0.000000e+00> : vector<2x128x32xf32>
    %70 = tpu.matmul %69, %57, %cst_16 {dimension_numbers = #tpu.dot_dimension_numbers<[2], [1], [1], [2], [0, 0, 0, 1, 1, 2], [0], [0]>} : vector<2x128x128xbf16>, vector<2x128x32xbf16>, vector<2x128x32xf32> -> vector<2x128x32xf32>
    %71 = vector.extract_strided_slice %52 {offsets = [0, 0, 32], sizes = [2, 128, 32], strides = [1, 1, 1]} : vector<2x128x128xbf16> to vector<2x128x32xbf16>
    %72 = vector.extract_strided_slice %53 {offsets = [0, 0, 32], sizes = [2, 128, 32], strides = [1, 1, 1]} : vector<2x128x128xbf16> to vector<2x128x32xbf16>
    %73 = vector.extract_strided_slice %54 {offsets = [0, 0, 32], sizes = [2, 128, 32], strides = [1, 1, 1]} : vector<2x128x128xbf16> to vector<2x128x32xbf16>
    %cst_17 = arith.constant dense<0.000000e+00> : vector<2x128x128xf32>
    %74 = tpu.matmul %71, %72, %cst_17 {dimension_numbers = #tpu.dot_dimension_numbers<[2], [2], [1], [1], [0, 0, 0, 1, 1, 1], [0], [0]>} : vector<2x128x32xbf16>, vector<2x128x32xbf16>, vector<2x128x128xf32> -> vector<2x128x128xf32>
    %cst_18 = arith.constant dense<0xFF800000> : vector<2x128xf32>
    %75 = vector.multi_reduction <maximumf>, %74, %cst_18 [2] : vector<2x128x128xf32> to vector<2x128xf32>
    %76 = vector.shape_cast %75 : vector<2x128xf32> to vector<2x128x1xf32>
    %77 = vector.broadcast %76 : vector<2x128x1xf32> to vector<2x128x128xf32>
    %78 = arith.subf %74, %77 : vector<2x128x128xf32>
    %79 = math.exp %78 : vector<2x128x128xf32>
    %cst_19 = arith.constant dense<0.000000e+00> : vector<2x128xf32>
    %80 = vector.multi_reduction <add>, %79, %cst_19 [2] : vector<2x128x128xf32> to vector<2x128xf32>
    %81 = vector.shape_cast %80 : vector<2x128xf32> to vector<2x128x1xf32>
    %82 = tpu.reciprocal %81 {approx = true} : vector<2x128x1xf32> -> vector<2x128x1xf32>
    %83 = vector.broadcast %82 : vector<2x128x1xf32> to vector<2x128x128xf32>
    %84 = arith.mulf %79, %83 : vector<2x128x128xf32>
    %85 = arith.truncf %84 : vector<2x128x128xf32> to vector<2x128x128xbf16>
    %cst_20 = arith.constant dense<0.000000e+00> : vector<2x128x32xf32>
    %86 = tpu.matmul %85, %73, %cst_20 {dimension_numbers = #tpu.dot_dimension_numbers<[2], [1], [1], [2], [0, 0, 0, 1, 1, 2], [0], [0]>} : vector<2x128x128xbf16>, vector<2x128x32xbf16>, vector<2x128x32xf32> -> vector<2x128x32xf32>
    %87 = vector.extract_strided_slice %52 {offsets = [0, 0, 64], sizes = [2, 128, 32], strides = [1, 1, 1]} : vector<2x128x128xbf16> to vector<2x128x32xbf16>
    %88 = vector.extract_strided_slice %53 {offsets = [0, 0, 64], sizes = [2, 128, 32], strides = [1, 1, 1]} : vector<2x128x128xbf16> to vector<2x128x32xbf16>
    %89 = vector.extract_strided_slice %54 {offsets = [0, 0, 64], sizes = [2, 128, 32], strides = [1, 1, 1]} : vector<2x128x128xbf16> to vector<2x128x32xbf16>
    %cst_21 = arith.constant dense<0.000000e+00> : vector<2x128x128xf32>
    %90 = tpu.matmul %87, %88, %cst_21 {dimension_numbers = #tpu.dot_dimension_numbers<[2], [2], [1], [1], [0, 0, 0, 1, 1, 1], [0], [0]>} : vector<2x128x32xbf16>, vector<2x128x32xbf16>, vector<2x128x128xf32> -> vector<2x128x128xf32>
    %cst_22 = arith.constant dense<0xFF800000> : vector<2x128xf32>
    %91 = vector.multi_reduction <maximumf>, %90, %cst_22 [2] : vector<2x128x128xf32> to vector<2x128xf32>
    %92 = vector.shape_cast %91 : vector<2x128xf32> to vector<2x128x1xf32>
    %93 = vector.broadcast %92 : vector<2x128x1xf32> to vector<2x128x128xf32>
    %94 = arith.subf %90, %93 : vector<2x128x128xf32>
    %95 = math.exp %94 : vector<2x128x128xf32>
    %cst_23 = arith.constant dense<0.000000e+00> : vector<2x128xf32>
    %96 = vector.multi_reduction <add>, %95, %cst_23 [2] : vector<2x128x128xf32> to vector<2x128xf32>
    %97 = vector.shape_cast %96 : vector<2x128xf32> to vector<2x128x1xf32>
    %98 = tpu.reciprocal %97 {approx = true} : vector<2x128x1xf32> -> vector<2x128x1xf32>
    %99 = vector.broadcast %98 : vector<2x128x1xf32> to vector<2x128x128xf32>
    %100 = arith.mulf %95, %99 : vector<2x128x128xf32>
    %101 = arith.truncf %100 : vector<2x128x128xf32> to vector<2x128x128xbf16>
    %cst_24 = arith.constant dense<0.000000e+00> : vector<2x128x32xf32>
    %102 = tpu.matmul %101, %89, %cst_24 {dimension_numbers = #tpu.dot_dimension_numbers<[2], [1], [1], [2], [0, 0, 0, 1, 1, 2], [0], [0]>} : vector<2x128x128xbf16>, vector<2x128x32xbf16>, vector<2x128x32xf32> -> vector<2x128x32xf32>
    %103 = vector.extract_strided_slice %52 {offsets = [0, 0, 96], sizes = [2, 128, 32], strides = [1, 1, 1]} : vector<2x128x128xbf16> to vector<2x128x32xbf16>
    %104 = vector.extract_strided_slice %53 {offsets = [0, 0, 96], sizes = [2, 128, 32], strides = [1, 1, 1]} : vector<2x128x128xbf16> to vector<2x128x32xbf16>
    %105 = vector.extract_strided_slice %54 {offsets = [0, 0, 96], sizes = [2, 128, 32], strides = [1, 1, 1]} : vector<2x128x128xbf16> to vector<2x128x32xbf16>
    %cst_25 = arith.constant dense<0.000000e+00> : vector<2x128x128xf32>
    %106 = tpu.matmul %103, %104, %cst_25 {dimension_numbers = #tpu.dot_dimension_numbers<[2], [2], [1], [1], [0, 0, 0, 1, 1, 1], [0], [0]>} : vector<2x128x32xbf16>, vector<2x128x32xbf16>, vector<2x128x128xf32> -> vector<2x128x128xf32>
    %cst_26 = arith.constant dense<0xFF800000> : vector<2x128xf32>
    %107 = vector.multi_reduction <maximumf>, %106, %cst_26 [2] : vector<2x128x128xf32> to vector<2x128xf32>
    %108 = vector.shape_cast %107 : vector<2x128xf32> to vector<2x128x1xf32>
    %109 = vector.broadcast %108 : vector<2x128x1xf32> to vector<2x128x128xf32>
    %110 = arith.subf %106, %109 : vector<2x128x128xf32>
    %111 = math.exp %110 : vector<2x128x128xf32>
    %cst_27 = arith.constant dense<0.000000e+00> : vector<2x128xf32>
    %112 = vector.multi_reduction <add>, %111, %cst_27 [2] : vector<2x128x128xf32> to vector<2x128xf32>
    %113 = vector.shape_cast %112 : vector<2x128xf32> to vector<2x128x1xf32>
    %114 = tpu.reciprocal %113 {approx = true} : vector<2x128x1xf32> -> vector<2x128x1xf32>
    %115 = vector.broadcast %114 : vector<2x128x1xf32> to vector<2x128x128xf32>
    %116 = arith.mulf %111, %115 : vector<2x128x128xf32>
    %117 = arith.truncf %116 : vector<2x128x128xf32> to vector<2x128x128xbf16>
    %cst_28 = arith.constant dense<0.000000e+00> : vector<2x128x32xf32>
    %118 = tpu.matmul %117, %105, %cst_28 {dimension_numbers = #tpu.dot_dimension_numbers<[2], [1], [1], [2], [0, 0, 0, 1, 1, 2], [0], [0]>} : vector<2x128x128xbf16>, vector<2x128x32xbf16>, vector<2x128x32xf32> -> vector<2x128x32xf32>
    %119 = tpu.concatenate %70, %86, %102, %118 in 2 : vector<2x128x32xf32>, vector<2x128x32xf32>, vector<2x128x32xf32>, vector<2x128x32xf32> -> vector<2x128x128xf32>
    %120 = vector.shape_cast %119 : vector<2x128x128xf32> to vector<256x128xf32>
    %121 = arith.truncf %120 : vector<256x128xf32> to vector<256x128xbf16>
    %c0_29 = arith.constant 0 : index
    %c0_30 = arith.constant 0 : index
    %122 = vector.load %arg3[%c0_29, %c0_30] : memref<128x128xbf16, #tpu.memory_space<vmem>>, vector<128x128xbf16>
    %cst_31 = arith.constant dense<0.000000e+00> : vector<256x128xf32>
    %123 = tpu.matmul %121, %122, %cst_31 {dimension_numbers = #tpu.dot_dimension_numbers<[1], [0], [0], [1], [0, 0, 1, 1], [], []>} : vector<256x128xbf16>, vector<128x128xbf16>, vector<256x128xf32> -> vector<256x128xf32>
    %124 = arith.addf %2, %123 : vector<256x128xf32>
    %125 = vector.broadcast %7 : vector<1x128xf32> to vector<256x128xf32>
    %126 = arith.addf %124, %125 : vector<256x128xf32>
    %cst_32 = arith.constant dense<0.000000e+00> : vector<256xf32>
    %127 = vector.multi_reduction <add>, %126, %cst_32 [1] : vector<256x128xf32> to vector<256xf32>
    %128 = vector.shape_cast %127 : vector<256xf32> to vector<256x1xf32>
    %cst_33 = arith.constant 1.280000e+02 : f32
    %129 = vector.broadcast %cst_33 : f32 to vector<256x1xf32>
    %130 = arith.divf %128, %129 : vector<256x1xf32>
    %131 = arith.mulf %126, %126 : vector<256x128xf32>
    %cst_34 = arith.constant dense<0.000000e+00> : vector<256xf32>
    %132 = vector.multi_reduction <add>, %131, %cst_34 [1] : vector<256x128xf32> to vector<256xf32>
    %133 = vector.shape_cast %132 : vector<256xf32> to vector<256x1xf32>
    %cst_35 = arith.constant 1.280000e+02 : f32
    %134 = vector.broadcast %cst_35 : f32 to vector<256x1xf32>
    %135 = arith.divf %133, %134 : vector<256x1xf32>
    %136 = vector.broadcast %130 : vector<256x1xf32> to vector<256x128xf32>
    %137 = arith.subf %126, %136 : vector<256x128xf32>
    %138 = arith.mulf %130, %130 : vector<256x1xf32>
    %139 = arith.subf %135, %138 : vector<256x1xf32>
    %cst_36 = arith.constant 9.99999974E-6 : f32
    %140 = vector.broadcast %cst_36 : f32 to vector<256x1xf32>
    %141 = arith.addf %139, %140 : vector<256x1xf32>
    %142 = math.rsqrt %141 : vector<256x1xf32>
    %143 = vector.broadcast %142 : vector<256x1xf32> to vector<256x128xf32>
    %144 = arith.mulf %137, %143 : vector<256x128xf32>
    %145 = vector.broadcast %10 : vector<1x128xf32> to vector<256x128xf32>
    %146 = arith.mulf %144, %145 : vector<256x128xf32>
    %147 = vector.broadcast %11 : vector<1x128xf32> to vector<256x128xf32>
    %148 = arith.addf %146, %147 : vector<256x128xf32>
    %149 = arith.truncf %148 : vector<256x128xf32> to vector<256x128xbf16>
    %c0_37 = arith.constant 0 : index
    %c0_38 = arith.constant 0 : index
    %150 = vector.load %arg4[%c0_37, %c0_38] : memref<128x512xbf16, #tpu.memory_space<vmem>>, vector<128x512xbf16>
    %cst_39 = arith.constant dense<0.000000e+00> : vector<256x512xf32>
    %151 = tpu.matmul %149, %150, %cst_39 {dimension_numbers = #tpu.dot_dimension_numbers<[1], [0], [0], [1], [0, 0, 1, 1], [], []>} : vector<256x128xbf16>, vector<128x512xbf16>, vector<256x512xf32> -> vector<256x512xf32>
    %152 = vector.broadcast %14 : vector<1x512xf32> to vector<256x512xf32>
    %153 = arith.addf %151, %152 : vector<256x512xf32>
    %154 = arith.mulf %153, %153 : vector<256x512xf32>
    %155 = arith.mulf %153, %154 : vector<256x512xf32>
    %cst_40 = arith.constant 4.471500e-02 : f32
    %156 = vector.broadcast %cst_40 : f32 to vector<256x512xf32>
    %157 = arith.mulf %156, %155 : vector<256x512xf32>
    %158 = arith.addf %153, %157 : vector<256x512xf32>
    %cst_41 = arith.constant 0.797884583 : f32
    %159 = vector.broadcast %cst_41 : f32 to vector<256x512xf32>
    %160 = arith.mulf %159, %158 : vector<256x512xf32>
    %161 = math.tanh %160 : vector<256x512xf32>
    %cst_42 = arith.constant 1.000000e+00 : f32
    %162 = vector.broadcast %cst_42 : f32 to vector<256x512xf32>
    %163 = arith.addf %162, %161 : vector<256x512xf32>
    %cst_43 = arith.constant 5.000000e-01 : f32
    %164 = vector.broadcast %cst_43 : f32 to vector<256x512xf32>
    %165 = arith.mulf %164, %163 : vector<256x512xf32>
    %166 = arith.mulf %153, %165 : vector<256x512xf32>
    %167 = arith.truncf %166 : vector<256x512xf32> to vector<256x512xbf16>
    %c0_44 = arith.constant 0 : index
    %c0_45 = arith.constant 0 : index
    %168 = vector.load %arg5[%c0_44, %c0_45] : memref<512x128xbf16, #tpu.memory_space<vmem>>, vector<512x128xbf16>
    %cst_46 = arith.constant dense<0.000000e+00> : vector<256x128xf32>
    %169 = tpu.matmul %167, %168, %cst_46 {dimension_numbers = #tpu.dot_dimension_numbers<[1], [0], [0], [1], [0, 0, 1, 1], [], []>} : vector<256x512xbf16>, vector<512x128xbf16>, vector<256x128xf32> -> vector<256x128xf32>
    %170 = arith.addf %126, %169 : vector<256x128xf32>
    %171 = vector.broadcast %12 : vector<1x128xf32> to vector<256x128xf32>
    %172 = arith.addf %170, %171 : vector<256x128xf32>
    %173 = arith.truncf %172 : vector<256x128xf32> to vector<256x128xbf16>
    %c0_47 = arith.constant 0 : index
    %c0_48 = arith.constant 0 : index
    %174 = vector.load %arg6[%c0_47, %c0_48] : memref<128x128xbf16, #tpu.memory_space<vmem>>, vector<128x128xbf16>
    %cst_49 = arith.constant dense<0.000000e+00> : vector<256x128xf32>
    %175 = tpu.matmul %173, %174, %cst_49 {dimension_numbers = #tpu.dot_dimension_numbers<[1], [0], [0], [1], [0, 0, 1, 1], [], []>} : vector<256x128xbf16>, vector<128x128xbf16>, vector<256x128xf32> -> vector<256x128xf32>
    %176 = vector.broadcast %13 : vector<1x128xf32> to vector<256x128xf32>
    %177 = arith.addf %175, %176 : vector<256x128xf32>
    %178 = vector.shape_cast %177 : vector<256x128xf32> to vector<2x128x128xf32>
    %179 = arith.truncf %178 : vector<2x128x128xf32> to vector<2x128x128xbf16>
    %c0_50 = arith.constant 0 : index
    %c0_51 = arith.constant 0 : index
    %c0_52 = arith.constant 0 : index
    %180 = vector.load %arg9[%c0_50, %c0_51, %c0_52] : memref<2x128x128xbf16, #tpu.memory_space<vmem>>, vector<2x128x128xbf16>
    tpu.vector_store %arg9[%c0_50, %c0_51, %c0_52], %179 {strides = array<i32>} : memref<2x128x128xbf16, #tpu.memory_space<vmem>>, vector<2x128x128xbf16>,
    return
  }
  func.func @transform_0(%arg0: i32) -> (i32, i32, i32) {
    %c0_i32 = arith.constant 0 : i32
    %c0_i32_0 = arith.constant 0 : i32
    %c0_i32_1 = arith.constant 0 : i32
    return %arg0, %c0_i32, %c0_i32_0 : i32, i32, i32
  }
  func.func @transform_1(%arg0: i32) -> (i32, i32) {
    %c0_i32 = arith.constant 0 : i32
    %c0_i32_0 = arith.constant 0 : i32
    %c0_i32_1 = arith.constant 0 : i32
    return %c0_i32, %c0_i32_0 : i32, i32
  }
  func.func @transform_2(%arg0: i32) -> (i32, i32) {
    %c0_i32 = arith.constant 0 : i32
    %c0_i32_0 = arith.constant 0 : i32
    %c0_i32_1 = arith.constant 0 : i32
    return %c0_i32, %c0_i32_0 : i32, i32
  }
  func.func @transform_3(%arg0: i32) -> (i32, i32) {
    %c0_i32 = arith.constant 0 : i32
    %c0_i32_0 = arith.constant 0 : i32
    %c0_i32_1 = arith.constant 0 : i32
    return %c0_i32, %c0_i32_0 : i32, i32
  }
  func.func @transform_4(%arg0: i32) -> (i32, i32) {
    %c0_i32 = arith.constant 0 : i32
    %c0_i32_0 = arith.constant 0 : i32
    %c0_i32_1 = arith.constant 0 : i32
    return %c0_i32, %c0_i32_0 : i32, i32
  }
  func.func @transform_5(%arg0: i32) -> (i32, i32) {
    %c0_i32 = arith.constant 0 : i32
    %c0_i32_0 = arith.constant 0 : i32
    %c0_i32_1 = arith.constant 0 : i32
    return %c0_i32, %c0_i32_0 : i32, i32
  }
  func.func @transform_6(%arg0: i32) -> (i32, i32) {
    %c0_i32 = arith.constant 0 : i32
    %c0_i32_0 = arith.constant 0 : i32
    %c0_i32_1 = arith.constant 0 : i32
    return %c0_i32, %c0_i32_0 : i32, i32
  }
  func.func @transform_7(%arg0: i32) -> (i32, i32) {
    %c0_i32 = arith.constant 0 : i32
    %c0_i32_0 = arith.constant 0 : i32
    %c0_i32_1 = arith.constant 0 : i32
    return %c0_i32, %c0_i32_0 : i32, i32
  }
  func.func @transform_8(%arg0: i32) -> (i32, i32, i32) {
    %c0_i32 = arith.constant 0 : i32
    %c0_i32_0 = arith.constant 0 : i32
    %c0_i32_1 = arith.constant 0 : i32
    return %arg0, %c0_i32, %c0_i32_0 : i32, i32, i32
  }
}

</mosaic_0001>

<llo_original>
// kernel: _lambda_.1
$region0: #{_lambda_.1}
  #allocation0 [shape = 'u32[]', space=smem, size = 0x4, offset = 0x4, fixed_abs, tag = 'smem constant byte address 0x4 - core index']
  #allocation1 [shape = 'u32[144,128]{1,0:T(1,128)}', space=vmem, size = 0x12000, scoped, tag = 'internal scratch']
  %s0 = inlined_call_operand.vmem [shape: bf16[4,128,128], index: 0, kind: input, shape index: {}]
  %s1 = inlined_call_operand.vmem [shape: bf16[128,384], index: 1, kind: input, shape index: {}]
  %s2 = inlined_call_operand.hbm [shape: bf16[128,128], index: 2, kind: input, shape index: {}]
  %s3 = inlined_call_operand.vmem [shape: bf16[128,512], index: 3, kind: input, shape index: {}]
  %s4 = inlined_call_operand.vmem [shape: bf16[512,128], index: 4, kind: input, shape index: {}]
  %s5 = inlined_call_operand.vmem [shape: bf16[128,128], index: 5, kind: input, shape index: {}]
  %s6 = inlined_call_operand.hbm [shape: f32[10,128], index: 6, kind: input, shape index: {}]
  %s7 = inlined_call_operand.vmem [shape: f32[1,512], index: 7, kind: input, shape index: {}]
  %s8 = inlined_call_operand.hbm [shape: bf16[4,128,128], index: 8, kind: output, shape index: {}]
  %s9 = sld [smem:[#allocation0]]
  $region73: #{_lambda_.1} parent=0
    _
  %s11 = ssub.s32 1, %s9
  %s12 = scalar_select 0, %s11, %s9
  $region1: #{_lambda_.1} parent=0
    #allocation2 [shape = 'u8[32768]{0}', space=vmem, size = 0x8000, scoped, tag = 'input window, operand 2, single buffered']
    #allocation3 [shape = 's32[2]{0}', space=sflag, size = 0x8, scoped, tag = 'scoped memory for _lambda_.1']
    #allocation4 [shape = 's32[2]{0}', space=sflag, size = 0x8, scoped, tag = 'scoped memory for _lambda_.1']
    #allocation5 [shape = 'u8[8192]{0}', space=vmem, size = 0x2000, scoped, tag = 'input window, operand 6, single buffered']
    #allocation6 [shape = 's32[1]{0}', space=sflag, size = 0x4, scoped, tag = 'scoped memory for _lambda_.1']
    #allocation7 [shape = 'u8[131072]{0}', space=vmem, size = 0x20000, scoped, tag = 'output window, operand 0']
    %13 = vsyncpa [#allocation3], 0
    %14 = vsyncpa [#allocation6], 0
    %15 = vsyncpa [#allocation4], 0
    %s16 = scalar_lea.sflag [#allocation4], 1
    %17 = vsyncpa %s16, 0
    loop: start=0, step=1, limit=4
    $region2: #{_lambda_.1} parent=1 // loop_pre_header
      _
    $region3: #{_lambda_.1} parent=1 // loop_header
      %s19 = sphi 0, %s23
      %p20 = scmp.ge.s32.totalorder %s19, 4
      %s29 = sphi 0, %s31
      %s32 = sphi 0, %s29
      %s33 = sphi 0, %s32
      %s49 = sphi 0, %s33
      %s53 = sphi 0, %s53
      %s55 = sphi 0, %s53
      %s56 = sphi 0, %s55
      %s70 = sphi 0, %s56
      %s74 = sphi 0, %s74
      %s76 = sphi 0, %s74
      %s77 = sphi 0, %s76
      %s91 = sphi 0, %s77
      %s95 = sphi 0, %s95
      %s97 = sphi 0, %s95
      %s98 = sphi 0, %s97
      %s112 = sphi 0, %s98
      %s116 = sphi 0, %s116
      %s118 = sphi 0, %s116
      %s119 = sphi 0, %s118
      %s133 = sphi 0, %s119
      %s137 = sphi 0, %s137
      %s139 = sphi 0, %s137
      %s140 = sphi 0, %s139
      %s154 = sphi 0, %s140
      %s158 = sphi 0, %s158
      %s160 = sphi 0, %s158
      %s161 = sphi 0, %s160
      %s175 = sphi 0, %s161
      %s179 = sphi 0, %s179
      %s181 = sphi 0, %s179
      %s182 = sphi 0, %s181
      %s196 = sphi 0, %s182
      %s202 = sphi 0, %s204
      %s205 = sphi 0, %s202
      %s206 = sphi 0, %s205
      %s222 = sphi 0, %s206
    $region4: #{_lambda_.1} parent=1 // loop_header_branch
      %22 = sbr.rel (%p20) target = $region8
    $region5: #{_lambda_.1} parent=1 // loop_body
      %s24 = ssub.s32 %s19, 1
      %s25 = ssub.s32 %s19, 2
      %s26 = sadd.s32 %s19, 1
      %s27 = ssub.s32 %s19, %s26
      %p28 = scmp.eq.s32.totalorder %s27, 0
      %s30 = sadd.s32 %s29, 1
      %s31 = scalar_select %p28, %s29, %s30
      %p34 = pneg %p28
      %p35 = scmp.eq.s32.totalorder %s19, 1
      %p36 = por %p34, %p35
      %p37 = scmp.ne.s32.totalorder %s29, %s32
      %p38 = scmp.eq.s32.totalorder %s19, 0
      %p39 = por %p37, %p38
      %p40 = scmp.ne.s32.totalorder %s29, %s32
      %p41 = scmp.eq.s32.totalorder %s24, 1
      %p42 = por %p40, %p41
      %p43 = scmp.ne.s32.totalorder %s32, %s33
      %p44 = scmp.eq.s32.totalorder %s24, 0
      %p45 = por %p43, %p44
      %p46 = scmp.ne.s32.totalorder %s32, %s33
      %p47 = scmp.eq.s32.totalorder %s25, 1
      %p48 = por %p46, %p47
      %p50 = scmp.ne.s32.totalorder %s33, %s49
      %p51 = scmp.eq.s32.totalorder %s25, 0
      %p52 = por %p50, %p51
      %s54 = sadd.s32 %s53, 1
      %p57 = scmp.eq.s32.totalorder %s19, 1
      %p58 = scmp.ne.s32.totalorder %s53, %s55
      %p59 = scmp.eq.s32.totalorder %s19, 0
      %p60 = por %p58, %p59
      %p61 = scmp.ne.s32.totalorder %s53, %s55
      %p62 = scmp.eq.s32.totalorder %s24, 1
      %p63 = por %p61, %p62
      %p64 = scmp.ne.s32.totalorder %s55, %s56
      %p65 = scmp.eq.s32.totalorder %s24, 0
      %p66 = por %p64, %p65
      %p67 = scmp.ne.s32.totalorder %s55, %s56
      %p68 = scmp.eq.s32.totalorder %s25, 1
      %p69 = por %p67, %p68
      %p71 = scmp.ne.s32.totalorder %s56, %s70
      %p72 = scmp.eq.s32.totalorder %s25, 0
      %p73 = por %p71, %p72
      %s75 = sadd.s32 %s74, 1
      %p78 = scmp.eq.s32.totalorder %s19, 1
      %p79 = scmp.ne.s32.totalorder %s74, %s76
      %p80 = scmp.eq.s32.totalorder %s19, 0
      %p81 = por %p79, %p80
      %p82 = scmp.ne.s32.totalorder %s74, %s76
      %p83 = scmp.eq.s32.totalorder %s24, 1
      %p84 = por %p82, %p83
      %p85 = scmp.ne.s32.totalorder %s76, %s77
      %p86 = scmp.eq.s32.totalorder %s24, 0
      %p87 = por %p85, %p86
      %p88 = scmp.ne.s32.totalorder %s76, %s77
      %p89 = scmp.eq.s32.totalorder %s25, 1
      %p90 = por %p88, %p89
      %p92 = scmp.ne.s32.totalorder %s77, %s91
      %p93 = scmp.eq.s32.totalorder %s25, 0
      %p94 = por %p92, %p93
      %s96 = sadd.s32 %s95, 1
      %p99 = scmp.eq.s32.totalorder %s19, 1
      %p100 = scmp.ne.s32.totalorder %s95, %s97
      %p101 = scmp.eq.s32.totalorder %s19, 0
      %p102 = por %p100, %p101
      %p103 = scmp.ne.s32.totalorder %s95, %s97
      %p104 = scmp.eq.s32.totalorder %s24, 1
      %p105 = por %p103, %p104
      %p106 = scmp.ne.s32.totalorder %s97, %s98
      %p107 = scmp.eq.s32.totalorder %s24, 0
      %p108 = por %p106, %p107
      %p109 = scmp.ne.s32.totalorder %s97, %s98
      %p110 = scmp.eq.s32.totalorder %s25, 1
      %p111 = por %p109, %p110
      %p113 = scmp.ne.s32.totalorder %s98, %s112
      %p114 = scmp.eq.s32.totalorder %s25, 0
      %p115 = por %p113, %p114
      %s117 = sadd.s32 %s116, 1
      %p120 = scmp.eq.s32.totalorder %s19, 1
      %p121 = scmp.ne.s32.totalorder %s116, %s118
      %p122 = scmp.eq.s32.totalorder %s19, 0
      %p123 = por %p121, %p122
      %p124 = scmp.ne.s32.totalorder %s116, %s118
      %p125 = scmp.eq.s32.totalorder %s24, 1
      %p126 = por %p124, %p125
      %p127 = scmp.ne.s32.totalorder %s118, %s119
      %p128 = scmp.eq.s32.totalorder %s24, 0
      %p129 = por %p127, %p128
      %p130 = scmp.ne.s32.totalorder %s118, %s119
      %p131 = scmp.eq.s32.totalorder %s25, 1
      %p132 = por %p130, %p131
      %p134 = scmp.ne.s32.totalorder %s119, %s133
      %p135 = scmp.eq.s32.totalorder %s25, 0
      %p136 = por %p134, %p135
      %s138 = sadd.s32 %s137, 1
      %p141 = scmp.eq.s32.totalorder %s19, 1
      %p142 = scmp.ne.s32.totalorder %s137, %s139
      %p143 = scmp.eq.s32.totalorder %s19, 0
      %p144 = por %p142, %p143
      %p145 = scmp.ne.s32.totalorder %s137, %s139
      %p146 = scmp.eq.s32.totalorder %s24, 1
      %p147 = por %p145, %p146
      %p148 = scmp.ne.s32.totalorder %s139, %s140
      %p149 = scmp.eq.s32.totalorder %s24, 0
      %p150 = por %p148, %p149
      %p151 = scmp.ne.s32.totalorder %s139, %s140
      %p152 = scmp.eq.s32.totalorder %s25, 1
      %p153 = por %p151, %p152
      %p155 = scmp.ne.s32.totalorder %s140, %s154
      %p156 = scmp.eq.s32.totalorder %s25, 0
      %p157 = por %p155, %p156
      %s159 = sadd.s32 %s158, 1
      %p162 = scmp.eq.s32.totalorder %s19, 1
      %p163 = scmp.ne.s32.totalorder %s158, %s160
      %p164 = scmp.eq.s32.totalorder %s19, 0
      %p165 = por %p163, %p164
      %p166 = scmp.ne.s32.totalorder %s158, %s160
      %p167 = scmp.eq.s32.totalorder %s24, 1
      %p168 = por %p166, %p167
      %p169 = scmp.ne.s32.totalorder %s160, %s161
      %p170 = scmp.eq.s32.totalorder %s24, 0
      %p171 = por %p169, %p170
      %p172 = scmp.ne.s32.totalorder %s160, %s161
      %p173 = scmp.eq.s32.totalorder %s25, 1
      %p174 = por %p172, %p173
      %p176 = scmp.ne.s32.totalorder %s161, %s175
      %p177 = scmp.eq.s32.totalorder %s25, 0
      %p178 = por %p176, %p177
      %s180 = sadd.s32 %s179, 1
      %p183 = scmp.eq.s32.totalorder %s19, 1
      %p184 = scmp.ne.s32.totalorder %s179, %s181
      %p185 = scmp.eq.s32.totalorder %s19, 0
      %p186 = por %p184, %p185
      %p187 = scmp.ne.s32.totalorder %s179, %s181
      %p188 = scmp.eq.s32.totalorder %s24, 1
      %p189 = por %p187, %p188
      %p190 = scmp.ne.s32.totalorder %s181, %s182
      %p191 = scmp.eq.s32.totalorder %s24, 0
      %p192 = por %p190, %p191
      %p193 = scmp.ne.s32.totalorder %s181, %s182
      %p194 = scmp.eq.s32.totalorder %s25, 1
      %p195 = por %p193, %p194
      %p197 = scmp.ne.s32.totalorder %s182, %s196
      %p198 = scmp.eq.s32.totalorder %s25, 0
      %p199 = por %p197, %p198
      %s200 = ssub.s32 %s19, %s26
      %p201 = scmp.eq.s32.totalorder %s200, 0
      %s203 = sadd.s32 %s202, 1
      %s204 = scalar_select %p201, %s202, %s203
      %p207 = pneg %p201
      %p208 = scmp.eq.s32.totalorder %s19, 1
      %p209 = por %p207, %p208
      %p210 = scmp.ne.s32.totalorder %s202, %s205
      %p211 = scmp.eq.s32.totalorder %s19, 0
      %p212 = por %p210, %p211
      %p213 = scmp.ne.s32.totalorder %s202, %s205
      %p214 = scmp.eq.s32.totalorder %s24, 1
      %p215 = por %p213, %p214
      %p216 = scmp.ne.s32.totalorder %s205, %s206
      %p217 = scmp.eq.s32.totalorder %s24, 0
      %p218 = por %p216, %p217
      %p219 = scmp.ne.s32.totalorder %s205, %s206
      %p220 = scmp.eq.s32.totalorder %s25, 1
      %p221 = por %p219, %p220
      %p223 = scmp.ne.s32.totalorder %s206, %s222
      %p224 = scmp.eq.s32.totalorder %s25, 0
      %p225 = por %p223, %p224
      %p226 = scmp.le.s32.totalorder 1, %s19
      %p227 = scmp.lt.s32.totalorder %s19, 3
      %p228 = pnand %p226, %p227
      %p229 = pneg %p228
      // Predicated region
      $region9: #{_lambda_.1} parent=5 // pred_check
        _
      $region10: #{_lambda_.1} parent=5 // pred_check_branch
        %231 = sbr.rel (%p228) target = $region12
      $region11: #{_lambda_.1} parent=5 // pred_region
        %s232 = ssub.s32 %s19, 1
        // Predicated region
        $region13: #{_lambda_.1} parent=11 // pred_check
          %p233 = pneg %p66
        $region14: #{_lambda_.1} parent=11 // pred_check_branch
          %235 = sbr.rel (%p233) target = $region16
        $region15: #{_lambda_.1} parent=11 // pred_region
          _
        $region16: #{_lambda_.1} parent=11 // pred_fallthru
          _
        // Predicated region
        $region17: #{_lambda_.1} parent=11 // pred_check
          %p236 = pneg %p87
        $region18: #{_lambda_.1} parent=11 // pred_check_branch
          %238 = sbr.rel (%p236) target = $region20
        $region19: #{_lambda_.1} parent=11 // pred_region
          %s240 = ssub.s32 1024, 1024
          %241 = vsyncadd [#allocation3], %s240
          %s242 = sshll.u32 [#allocation2], 4
          %s243 = int_to_ptr.vmem [resolvable:$true] %s242
          %248 = dma.hbm_to_vmem [thread:$0]  %s2, 1024, %s243, [#allocation3], 64, 64, 4
        $region20: #{_lambda_.1} parent=11 // pred_fallthru
          _
        // Predicated region
        $region21: #{_lambda_.1} parent=11 // pred_check
          %p249 = pneg %p108
        $region22: #{_lambda_.1} parent=11 // pred_check_branch
          %251 = sbr.rel (%p249) target = $region24
        $region23: #{_lambda_.1} parent=11 // pred_region
          _
        $region24: #{_lambda_.1} parent=11 // pred_fallthru
          _
        // Predicated region
        $region25: #{_lambda_.1} parent=11 // pred_check
          %p252 = pneg %p129
        $region26: #{_lambda_.1} parent=11 // pred_check_branch
          %254 = sbr.rel (%p252) target = $region28
        $region27: #{_lambda_.1} parent=11 // pred_region
          _
        $region28: #{_lambda_.1} parent=11 // pred_fallthru
          _
        // Predicated region
        $region29: #{_lambda_.1} parent=11 // pred_check
          %p255 = pneg %p150
        $region30: #{_lambda_.1} parent=11 // pred_check_branch
          %257 = sbr.rel (%p255) target = $region32
        $region31: #{_lambda_.1} parent=11 // pred_region
          _
        $region32: #{_lambda_.1} parent=11 // pred_fallthru
          _
        // Predicated region
        $region33: #{_lambda_.1} parent=11 // pred_check
          %p258 = pneg %p171
        $region34: #{_lambda_.1} parent=11 // pred_check_branch
          %260 = sbr.rel (%p258) target = $region36
        $region35: #{_lambda_.1} parent=11 // pred_region
          %s262 = ssub.s32 256, 256
          %263 = vsyncadd [#allocation6], %s262
          %s264 = sshll.u32 [#allocation5], 4
          %s265 = int_to_ptr.vmem [resolvable:$true] %s264
          %270 = dma.hbm_to_vmem [thread:$0]  %s6, 256, %s265, [#allocation6], 128, 128, 8
        $region36: #{_lambda_.1} parent=11 // pred_fallthru
          _
        // Predicated region
        $region37: #{_lambda_.1} parent=11 // pred_check
          %p271 = pneg %p192
        $region38: #{_lambda_.1} parent=11 // pred_check_branch
          %273 = sbr.rel (%p271) target = $region40
        $region39: #{_lambda_.1} parent=11 // pred_region
          _
        $region40: #{_lambda_.1} parent=11 // pred_fallthru
          _
      $region12: #{_lambda_.1} parent=5 // pred_fallthru
        _
      %p274 = scmp.lt.s32.totalorder %s19, 2
      // Predicated region
      $region41: #{_lambda_.1} parent=5 // pred_check
        %p275 = pneg %p274
      $region42: #{_lambda_.1} parent=5 // pred_check_branch
        %277 = sbr.rel (%p275) target = $region44
      $region43: #{_lambda_.1} parent=5 // pred_region
        // Predicated region
        $region45: #{_lambda_.1} parent=43 // pred_check
          %p278 = pneg %p39
        $region46: #{_lambda_.1} parent=43 // pred_check_branch
          %280 = sbr.rel (%p278) target = $region48
        $region47: #{_lambda_.1} parent=43 // pred_region
          %s281 = smul.u32 2, %s19
          %p282 = scmp.lt.s32.totalorder %s281, 3
          %s283 = scalar_select %p282, %s281, 3
          %s284 = smul.addr %s283, 16
          %s285 = smul.addr %s284, 4
          %s286 = scalar_lea.vmem %s0, %s285
          %s287 = smul.u32 2, %s19
        $region48: #{_lambda_.1} parent=43 // pred_fallthru
          _
      $region44: #{_lambda_.1} parent=5 // pred_fallthru
        _
      %p288 = scmp.le.s32.totalorder 1, %s19
      %p289 = scmp.lt.s32.totalorder %s19, 3
      %p290 = pnand %p288, %p289
      %p291 = pneg %p290
      // Predicated region
      $region49: #{_lambda_.1} parent=5 // pred_check
        _
      $region50: #{_lambda_.1} parent=5 // pred_check_branch
        %293 = sbr.rel (%p290) target = $region52
      $region51: #{_lambda_.1} parent=5 // pred_region
        %s294 = ssub.s32 %s19, 1
        // Predicated region
        $region53: #{_lambda_.1} parent=51 // pred_check
          %p295 = pneg %p87
        $region54: #{_lambda_.1} parent=51 // pred_check_branch
          %297 = sbr.rel (%p295) target = $region56
        $region55: #{_lambda_.1} parent=51 // pred_region
          %298 = dma.done [#allocation3], 1024
        $region56: #{_lambda_.1} parent=51 // pred_fallthru
          _
        // Predicated region
        $region57: #{_lambda_.1} parent=51 // pred_check
          %p299 = pneg %p171
        $region58: #{_lambda_.1} parent=51 // pred_check_branch
          %301 = sbr.rel (%p299) target = $region60
        $region59: #{_lambda_.1} parent=51 // pred_region
          %302 = dma.done [#allocation6], 256
        $region60: #{_lambda_.1} parent=51 // pred_fallthru
          _
        %s303 = smul.u32 2, %s24
        %p304 = scmp.lt.s32.totalorder %s303, 3
        %s305 = scalar_select %p304, %s303, 3
        %s306 = smul.addr %s305, 16
        %s307 = smul.addr %s306, 4
        %s308 = scalar_lea.vmem %s0, %s307
        %p309 = pneg %p45
        %p310 = pneg %p42
        %p311 = pneg %p66
        %p312 = pneg %p63
        %p313 = pneg %p87
        %p314 = pneg %p84
        %p315 = pneg %p108
        %p316 = pneg %p105
        %p317 = pneg %p129
        %p318 = pneg %p126
        %p319 = pneg %p150
        %p320 = pneg %p147
        %p321 = pneg %p171
        %p322 = pneg %p168
        %p323 = pneg %p192
        %p324 = pneg %p189
        %p325 = pneg %p218
        %p326 = pneg %p215
        %s327 = sand.u32 %s205, 1
        %s328 = scalar_lea.sflag [#allocation4], %s327
        %s329 = sand.u32 %s205, 1
        %s330 = smul.addr %s329, 128
        %s331 = scalar_lea.vmem [#allocation7], %s330
        %s332 = smul.u32 2, %s24
        %p333 = scmp.lt.s32.totalorder %s332, 3
        %s334 = scalar_select %p333, %s332, 3
        %s335 = smul.addr %s334, 16
        %s336 = smul.addr %s335, 4
        %s337 = scalar_lea.vmem %s0, %s336
        %s338 = smul.u32 2, %s24
        %s339 = smul.u32 2, %s24
        %v341 = vld [vmem:[%s337] sm:$0xf]
        %v342 = vld [vmem:[%s337 + $0x4] sm:$0xf]
        %v343 = vld [vmem:[%s337 + $0x8] sm:$0xf]
        %v344 = vld [vmem:[%s337 + $0xc] sm:$0xf]
        %v345 = vld [vmem:[%s337 + $0x10] sm:$0xf]
        %v346 = vld [vmem:[%s337 + $0x14] sm:$0xf]
        %v347 = vld [vmem:[%s337 + $0x18] sm:$0xf]
        %v348 = vld [vmem:[%s337 + $0x1c] sm:$0xf]
        %v349 = vld [vmem:[%s337 + $0x20] sm:$0xf]
        %v350 = vld [vmem:[%s337 + $0x24] sm:$0xf]
        %v351 = vld [vmem:[%s337 + $0x28] sm:$0xf]
        %v352 = vld [vmem:[%s337 + $0x2c] sm:$0xf]
        %v353 = vld [vmem:[%s337 + $0x30] sm:$0xf]
        %v354 = vld [vmem:[%s337 + $0x34] sm:$0xf]
        %v355 = vld [vmem:[%s337 + $0x38] sm:$0xf]
        %v356 = vld [vmem:[%s337 + $0x3c] sm:$0xf]
        %v357 = vld [vmem:[%s337 + $0x40] sm:$0xf]
        %v358 = vld [vmem:[%s337 + $0x44] sm:$0xf]
        %v359 = vld [vmem:[%s337 + $0x48] sm:$0xf]
        %v360 = vld [vmem:[%s337 + $0x4c] sm:$0xf]
        %v361 = vld [vmem:[%s337 + $0x50] sm:$0xf]
        %v362 = vld [vmem:[%s337 + $0x54] sm:$0xf]
        %v363 = vld [vmem:[%s337 + $0x58] sm:$0xf]
        %v364 = vld [vmem:[%s337 + $0x5c] sm:$0xf]
        %v365 = vld [vmem:[%s337 + $0x60] sm:$0xf]
        %v366 = vld [vmem:[%s337 + $0x64] sm:$0xf]
        %v367 = vld [vmem:[%s337 + $0x68] sm:$0xf]
        %v368 = vld [vmem:[%s337 + $0x6c] sm:$0xf]
        %v369 = vld [vmem:[%s337 + $0x70] sm:$0xf]
        %v370 = vld [vmem:[%s337 + $0x74] sm:$0xf]
        %v371 = vld [vmem:[%s337 + $0x78] sm:$0xf]
        %v372 = vld [vmem:[%s337 + $0x7c] sm:$0xf]
        %v373 = vunpack.c.l.bf16 %v341
        %v374 = vunpack.c.l.bf16 %v342
        %v375 = vunpack.c.l.bf16 %v343
        %v376 = vunpack.c.l.bf16 %v344
        %v377 = vunpack.c.l.bf16 %v345
        %v378 = vunpack.c.l.bf16 %v346
        %v379 = vunpack.c.l.bf16 %v347
        %v380 = vunpack.c.l.bf16 %v348
        %v381 = vunpack.c.l.bf16 %v349
        %v382 = vunpack.c.l.bf16 %v350
        %v383 = vunpack.c.l.bf16 %v351
        %v384 = vunpack.c.l.bf16 %v352
        %v385 = vunpack.c.l.bf16 %v353
        %v386 = vunpack.c.l.bf16 %v354
        %v387 = vunpack.c.l.bf16 %v355
        %v388 = vunpack.c.l.bf16 %v356
        %v389 = vunpack.c.l.bf16 %v357
        %v390 = vunpack.c.l.bf16 %v358
        %v391 = vunpack.c.l.bf16 %v359
        %v392 = vunpack.c.l.bf16 %v360
        %v393 = vunpack.c.l.bf16 %v361
        %v394 = vunpack.c.l.bf16 %v362
        %v395 = vunpack.c.l.bf16 %v363
        %v396 = vunpack.c.l.bf16 %v364
        %v397 = vunpack.c.l.bf16 %v365
        %v398 = vunpack.c.l.bf16 %v366
        %v399 = vunpack.c.l.bf16 %v367
        %v400 = vunpack.c.l.bf16 %v368
        %v401 = vunpack.c.l.bf16 %v369
        %v402 = vunpack.c.l.bf16 %v370
        %v403 = vunpack.c.l.bf16 %v371
        %v404 = vunpack.c.l.bf16 %v372
        %v405 = vld [vmem:[#allocation5] sm:$0xff]
        %v406 = vld [vmem:[#allocation5 + $0x8] sm:$0x3]
        %v407 = vld [vmem:[%s7] sm:$0xf]
        %408 = vadd.xlane.f32.xlu0 %v373
        %v409 = vpop.xlane.xlu0 %408
        %410 = vadd.xlane.f32.xlu0 %v374
        %v411 = vpop.xlane.xlu0 %410
        %412 = vadd.xlane.f32.xlu0 %v375
        %v413 = vpop.xlane.xlu0 %412
        %414 = vadd.xlane.f32.xlu0 %v376
        %v415 = vpop.xlane.xlu0 %414
        %416 = vadd.xlane.f32.xlu0 %v377
        %v417 = vpop.xlane.xlu0 %416
        %418 = vadd.xlane.f32.xlu0 %v378
        %v419 = vpop.xlane.xlu0 %418
        %420 = vadd.xlane.f32.xlu0 %v379
        %v421 = vpop.xlane.xlu0 %420
        %422 = vadd.xlane.f32.xlu0 %v380
        %v423 = vpop.xlane.xlu0 %422
        %424 = vadd.xlane.f32.xlu0 %v381
        %v425 = vpop.xlane.xlu0 %424
        %426 = vadd.xlane.f32.xlu0 %v382
        %v427 = vpop.xlane.xlu0 %426
        %428 = vadd.xlane.f32.xlu0 %v383
        %v429 = vpop.xlane.xlu0 %428
        %430 = vadd.xlane.f32.xlu0 %v384
        %v431 = vpop.xlane.xlu0 %430
        %432 = vadd.xlane.f32.xlu0 %v385
        %v433 = vpop.xlane.xlu0 %432
        %434 = vadd.xlane.f32.xlu0 %v386
        %v435 = vpop.xlane.xlu0 %434
        %436 = vadd.xlane.f32.xlu0 %v387
        %v437 = vpop.xlane.xlu0 %436
        %438 = vadd.xlane.f32.xlu0 %v388
        %v439 = vpop.xlane.xlu0 %438
        %440 = vadd.xlane.f32.xlu0 %v389
        %v441 = vpop.xlane.xlu0 %440
        %442 = vadd.xlane.f32.xlu0 %v390
        %v443 = vpop.xlane.xlu0 %442
        %444 = vadd.xlane.f32.xlu0 %v391
        %v445 = vpop.xlane.xlu0 %444
        %446 = vadd.xlane.f32.xlu0 %v392
        %v447 = vpop.xlane.xlu0 %446
        %448 = vadd.xlane.f32.xlu0 %v393
        %v449 = vpop.xlane.xlu0 %448
        %450 = vadd.xlane.f32.xlu0 %v394
        %v451 = vpop.xlane.xlu0 %450
        %452 = vadd.xlane.f32.xlu0 %v395
        %v453 = vpop.xlane.xlu0 %452
        %454 = vadd.xlane.f32.xlu0 %v396
        %v455 = vpop.xlane.xlu0 %454
        %456 = vadd.xlane.f32.xlu0 %v397
        %v457 = vpop.xlane.xlu0 %456
        %458 = vadd.xlane.f32.xlu0 %v398
        %v459 = vpop.xlane.xlu0 %458
        %460 = vadd.xlane.f32.xlu0 %v399
        %v461 = vpop.xlane.xlu0 %460
        %462 = vadd.xlane.f32.xlu0 %v400
        %v463 = vpop.xlane.xlu0 %462
        %464 = vadd.xlane.f32.xlu0 %v401
        %v465 = vpop.xlane.xlu0 %464
        %466 = vadd.xlane.f32.xlu0 %v402
        %v467 = vpop.xlane.xlu0 %466
        %468 = vadd.xlane.f32.xlu0 %v403
        %v469 = vpop.xlane.xlu0 %468
        %470 = vadd.xlane.f32.xlu0 %v404
        %v471 = vpop.xlane.xlu0 %470
        %v472 = vrcp.pop 128.0
        %v473 = vmul.f32 %v409, %v472
        %v474 = vmul.f32 %v411, %v472
        %v475 = vmul.f32 %v413, %v472
        %v476 = vmul.f32 %v415, %v472
        %v477 = vmul.f32 %v417, %v472
        %v478 = vmul.f32 %v419, %v472
        %v479 = vmul.f32 %v421, %v472
        %v480 = vmul.f32 %v423, %v472
        %v481 = vmul.f32 %v425, %v472
        %v482 = vmul.f32 %v427, %v472
        %v483 = vmul.f32 %v429, %v472
        %v484 = vmul.f32 %v431, %v472
        %v485 = vmul.f32 %v433, %v472
        %v486 = vmul.f32 %v435, %v472
        %v487 = vmul.f32 %v437, %v472
        %v488 = vmul.f32 %v439, %v472
        %v489 = vmul.f32 %v441, %v472
        %v490 = vmul.f32 %v443, %v472
        %v491 = vmul.f32 %v445, %v472
        %v492 = vmul.f32 %v447, %v472
        %v493 = vmul.f32 %v449, %v472
        %v494 = vmul.f32 %v451, %v472
        %v495 = vmul.f32 %v453, %v472
        %v496 = vmul.f32 %v455, %v472
        %v497 = vmul.f32 %v457, %v472
        %v498 = vmul.f32 %v459, %v472
        %v499 = vmul.f32 %v461, %v472
        %v500 = vmul.f32 %v463, %v472
        %v501 = vmul.f32 %v465, %v472
        %v502 = vmul.f32 %v467, %v472
        %v503 = vmul.f32 %v469, %v472
        %v504 = vmul.f32 %v471, %v472
        %v505 = vmul.f32 %v373, %v373
        %v506 = vmul.f32 %v374, %v374
        %v507 = vmul.f32 %v375, %v375
        %v508 = vmul.f32 %v376, %v376
        %v509 = vmul.f32 %v377, %v377
        %v510 = vmul.f32 %v378, %v378
        %v511 = vmul.f32 %v379, %v379
        %v512 = vmul.f32 %v380, %v380
        %v513 = vmul.f32 %v381, %v381
        %v514 = vmul.f32 %v382, %v382
        %v515 = vmul.f32 %v383, %v383
        %v516 = vmul.f32 %v384, %v384
        %v517 = vmul.f32 %v385, %v385
        %v518 = vmul.f32 %v386, %v386
        %v519 = vmul.f32 %v387, %v387
        %v520 = vmul.f32 %v388, %v388
        %v521 = vmul.f32 %v389, %v389
        %v522 = vmul.f32 %v390, %v390
        %v523 = vmul.f32 %v391, %v391
        %v524 = vmul.f32 %v392, %v392
        %v525 = vmul.f32 %v393, %v393
        %v526 = vmul.f32 %v394, %v394
        %v527 = vmul.f32 %v395, %v395
        %v528 = vmul.f32 %v396, %v396
        %v529 = vmul.f32 %v397, %v397
        %v530 = vmul.f32 %v398, %v398
        %v531 = vmul.f32 %v399, %v399
        %v532 = vmul.f32 %v400, %v400
        %v533 = vmul.f32 %v401, %v401
        %v534 = vmul.f32 %v402, %v402
        %v535 = vmul.f32 %v403, %v403
        %v536 = vmul.f32 %v404, %v404
        %537 = vadd.xlane.f32.xlu0 %v505
        %v538 = vpop.xlane.xlu0 %537
        %539 = vadd.xlane.f32.xlu0 %v506
        %v540 = vpop.xlane.xlu0 %539
        %541 = vadd.xlane.f32.xlu0 %v507
        %v542 = vpop.xlane.xlu0 %541
        %543 = vadd.xlane.f32.xlu0 %v508
        %v544 = vpop.xlane.xlu0 %543
        %545 = vadd.xlane.f32.xlu0 %v509
        %v546 = vpop.xlane.xlu0 %545
        %547 = vadd.xlane.f32.xlu0 %v510
        %v548 = vpop.xlane.xlu0 %547
        %549 = vadd.xlane.f32.xlu0 %v511
        %v550 = vpop.xlane.xlu0 %549
        %551 = vadd.xlane.f32.xlu0 %v512
        %v552 = vpop.xlane.xlu0 %551
        %553 = vadd.xlane.f32.xlu0 %v513
        %v554 = vpop.xlane.xlu0 %553
        %555 = vadd.xlane.f32.xlu0 %v514
        %v556 = vpop.xlane.xlu0 %555
        %557 = vadd.xlane.f32.xlu0 %v515
        %v558 = vpop.xlane.xlu0 %557
        %559 = vadd.xlane.f32.xlu0 %v516
        %v560 = vpop.xlane.xlu0 %559
        %561 = vadd.xlane.f32.xlu0 %v517
        %v562 = vpop.xlane.xlu0 %561
        %563 = vadd.xlane.f32.xlu0 %v518
        %v564 = vpop.xlane.xlu0 %563
        %565 = vadd.xlane.f32.xlu0 %v519
        %v566 = vpop.xlane.xlu0 %565
        %567 = vadd.xlane.f32.xlu0 %v520
        %v568 = vpop.xlane.xlu0 %567
        %569 = vadd.xlane.f32.xlu0 %v521
        %v570 = vpop.xlane.xlu0 %569
        %571 = vadd.xlane.f32.xlu0 %v522
        %v572 = vpop.xlane.xlu0 %571
        %573 = vadd.xlane.f32.xlu0 %v523
        %v574 = vpop.xlane.xlu0 %573
        %575 = vadd.xlane.f32.xlu0 %v524
        %v576 = vpop.xlane.xlu0 %575
        %577 = vadd.xlane.f32.xlu0 %v525
        %v578 = vpop.xlane.xlu0 %577
        %579 = vadd.xlane.f32.xlu0 %v526
        %v580 = vpop.xlane.xlu0 %579
        %581 = vadd.xlane.f32.xlu0 %v527
        %v582 = vpop.xlane.xlu0 %581
        %583 = vadd.xlane.f32.xlu0 %v528
        %v584 = vpop.xlane.xlu0 %583
        %585 = vadd.xlane.f32.xlu0 %v529
        %v586 = vpop.xlane.xlu0 %585
        %587 = vadd.xlane.f32.xlu0 %v530
        %v588 = vpop.xlane.xlu0 %587
        %589 = vadd.xlane.f32.xlu0 %v531
        %v590 = vpop.xlane.xlu0 %589
        %591 = vadd.xlane.f32.xlu0 %v532
        %v592 = vpop.xlane.xlu0 %591
        %593 = vadd.xlane.f32.xlu0 %v533
        %v594 = vpop.xlane.xlu0 %593
        %595 = vadd.xlane.f32.xlu0 %v534
        %v596 = vpop.xlane.xlu0 %595
        %597 = vadd.xlane.f32.xlu0 %v535
        %v598 = vpop.xlane.xlu0 %597
        %599 = vadd.xlane.f32.xlu0 %v536
        %v600 = vpop.xlane.xlu0 %599
        %v601 = vmul.f32 %v538, %v472
        %v602 = vmul.f32 %v540, %v472
        %v603 = vmul.f32 %v542, %v472
        %v604 = vmul.f32 %v544, %v472
        %v605 = vmul.f32 %v546, %v472
        %v606 = vmul.f32 %v548, %v472
        %v607 = vmul.f32 %v550, %v472
        %v608 = vmul.f32 %v552, %v472
        %v609 = vmul.f32 %v554, %v472
        %v610 = vmul.f32 %v556, %v472
        %v611 = vmul.f32 %v558, %v472
        %v612 = vmul.f32 %v560, %v472
        %v613 = vmul.f32 %v562, %v472
        %v614 = vmul.f32 %v564, %v472
        %v615 = vmul.f32 %v566, %v472
        %v616 = vmul.f32 %v568, %v472
        %v617 = vmul.f32 %v570, %v472
        %v618 = vmul.f32 %v572, %v472
        %v619 = vmul.f32 %v574, %v472
        %v620 = vmul.f32 %v576, %v472
        %v621 = vmul.f32 %v578, %v472
        %v622 = vmul.f32 %v580, %v472
        %v623 = vmul.f32 %v582, %v472
        %v624 = vmul.f32 %v584, %v472
        %v625 = vmul.f32 %v586, %v472
        %v626 = vmul.f32 %v588, %v472
        %v627 = vmul.f32 %v590, %v472
        %v628 = vmul.f32 %v592, %v472
        %v629 = vmul.f32 %v594, %v472
        %v630 = vmul.f32 %v596, %v472
        %v631 = vmul.f32 %v598, %v472
        %v632 = vmul.f32 %v600, %v472
        %v633 = vsub.f32 %v373, %v473
        %v634 = vsub.f32 %v374, %v474
        %v635 = vsub.f32 %v375, %v475
        %v636 = vsub.f32 %v376, %v476
        %v637 = vsub.f32 %v377, %v477
        %v638 = vsub.f32 %v378, %v478
        %v639 = vsub.f32 %v379, %v479
        %v640 = vsub.f32 %v380, %v480
        %v641 = vsub.f32 %v381, %v481
        %v642 = vsub.f32 %v382, %v482
        %v643 = vsub.f32 %v383, %v483
        %v644 = vsub.f32 %v384, %v484
        %v645 = vsub.f32 %v385, %v485
        %v646 = vsub.f32 %v386, %v486
        %v647 = vsub.f32 %v387, %v487
        %v648 = vsub.f32 %v388, %v488
        %v649 = vsub.f32 %v389, %v489
        %v650 = vsub.f32 %v390, %v490
        %v651 = vsub.f32 %v391, %v491
        %v652 = vsub.f32 %v392, %v492
        %v653 = vsub.f32 %v393, %v493
        %v654 = vsub.f32 %v394, %v494
        %v655 = vsub.f32 %v395, %v495
        %v656 = vsub.f32 %v396, %v496
        %v657 = vsub.f32 %v397, %v497
        %v658 = vsub.f32 %v398, %v498
        %v659 = vsub.f32 %v399, %v499
        %v660 = vsub.f32 %v400, %v500
        %v661 = vsub.f32 %v401, %v501
        %v662 = vsub.f32 %v402, %v502
        %v663 = vsub.f32 %v403, %v503
        %v664 = vsub.f32 %v404, %v504
        %v665 = vmul.f32 %v473, %v473
        %v666 = vmul.f32 %v474, %v474
        %v667 = vmul.f32 %v475, %v475
        %v668 = vmul.f32 %v476, %v476
        %v669 = vmul.f32 %v477, %v477
        %v670 = vmul.f32 %v478, %v478
        %v671 = vmul.f32 %v479, %v479
        %v672 = vmul.f32 %v480, %v480
        %v673 = vmul.f32 %v481, %v481
        %v674 = vmul.f32 %v482, %v482
        %v675 = vmul.f32 %v483, %v483
        %v676 = vmul.f32 %v484, %v484
        %v677 = vmul.f32 %v485, %v485
        %v678 = vmul.f32 %v486, %v486
        %v679 = vmul.f32 %v487, %v487
        %v680 = vmul.f32 %v488, %v488
        %v681 = vmul.f32 %v489, %v489
        %v682 = vmul.f32 %v490, %v490
        %v683 = vmul.f32 %v491, %v491
        %v684 = vmul.f32 %v492, %v492
        %v685 = vmul.f32 %v493, %v493
        %v686 = vmul.f32 %v494, %v494
        %v687 = vmul.f32 %v495, %v495
        %v688 = vmul.f32 %v496, %v496
        %v689 = vmul.f32 %v497, %v497
        %v690 = vmul.f32 %v498, %v498
        %v691 = vmul.f32 %v499, %v499
        %v692 = vmul.f32 %v500, %v500
        %v693 = vmul.f32 %v501, %v501
        %v694 = vmul.f32 %v502, %v502
        %v695 = vmul.f32 %v503, %v503
        %v696 = vmul.f32 %v504, %v504
        %v697 = vsub.f32 %v601, %v665
        %v698 = vsub.f32 %v602, %v666
        %v699 = vsub.f32 %v603, %v667
        %v700 = vsub.f32 %v604, %v668
        %v701 = vsub.f32 %v605, %v669
        %v702 = vsub.f32 %v606, %v670
        %v703 = vsub.f32 %v607, %v671
        %v704 = vsub.f32 %v608, %v672
        %v705 = vsub.f32 %v609, %v673
        %v706 = vsub.f32 %v610, %v674
        %v707 = vsub.f32 %v611, %v675
        %v708 = vsub.f32 %v612, %v676
        %v709 = vsub.f32 %v613, %v677
        %v710 = vsub.f32 %v614, %v678
        %v711 = vsub.f32 %v615, %v679
        %v712 = vsub.f32 %v616, %v680
        %v713 = vsub.f32 %v617, %v681
        %v714 = vsub.f32 %v618, %v682
        %v715 = vsub.f32 %v619, %v683
        %v716 = vsub.f32 %v620, %v684
        %v717 = vsub.f32 %v621, %v685
        %v718 = vsub.f32 %v622, %v686
        %v719 = vsub.f32 %v623, %v687
        %v720 = vsub.f32 %v624, %v688
        %v721 = vsub.f32 %v625, %v689
        %v722 = vsub.f32 %v626, %v690
        %v723 = vsub.f32 %v627, %v691
        %v724 = vsub.f32 %v628, %v692
        %v725 = vsub.f32 %v629, %v693
        %v726 = vsub.f32 %v630, %v694
        %v727 = vsub.f32 %v631, %v695
        %v728 = vsub.f32 %v632, %v696
        %v729 = vadd.f32 %v697, 1e-05
        %v730 = vadd.f32 %v698, 1e-05
        %v731 = vadd.f32 %v699, 1e-05
        %v732 = vadd.f32 %v700, 1e-05
        %v733 = vadd.f32 %v701, 1e-05
        %v734 = vadd.f32 %v702, 1e-05
        %v735 = vadd.f32 %v703, 1e-05
        %v736 = vadd.f32 %v704, 1e-05
        %v737 = vadd.f32 %v705, 1e-05
        %v738 = vadd.f32 %v706, 1e-05
        %v739 = vadd.f32 %v707, 1e-05
        %v740 = vadd.f32 %v708, 1e-05
        %v741 = vadd.f32 %v709, 1e-05
        %v742 = vadd.f32 %v710, 1e-05
        %v743 = vadd.f32 %v711, 1e-05
        %v744 = vadd.f32 %v712, 1e-05
        %v745 = vadd.f32 %v713, 1e-05
        %v746 = vadd.f32 %v714, 1e-05
        %v747 = vadd.f32 %v715, 1e-05
        %v748 = vadd.f32 %v716, 1e-05
        %v749 = vadd.f32 %v717, 1e-05
        %v750 = vadd.f32 %v718, 1e-05
        %v751 = vadd.f32 %v719, 1e-05
        %v752 = vadd.f32 %v720, 1e-05
        %v753 = vadd.f32 %v721, 1e-05
        %v754 = vadd.f32 %v722, 1e-05
        %v755 = vadd.f32 %v723, 1e-05
        %v756 = vadd.f32 %v724, 1e-05
        %v757 = vadd.f32 %v725, 1e-05
        %v758 = vadd.f32 %v726, 1e-05
        %v759 = vadd.f32 %v727, 1e-05
        %v760 = vadd.f32 %v728, 1e-05
        %v761 = vrsqrt.pop %v729
        %v762 = vrsqrt.pop %v730
        %v763 = vrsqrt.pop %v731
        %v764 = vrsqrt.pop %v732
        %v765 = vrsqrt.pop %v733
        %v766 = vrsqrt.pop %v734
        %v767 = vrsqrt.pop %v735
        %v768 = vrsqrt.pop %v736
        %v769 = vrsqrt.pop %v737
        %v770 = vrsqrt.pop %v738
        %v771 = vrsqrt.pop %v739
        %v772 = vrsqrt.pop %v740
        %v773 = vrsqrt.pop %v741
        %v774 = vrsqrt.pop %v742
        %v775 = vrsqrt.pop %v743
        %v776 = vrsqrt.pop %v744
        %v777 = vrsqrt.pop %v745
        %v778 = vrsqrt.pop %v746
        %v779 = vrsqrt.pop %v747
        %v780 = vrsqrt.pop %v748
        %v781 = vrsqrt.pop %v749
        %v782 = vrsqrt.pop %v750
        %v783 = vrsqrt.pop %v751
        %v784 = vrsqrt.pop %v752
        %v785 = vrsqrt.pop %v753
        %v786 = vrsqrt.pop %v754
        %v787 = vrsqrt.pop %v755
        %v788 = vrsqrt.pop %v756
        %v789 = vrsqrt.pop %v757
        %v790 = vrsqrt.pop %v758
        %v791 = vrsqrt.pop %v759
        %v792 = vrsqrt.pop %v760
        %v793 = vmul.f32 %v633, %v761
        %v794 = vmul.f32 %v634, %v762
        %v795 = vmul.f32 %v635, %v763
        %v796 = vmul.f32 %v636, %v764
        %v797 = vmul.f32 %v637, %v765
        %v798 = vmul.f32 %v638, %v766
        %v799 = vmul.f32 %v639, %v767
        %v800 = vmul.f32 %v640, %v768
        %v801 = vmul.f32 %v641, %v769
        %v802 = vmul.f32 %v642, %v770
        %v803 = vmul.f32 %v643, %v771
        %v804 = vmul.f32 %v644, %v772
        %v805 = vmul.f32 %v645, %v773
        %v806 = vmul.f32 %v646, %v774
        %v807 = vmul.f32 %v647, %v775
        %v808 = vmul.f32 %v648, %v776
        %v809 = vmul.f32 %v649, %v777
        %v810 = vmul.f32 %v650, %v778
        %v811 = vmul.f32 %v651, %v779
        %v812 = vmul.f32 %v652, %v780
        %v813 = vmul.f32 %v653, %v781
        %v814 = vmul.f32 %v654, %v782
        %v815 = vmul.f32 %v655, %v783
        %v816 = vmul.f32 %v656, %v784
        %v817 = vmul.f32 %v657, %v785
        %v818 = vmul.f32 %v658, %v786
        %v819 = vmul.f32 %v659, %v787
        %v820 = vmul.f32 %v660, %v788
        %v821 = vmul.f32 %v661, %v789
        %v822 = vmul.f32 %v662, %v790
        %v823 = vmul.f32 %v663, %v791
        %v824 = vmul.f32 %v664, %v792
        %v825 = vlaneseq
        %v826 = vshrl.u32 %v825, 7
        %v827 = vsub.s32 4, %v826
        %v828 = vrot.slane %v405, %v827
        %v829 = vmul.f32 %v793, %v828
        %v830 = vmul.f32 %v794, %v828
        %v831 = vmul.f32 %v795, %v828
        %v832 = vmul.f32 %v796, %v828
        %v833 = vmul.f32 %v797, %v828
        %v834 = vmul.f32 %v798, %v828
        %v835 = vmul.f32 %v799, %v828
        %v836 = vmul.f32 %v800, %v828
        %v837 = vmul.f32 %v801, %v828
        %v838 = vmul.f32 %v802, %v828
        %v839 = vmul.f32 %v803, %v828
        %v840 = vmul.f32 %v804, %v828
        %v841 = vmul.f32 %v805, %v828
        %v842 = vmul.f32 %v806, %v828
        %v843 = vmul.f32 %v807, %v828
        %v844 = vmul.f32 %v808, %v828
        %v845 = vmul.f32 %v809, %v828
        %v846 = vmul.f32 %v810, %v828
        %v847 = vmul.f32 %v811, %v828
        %v848 = vmul.f32 %v812, %v828
        %v849 = vmul.f32 %v813, %v828
        %v850 = vmul.f32 %v814, %v828
        %v851 = vmul.f32 %v815, %v828
        %v852 = vmul.f32 %v816, %v828
        %v853 = vmul.f32 %v817, %v828
        %v854 = vmul.f32 %v818, %v828
        %v855 = vmul.f32 %v819, %v828
        %v856 = vmul.f32 %v820, %v828
        %v857 = vmul.f32 %v821, %v828
        %v858 = vmul.f32 %v822, %v828
        %v859 = vmul.f32 %v823, %v828
        %v860 = vmul.f32 %v824, %v828
        %v861 = vlaneseq
        %v862 = vshrl.u32 %v861, 7
        %v863 = vsub.s32 5, %v862
        %v864 = vrot.slane %v405, %v863
        %v865 = vadd.f32 %v829, %v864
        %v866 = vadd.f32 %v830, %v864
        %v867 = vadd.f32 %v831, %v864
        %v868 = vadd.f32 %v832, %v864
        %v869 = vadd.f32 %v833, %v864
        %v870 = vadd.f32 %v834, %v864
        %v871 = vadd.f32 %v835, %v864
        %v872 = vadd.f32 %v836, %v864
        %v873 = vadd.f32 %v837, %v864
        %v874 = vadd.f32 %v838, %v864
        %v875 = vadd.f32 %v839, %v864
        %v876 = vadd.f32 %v840, %v864
        %v877 = vadd.f32 %v841, %v864
        %v878 = vadd.f32 %v842, %v864
        %v879 = vadd.f32 %v843, %v864
        %v880 = vadd.f32 %v844, %v864
        %v881 = vadd.f32 %v845, %v864
        %v882 = vadd.f32 %v846, %v864
        %v883 = vadd.f32 %v847, %v864
        %v884 = vadd.f32 %v848, %v864
        %v885 = vadd.f32 %v849, %v864
        %v886 = vadd.f32 %v850, %v864
        %v887 = vadd.f32 %v851, %v864
        %v888 = vadd.f32 %v852, %v864
        %v889 = vadd.f32 %v853, %v864
        %v890 = vadd.f32 %v854, %v864
        %v891 = vadd.f32 %v855, %v864
        %v892 = vadd.f32 %v856, %v864
        %v893 = vadd.f32 %v857, %v864
        %v894 = vadd.f32 %v858, %v864
        %v895 = vadd.f32 %v859, %v864
        %v896 = vadd.f32 %v860, %v864
        %v897 = vpack.c.bf16 %v866, %v865
        %v898 = vpack.c.bf16 %v868, %v867
        %v899 = vpack.c.bf16 %v870, %v869
        %v900 = vpack.c.bf16 %v872, %v871
        %v901 = vpack.c.bf16 %v874, %v873
        %v902 = vpack.c.bf16 %v876, %v875
        %v903 = vpack.c.bf16 %v878, %v877
        %v904 = vpack.c.bf16 %v880, %v879
        %v905 = vpack.c.bf16 %v882, %v881
        %v906 = vpack.c.bf16 %v884, %v883
        %v907 = vpack.c.bf16 %v886, %v885
        %v908 = vpack.c.bf16 %v888, %v887
        %v909 = vpack.c.bf16 %v890, %v889
        %v910 = vpack.c.bf16 %v892, %v891
        %v911 = vpack.c.bf16 %v894, %v893
        %v912 = vpack.c.bf16 %v896, %v895
        %v913 = vld [vmem:[%s1] sm:$0xff]
        %v914 = vld [vmem:[%s1 + $0x8] sm:$0xf]
        %v915 = vld [vmem:[%s1 + $0xc] sm:$0xff]
        %v916 = vld [vmem:[%s1 + $0x14] sm:$0xf]
        %v917 = vld [vmem:[%s1 + $0x18] sm:$0xff]
        %v918 = vld [vmem:[%s1 + $0x20] sm:$0xf]
        %v919 = vld [vmem:[%s1 + $0x24] sm:$0xff]
        %v920 = vld [vmem:[%s1 + $0x2c] sm:$0xf]
        %v921 = vld [vmem:[%s1 + $0x30] sm:$0xff]
        %v922 = vld [vmem:[%s1 + $0x38] sm:$0xf]
        %v923 = vld [vmem:[%s1 + $0x3c] sm:$0xff]
        %v924 = vld [vmem:[%s1 + $0x44] sm:$0xf]
        %v925 = vld [vmem:[%s1 + $0x48] sm:$0xff]
        %v926 = vld [vmem:[%s1 + $0x50] sm:$0xf]
        %v927 = vld [vmem:[%s1 + $0x54] sm:$0xff]
        %v928 = vld [vmem:[%s1 + $0x5c] sm:$0xf]
        %v929 = vld [vmem:[%s1 + $0x60] sm:$0xff]
        %v930 = vld [vmem:[%s1 + $0x68] sm:$0xf]
        %v931 = vld [vmem:[%s1 + $0x6c] sm:$0xff]
        %v932 = vld [vmem:[%s1 + $0x74] sm:$0xf]
        %v933 = vld [vmem:[%s1 + $0x78] sm:$0xff]
        %v934 = vld [vmem:[%s1 + $0x80] sm:$0xf]
        %v935 = vld [vmem:[%s1 + $0x84] sm:$0xff]
        %v936 = vld [vmem:[%s1 + $0x8c] sm:$0xf]
        %v937 = vld [vmem:[%s1 + $0x90] sm:$0xff]
        %v938 = vld [vmem:[%s1 + $0x98] sm:$0xf]
        %v939 = vld [vmem:[%s1 + $0x9c] sm:$0xff]
        %v940 = vld [vmem:[%s1 + $0xa4] sm:$0xf]
        %v941 = vld [vmem:[%s1 + $0xa8] sm:$0xff]
        %v942 = vld [vmem:[%s1 + $0xb0] sm:$0xf]
        %v943 = vld [vmem:[%s1 + $0xb4] sm:$0xff]
        %v944 = vld [vmem:[%s1 + $0xbc] sm:$0xf]
        %v977 = vunpack.c.l.b16 %v913
        %v978 = vunpack.c.h.b16 %v913
        %v979 = vunpack.c.l.b16 %v914
        %v980 = vunpack.c.l.b16 %v915
        %v981 = vunpack.c.h.b16 %v915
        %v982 = vunpack.c.l.b16 %v916
        %v983 = vunpack.c.l.b16 %v917
        %v984 = vunpack.c.h.b16 %v917
        %v985 = vunpack.c.l.b16 %v918
        %v986 = vunpack.c.l.b16 %v919
        %v987 = vunpack.c.h.b16 %v919
        %v988 = vunpack.c.l.b16 %v920
        %v989 = vunpack.c.l.b16 %v921
        %v990 = vunpack.c.h.b16 %v921
        %v991 = vunpack.c.l.b16 %v922
        %v992 = vunpack.c.l.b16 %v923
        %v993 = vunpack.c.h.b16 %v923
        %v994 = vunpack.c.l.b16 %v924
        %v995 = vunpack.c.l.b16 %v925
        %v996 = vunpack.c.h.b16 %v925
        %v997 = vunpack.c.l.b16 %v926
        %v998 = vunpack.c.l.b16 %v927
        %v999 = vunpack.c.h.b16 %v927
        %v1000 = vunpack.c.l.b16 %v928
        %v1001 = vunpack.c.l.b16 %v929
        %v1002 = vunpack.c.h.b16 %v929
        %v1003 = vunpack.c.l.b16 %v930
        %v1004 = vunpack.c.l.b16 %v931
        %v1005 = vunpack.c.h.b16 %v931
        %v1006 = vunpack.c.l.b16 %v932
        %v1007 = vunpack.c.l.b16 %v933
        %v1008 = vunpack.c.h.b16 %v933
        %v1009 = vunpack.c.l.b16 %v934
        %v1010 = vunpack.c.l.b16 %v935
        %v1011 = vunpack.c.h.b16 %v935
        %v1012 = vunpack.c.l.b16 %v936
        %v1013 = vunpack.c.l.b16 %v937
        %v1014 = vunpack.c.h.b16 %v937
        %v1015 = vunpack.c.l.b16 %v938
        %v1016 = vunpack.c.l.b16 %v939
        %v1017 = vunpack.c.h.b16 %v939
        %v1018 = vunpack.c.l.b16 %v940
        %v1019 = vunpack.c.l.b16 %v941
        %v1020 = vunpack.c.h.b16 %v941
        %v1021 = vunpack.c.l.b16 %v942
        %v1022 = vunpack.c.l.b16 %v943
        %v1023 = vunpack.c.h.b16 %v943
        %v1024 = vunpack.c.l.b16 %v944
        %v1025 = vpack.c.b16 %v980, %v977
        %v1026 = vpack.c.b16 %v981, %v978
        %v1027 = vpack.c.b16 %v982, %v979
        %v1028 = vpack.c.b16 %v986, %v983
        %v1029 = vpack.c.b16 %v987, %v984
        %v1030 = vpack.c.b16 %v988, %v985
        %v1031 = vpack.c.b16 %v992, %v989
        %v1032 = vpack.c.b16 %v993, %v990
        %v1033 = vpack.c.b16 %v994, %v991
        %v1034 = vpack.c.b16 %v998, %v995
        %v1035 = vpack.c.b16 %v999, %v996
        %v1036 = vpack.c.b16 %v1000, %v997
        %v1037 = vpack.c.b16 %v1004, %v1001
        %v1038 = vpack.c.b16 %v1005, %v1002
        %v1039 = vpack.c.b16 %v1006, %v1003
        %v1040 = vpack.c.b16 %v1010, %v1007
        %v1041 = vpack.c.b16 %v1011, %v1008
        %v1042 = vpack.c.b16 %v1012, %v1009
        %v1043 = vpack.c.b16 %v1016, %v1013
        %v1044 = vpack.c.b16 %v1017, %v1014
        %v1045 = vpack.c.b16 %v1018, %v1015
        %v1046 = vpack.c.b16 %v1022, %v1019
        %v1047 = vpack.c.b16 %v1023, %v1020
        %v1048 = vpack.c.b16 %v1024, %v1021
        %1073 = vmatprep.subr.bf16.mxu0 %v1047
        %1074 = vmatpush1.bf16.msra.mxu0 %v1046
        %1075 = vmatprep.subr.bf16.mxu0 %v1044
        %1076 = vmatpush1.bf16.msra.mxu0 %v1043
        %1077 = vmatprep.subr.bf16.mxu0 %v1041
        %1078 = vmatpush1.bf16.msra.mxu0 %v1040
        %1079 = vmatprep.subr.bf16.mxu0 %v1038
        %1080 = vmatpush1.bf16.msra.mxu0 %v1037
        %1081 = vmatprep.subr.bf16.mxu0 %v1035
        %1082 = vmatpush1.bf16.msra.mxu0 %v1034
        %1083 = vmatprep.subr.bf16.mxu0 %v1032
        %1084 = vmatpush1.bf16.msra.mxu0 %v1031
        %1085 = vmatprep.subr.bf16.mxu0 %v1029
        %1086 = vmatpush1.bf16.msra.mxu0 %v1028
        %1087 = vmatprep.subr.bf16.mxu0 %v1026
        %1088 = vmatpush1.bf16.msra.mxu0 %v1025
        %1089 = vmatprep.subr.bf16.mxu0 0
        %1090 = vmatpush2.bf16.msra.mxu0 0
        %1091 = vmatprep.subr.bf16.mxu0 0
        %1092 = vmatpush2.bf16.msra.mxu0 0
        %1093 = vmatprep.subr.bf16.mxu0 0
        %1094 = vmatpush2.bf16.msra.mxu0 0
        %1095 = vmatprep.subr.bf16.mxu0 0
        %1096 = vmatpush2.bf16.msra.mxu0 0
        %1097 = vmatprep.subr.bf16.mxu0 0
        %1098 = vmatpush2.bf16.msra.mxu0 0
        %1099 = vmatprep.subr.bf16.mxu0 0
        %1100 = vmatpush2.bf16.msra.mxu0 0
        %1101 = vmatprep.subr.bf16.mxu0 0
        %1102 = vmatpush2.bf16.msra.mxu0 0
        %1103 = vmatprep.subr.bf16.mxu0 0
        %1104 = vmatpush2.bf16.msra.mxu0 0
        %1105 = vmatprep.mubr.bf16.mxu0 0
        %1106 = vmatmul.mubr.bf16.gmra.mxu0 %v897
        %v1107 = vpop.f32.mrf.mxu0
        %v1108 = vadd.f32 0.0, %v1107
        %v1109 = vpop.f32.mrf.mxu0
        %v1110 = vadd.f32 0.0, %v1109
        %v1111 = vpop.f32.mrf.mxu0
        %v1112 = vadd.f32 0.0, %v1111
        %v1113 = vpop.f32.mrf.mxu0
        %v1114 = vadd.f32 0.0, %v1113
        %1115 = vmatprep.mubr.bf16.mxu0 0
        %1116 = vmatmul.mubr.bf16.gmra.mxu0 %v898
        %v1117 = vpop.f32.mrf.mxu0
        %v1118 = vadd.f32 0.0, %v1117
        %v1119 = vpop.f32.mrf.mxu0
        %v1120 = vadd.f32 0.0, %v1119
        %v1121 = vpop.f32.mrf.mxu0
        %v1122 = vadd.f32 0.0, %v1121
        %v1123 = vpop.f32.mrf.mxu0
        %v1124 = vadd.f32 0.0, %v1123
        %1125 = vmatprep.mubr.bf16.mxu0 0
        %1126 = vmatmul.mubr.bf16.gmra.mxu0 %v899
        %v1127 = vpop.f32.mrf.mxu0
        %v1128 = vadd.f32 0.0, %v1127
        %v1129 = vpop.f32.mrf.mxu0
        %v1130 = vadd.f32 0.0, %v1129
        %v1131 = vpop.f32.mrf.mxu0
        %v1132 = vadd.f32 0.0, %v1131
        %v1133 = vpop.f32.mrf.mxu0
        %v1134 = vadd.f32 0.0, %v1133
        %1135 = vmatprep.mubr.bf16.mxu0 0
        %1136 = vmatmul.mubr.bf16.gmra.mxu0 %v900
        %v1137 = vpop.f32.mrf.mxu0
        %v1138 = vadd.f32 0.0, %v1137
        %v1139 = vpop.f32.mrf.mxu0
        %v1140 = vadd.f32 0.0, %v1139
        %v1141 = vpop.f32.mrf.mxu0
        %v1142 = vadd.f32 0.0, %v1141
        %v1143 = vpop.f32.mrf.mxu0
        %v1144 = vadd.f32 0.0, %v1143
        %1145 = vmatprep.mubr.bf16.mxu0 0
        %1146 = vmatmul.mubr.bf16.gmra.mxu0 %v901
        %v1147 = vpop.f32.mrf.mxu0
        %v1148 = vadd.f32 0.0, %v1147
        %v1149 = vpop.f32.mrf.mxu0
        %v1150 = vadd.f32 0.0, %v1149
        %v1151 = vpop.f32.mrf.mxu0
        %v1152 = vadd.f32 0.0, %v1151
        %v1153 = vpop.f32.mrf.mxu0
        %v1154 = vadd.f32 0.0, %v1153
        %1155 = vmatprep.mubr.bf16.mxu0 0
        %1156 = vmatmul.mubr.bf16.gmra.mxu0 %v902
        %v1157 = vpop.f32.mrf.mxu0
        %v1158 = vadd.f32 0.0, %v1157
        %v1159 = vpop.f32.mrf.mxu0
        %v1160 = vadd.f32 0.0, %v1159
        %v1161 = vpop.f32.mrf.mxu0
        %v1162 = vadd.f32 0.0, %v1161
        %v1163 = vpop.f32.mrf.mxu0
        %v1164 = vadd.f32 0.0, %v1163
        %1165 = vmatprep.mubr.bf16.mxu0 0
        %1166 = vmatmul.mubr.bf16.gmra.mxu0 %v903
        %v1167 = vpop.f32.mrf.mxu0
        %v1168 = vadd.f32 0.0, %v1167
        %v1169 = vpop.f32.mrf.mxu0
        %v1170 = vadd.f32 0.0, %v1169
        %v1171 = vpop.f32.mrf.mxu0
        %v1172 = vadd.f32 0.0, %v1171
        %v1173 = vpop.f32.mrf.mxu0
        %v1174 = vadd.f32 0.0, %v1173
        %1175 = vmatprep.mubr.bf16.mxu0 0
        %1176 = vmatmul.mubr.bf16.gmra.mxu0 %v904
        %v1177 = vpop.f32.mrf.mxu0
        %v1178 = vadd.f32 0.0, %v1177
        %v1179 = vpop.f32.mrf.mxu0
        %v1180 = vadd.f32 0.0, %v1179
        %v1181 = vpop.f32.mrf.mxu0
        %v1182 = vadd.f32 0.0, %v1181
        %v1183 = vpop.f32.mrf.mxu0
        %v1184 = vadd.f32 0.0, %v1183
        %1185 = vmatprep.mubr.bf16.mxu0 0
        %1186 = vmatmul.mubr.bf16.gmra.mxu0 %v905
        %v1187 = vpop.f32.mrf.mxu0
        %v1188 = vadd.f32 0.0, %v1187
        %v1189 = vpop.f32.mrf.mxu0
        %v1190 = vadd.f32 0.0, %v1189
        %v1191 = vpop.f32.mrf.mxu0
        %v1192 = vadd.f32 0.0, %v1191
        %v1193 = vpop.f32.mrf.mxu0
        %v1194 = vadd.f32 0.0, %v1193
        %1195 = vmatprep.mubr.bf16.mxu0 0
        %1196 = vmatmul.mubr.bf16.gmra.mxu0 %v906
        %v1197 = vpop.f32.mrf.mxu0
        %v1198 = vadd.f32 0.0, %v1197
        %v1199 = vpop.f32.mrf.mxu0
        %v1200 = vadd.f32 0.0, %v1199
        %v1201 = vpop.f32.mrf.mxu0
        %v1202 = vadd.f32 0.0, %v1201
        %v1203 = vpop.f32.mrf.mxu0
        %v1204 = vadd.f32 0.0, %v1203
        %1205 = vmatprep.mubr.bf16.mxu0 0
        %1206 = vmatmul.mubr.bf16.gmra.mxu0 %v907
        %v1207 = vpop.f32.mrf.mxu0
        %v1208 = vadd.f32 0.0, %v1207
        %v1209 = vpop.f32.mrf.mxu0
        %v1210 = vadd.f32 0.0, %v1209
        %v1211 = vpop.f32.mrf.mxu0
        %v1212 = vadd.f32 0.0, %v1211
        %v1213 = vpop.f32.mrf.mxu0
        %v1214 = vadd.f32 0.0, %v1213
        %1215 = vmatprep.mubr.bf16.mxu0 0
        %1216 = vmatmul.mubr.bf16.gmra.mxu0 %v908
        %v1217 = vpop.f32.mrf.mxu0
        %v1218 = vadd.f32 0.0, %v1217
        %v1219 = vpop.f32.mrf.mxu0
        %v1220 = vadd.f32 0.0, %v1219
        %v1221 = vpop.f32.mrf.mxu0
        %v1222 = vadd.f32 0.0, %v1221
        %v1223 = vpop.f32.mrf.mxu0
        %v1224 = vadd.f32 0.0, %v1223
        %1225 = vmatprep.mubr.bf16.mxu0 0
        %1226 = vmatmul.mubr.bf16.gmra.mxu0 %v909
        %v1227 = vpop.f32.mrf.mxu0
        %v1228 = vadd.f32 0.0, %v1227
        %v1229 = vpop.f32.mrf.mxu0
        %v1230 = vadd.f32 0.0, %v1229
        %v1231 = vpop.f32.mrf.mxu0
        %v1232 = vadd.f32 0.0, %v1231
        %v1233 = vpop.f32.mrf.mxu0
        %v1234 = vadd.f32 0.0, %v1233
        %1235 = vmatprep.mubr.bf16.mxu0 0
        %1236 = vmatmul.mubr.bf16.gmra.mxu0 %v910
        %v1237 = vpop.f32.mrf.mxu0
        %v1238 = vadd.f32 0.0, %v1237
        %v1239 = vpop.f32.mrf.mxu0
        %v1240 = vadd.f32 0.0, %v1239
        %v1241 = vpop.f32.mrf.mxu0
        %v1242 = vadd.f32 0.0, %v1241
        %v1243 = vpop.f32.mrf.mxu0
        %v1244 = vadd.f32 0.0, %v1243
        %1245 = vmatprep.mubr.bf16.mxu0 0
        %1246 = vmatmul.mubr.bf16.gmra.mxu0 %v911
        %v1247 = vpop.f32.mrf.mxu0
        %v1248 = vadd.f32 0.0, %v1247
        %v1249 = vpop.f32.mrf.mxu0
        %v1250 = vadd.f32 0.0, %v1249
        %v1251 = vpop.f32.mrf.mxu0
        %v1252 = vadd.f32 0.0, %v1251
        %v1253 = vpop.f32.mrf.mxu0
        %v1254 = vadd.f32 0.0, %v1253
        %1255 = vmatprep.mubr.bf16.mxu0 0
        %1256 = vmatmul.mubr.bf16.gmra.mxu0 %v912
        %v1257 = vpop.f32.mrf.mxu0
        %v1258 = vadd.f32 0.0, %v1257
        %v1259 = vpop.f32.mrf.mxu0
        %v1260 = vadd.f32 0.0, %v1259
        %v1261 = vpop.f32.mrf.mxu0
        %v1262 = vadd.f32 0.0, %v1261
        %v1263 = vpop.f32.mrf.mxu0
        %v1264 = vadd.f32 0.0, %v1263
        %1265 = vdwg.mxu0
        %1266 = vmatprep.subr.bf16.mxu0 0
        %1267 = vmatpush1.bf16.msra.mxu0 %v1048
        %1268 = vmatprep.subr.bf16.mxu0 0
        %1269 = vmatpush1.bf16.msra.mxu0 %v1045
        %1270 = vmatprep.subr.bf16.mxu0 0
        %1271 = vmatpush1.bf16.msra.mxu0 %v1042
        %1272 = vmatprep.subr.bf16.mxu0 0
        %1273 = vmatpush1.bf16.msra.mxu0 %v1039
        %1274 = vmatprep.subr.bf16.mxu0 0
        %1275 = vmatpush1.bf16.msra.mxu0 %v1036
        %1276 = vmatprep.subr.bf16.mxu0 0
        %1277 = vmatpush1.bf16.msra.mxu0 %v1033
        %1278 = vmatprep.subr.bf16.mxu0 0
        %1279 = vmatpush1.bf16.msra.mxu0 %v1030
        %1280 = vmatprep.subr.bf16.mxu0 0
        %1281 = vmatpush1.bf16.msra.mxu0 %v1027
        %1282 = vmatprep.subr.bf16.mxu0 0
        %1283 = vmatpush2.bf16.msra.mxu0 0
        %1284 = vmatprep.subr.bf16.mxu0 0
        %1285 = vmatpush2.bf16.msra.mxu0 0
        %1286 = vmatprep.subr.bf16.mxu0 0
        %1287 = vmatpush2.bf16.msra.mxu0 0
        %1288 = vmatprep.subr.bf16.mxu0 0
        %1289 = vmatpush2.bf16.msra.mxu0 0
        %1290 = vmatprep.subr.bf16.mxu0 0
        %1291 = vmatpush2.bf16.msra.mxu0 0
        %1292 = vmatprep.subr.bf16.mxu0 0
        %1293 = vmatpush2.bf16.msra.mxu0 0
        %1294 = vmatprep.subr.bf16.mxu0 0
        %1295 = vmatpush2.bf16.msra.mxu0 0
        %1296 = vmatprep.subr.bf16.mxu0 0
        %1297 = vmatpush2.bf16.msra.mxu0 0
        %1298 = vmatprep.mubr.bf16.mxu0 0
        %1299 = vmatmul.mubr.bf16.gmra.mxu0 %v897
        %v1300 = vpop.f32.mrf.mxu0
        %v1301 = vadd.f32 0.0, %v1300
        %v1302 = vpop.f32.mrf.mxu0
        %v1303 = vpop.f32.mrf.mxu0
        %v1304 = vadd.f32 0.0, %v1303
        %v1305 = vpop.f32.mrf.mxu0
        %1306 = vmatprep.mubr.bf16.mxu0 0
        %1307 = vmatmul.mubr.bf16.gmra.mxu0 %v898
        %v1308 = vpop.f32.mrf.mxu0
        %v1309 = vadd.f32 0.0, %v1308
        %v1310 = vpop.f32.mrf.mxu0
        %v1311 = vpop.f32.mrf.mxu0
        %v1312 = vadd.f32 0.0, %v1311
        %v1313 = vpop.f32.mrf.mxu0
        %1314 = vmatprep.mubr.bf16.mxu0 0
        %1315 = vmatmul.mubr.bf16.gmra.mxu0 %v899
        %v1316 = vpop.f32.mrf.mxu0
        %v1317 = vadd.f32 0.0, %v1316
        %v1318 = vpop.f32.mrf.mxu0
        %v1319 = vpop.f32.mrf.mxu0
        %v1320 = vadd.f32 0.0, %v1319
        %v1321 = vpop.f32.mrf.mxu0
        %1322 = vmatprep.mubr.bf16.mxu0 0
        %1323 = vmatmul.mubr.bf16.gmra.mxu0 %v900
        %v1324 = vpop.f32.mrf.mxu0
        %v1325 = vadd.f32 0.0, %v1324
        %v1326 = vpop.f32.mrf.mxu0
        %v1327 = vpop.f32.mrf.mxu0
        %v1328 = vadd.f32 0.0, %v1327
        %v1329 = vpop.f32.mrf.mxu0
        %1330 = vmatprep.mubr.bf16.mxu0 0
        %1331 = vmatmul.mubr.bf16.gmra.mxu0 %v901
        %v1332 = vpop.f32.mrf.mxu0
        %v1333 = vadd.f32 0.0, %v1332
        %v1334 = vpop.f32.mrf.mxu0
        %v1335 = vpop.f32.mrf.mxu0
        %v1336 = vadd.f32 0.0, %v1335
        %v1337 = vpop.f32.mrf.mxu0
        %1338 = vmatprep.mubr.bf16.mxu0 0
        %1339 = vmatmul.mubr.bf16.gmra.mxu0 %v902
        %v1340 = vpop.f32.mrf.mxu0
        %v1341 = vadd.f32 0.0, %v1340
        %v1342 = vpop.f32.mrf.mxu0
        %v1343 = vpop.f32.mrf.mxu0
        %v1344 = vadd.f32 0.0, %v1343
        %v1345 = vpop.f32.mrf.mxu0
        %1346 = vmatprep.mubr.bf16.mxu0 0
        %1347 = vmatmul.mubr.bf16.gmra.mxu0 %v903
        %v1348 = vpop.f32.mrf.mxu0
        %v1349 = vadd.f32 0.0, %v1348
        %v1350 = vpop.f32.mrf.mxu0
        %v1351 = vpop.f32.mrf.mxu0
        %v1352 = vadd.f32 0.0, %v1351
        %v1353 = vpop.f32.mrf.mxu0
        %1354 = vmatprep.mubr.bf16.mxu0 0
        %1355 = vmatmul.mubr.bf16.gmra.mxu0 %v904
        %v1356 = vpop.f32.mrf.mxu0
        %v1357 = vadd.f32 0.0, %v1356
        %v1358 = vpop.f32.mrf.mxu0
        %v1359 = vpop.f32.mrf.mxu0
        %v1360 = vadd.f32 0.0, %v1359
        %v1361 = vpop.f32.mrf.mxu0
        %1362 = vmatprep.mubr.bf16.mxu0 0
        %1363 = vmatmul.mubr.bf16.gmra.mxu0 %v905
        %v1364 = vpop.f32.mrf.mxu0
        %v1365 = vadd.f32 0.0, %v1364
        %v1366 = vpop.f32.mrf.mxu0
        %v1367 = vpop.f32.mrf.mxu0
        %v1368 = vadd.f32 0.0, %v1367
        %v1369 = vpop.f32.mrf.mxu0
        %1370 = vmatprep.mubr.bf16.mxu0 0
        %1371 = vmatmul.mubr.bf16.gmra.mxu0 %v906
        %v1372 = vpop.f32.mrf.mxu0
        %v1373 = vadd.f32 0.0, %v1372
        %v1374 = vpop.f32.mrf.mxu0
        %v1375 = vpop.f32.mrf.mxu0
        %v1376 = vadd.f32 0.0, %v1375
        %v1377 = vpop.f32.mrf.mxu0
        %1378 = vmatprep.mubr.bf16.mxu0 0
        %1379 = vmatmul.mubr.bf16.gmra.mxu0 %v907
        %v1380 = vpop.f32.mrf.mxu0
        %v1381 = vadd.f32 0.0, %v1380
        %v1382 = vpop.f32.mrf.mxu0
        %v1383 = vpop.f32.mrf.mxu0
        %v1384 = vadd.f32 0.0, %v1383
        %v1385 = vpop.f32.mrf.mxu0
        %1386 = vmatprep.mubr.bf16.mxu0 0
        %1387 = vmatmul.mubr.bf16.gmra.mxu0 %v908
        %v1388 = vpop.f32.mrf.mxu0
        %v1389 = vadd.f32 0.0, %v1388
        %v1390 = vpop.f32.mrf.mxu0
        %v1391 = vpop.f32.mrf.mxu0
        %v1392 = vadd.f32 0.0, %v1391
        %v1393 = vpop.f32.mrf.mxu0
        %1394 = vmatprep.mubr.bf16.mxu0 0
        %1395 = vmatmul.mubr.bf16.gmra.mxu0 %v909
        %v1396 = vpop.f32.mrf.mxu0
        %v1397 = vadd.f32 0.0, %v1396
        %v1398 = vpop.f32.mrf.mxu0
        %v1399 = vpop.f32.mrf.mxu0
        %v1400 = vadd.f32 0.0, %v1399
        %v1401 = vpop.f32.mrf.mxu0
        %1402 = vmatprep.mubr.bf16.mxu0 0
        %1403 = vmatmul.mubr.bf16.gmra.mxu0 %v910
        %v1404 = vpop.f32.mrf.mxu0
        %v1405 = vadd.f32 0.0, %v1404
        %v1406 = vpop.f32.mrf.mxu0
        %v1407 = vpop.f32.mrf.mxu0
        %v1408 = vadd.f32 0.0, %v1407
        %v1409 = vpop.f32.mrf.mxu0
        %1410 = vmatprep.mubr.bf16.mxu0 0
        %1411 = vmatmul.mubr.bf16.gmra.mxu0 %v911
        %v1412 = vpop.f32.mrf.mxu0
        %v1413 = vadd.f32 0.0, %v1412
        %v1414 = vpop.f32.mrf.mxu0
        %v1415 = vpop.f32.mrf.mxu0
        %v1416 = vadd.f32 0.0, %v1415
        %v1417 = vpop.f32.mrf.mxu0
        %1418 = vmatprep.mubr.bf16.mxu0 0
        %1419 = vmatmul.mubr.bf16.gmra.mxu0 %v912
        %v1420 = vpop.f32.mrf.mxu0
        %v1421 = vadd.f32 0.0, %v1420
        %v1422 = vpop.f32.mrf.mxu0
        %v1423 = vpop.f32.mrf.mxu0
        %v1424 = vadd.f32 0.0, %v1423
        %v1425 = vpop.f32.mrf.mxu0
        %1426 = vdwg.mxu0
        %v1427 = vlaneseq
        %v1428 = vshrl.u32 %v1427, 7
        %v1429 = vsub.s32 0, %v1428
        %v1430 = vrot.slane %v405, %v1429
        %v1431 = vadd.f32 %v1108, %v1430
        %v1432 = vadd.f32 %v1112, %v1430
        %v1433 = vadd.f32 %v1118, %v1430
        %v1434 = vadd.f32 %v1122, %v1430
        %v1435 = vadd.f32 %v1128, %v1430
        %v1436 = vadd.f32 %v1132, %v1430
        %v1437 = vadd.f32 %v1138, %v1430
        %v1438 = vadd.f32 %v1142, %v1430
        %v1439 = vadd.f32 %v1148, %v1430
        %v1440 = vadd.f32 %v1152, %v1430
        %v1441 = vadd.f32 %v1158, %v1430
        %v1442 = vadd.f32 %v1162, %v1430
        %v1443 = vadd.f32 %v1168, %v1430
        %v1444 = vadd.f32 %v1172, %v1430
        %v1445 = vadd.f32 %v1178, %v1430
        %v1446 = vadd.f32 %v1182, %v1430
        %v1447 = vadd.f32 %v1188, %v1430
        %v1448 = vadd.f32 %v1192, %v1430
        %v1449 = vadd.f32 %v1198, %v1430
        %v1450 = vadd.f32 %v1202, %v1430
        %v1451 = vadd.f32 %v1208, %v1430
        %v1452 = vadd.f32 %v1212, %v1430
        %v1453 = vadd.f32 %v1218, %v1430
        %v1454 = vadd.f32 %v1222, %v1430
        %v1455 = vadd.f32 %v1228, %v1430
        %v1456 = vadd.f32 %v1232, %v1430
        %v1457 = vadd.f32 %v1238, %v1430
        %v1458 = vadd.f32 %v1242, %v1430
        %v1459 = vadd.f32 %v1248, %v1430
        %v1460 = vadd.f32 %v1252, %v1430
        %v1461 = vadd.f32 %v1258, %v1430
        %v1462 = vadd.f32 %v1262, %v1430
        %v1463 = vpack.c.bf16 %v1432, %v1431
        %v1464 = vpack.c.bf16 %v1434, %v1433
        %v1465 = vpack.c.bf16 %v1436, %v1435
        %v1466 = vpack.c.bf16 %v1438, %v1437
        %v1467 = vpack.c.bf16 %v1440, %v1439
        %v1468 = vpack.c.bf16 %v1442, %v1441
        %v1469 = vpack.c.bf16 %v1444, %v1443
        %v1470 = vpack.c.bf16 %v1446, %v1445
        %v1471 = vpack.c.bf16 %v1448, %v1447
        %v1472 = vpack.c.bf16 %v1450, %v1449
        %v1473 = vpack.c.bf16 %v1452, %v1451
        %v1474 = vpack.c.bf16 %v1454, %v1453
        %v1475 = vpack.c.bf16 %v1456, %v1455
        %v1476 = vpack.c.bf16 %v1458, %v1457
        %v1477 = vpack.c.bf16 %v1460, %v1459
        %v1478 = vpack.c.bf16 %v1462, %v1461
        %v1479 = vlaneseq
        %v1480 = vshrl.u32 %v1479, 7
        %v1481 = vsub.s32 1, %v1480
        %v1482 = vrot.slane %v405, %v1481
        %v1483 = vadd.f32 %v1110, %v1482
        %v1484 = vadd.f32 %v1114, %v1482
        %v1485 = vadd.f32 %v1120, %v1482
        %v1486 = vadd.f32 %v1124, %v1482
        %v1487 = vadd.f32 %v1130, %v1482
        %v1488 = vadd.f32 %v1134, %v1482
        %v1489 = vadd.f32 %v1140, %v1482
        %v1490 = vadd.f32 %v1144, %v1482
        %v1491 = vadd.f32 %v1150, %v1482
        %v1492 = vadd.f32 %v1154, %v1482
        %v1493 = vadd.f32 %v1160, %v1482
        %v1494 = vadd.f32 %v1164, %v1482
        %v1495 = vadd.f32 %v1170, %v1482
        %v1496 = vadd.f32 %v1174, %v1482
        %v1497 = vadd.f32 %v1180, %v1482
        %v1498 = vadd.f32 %v1184, %v1482
        %v1499 = vadd.f32 %v1190, %v1482
        %v1500 = vadd.f32 %v1194, %v1482
        %v1501 = vadd.f32 %v1200, %v1482
        %v1502 = vadd.f32 %v1204, %v1482
        %v1503 = vadd.f32 %v1210, %v1482
        %v1504 = vadd.f32 %v1214, %v1482
        %v1505 = vadd.f32 %v1220, %v1482
        %v1506 = vadd.f32 %v1224, %v1482
        %v1507 = vadd.f32 %v1230, %v1482
        %v1508 = vadd.f32 %v1234, %v1482
        %v1509 = vadd.f32 %v1240, %v1482
        %v1510 = vadd.f32 %v1244, %v1482
        %v1511 = vadd.f32 %v1250, %v1482
        %v1512 = vadd.f32 %v1254, %v1482
        %v1513 = vadd.f32 %v1260, %v1482
        %v1514 = vadd.f32 %v1264, %v1482
        %v1515 = vpack.c.bf16 %v1484, %v1483
        %v1516 = vpack.c.bf16 %v1486, %v1485
        %v1517 = vpack.c.bf16 %v1488, %v1487
        %v1518 = vpack.c.bf16 %v1490, %v1489
        %v1519 = vpack.c.bf16 %v1492, %v1491
        %v1520 = vpack.c.bf16 %v1494, %v1493
        %v1521 = vpack.c.bf16 %v1496, %v1495
        %v1522 = vpack.c.bf16 %v1498, %v1497
        %v1523 = vpack.c.bf16 %v1500, %v1499
        %v1524 = vpack.c.bf16 %v1502, %v1501
        %v1525 = vpack.c.bf16 %v1504, %v1503
        %v1526 = vpack.c.bf16 %v1506, %v1505
        %v1527 = vpack.c.bf16 %v1508, %v1507
        %v1528 = vpack.c.bf16 %v1510, %v1509
        %v1529 = vpack.c.bf16 %v1512, %v1511
        %v1530 = vpack.c.bf16 %v1514, %v1513
        %v1531 = vlaneseq
        %v1532 = vshrl.u32 %v1531, 7
        %v1533 = vsub.s32 2, %v1532
        %v1534 = vrot.slane %v405, %v1533
        %v1535 = vadd.f32 %v1301, %v1534
        %v1536 = vadd.f32 %v1304, %v1534
        %v1537 = vadd.f32 %v1309, %v1534
        %v1538 = vadd.f32 %v1312, %v1534
        %v1539 = vadd.f32 %v1317, %v1534
        %v1540 = vadd.f32 %v1320, %v1534
        %v1541 = vadd.f32 %v1325, %v1534
        %v1542 = vadd.f32 %v1328, %v1534
        %v1543 = vadd.f32 %v1333, %v1534
        %v1544 = vadd.f32 %v1336, %v1534
        %v1545 = vadd.f32 %v1341, %v1534
        %v1546 = vadd.f32 %v1344, %v1534
        %v1547 = vadd.f32 %v1349, %v1534
        %v1548 = vadd.f32 %v1352, %v1534
        %v1549 = vadd.f32 %v1357, %v1534
        %v1550 = vadd.f32 %v1360, %v1534
        %v1551 = vadd.f32 %v1365, %v1534
        %v1552 = vadd.f32 %v1368, %v1534
        %v1553 = vadd.f32 %v1373, %v1534
        %v1554 = vadd.f32 %v1376, %v1534
        %v1555 = vadd.f32 %v1381, %v1534
        %v1556 = vadd.f32 %v1384, %v1534
        %v1557 = vadd.f32 %v1389, %v1534
        %v1558 = vadd.f32 %v1392, %v1534
        %v1559 = vadd.f32 %v1397, %v1534
        %v1560 = vadd.f32 %v1400, %v1534
        %v1561 = vadd.f32 %v1405, %v1534
        %v1562 = vadd.f32 %v1408, %v1534
        %v1563 = vadd.f32 %v1413, %v1534
        %v1564 = vadd.f32 %v1416, %v1534
        %v1565 = vadd.f32 %v1421, %v1534
        %v1566 = vadd.f32 %v1424, %v1534
        %v1567 = vpack.c.bf16 %v1536, %v1535
        %v1568 = vpack.c.bf16 %v1538, %v1537
        %v1569 = vpack.c.bf16 %v1540, %v1539
        %v1570 = vpack.c.bf16 %v1542, %v1541
        %v1571 = vpack.c.bf16 %v1544, %v1543
        %v1572 = vpack.c.bf16 %v1546, %v1545
        %v1573 = vpack.c.bf16 %v1548, %v1547
        %v1574 = vpack.c.bf16 %v1550, %v1549
        %v1575 = vpack.c.bf16 %v1552, %v1551
        %v1576 = vpack.c.bf16 %v1554, %v1553
        %v1577 = vpack.c.bf16 %v1556, %v1555
        %v1578 = vpack.c.bf16 %v1558, %v1557
        %v1579 = vpack.c.bf16 %v1560, %v1559
        %v1580 = vpack.c.bf16 %v1562, %v1561
        %v1581 = vpack.c.bf16 %v1564, %v1563
        %v1582 = vpack.c.bf16 %v1566, %v1565
        %vm1583 = vcmask 261120
        %v1585 = vsel %vm1583, %v1463, 0
        %v1588 = vsel %vm1583, %v1464, 0
        %v1591 = vsel %vm1583, %v1465, 0
        %v1594 = vsel %vm1583, %v1466, 0
        %v1597 = vsel %vm1583, %v1467, 0
        %v1600 = vsel %vm1583, %v1468, 0
        %v1603 = vsel %vm1583, %v1469, 0
        %v1606 = vsel %vm1583, %v1470, 0
        %v1609 = vsel %vm1583, %v1515, 0
        %v1612 = vsel %vm1583, %v1516, 0
        %v1615 = vsel %vm1583, %v1517, 0
        %v1618 = vsel %vm1583, %v1518, 0
        %v1621 = vsel %vm1583, %v1519, 0
        %v1624 = vsel %vm1583, %v1520, 0
        %v1627 = vsel %vm1583, %v1521, 0
        %v1630 = vsel %vm1583, %v1522, 0
        %1632 = vmatprep.subr.bf16.mxu0 0
        %1633 = vmatpush1.bf16.xpose.msra.mxu0 %v1630
        %1634 = vmatprep.subr.bf16.mxu0 0
        %1635 = vmatpush1.bf16.xpose.msra.mxu0 %v1627
        %1636 = vmatprep.subr.bf16.mxu0 0
        %1637 = vmatpush1.bf16.xpose.msra.mxu0 %v1624
        %1638 = vmatprep.subr.bf16.mxu0 0
        %1639 = vmatpush1.bf16.xpose.msra.mxu0 %v1621
        %1640 = vmatprep.subr.bf16.mxu0 0
        %1641 = vmatpush1.bf16.xpose.msra.mxu0 %v1618
        %1642 = vmatprep.subr.bf16.mxu0 0
        %1643 = vmatpush1.bf16.xpose.msra.mxu0 %v1615
        %1644 = vmatprep.subr.bf16.mxu0 0
        %1645 = vmatpush1.bf16.xpose.msra.mxu0 %v1612
        %1646 = vmatprep.subr.bf16.mxu0 0
        %1647 = vmatpush1.bf16.xpose.msra.mxu0 %v1609
        %1648 = vmatprep.subr.bf16.mxu0 0
        %1649 = vmatpush2.bf16.xpose.msra.mxu0 0
        %1650 = vmatprep.subr.bf16.mxu0 0
        %1651 = vmatpush2.bf16.xpose.msra.mxu0 0
        %1652 = vmatprep.subr.bf16.mxu0 0
        %1653 = vmatpush2.bf16.xpose.msra.mxu0 0
        %1654 = vmatprep.subr.bf16.mxu0 0
        %1655 = vmatpush2.bf16.xpose.msra.mxu0 0
        %1656 = vmatprep.subr.bf16.mxu0 0
        %1657 = vmatpush2.bf16.xpose.msra.mxu0 0
        %1658 = vmatprep.subr.bf16.mxu0 0
        %1659 = vmatpush2.bf16.xpose.msra.mxu0 0
        %1660 = vmatprep.subr.bf16.mxu0 0
        %1661 = vmatpush2.bf16.xpose.msra.mxu0 0
        %1662 = vmatprep.subr.bf16.mxu0 0
        %1663 = vmatpush2.bf16.xpose.msra.mxu0 0
        %1664 = vmatprep.mubr.bf16.mxu0 0
        %1665 = vmatmul.mubr.bf16.gmra.mxu0 %v1585
        %v1666 = vpop.f32.mrf.mxu0
        %v1667 = vadd.f32 0.0, %v1666
        %v1668 = vpop.f32.mrf.mxu0
        %v1669 = vpop.f32.mrf.mxu0
        %v1670 = vadd.f32 0.0, %v1669
        %v1671 = vpop.f32.mrf.mxu0
        %1672 = vmatprep.mubr.bf16.mxu0 0
        %1673 = vmatmul.mubr.bf16.gmra.mxu0 %v1588
        %v1674 = vpop.f32.mrf.mxu0
        %v1675 = vadd.f32 0.0, %v1674
        %v1676 = vpop.f32.mrf.mxu0
        %v1677 = vpop.f32.mrf.mxu0
        %v1678 = vadd.f32 0.0, %v1677
        %v1679 = vpop.f32.mrf.mxu0
        %1680 = vmatprep.mubr.bf16.mxu0 0
        %1681 = vmatmul.mubr.bf16.gmra.mxu0 %v1591
        %v1682 = vpop.f32.mrf.mxu0
        %v1683 = vadd.f32 0.0, %v1682
        %v1684 = vpop.f32.mrf.mxu0
        %v1685 = vpop.f32.mrf.mxu0
        %v1686 = vadd.f32 0.0, %v1685
        %v1687 = vpop.f32.mrf.mxu0
        %1688 = vmatprep.mubr.bf16.mxu0 0
        %1689 = vmatmul.mubr.bf16.gmra.mxu0 %v1594
        %v1690 = vpop.f32.mrf.mxu0
        %v1691 = vadd.f32 0.0, %v1690
        %v1692 = vpop.f32.mrf.mxu0
        %v1693 = vpop.f32.mrf.mxu0
        %v1694 = vadd.f32 0.0, %v1693
        %v1695 = vpop.f32.mrf.mxu0
        %1696 = vmatprep.mubr.bf16.mxu0 0
        %1697 = vmatmul.mubr.bf16.gmra.mxu0 %v1597
        %v1698 = vpop.f32.mrf.mxu0
        %v1699 = vadd.f32 0.0, %v1698
        %v1700 = vpop.f32.mrf.mxu0
        %v1701 = vpop.f32.mrf.mxu0
        %v1702 = vadd.f32 0.0, %v1701
        %v1703 = vpop.f32.mrf.mxu0
        %1704 = vmatprep.mubr.bf16.mxu0 0
        %1705 = vmatmul.mubr.bf16.gmra.mxu0 %v1600
        %v1706 = vpop.f32.mrf.mxu0
        %v1707 = vadd.f32 0.0, %v1706
        %v1708 = vpop.f32.mrf.mxu0
        %v1709 = vpop.f32.mrf.mxu0
        %v1710 = vadd.f32 0.0, %v1709
        %v1711 = vpop.f32.mrf.mxu0
        %1712 = vmatprep.mubr.bf16.mxu0 0
        %1713 = vmatmul.mubr.bf16.gmra.mxu0 %v1603
        %v1714 = vpop.f32.mrf.mxu0
        %v1715 = vadd.f32 0.0, %v1714
        %v1716 = vpop.f32.mrf.mxu0
        %v1717 = vpop.f32.mrf.mxu0
        %v1718 = vadd.f32 0.0, %v1717
        %v1719 = vpop.f32.mrf.mxu0
        %1720 = vmatprep.mubr.bf16.mxu0 0
        %1721 = vmatmul.mubr.bf16.gmra.mxu0 %v1606
        %v1722 = vpop.f32.mrf.mxu0
        %v1723 = vadd.f32 0.0, %v1722
        %v1724 = vpop.f32.mrf.mxu0
        %v1725 = vpop.f32.mrf.mxu0
        %v1726 = vadd.f32 0.0, %v1725
        %v1727 = vpop.f32.mrf.mxu0
        %1728 = vdwg.mxu0
        %v1730 = vsel %vm1583, %v1471, 0
        %v1733 = vsel %vm1583, %v1472, 0
        %v1736 = vsel %vm1583, %v1473, 0
        %v1739 = vsel %vm1583, %v1474, 0
        %v1742 = vsel %vm1583, %v1475, 0
        %v1745 = vsel %vm1583, %v1476, 0
        %v1748 = vsel %vm1583, %v1477, 0
        %v1751 = vsel %vm1583, %v1478, 0
        %v1754 = vsel %vm1583, %v1523, 0
        %v1757 = vsel %vm1583, %v1524, 0
        %v1760 = vsel %vm1583, %v1525, 0
        %v1763 = vsel %vm1583, %v1526, 0
        %v1766 = vsel %vm1583, %v1527, 0
        %v1769 = vsel %vm1583, %v1528, 0
        %v1772 = vsel %vm1583, %v1529, 0
        %v1775 = vsel %vm1583, %v1530, 0
        %1777 = vmatprep.subr.bf16.mxu0 0
        %1778 = vmatpush1.bf16.xpose.msra.mxu0 %v1775
        %1779 = vmatprep.subr.bf16.mxu0 0
        %1780 = vmatpush1.bf16.xpose.msra.mxu0 %v1772
        %1781 = vmatprep.subr.bf16.mxu0 0
        %1782 = vmatpush1.bf16.xpose.msra.mxu0 %v1769
        %1783 = vmatprep.subr.bf16.mxu0 0
        %1784 = vmatpush1.bf16.xpose.msra.mxu0 %v1766
        %1785 = vmatprep.subr.bf16.mxu0 0
        %1786 = vmatpush1.bf16.xpose.msra.mxu0 %v1763
        %1787 = vmatprep.subr.bf16.mxu0 0
        %1788 = vmatpush1.bf16.xpose.msra.mxu0 %v1760
        %1789 = vmatprep.subr.bf16.mxu0 0
        %1790 = vmatpush1.bf16.xpose.msra.mxu0 %v1757
        %1791 = vmatprep.subr.bf16.mxu0 0
        %1792 = vmatpush1.bf16.xpose.msra.mxu0 %v1754
        %1793 = vmatprep.subr.bf16.mxu0 0
        %1794 = vmatpush2.bf16.xpose.msra.mxu0 0
        %1795 = vmatprep.subr.bf16.mxu0 0
        %1796 = vmatpush2.bf16.xpose.msra.mxu0 0
        %1797 = vmatprep.subr.bf16.mxu0 0
        %1798 = vmatpush2.bf16.xpose.msra.mxu0 0
        %1799 = vmatprep.subr.bf16.mxu0 0
        %1800 = vmatpush2.bf16.xpose.msra.mxu0 0
        %1801 = vmatprep.subr.bf16.mxu0 0
        %1802 = vmatpush2.bf16.xpose.msra.mxu0 0
        %1803 = vmatprep.subr.bf16.mxu0 0
        %1804 = vmatpush2.bf16.xpose.msra.mxu0 0
        %1805 = vmatprep.subr.bf16.mxu0 0
        %1806 = vmatpush2.bf16.xpose.msra.mxu0 0
        %1807 = vmatprep.subr.bf16.mxu0 0
        %1808 = vmatpush2.bf16.xpose.msra.mxu0 0
        %1809 = vmatprep.mubr.bf16.mxu0 0
        %1810 = vmatmul.mubr.bf16.gmra.mxu0 %v1730
        %v1811 = vpop.f32.mrf.mxu0
        %v1812 = vadd.f32 0.0, %v1811
        %v1813 = vpop.f32.mrf.mxu0
        %v1814 = vpop.f32.mrf.mxu0
        %v1815 = vadd.f32 0.0, %v1814
        %v1816 = vpop.f32.mrf.mxu0
        %1817 = vmatprep.mubr.bf16.mxu0 0
        %1818 = vmatmul.mubr.bf16.gmra.mxu0 %v1733
        %v1819 = vpop.f32.mrf.mxu0
        %v1820 = vadd.f32 0.0, %v1819
        %v1821 = vpop.f32.mrf.mxu0
        %v1822 = vpop.f32.mrf.mxu0
        %v1823 = vadd.f32 0.0, %v1822
        %v1824 = vpop.f32.mrf.mxu0
        %1825 = vmatprep.mubr.bf16.mxu0 0
        %1826 = vmatmul.mubr.bf16.gmra.mxu0 %v1736
        %v1827 = vpop.f32.mrf.mxu0
        %v1828 = vadd.f32 0.0, %v1827
        %v1829 = vpop.f32.mrf.mxu0
        %v1830 = vpop.f32.mrf.mxu0
        %v1831 = vadd.f32 0.0, %v1830
        %v1832 = vpop.f32.mrf.mxu0
        %1833 = vmatprep.mubr.bf16.mxu0 0
        %1834 = vmatmul.mubr.bf16.gmra.mxu0 %v1739
        %v1835 = vpop.f32.mrf.mxu0
        %v1836 = vadd.f32 0.0, %v1835
        %v1837 = vpop.f32.mrf.mxu0
        %v1838 = vpop.f32.mrf.mxu0
        %v1839 = vadd.f32 0.0, %v1838
        %v1840 = vpop.f32.mrf.mxu0
        %1841 = vmatprep.mubr.bf16.mxu0 0
        %1842 = vmatmul.mubr.bf16.gmra.mxu0 %v1742
        %v1843 = vpop.f32.mrf.mxu0
        %v1844 = vadd.f32 0.0, %v1843
        %v1845 = vpop.f32.mrf.mxu0
        %v1846 = vpop.f32.mrf.mxu0
        %v1847 = vadd.f32 0.0, %v1846
        %v1848 = vpop.f32.mrf.mxu0
        %1849 = vmatprep.mubr.bf16.mxu0 0
        %1850 = vmatmul.mubr.bf16.gmra.mxu0 %v1745
        %v1851 = vpop.f32.mrf.mxu0
        %v1852 = vadd.f32 0.0, %v1851
        %v1853 = vpop.f32.mrf.mxu0
        %v1854 = vpop.f32.mrf.mxu0
        %v1855 = vadd.f32 0.0, %v1854
        %v1856 = vpop.f32.mrf.mxu0
        %1857 = vmatprep.mubr.bf16.mxu0 0
        %1858 = vmatmul.mubr.bf16.gmra.mxu0 %v1748
        %v1859 = vpop.f32.mrf.mxu0
        %v1860 = vadd.f32 0.0, %v1859
        %v1861 = vpop.f32.mrf.mxu0
        %v1862 = vpop.f32.mrf.mxu0
        %v1863 = vadd.f32 0.0, %v1862
        %v1864 = vpop.f32.mrf.mxu0
        %1865 = vmatprep.mubr.bf16.mxu0 0
        %1866 = vmatmul.mubr.bf16.gmra.mxu0 %v1751
        %v1867 = vpop.f32.mrf.mxu0
        %v1868 = vadd.f32 0.0, %v1867
        %v1869 = vpop.f32.mrf.mxu0
        %v1870 = vpop.f32.mrf.mxu0
        %v1871 = vadd.f32 0.0, %v1870
        %v1872 = vpop.f32.mrf.mxu0
        %1873 = vdwg.mxu0
        %1874 = vmax.xlane.f32.xlu0 %v1667
        %v1875 = vpop.xlane.xlu0 %1874
        %1876 = vmax.xlane.f32.xlu0 %v1670
        %v1877 = vpop.xlane.xlu0 %1876
        %1878 = vmax.xlane.f32.xlu0 %v1675
        %v1879 = vpop.xlane.xlu0 %1878
        %1880 = vmax.xlane.f32.xlu0 %v1678
        %v1881 = vpop.xlane.xlu0 %1880
        %1882 = vmax.xlane.f32.xlu0 %v1683
        %v1883 = vpop.xlane.xlu0 %1882
        %1884 = vmax.xlane.f32.xlu0 %v1686
        %v1885 = vpop.xlane.xlu0 %1884
        %1886 = vmax.xlane.f32.xlu0 %v1691
        %v1887 = vpop.xlane.xlu0 %1886
        %1888 = vmax.xlane.f32.xlu0 %v1694
        %v1889 = vpop.xlane.xlu0 %1888
        %1890 = vmax.xlane.f32.xlu0 %v1699
        %v1891 = vpop.xlane.xlu0 %1890
        %1892 = vmax.xlane.f32.xlu0 %v1702
        %v1893 = vpop.xlane.xlu0 %1892
        %1894 = vmax.xlane.f32.xlu0 %v1707
        %v1895 = vpop.xlane.xlu0 %1894
        %1896 = vmax.xlane.f32.xlu0 %v1710
        %v1897 = vpop.xlane.xlu0 %1896
        %1898 = vmax.xlane.f32.xlu0 %v1715
        %v1899 = vpop.xlane.xlu0 %1898
        %1900 = vmax.xlane.f32.xlu0 %v1718
        %v1901 = vpop.xlane.xlu0 %1900
        %1902 = vmax.xlane.f32.xlu0 %v1723
        %v1903 = vpop.xlane.xlu0 %1902
        %1904 = vmax.xlane.f32.xlu0 %v1726
        %v1905 = vpop.xlane.xlu0 %1904
        %1906 = vmax.xlane.f32.xlu0 %v1812
        %v1907 = vpop.xlane.xlu0 %1906
        %1908 = vmax.xlane.f32.xlu0 %v1815
        %v1909 = vpop.xlane.xlu0 %1908
        %1910 = vmax.xlane.f32.xlu0 %v1820
        %v1911 = vpop.xlane.xlu0 %1910
        %1912 = vmax.xlane.f32.xlu0 %v1823
        %v1913 = vpop.xlane.xlu0 %1912
        %1914 = vmax.xlane.f32.xlu0 %v1828
        %v1915 = vpop.xlane.xlu0 %1914
        %1916 = vmax.xlane.f32.xlu0 %v1831
        %v1917 = vpop.xlane.xlu0 %1916
        %1918 = vmax.xlane.f32.xlu0 %v1836
        %v1919 = vpop.xlane.xlu0 %1918
        %1920 = vmax.xlane.f32.xlu0 %v1839
        %v1921 = vpop.xlane.xlu0 %1920
        %1922 = vmax.xlane.f32.xlu0 %v1844
        %v1923 = vpop.xlane.xlu0 %1922
        %1924 = vmax.xlane.f32.xlu0 %v1847
        %v1925 = vpop.xlane.xlu0 %1924
        %1926 = vmax.xlane.f32.xlu0 %v1852
        %v1927 = vpop.xlane.xlu0 %1926
        %1928 = vmax.xlane.f32.xlu0 %v1855
        %v1929 = vpop.xlane.xlu0 %1928
        %1930 = vmax.xlane.f32.xlu0 %v1860
        %v1931 = vpop.xlane.xlu0 %1930
        %1932 = vmax.xlane.f32.xlu0 %v1863
        %v1933 = vpop.xlane.xlu0 %1932
        %1934 = vmax.xlane.f32.xlu0 %v1868
        %v1935 = vpop.xlane.xlu0 %1934
        %1936 = vmax.xlane.f32.xlu0 %v1871
        %v1937 = vpop.xlane.xlu0 %1936
        %v1938 = vsub.f32 %v1667, %v1875
        %v1939 = vsub.f32 %v1670, %v1877
        %v1940 = vsub.f32 %v1675, %v1879
        %v1941 = vsub.f32 %v1678, %v1881
        %v1942 = vsub.f32 %v1683, %v1883
        %v1943 = vsub.f32 %v1686, %v1885
        %v1944 = vsub.f32 %v1691, %v1887
        %v1945 = vsub.f32 %v1694, %v1889
        %v1946 = vsub.f32 %v1699, %v1891
        %v1947 = vsub.f32 %v1702, %v1893
        %v1948 = vsub.f32 %v1707, %v1895
        %v1949 = vsub.f32 %v1710, %v1897
        %v1950 = vsub.f32 %v1715, %v1899
        %v1951 = vsub.f32 %v1718, %v1901
        %v1952 = vsub.f32 %v1723, %v1903
        %v1953 = vsub.f32 %v1726, %v1905
        %v1954 = vsub.f32 %v1812, %v1907
        %v1955 = vsub.f32 %v1815, %v1909
        %v1956 = vsub.f32 %v1820, %v1911
        %v1957 = vsub.f32 %v1823, %v1913
        %v1958 = vsub.f32 %v1828, %v1915
        %v1959 = vsub.f32 %v1831, %v1917
        %v1960 = vsub.f32 %v1836, %v1919
        %v1961 = vsub.f32 %v1839, %v1921
        %v1962 = vsub.f32 %v1844, %v1923
        %v1963 = vsub.f32 %v1847, %v1925
        %v1964 = vsub.f32 %v1852, %v1927
        %v1965 = vsub.f32 %v1855, %v1929
        %v1966 = vsub.f32 %v1860, %v1931
        %v1967 = vsub.f32 %v1863, %v1933
        %v1968 = vsub.f32 %v1868, %v1935
        %v1969 = vsub.f32 %v1871, %v1937
        %v1970 = vmul.f32 %v1938, 1.442695
        %v1971 = vpow.pop %v1970
        %v1972 = vmul.f32 %v1939, 1.442695
        %v1973 = vpow.pop %v1972
        %v1974 = vmul.f32 %v1940, 1.442695
        %v1975 = vpow.pop %v1974
        %v1976 = vmul.f32 %v1941, 1.442695
        %v1977 = vpow.pop %v1976
        %v1978 = vmul.f32 %v1942, 1.442695
        %v1979 = vpow.pop %v1978
        %v1980 = vmul.f32 %v1943, 1.442695
        %v1981 = vpow.pop %v1980
        %v1982 = vmul.f32 %v1944, 1.442695
        %v1983 = vpow.pop %v1982
        %v1984 = vmul.f32 %v1945, 1.442695
        %v1985 = vpow.pop %v1984
        %v1986 = vmul.f32 %v1946, 1.442695
        %v1987 = vpow.pop %v1986
        %v1988 = vmul.f32 %v1947, 1.442695
        %v1989 = vpow.pop %v1988
        %v1990 = vmul.f32 %v1948, 1.442695
        %v1991 = vpow.pop %v1990
        %v1992 = vmul.f32 %v1949, 1.442695
        %v1993 = vpow.pop %v1992
        %v1994 = vmul.f32 %v1950, 1.442695
        %v1995 = vpow.pop %v1994
        %v1996 = vmul.f32 %v1951, 1.442695
        %v1997 = vpow.pop %v1996
        %v1998 = vmul.f32 %v1952, 1.442695
        %v1999 = vpow.pop %v1998
        %v2000 = vmul.f32 %v1953, 1.442695
        %v2001 = vpow.pop %v2000
        %v2002 = vmul.f32 %v1954, 1.442695
        %v2003 = vpow.pop %v2002
        %v2004 = vmul.f32 %v1955, 1.442695
        %v2005 = vpow.pop %v2004
        %v2006 = vmul.f32 %v1956, 1.442695
        %v2007 = vpow.pop %v2006
        %v2008 = vmul.f32 %v1957, 1.442695
        %v2009 = vpow.pop %v2008
        %v2010 = vmul.f32 %v1958, 1.442695
        %v2011 = vpow.pop %v2010
        %v2012 = vmul.f32 %v1959, 1.442695
        %v2013 = vpow.pop %v2012
        %v2014 = vmul.f32 %v1960, 1.442695
        %v2015 = vpow.pop %v2014
        %v2016 = vmul.f32 %v1961, 1.442695
        %v2017 = vpow.pop %v2016
        %v2018 = vmul.f32 %v1962, 1.442695
        %v2019 = vpow.pop %v2018
        %v2020 = vmul.f32 %v1963, 1.442695
        %v2021 = vpow.pop %v2020
        %v2022 = vmul.f32 %v1964, 1.442695
        %v2023 = vpow.pop %v2022
        %v2024 = vmul.f32 %v1965, 1.442695
        %v2025 = vpow.pop %v2024
        %v2026 = vmul.f32 %v1966, 1.442695
        %v2027 = vpow.pop %v2026
        %v2028 = vmul.f32 %v1967, 1.442695
        %v2029 = vpow.pop %v2028
        %v2030 = vmul.f32 %v1968, 1.442695
        %v2031 = vpow.pop %v2030
        %v2032 = vmul.f32 %v1969, 1.442695
        %v2033 = vpow.pop %v2032
        %2034 = vadd.xlane.f32.xlu0 %v1971
        %v2035 = vpop.xlane.xlu0 %2034
        %2036 = vadd.xlane.f32.xlu0 %v1973
        %v2037 = vpop.xlane.xlu0 %2036
        %2038 = vadd.xlane.f32.xlu0 %v1975
        %v2039 = vpop.xlane.xlu0 %2038
        %2040 = vadd.xlane.f32.xlu0 %v1977
        %v2041 = vpop.xlane.xlu0 %2040
        %2042 = vadd.xlane.f32.xlu0 %v1979
        %v2043 = vpop.xlane.xlu0 %2042
        %2044 = vadd.xlane.f32.xlu0 %v1981
        %v2045 = vpop.xlane.xlu0 %2044
        %2046 = vadd.xlane.f32.xlu0 %v1983
        %v2047 = vpop.xlane.xlu0 %2046
        %2048 = vadd.xlane.f32.xlu0 %v1985
        %v2049 = vpop.xlane.xlu0 %2048
        %2050 = vadd.xlane.f32.xlu0 %v1987
        %v2051 = vpop.xlane.xlu0 %2050
        %2052 = vadd.xlane.f32.xlu0 %v1989
        %v2053 = vpop.xlane.xlu0 %2052
        %2054 = vadd.xlane.f32.xlu0 %v1991
        %v2055 = vpop.xlane.xlu0 %2054
        %2056 = vadd.xlane.f32.xlu0 %v1993
        %v2057 = vpop.xlane.xlu0 %2056
        %2058 = vadd.xlane.f32.xlu0 %v1995
        %v2059 = vpop.xlane.xlu0 %2058
        %2060 = vadd.xlane.f32.xlu0 %v1997
        %v2061 = vpop.xlane.xlu0 %2060
        %2062 = vadd.xlane.f32.xlu0 %v1999
        %v2063 = vpop.xlane.xlu0 %2062
        %2064 = vadd.xlane.f32.xlu0 %v2001
        %v2065 = vpop.xlane.xlu0 %2064
        %2066 = vadd.xlane.f32.xlu0 %v2003
        %v2067 = vpop.xlane.xlu0 %2066
        %2068 = vadd.xlane.f32.xlu0 %v2005
        %v2069 = vpop.xlane.xlu0 %2068
        %2070 = vadd.xlane.f32.xlu0 %v2007
        %v2071 = vpop.xlane.xlu0 %2070
        %2072 = vadd.xlane.f32.xlu0 %v2009
        %v2073 = vpop.xlane.xlu0 %2072
        %2074 = vadd.xlane.f32.xlu0 %v2011
        %v2075 = vpop.xlane.xlu0 %2074
        %2076 = vadd.xlane.f32.xlu0 %v2013
        %v2077 = vpop.xlane.xlu0 %2076
        %2078 = vadd.xlane.f32.xlu0 %v2015
        %v2079 = vpop.xlane.xlu0 %2078
        %2080 = vadd.xlane.f32.xlu0 %v2017
        %v2081 = vpop.xlane.xlu0 %2080
        %2082 = vadd.xlane.f32.xlu0 %v2019
        %v2083 = vpop.xlane.xlu0 %2082
        %2084 = vadd.xlane.f32.xlu0 %v2021
        %v2085 = vpop.xlane.xlu0 %2084
        %2086 = vadd.xlane.f32.xlu0 %v2023
        %v2087 = vpop.xlane.xlu0 %2086
        %2088 = vadd.xlane.f32.xlu0 %v2025
        %v2089 = vpop.xlane.xlu0 %2088
        %2090 = vadd.xlane.f32.xlu0 %v2027
        %v2091 = vpop.xlane.xlu0 %2090
        %2092 = vadd.xlane.f32.xlu0 %v2029
        %v2093 = vpop.xlane.xlu0 %2092
        %2094 = vadd.xlane.f32.xlu0 %v2031
        %v2095 = vpop.xlane.xlu0 %2094
        %2096 = vadd.xlane.f32.xlu0 %v2033
        %v2097 = vpop.xlane.xlu0 %2096
        %v2098 = vrcp.pop %v2035
        %v2099 = vrcp.pop %v2037
        %v2100 = vrcp.pop %v2039
        %v2101 = vrcp.pop %v2041
        %v2102 = vrcp.pop %v2043
        %v2103 = vrcp.pop %v2045
        %v2104 = vrcp.pop %v2047
        %v2105 = vrcp.pop %v2049
        %v2106 = vrcp.pop %v2051
        %v2107 = vrcp.pop %v2053
        %v2108 = vrcp.pop %v2055
        %v2109 = vrcp.pop %v2057
        %v2110 = vrcp.pop %v2059
        %v2111 = vrcp.pop %v2061
        %v2112 = vrcp.pop %v2063
        %v2113 = vrcp.pop %v2065
        %v2114 = vrcp.pop %v2067
        %v2115 = vrcp.pop %v2069
        %v2116 = vrcp.pop %v2071
        %v2117 = vrcp.pop %v2073
        %v2118 = vrcp.pop %v2075
        %v2119 = vrcp.pop %v2077
        %v2120 = vrcp.pop %v2079
        %v2121 = vrcp.pop %v2081
        %v2122 = vrcp.pop %v2083
        %v2123 = vrcp.pop %v2085
        %v2124 = vrcp.pop %v2087
        %v2125 = vrcp.pop %v2089
        %v2126 = vrcp.pop %v2091
        %v2127 = vrcp.pop %v2093
        %v2128 = vrcp.pop %v2095
        %v2129 = vrcp.pop %v2097
        %v2130 = vmul.f32 %v1971, %v2098
        %v2131 = vmul.f32 %v1973, %v2099
        %v2132 = vmul.f32 %v1975, %v2100
        %v2133 = vmul.f32 %v1977, %v2101
        %v2134 = vmul.f32 %v1979, %v2102
        %v2135 = vmul.f32 %v1981, %v2103
        %v2136 = vmul.f32 %v1983, %v2104
        %v2137 = vmul.f32 %v1985, %v2105
        %v2138 = vmul.f32 %v1987, %v2106
        %v2139 = vmul.f32 %v1989, %v2107
        %v2140 = vmul.f32 %v1991, %v2108
        %v2141 = vmul.f32 %v1993, %v2109
        %v2142 = vmul.f32 %v1995, %v2110
        %v2143 = vmul.f32 %v1997, %v2111
        %v2144 = vmul.f32 %v1999, %v2112
        %v2145 = vmul.f32 %v2001, %v2113
        %v2146 = vmul.f32 %v2003, %v2114
        %v2147 = vmul.f32 %v2005, %v2115
        %v2148 = vmul.f32 %v2007, %v2116
        %v2149 = vmul.f32 %v2009, %v2117
        %v2150 = vmul.f32 %v2011, %v2118
        %v2151 = vmul.f32 %v2013, %v2119
        %v2152 = vmul.f32 %v2015, %v2120
        %v2153 = vmul.f32 %v2017, %v2121
        %v2154 = vmul.f32 %v2019, %v2122
        %v2155 = vmul.f32 %v2021, %v2123
        %v2156 = vmul.f32 %v2023, %v2124
        %v2157 = vmul.f32 %v2025, %v2125
        %v2158 = vmul.f32 %v2027, %v2126
        %v2159 = vmul.f32 %v2029, %v2127
        %v2160 = vmul.f32 %v2031, %v2128
        %v2161 = vmul.f32 %v2033, %v2129
        %v2162 = vpack.c.bf16 %v2131, %v2130
        %v2163 = vpack.c.bf16 %v2133, %v2132
        %v2164 = vpack.c.bf16 %v2135, %v2134
        %v2165 = vpack.c.bf16 %v2137, %v2136
        %v2166 = vpack.c.bf16 %v2139, %v2138
        %v2167 = vpack.c.bf16 %v2141, %v2140
        %v2168 = vpack.c.bf16 %v2143, %v2142
        %v2169 = vpack.c.bf16 %v2145, %v2144
        %v2170 = vpack.c.bf16 %v2147, %v2146
        %v2171 = vpack.c.bf16 %v2149, %v2148
        %v2172 = vpack.c.bf16 %v2151, %v2150
        %v2173 = vpack.c.bf16 %v2153, %v2152
        %v2174 = vpack.c.bf16 %v2155, %v2154
        %v2175 = vpack.c.bf16 %v2157, %v2156
        %v2176 = vpack.c.bf16 %v2159, %v2158
        %v2177 = vpack.c.bf16 %v2161, %v2160
        %2178 = vmatprep.subr.bf16.mxu0 0
        %2179 = vmatpush1.bf16.msra.mxu0 %v1574
        %2180 = vmatprep.subr.bf16.mxu0 0
        %2181 = vmatpush1.bf16.msra.mxu0 %v1573
        %2182 = vmatprep.subr.bf16.mxu0 0
        %2183 = vmatpush1.bf16.msra.mxu0 %v1572
        %2184 = vmatprep.subr.bf16.mxu0 0
        %2185 = vmatpush1.bf16.msra.mxu0 %v1571
        %2186 = vmatprep.subr.bf16.mxu0 0
        %2187 = vmatpush1.bf16.msra.mxu0 %v1570
        %2188 = vmatprep.subr.bf16.mxu0 0
        %2189 = vmatpush1.bf16.msra.mxu0 %v1569
        %2190 = vmatprep.subr.bf16.mxu0 0
        %2191 = vmatpush1.bf16.msra.mxu0 %v1568
        %2192 = vmatprep.subr.bf16.mxu0 0
        %2193 = vmatpush1.bf16.msra.mxu0 %v1567
        %2194 = vmatprep.subr.bf16.mxu0 0
        %2195 = vmatpush2.bf16.msra.mxu0 0
        %2196 = vmatprep.subr.bf16.mxu0 0
        %2197 = vmatpush2.bf16.msra.mxu0 0
        %2198 = vmatprep.subr.bf16.mxu0 0
        %2199 = vmatpush2.bf16.msra.mxu0 0
        %2200 = vmatprep.subr.bf16.mxu0 0
        %2201 = vmatpush2.bf16.msra.mxu0 0
        %2202 = vmatprep.subr.bf16.mxu0 0
        %2203 = vmatpush2.bf16.msra.mxu0 0
        %2204 = vmatprep.subr.bf16.mxu0 0
        %2205 = vmatpush2.bf16.msra.mxu0 0
        %2206 = vmatprep.subr.bf16.mxu0 0
        %2207 = vmatpush2.bf16.msra.mxu0 0
        %2208 = vmatprep.subr.bf16.mxu0 0
        %2209 = vmatpush2.bf16.msra.mxu0 0
        %2210 = vmatprep.mubr.bf16.mxu0 0
        %2211 = vmatmul.mubr.bf16.gmra.mxu0 %v2162
        %v2212 = vpop.f32.mrf.mxu0
        %v2213 = vadd.f32 0.0, %v2212
        %v2214 = vpop.f32.mrf.mxu0
        %v2215 = vpop.f32.mrf.mxu0
        %v2216 = vadd.f32 0.0, %v2215
        %v2217 = vpop.f32.mrf.mxu0
        %2218 = vmatprep.mubr.bf16.mxu0 0
        %2219 = vmatmul.mubr.bf16.gmra.mxu0 %v2163
        %v2220 = vpop.f32.mrf.mxu0
        %v2221 = vadd.f32 0.0, %v2220
        %v2222 = vpop.f32.mrf.mxu0
        %v2223 = vpop.f32.mrf.mxu0
        %v2224 = vadd.f32 0.0, %v2223
        %v2225 = vpop.f32.mrf.mxu0
        %2226 = vmatprep.mubr.bf16.mxu0 0
        %2227 = vmatmul.mubr.bf16.gmra.mxu0 %v2164
        %v2228 = vpop.f32.mrf.mxu0
        %v2229 = vadd.f32 0.0, %v2228
        %v2230 = vpop.f32.mrf.mxu0
        %v2231 = vpop.f32.mrf.mxu0
        %v2232 = vadd.f32 0.0, %v2231
        %v2233 = vpop.f32.mrf.mxu0
        %2234 = vmatprep.mubr.bf16.mxu0 0
        %2235 = vmatmul.mubr.bf16.gmra.mxu0 %v2165
        %v2236 = vpop.f32.mrf.mxu0
        %v2237 = vadd.f32 0.0, %v2236
        %v2238 = vpop.f32.mrf.mxu0
        %v2239 = vpop.f32.mrf.mxu0
        %v2240 = vadd.f32 0.0, %v2239
        %v2241 = vpop.f32.mrf.mxu0
        %2242 = vmatprep.mubr.bf16.mxu0 0
        %2243 = vmatmul.mubr.bf16.gmra.mxu0 %v2166
        %v2244 = vpop.f32.mrf.mxu0
        %v2245 = vadd.f32 0.0, %v2244
        %v2246 = vpop.f32.mrf.mxu0
        %v2247 = vpop.f32.mrf.mxu0
        %v2248 = vadd.f32 0.0, %v2247
        %v2249 = vpop.f32.mrf.mxu0
        %2250 = vmatprep.mubr.bf16.mxu0 0
        %2251 = vmatmul.mubr.bf16.gmra.mxu0 %v2167
        %v2252 = vpop.f32.mrf.mxu0
        %v2253 = vadd.f32 0.0, %v2252
        %v2254 = vpop.f32.mrf.mxu0
        %v2255 = vpop.f32.mrf.mxu0
        %v2256 = vadd.f32 0.0, %v2255
        %v2257 = vpop.f32.mrf.mxu0
        %2258 = vmatprep.mubr.bf16.mxu0 0
        %2259 = vmatmul.mubr.bf16.gmra.mxu0 %v2168
        %v2260 = vpop.f32.mrf.mxu0
        %v2261 = vadd.f32 0.0, %v2260
        %v2262 = vpop.f32.mrf.mxu0
        %v2263 = vpop.f32.mrf.mxu0
        %v2264 = vadd.f32 0.0, %v2263
        %v2265 = vpop.f32.mrf.mxu0
        %2266 = vmatprep.mubr.bf16.mxu0 0
        %2267 = vmatmul.mubr.bf16.gmra.mxu0 %v2169
        %v2268 = vpop.f32.mrf.mxu0
        %v2269 = vadd.f32 0.0, %v2268
        %v2270 = vpop.f32.mrf.mxu0
        %v2271 = vpop.f32.mrf.mxu0
        %v2272 = vadd.f32 0.0, %v2271
        %v2273 = vpop.f32.mrf.mxu0
        %2274 = vdwg.mxu0
        %2275 = vmatprep.subr.bf16.mxu0 0
        %2276 = vmatpush1.bf16.msra.mxu0 %v1582
        %2277 = vmatprep.subr.bf16.mxu0 0
        %2278 = vmatpush1.bf16.msra.mxu0 %v1581
        %2279 = vmatprep.subr.bf16.mxu0 0
        %2280 = vmatpush1.bf16.msra.mxu0 %v1580
        %2281 = vmatprep.subr.bf16.mxu0 0
        %2282 = vmatpush1.bf16.msra.mxu0 %v1579
        %2283 = vmatprep.subr.bf16.mxu0 0
        %2284 = vmatpush1.bf16.msra.mxu0 %v1578
        %2285 = vmatprep.subr.bf16.mxu0 0
        %2286 = vmatpush1.bf16.msra.mxu0 %v1577
        %2287 = vmatprep.subr.bf16.mxu0 0
        %2288 = vmatpush1.bf16.msra.mxu0 %v1576
        %2289 = vmatprep.subr.bf16.mxu0 0
        %2290 = vmatpush1.bf16.msra.mxu0 %v1575
        %2291 = vmatprep.subr.bf16.mxu0 0
        %2292 = vmatpush2.bf16.msra.mxu0 0
        %2293 = vmatprep.subr.bf16.mxu0 0
        %2294 = vmatpush2.bf16.msra.mxu0 0
        %2295 = vmatprep.subr.bf16.mxu0 0
        %2296 = vmatpush2.bf16.msra.mxu0 0
        %2297 = vmatprep.subr.bf16.mxu0 0
        %2298 = vmatpush2.bf16.msra.mxu0 0
        %2299 = vmatprep.subr.bf16.mxu0 0
        %2300 = vmatpush2.bf16.msra.mxu0 0
        %2301 = vmatprep.subr.bf16.mxu0 0
        %2302 = vmatpush2.bf16.msra.mxu0 0
        %2303 = vmatprep.subr.bf16.mxu0 0
        %2304 = vmatpush2.bf16.msra.mxu0 0
        %2305 = vmatprep.subr.bf16.mxu0 0
        %2306 = vmatpush2.bf16.msra.mxu0 0
        %2307 = vmatprep.mubr.bf16.mxu0 0
        %2308 = vmatmul.mubr.bf16.gmra.mxu0 %v2170
        %v2309 = vpop.f32.mrf.mxu0
        %v2310 = vadd.f32 0.0, %v2309
        %v2311 = vpop.f32.mrf.mxu0
        %v2312 = vpop.f32.mrf.mxu0
        %v2313 = vadd.f32 0.0, %v2312
        %v2314 = vpop.f32.mrf.mxu0
        %2315 = vmatprep.mubr.bf16.mxu0 0
        %2316 = vmatmul.mubr.bf16.gmra.mxu0 %v2171
        %v2317 = vpop.f32.mrf.mxu0
        %v2318 = vadd.f32 0.0, %v2317
        %v2319 = vpop.f32.mrf.mxu0
        %v2320 = vpop.f32.mrf.mxu0
        %v2321 = vadd.f32 0.0, %v2320
        %v2322 = vpop.f32.mrf.mxu0
        %2323 = vmatprep.mubr.bf16.mxu0 0
        %2324 = vmatmul.mubr.bf16.gmra.mxu0 %v2172
        %v2325 = vpop.f32.mrf.mxu0
        %v2326 = vadd.f32 0.0, %v2325
        %v2327 = vpop.f32.mrf.mxu0
        %v2328 = vpop.f32.mrf.mxu0
        %v2329 = vadd.f32 0.0, %v2328
        %v2330 = vpop.f32.mrf.mxu0
        %2331 = vmatprep.mubr.bf16.mxu0 0
        %2332 = vmatmul.mubr.bf16.gmra.mxu0 %v2173
        %v2333 = vpop.f32.mrf.mxu0
        %v2334 = vadd.f32 0.0, %v2333
        %v2335 = vpop.f32.mrf.mxu0
        %v2336 = vpop.f32.mrf.mxu0
        %v2337 = vadd.f32 0.0, %v2336
        %v2338 = vpop.f32.mrf.mxu0
        %2339 = vmatprep.mubr.bf16.mxu0 0
        %2340 = vmatmul.mubr.bf16.gmra.mxu0 %v2174
        %v2341 = vpop.f32.mrf.mxu0
        %v2342 = vadd.f32 0.0, %v2341
        %v2343 = vpop.f32.mrf.mxu0
        %v2344 = vpop.f32.mrf.mxu0
        %v2345 = vadd.f32 0.0, %v2344
        %v2346 = vpop.f32.mrf.mxu0
        %2347 = vmatprep.mubr.bf16.mxu0 0
        %2348 = vmatmul.mubr.bf16.gmra.mxu0 %v2175
        %v2349 = vpop.f32.mrf.mxu0
        %v2350 = vadd.f32 0.0, %v2349
        %v2351 = vpop.f32.mrf.mxu0
        %v2352 = vpop.f32.mrf.mxu0
        %v2353 = vadd.f32 0.0, %v2352
        %v2354 = vpop.f32.mrf.mxu0
        %2355 = vmatprep.mubr.bf16.mxu0 0
        %2356 = vmatmul.mubr.bf16.gmra.mxu0 %v2176
        %v2357 = vpop.f32.mrf.mxu0
        %v2358 = vadd.f32 0.0, %v2357
        %v2359 = vpop.f32.mrf.mxu0
        %v2360 = vpop.f32.mrf.mxu0
        %v2361 = vadd.f32 0.0, %v2360
        %v2362 = vpop.f32.mrf.mxu0
        %2363 = vmatprep.mubr.bf16.mxu0 0
        %2364 = vmatmul.mubr.bf16.gmra.mxu0 %v2177
        %v2365 = vpop.f32.mrf.mxu0
        %v2366 = vadd.f32 0.0, %v2365
        %v2367 = vpop.f32.mrf.mxu0
        %v2368 = vpop.f32.mrf.mxu0
        %v2369 = vadd.f32 0.0, %v2368
        %v2370 = vpop.f32.mrf.mxu0
        %2371 = vdwg.mxu0
        %2380 = vrot.lane.b32.xlu0 %v1463, 96
        %v2381 = vpop.permute.xlu0 %2380
        %2382 = vrot.lane.b32.xlu0 %v1464, 96
        %v2383 = vpop.permute.xlu0 %2382
        %2384 = vrot.lane.b32.xlu0 %v1465, 96
        %v2385 = vpop.permute.xlu0 %2384
        %2386 = vrot.lane.b32.xlu0 %v1466, 96
        %v2387 = vpop.permute.xlu0 %2386
        %2388 = vrot.lane.b32.xlu0 %v1467, 96
        %v2389 = vpop.permute.xlu0 %2388
        %2390 = vrot.lane.b32.xlu0 %v1468, 96
        %v2391 = vpop.permute.xlu0 %2390
        %2392 = vrot.lane.b32.xlu0 %v1469, 96
        %v2393 = vpop.permute.xlu0 %2392
        %2394 = vrot.lane.b32.xlu0 %v1470, 96
        %v2395 = vpop.permute.xlu0 %2394
        %2404 = vrot.lane.b32.xlu0 %v1515, 96
        %v2405 = vpop.permute.xlu0 %2404
        %2406 = vrot.lane.b32.xlu0 %v1516, 96
        %v2407 = vpop.permute.xlu0 %2406
        %2408 = vrot.lane.b32.xlu0 %v1517, 96
        %v2409 = vpop.permute.xlu0 %2408
        %2410 = vrot.lane.b32.xlu0 %v1518, 96
        %v2411 = vpop.permute.xlu0 %2410
        %2412 = vrot.lane.b32.xlu0 %v1519, 96
        %v2413 = vpop.permute.xlu0 %2412
        %2414 = vrot.lane.b32.xlu0 %v1520, 96
        %v2415 = vpop.permute.xlu0 %2414
        %2416 = vrot.lane.b32.xlu0 %v1521, 96
        %v2417 = vpop.permute.xlu0 %2416
        %2418 = vrot.lane.b32.xlu0 %v1522, 96
        %v2419 = vpop.permute.xlu0 %2418
        %v2421 = vsel %vm1583, %v2381, 0
        %v2424 = vsel %vm1583, %v2383, 0
        %v2427 = vsel %vm1583, %v2385, 0
        %v2430 = vsel %vm1583, %v2387, 0
        %v2433 = vsel %vm1583, %v2389, 0
        %v2436 = vsel %vm1583, %v2391, 0
        %v2439 = vsel %vm1583, %v2393, 0
        %v2442 = vsel %vm1583, %v2395, 0
        %v2445 = vsel %vm1583, %v2405, 0
        %v2448 = vsel %vm1583, %v2407, 0
        %v2451 = vsel %vm1583, %v2409, 0
        %v2454 = vsel %vm1583, %v2411, 0
        %v2457 = vsel %vm1583, %v2413, 0
        %v2460 = vsel %vm1583, %v2415, 0
        %v2463 = vsel %vm1583, %v2417, 0
        %v2466 = vsel %vm1583, %v2419, 0
        %2468 = vmatprep.subr.bf16.mxu0 0
        %2469 = vmatpush1.bf16.xpose.msra.mxu0 %v2466
        %2470 = vmatprep.subr.bf16.mxu0 0
        %2471 = vmatpush1.bf16.xpose.msra.mxu0 %v2463
        %2472 = vmatprep.subr.bf16.mxu0 0
        %2473 = vmatpush1.bf16.xpose.msra.mxu0 %v2460
        %2474 = vmatprep.subr.bf16.mxu0 0
        %2475 = vmatpush1.bf16.xpose.msra.mxu0 %v2457
        %2476 = vmatprep.subr.bf16.mxu0 0
        %2477 = vmatpush1.bf16.xpose.msra.mxu0 %v2454
        %2478 = vmatprep.subr.bf16.mxu0 0
        %2479 = vmatpush1.bf16.xpose.msra.mxu0 %v2451
        %2480 = vmatprep.subr.bf16.mxu0 0
        %2481 = vmatpush1.bf16.xpose.msra.mxu0 %v2448
        %2482 = vmatprep.subr.bf16.mxu0 0
        %2483 = vmatpush1.bf16.xpose.msra.mxu0 %v2445
        %2484 = vmatprep.subr.bf16.mxu0 0
        %2485 = vmatpush2.bf16.xpose.msra.mxu0 0
        %2486 = vmatprep.subr.bf16.mxu0 0
        %2487 = vmatpush2.bf16.xpose.msra.mxu0 0
        %2488 = vmatprep.subr.bf16.mxu0 0
        %2489 = vmatpush2.bf16.xpose.msra.mxu0 0
        %2490 = vmatprep.subr.bf16.mxu0 0
        %2491 = vmatpush2.bf16.xpose.msra.mxu0 0
        %2492 = vmatprep.subr.bf16.mxu0 0
        %2493 = vmatpush2.bf16.xpose.msra.mxu0 0
        %2494 = vmatprep.subr.bf16.mxu0 0
        %2495 = vmatpush2.bf16.xpose.msra.mxu0 0
        %2496 = vmatprep.subr.bf16.mxu0 0
        %2497 = vmatpush2.bf16.xpose.msra.mxu0 0
        %2498 = vmatprep.subr.bf16.mxu0 0
        %2499 = vmatpush2.bf16.xpose.msra.mxu0 0
        %2500 = vmatprep.mubr.bf16.mxu0 0
        %2501 = vmatmul.mubr.bf16.gmra.mxu0 %v2421
        %v2502 = vpop.f32.mrf.mxu0
        %v2503 = vadd.f32 0.0, %v2502
        %v2504 = vpop.f32.mrf.mxu0
        %v2505 = vpop.f32.mrf.mxu0
        %v2506 = vadd.f32 0.0, %v2505
        %v2507 = vpop.f32.mrf.mxu0
        %2508 = vmatprep.mubr.bf16.mxu0 0
        %2509 = vmatmul.mubr.bf16.gmra.mxu0 %v2424
        %v2510 = vpop.f32.mrf.mxu0
        %v2511 = vadd.f32 0.0, %v2510
        %v2512 = vpop.f32.mrf.mxu0
        %v2513 = vpop.f32.mrf.mxu0
        %v2514 = vadd.f32 0.0, %v2513
        %v2515 = vpop.f32.mrf.mxu0
        %2516 = vmatprep.mubr.bf16.mxu0 0
        %2517 = vmatmul.mubr.bf16.gmra.mxu0 %v2427
        %v2518 = vpop.f32.mrf.mxu0
        %v2519 = vadd.f32 0.0, %v2518
        %v2520 = vpop.f32.mrf.mxu0
        %v2521 = vpop.f32.mrf.mxu0
        %v2522 = vadd.f32 0.0, %v2521
        %v2523 = vpop.f32.mrf.mxu0
        %2524 = vmatprep.mubr.bf16.mxu0 0
        %2525 = vmatmul.mubr.bf16.gmra.mxu0 %v2430
        %v2526 = vpop.f32.mrf.mxu0
        %v2527 = vadd.f32 0.0, %v2526
        %v2528 = vpop.f32.mrf.mxu0
        %v2529 = vpop.f32.mrf.mxu0
        %v2530 = vadd.f32 0.0, %v2529
        %v2531 = vpop.f32.mrf.mxu0
        %2532 = vmatprep.mubr.bf16.mxu0 0
        %2533 = vmatmul.mubr.bf16.gmra.mxu0 %v2433
        %v2534 = vpop.f32.mrf.mxu0
        %v2535 = vadd.f32 0.0, %v2534
        %v2536 = vpop.f32.mrf.mxu0
        %v2537 = vpop.f32.mrf.mxu0
        %v2538 = vadd.f32 0.0, %v2537
        %v2539 = vpop.f32.mrf.mxu0
        %2540 = vmatprep.mubr.bf16.mxu0 0
        %2541 = vmatmul.mubr.bf16.gmra.mxu0 %v2436
        %v2542 = vpop.f32.mrf.mxu0
        %v2543 = vadd.f32 0.0, %v2542
        %v2544 = vpop.f32.mrf.mxu0
        %v2545 = vpop.f32.mrf.mxu0
        %v2546 = vadd.f32 0.0, %v2545
        %v2547 = vpop.f32.mrf.mxu0
        %2548 = vmatprep.mubr.bf16.mxu0 0
        %2549 = vmatmul.mubr.bf16.gmra.mxu0 %v2439
        %v2550 = vpop.f32.mrf.mxu0
        %v2551 = vadd.f32 0.0, %v2550
        %v2552 = vpop.f32.mrf.mxu0
        %v2553 = vpop.f32.mrf.mxu0
        %v2554 = vadd.f32 0.0, %v2553
        %v2555 = vpop.f32.mrf.mxu0
        %2556 = vmatprep.mubr.bf16.mxu0 0
        %2557 = vmatmul.mubr.bf16.gmra.mxu0 %v2442
        %v2558 = vpop.f32.mrf.mxu0
        %v2559 = vadd.f32 0.0, %v2558
        %v2560 = vpop.f32.mrf.mxu0
        %v2561 = vpop.f32.mrf.mxu0
        %v2562 = vadd.f32 0.0, %v2561
        %v2563 = vpop.f32.mrf.mxu0
        %2564 = vdwg.mxu0
        %2573 = vrot.lane.b32.xlu0 %v1471, 96
        %v2574 = vpop.permute.xlu0 %2573
        %2575 = vrot.lane.b32.xlu0 %v1472, 96
        %v2576 = vpop.permute.xlu0 %2575
        %2577 = vrot.lane.b32.xlu0 %v1473, 96
        %v2578 = vpop.permute.xlu0 %2577
        %2579 = vrot.lane.b32.xlu0 %v1474, 96
        %v2580 = vpop.permute.xlu0 %2579
        %2581 = vrot.lane.b32.xlu0 %v1475, 96
        %v2582 = vpop.permute.xlu0 %2581
        %2583 = vrot.lane.b32.xlu0 %v1476, 96
        %v2584 = vpop.permute.xlu0 %2583
        %2585 = vrot.lane.b32.xlu0 %v1477, 96
        %v2586 = vpop.permute.xlu0 %2585
        %2587 = vrot.lane.b32.xlu0 %v1478, 96
        %v2588 = vpop.permute.xlu0 %2587
        %2597 = vrot.lane.b32.xlu0 %v1523, 96
        %v2598 = vpop.permute.xlu0 %2597
        %2599 = vrot.lane.b32.xlu0 %v1524, 96
        %v2600 = vpop.permute.xlu0 %2599
        %2601 = vrot.lane.b32.xlu0 %v1525, 96
        %v2602 = vpop.permute.xlu0 %2601
        %2603 = vrot.lane.b32.xlu0 %v1526, 96
        %v2604 = vpop.permute.xlu0 %2603
        %2605 = vrot.lane.b32.xlu0 %v1527, 96
        %v2606 = vpop.permute.xlu0 %2605
        %2607 = vrot.lane.b32.xlu0 %v1528, 96
        %v2608 = vpop.permute.xlu0 %2607
        %2609 = vrot.lane.b32.xlu0 %v1529, 96
        %v2610 = vpop.permute.xlu0 %2609
        %2611 = vrot.lane.b32.xlu0 %v1530, 96
        %v2612 = vpop.permute.xlu0 %2611
        %v2614 = vsel %vm1583, %v2574, 0
        %v2617 = vsel %vm1583, %v2576, 0
        %v2620 = vsel %vm1583, %v2578, 0
        %v2623 = vsel %vm1583, %v2580, 0
        %v2626 = vsel %vm1583, %v2582, 0
        %v2629 = vsel %vm1583, %v2584, 0
        %v2632 = vsel %vm1583, %v2586, 0
        %v2635 = vsel %vm1583, %v2588, 0
        %v2638 = vsel %vm1583, %v2598, 0
        %v2641 = vsel %vm1583, %v2600, 0
        %v2644 = vsel %vm1583, %v2602, 0
        %v2647 = vsel %vm1583, %v2604, 0
        %v2650 = vsel %vm1583, %v2606, 0
        %v2653 = vsel %vm1583, %v2608, 0
        %v2656 = vsel %vm1583, %v2610, 0
        %v2659 = vsel %vm1583, %v2612, 0
        %2661 = vmatprep.subr.bf16.mxu0 0
        %2662 = vmatpush1.bf16.xpose.msra.mxu0 %v2659
        %2663 = vmatprep.subr.bf16.mxu0 0
        %2664 = vmatpush1.bf16.xpose.msra.mxu0 %v2656
        %2665 = vmatprep.subr.bf16.mxu0 0
        %2666 = vmatpush1.bf16.xpose.msra.mxu0 %v2653
        %2667 = vmatprep.subr.bf16.mxu0 0
        %2668 = vmatpush1.bf16.xpose.msra.mxu0 %v2650
        %2669 = vmatprep.subr.bf16.mxu0 0
        %2670 = vmatpush1.bf16.xpose.msra.mxu0 %v2647
        %2671 = vmatprep.subr.bf16.mxu0 0
        %2672 = vmatpush1.bf16.xpose.msra.mxu0 %v2644
        %2673 = vmatprep.subr.bf16.mxu0 0
        %2674 = vmatpush1.bf16.xpose.msra.mxu0 %v2641
        %2675 = vmatprep.subr.bf16.mxu0 0
        %2676 = vmatpush1.bf16.xpose.msra.mxu0 %v2638
        %2677 = vmatprep.subr.bf16.mxu0 0
        %2678 = vmatpush2.bf16.xpose.msra.mxu0 0
        %2679 = vmatprep.subr.bf16.mxu0 0
        %2680 = vmatpush2.bf16.xpose.msra.mxu0 0
        %2681 = vmatprep.subr.bf16.mxu0 0
        %2682 = vmatpush2.bf16.xpose.msra.mxu0 0
        %2683 = vmatprep.subr.bf16.mxu0 0
        %2684 = vmatpush2.bf16.xpose.msra.mxu0 0
        %2685 = vmatprep.subr.bf16.mxu0 0
        %2686 = vmatpush2.bf16.xpose.msra.mxu0 0
        %2687 = vmatprep.subr.bf16.mxu0 0
        %2688 = vmatpush2.bf16.xpose.msra.mxu0 0
        %2689 = vmatprep.subr.bf16.mxu0 0
        %2690 = vmatpush2.bf16.xpose.msra.mxu0 0
        %2691 = vmatprep.subr.bf16.mxu0 0
        %2692 = vmatpush2.bf16.xpose.msra.mxu0 0
        %2693 = vmatprep.mubr.bf16.mxu0 0
        %2694 = vmatmul.mubr.bf16.gmra.mxu0 %v2614
        %v2695 = vpop.f32.mrf.mxu0
        %v2696 = vadd.f32 0.0, %v2695
        %v2697 = vpop.f32.mrf.mxu0
        %v2698 = vpop.f32.mrf.mxu0
        %v2699 = vadd.f32 0.0, %v2698
        %v2700 = vpop.f32.mrf.mxu0
        %2701 = vmatprep.mubr.bf16.mxu0 0
        %2702 = vmatmul.mubr.bf16.gmra.mxu0 %v2617
        %v2703 = vpop.f32.mrf.mxu0
        %v2704 = vadd.f32 0.0, %v2703
        %v2705 = vpop.f32.mrf.mxu0
        %v2706 = vpop.f32.mrf.mxu0
        %v2707 = vadd.f32 0.0, %v2706
        %v2708 = vpop.f32.mrf.mxu0
        %2709 = vmatprep.mubr.bf16.mxu0 0
        %2710 = vmatmul.mubr.bf16.gmra.mxu0 %v2620
        %v2711 = vpop.f32.mrf.mxu0
        %v2712 = vadd.f32 0.0, %v2711
        %v2713 = vpop.f32.mrf.mxu0
        %v2714 = vpop.f32.mrf.mxu0
        %v2715 = vadd.f32 0.0, %v2714
        %v2716 = vpop.f32.mrf.mxu0
        %2717 = vmatprep.mubr.bf16.mxu0 0
        %2718 = vmatmul.mubr.bf16.gmra.mxu0 %v2623
        %v2719 = vpop.f32.mrf.mxu0
        %v2720 = vadd.f32 0.0, %v2719
        %v2721 = vpop.f32.mrf.mxu0
        %v2722 = vpop.f32.mrf.mxu0
        %v2723 = vadd.f32 0.0, %v2722
        %v2724 = vpop.f32.mrf.mxu0
        %2725 = vmatprep.mubr.bf16.mxu0 0
        %2726 = vmatmul.mubr.bf16.gmra.mxu0 %v2626
        %v2727 = vpop.f32.mrf.mxu0
        %v2728 = vadd.f32 0.0, %v2727
        %v2729 = vpop.f32.mrf.mxu0
        %v2730 = vpop.f32.mrf.mxu0
        %v2731 = vadd.f32 0.0, %v2730
        %v2732 = vpop.f32.mrf.mxu0
        %2733 = vmatprep.mubr.bf16.mxu0 0
        %2734 = vmatmul.mubr.bf16.gmra.mxu0 %v2629
        %v2735 = vpop.f32.mrf.mxu0
        %v2736 = vadd.f32 0.0, %v2735
        %v2737 = vpop.f32.mrf.mxu0
        %v2738 = vpop.f32.mrf.mxu0
        %v2739 = vadd.f32 0.0, %v2738
        %v2740 = vpop.f32.mrf.mxu0
        %2741 = vmatprep.mubr.bf16.mxu0 0
        %2742 = vmatmul.mubr.bf16.gmra.mxu0 %v2632
        %v2743 = vpop.f32.mrf.mxu0
        %v2744 = vadd.f32 0.0, %v2743
        %v2745 = vpop.f32.mrf.mxu0
        %v2746 = vpop.f32.mrf.mxu0
        %v2747 = vadd.f32 0.0, %v2746
        %v2748 = vpop.f32.mrf.mxu0
        %2749 = vmatprep.mubr.bf16.mxu0 0
        %2750 = vmatmul.mubr.bf16.gmra.mxu0 %v2635
        %v2751 = vpop.f32.mrf.mxu0
        %v2752 = vadd.f32 0.0, %v2751
        %v2753 = vpop.f32.mrf.mxu0
        %v2754 = vpop.f32.mrf.mxu0
        %v2755 = vadd.f32 0.0, %v2754
        %v2756 = vpop.f32.mrf.mxu0
        %2757 = vdwg.mxu0
        %2758 = vmax.xlane.f32.xlu0 %v2503
        %v2759 = vpop.xlane.xlu0 %2758
        %2760 = vmax.xlane.f32.xlu0 %v2506
        %v2761 = vpop.xlane.xlu0 %2760
        %2762 = vmax.xlane.f32.xlu0 %v2511
        %v2763 = vpop.xlane.xlu0 %2762
        %2764 = vmax.xlane.f32.xlu0 %v2514
        %v2765 = vpop.xlane.xlu0 %2764
        %2766 = vmax.xlane.f32.xlu0 %v2519
        %v2767 = vpop.xlane.xlu0 %2766
        %2768 = vmax.xlane.f32.xlu0 %v2522
        %v2769 = vpop.xlane.xlu0 %2768
        %2770 = vmax.xlane.f32.xlu0 %v2527
        %v2771 = vpop.xlane.xlu0 %2770
        %2772 = vmax.xlane.f32.xlu0 %v2530
        %v2773 = vpop.xlane.xlu0 %2772
        %2774 = vmax.xlane.f32.xlu0 %v2535
        %v2775 = vpop.xlane.xlu0 %2774
        %2776 = vmax.xlane.f32.xlu0 %v2538
        %v2777 = vpop.xlane.xlu0 %2776
        %2778 = vmax.xlane.f32.xlu0 %v2543
        %v2779 = vpop.xlane.xlu0 %2778
        %2780 = vmax.xlane.f32.xlu0 %v2546
        %v2781 = vpop.xlane.xlu0 %2780
        %2782 = vmax.xlane.f32.xlu0 %v2551
        %v2783 = vpop.xlane.xlu0 %2782
        %2784 = vmax.xlane.f32.xlu0 %v2554
        %v2785 = vpop.xlane.xlu0 %2784
        %2786 = vmax.xlane.f32.xlu0 %v2559
        %v2787 = vpop.xlane.xlu0 %2786
        %2788 = vmax.xlane.f32.xlu0 %v2562
        %v2789 = vpop.xlane.xlu0 %2788
        %2790 = vmax.xlane.f32.xlu0 %v2696
        %v2791 = vpop.xlane.xlu0 %2790
        %2792 = vmax.xlane.f32.xlu0 %v2699
        %v2793 = vpop.xlane.xlu0 %2792
        %2794 = vmax.xlane.f32.xlu0 %v2704
        %v2795 = vpop.xlane.xlu0 %2794
        %2796 = vmax.xlane.f32.xlu0 %v2707
        %v2797 = vpop.xlane.xlu0 %2796
        %2798 = vmax.xlane.f32.xlu0 %v2712
        %v2799 = vpop.xlane.xlu0 %2798
        %2800 = vmax.xlane.f32.xlu0 %v2715
        %v2801 = vpop.xlane.xlu0 %2800
        %2802 = vmax.xlane.f32.xlu0 %v2720
        %v2803 = vpop.xlane.xlu0 %2802
        %2804 = vmax.xlane.f32.xlu0 %v2723
        %v2805 = vpop.xlane.xlu0 %2804
        %2806 = vmax.xlane.f32.xlu0 %v2728
        %v2807 = vpop.xlane.xlu0 %2806
        %2808 = vmax.xlane.f32.xlu0 %v2731
        %v2809 = vpop.xlane.xlu0 %2808
        %2810 = vmax.xlane.f32.xlu0 %v2736
        %v2811 = vpop.xlane.xlu0 %2810
        %2812 = vmax.xlane.f32.xlu0 %v2739
        %v2813 = vpop.xlane.xlu0 %2812
        %2814 = vmax.xlane.f32.xlu0 %v2744
        %v2815 = vpop.xlane.xlu0 %2814
        %2816 = vmax.xlane.f32.xlu0 %v2747
        %v2817 = vpop.xlane.xlu0 %2816
        %2818 = vmax.xlane.f32.xlu0 %v2752
        %v2819 = vpop.xlane.xlu0 %2818
        %2820 = vmax.xlane.f32.xlu0 %v2755
        %v2821 = vpop.xlane.xlu0 %2820
        %v2822 = vsub.f32 %v2503, %v2759
        %v2823 = vsub.f32 %v2506, %v2761
        %v2824 = vsub.f32 %v2511, %v2763
        %v2825 = vsub.f32 %v2514, %v2765
        %v2826 = vsub.f32 %v2519, %v2767
        %v2827 = vsub.f32 %v2522, %v2769
        %v2828 = vsub.f32 %v2527, %v2771
        %v2829 = vsub.f32 %v2530, %v2773
        %v2830 = vsub.f32 %v2535, %v2775
        %v2831 = vsub.f32 %v2538, %v2777
        %v2832 = vsub.f32 %v2543, %v2779
        %v2833 = vsub.f32 %v2546, %v2781
        %v2834 = vsub.f32 %v2551, %v2783
        %v2835 = vsub.f32 %v2554, %v2785
        %v2836 = vsub.f32 %v2559, %v2787
        %v2837 = vsub.f32 %v2562, %v2789
        %v2838 = vsub.f32 %v2696, %v2791
        %v2839 = vsub.f32 %v2699, %v2793
        %v2840 = vsub.f32 %v2704, %v2795
        %v2841 = vsub.f32 %v2707, %v2797
        %v2842 = vsub.f32 %v2712, %v2799
        %v2843 = vsub.f32 %v2715, %v2801
        %v2844 = vsub.f32 %v2720, %v2803
        %v2845 = vsub.f32 %v2723, %v2805
        %v2846 = vsub.f32 %v2728, %v2807
        %v2847 = vsub.f32 %v2731, %v2809
        %v2848 = vsub.f32 %v2736, %v2811
        %v2849 = vsub.f32 %v2739, %v2813
        %v2850 = vsub.f32 %v2744, %v2815
        %v2851 = vsub.f32 %v2747, %v2817
        %v2852 = vsub.f32 %v2752, %v2819
        %v2853 = vsub.f32 %v2755, %v2821
        %v2854 = vmul.f32 %v2822, 1.442695
        %v2855 = vpow.pop %v2854
        %v2856 = vmul.f32 %v2823, 1.442695
        %v2857 = vpow.pop %v2856
        %v2858 = vmul.f32 %v2824, 1.442695
        %v2859 = vpow.pop %v2858
        %v2860 = vmul.f32 %v2825, 1.442695
        %v2861 = vpow.pop %v2860
        %v2862 = vmul.f32 %v2826, 1.442695
        %v2863 = vpow.pop %v2862
        %v2864 = vmul.f32 %v2827, 1.442695
        %v2865 = vpow.pop %v2864
        %v2866 = vmul.f32 %v2828, 1.442695
        %v2867 = vpow.pop %v2866
        %v2868 = vmul.f32 %v2829, 1.442695
        %v2869 = vpow.pop %v2868
        %v2870 = vmul.f32 %v2830, 1.442695
        %v2871 = vpow.pop %v2870
        %v2872 = vmul.f32 %v2831, 1.442695
        %v2873 = vpow.pop %v2872
        %v2874 = vmul.f32 %v2832, 1.442695
        %v2875 = vpow.pop %v2874
        %v2876 = vmul.f32 %v2833, 1.442695
        %v2877 = vpow.pop %v2876
        %v2878 = vmul.f32 %v2834, 1.442695
        %v2879 = vpow.pop %v2878
        %v2880 = vmul.f32 %v2835, 1.442695
        %v2881 = vpow.pop %v2880
        %v2882 = vmul.f32 %v2836, 1.442695
        %v2883 = vpow.pop %v2882
        %v2884 = vmul.f32 %v2837, 1.442695
        %v2885 = vpow.pop %v2884
        %v2886 = vmul.f32 %v2838, 1.442695
        %v2887 = vpow.pop %v2886
        %v2888 = vmul.f32 %v2839, 1.442695
        %v2889 = vpow.pop %v2888
        %v2890 = vmul.f32 %v2840, 1.442695
        %v2891 = vpow.pop %v2890
        %v2892 = vmul.f32 %v2841, 1.442695
        %v2893 = vpow.pop %v2892
        %v2894 = vmul.f32 %v2842, 1.442695
        %v2895 = vpow.pop %v2894
        %v2896 = vmul.f32 %v2843, 1.442695
        %v2897 = vpow.pop %v2896
        %v2898 = vmul.f32 %v2844, 1.442695
        %v2899 = vpow.pop %v2898
        %v2900 = vmul.f32 %v2845, 1.442695
        %v2901 = vpow.pop %v2900
        %v2902 = vmul.f32 %v2846, 1.442695
        %v2903 = vpow.pop %v2902
        %v2904 = vmul.f32 %v2847, 1.442695
        %v2905 = vpow.pop %v2904
        %v2906 = vmul.f32 %v2848, 1.442695
        %v2907 = vpow.pop %v2906
        %v2908 = vmul.f32 %v2849, 1.442695
        %v2909 = vpow.pop %v2908
        %v2910 = vmul.f32 %v2850, 1.442695
        %v2911 = vpow.pop %v2910
        %v2912 = vmul.f32 %v2851, 1.442695
        %v2913 = vpow.pop %v2912
        %v2914 = vmul.f32 %v2852, 1.442695
        %v2915 = vpow.pop %v2914
        %v2916 = vmul.f32 %v2853, 1.442695
        %v2917 = vpow.pop %v2916
        %2918 = vadd.xlane.f32.xlu0 %v2855
        %v2919 = vpop.xlane.xlu0 %2918
        %2920 = vadd.xlane.f32.xlu0 %v2857
        %v2921 = vpop.xlane.xlu0 %2920
        %2922 = vadd.xlane.f32.xlu0 %v2859
        %v2923 = vpop.xlane.xlu0 %2922
        %2924 = vadd.xlane.f32.xlu0 %v2861
        %v2925 = vpop.xlane.xlu0 %2924
        %2926 = vadd.xlane.f32.xlu0 %v2863
        %v2927 = vpop.xlane.xlu0 %2926
        %2928 = vadd.xlane.f32.xlu0 %v2865
        %v2929 = vpop.xlane.xlu0 %2928
        %2930 = vadd.xlane.f32.xlu0 %v2867
        %v2931 = vpop.xlane.xlu0 %2930
        %2932 = vadd.xlane.f32.xlu0 %v2869
        %v2933 = vpop.xlane.xlu0 %2932
        %2934 = vadd.xlane.f32.xlu0 %v2871
        %v2935 = vpop.xlane.xlu0 %2934
        %2936 = vadd.xlane.f32.xlu0 %v2873
        %v2937 = vpop.xlane.xlu0 %2936
        %2938 = vadd.xlane.f32.xlu0 %v2875
        %v2939 = vpop.xlane.xlu0 %2938
        %2940 = vadd.xlane.f32.xlu0 %v2877
        %v2941 = vpop.xlane.xlu0 %2940
        %2942 = vadd.xlane.f32.xlu0 %v2879
        %v2943 = vpop.xlane.xlu0 %2942
        %2944 = vadd.xlane.f32.xlu0 %v2881
        %v2945 = vpop.xlane.xlu0 %2944
        %2946 = vadd.xlane.f32.xlu0 %v2883
        %v2947 = vpop.xlane.xlu0 %2946
        %2948 = vadd.xlane.f32.xlu0 %v2885
        %v2949 = vpop.xlane.xlu0 %2948
        %2950 = vadd.xlane.f32.xlu0 %v2887
        %v2951 = vpop.xlane.xlu0 %2950
        %2952 = vadd.xlane.f32.xlu0 %v2889
        %v2953 = vpop.xlane.xlu0 %2952
        %2954 = vadd.xlane.f32.xlu0 %v2891
        %v2955 = vpop.xlane.xlu0 %2954
        %2956 = vadd.xlane.f32.xlu0 %v2893
        %v2957 = vpop.xlane.xlu0 %2956
        %2958 = vadd.xlane.f32.xlu0 %v2895
        %v2959 = vpop.xlane.xlu0 %2958
        %2960 = vadd.xlane.f32.xlu0 %v2897
        %v2961 = vpop.xlane.xlu0 %2960
        %2962 = vadd.xlane.f32.xlu0 %v2899
        %v2963 = vpop.xlane.xlu0 %2962
        %2964 = vadd.xlane.f32.xlu0 %v2901
        %v2965 = vpop.xlane.xlu0 %2964
        %2966 = vadd.xlane.f32.xlu0 %v2903
        %v2967 = vpop.xlane.xlu0 %2966
        %2968 = vadd.xlane.f32.xlu0 %v2905
        %v2969 = vpop.xlane.xlu0 %2968
        %2970 = vadd.xlane.f32.xlu0 %v2907
        %v2971 = vpop.xlane.xlu0 %2970
        %2972 = vadd.xlane.f32.xlu0 %v2909
        %v2973 = vpop.xlane.xlu0 %2972
        %2974 = vadd.xlane.f32.xlu0 %v2911
        %v2975 = vpop.xlane.xlu0 %2974
        %2976 = vadd.xlane.f32.xlu0 %v2913
        %v2977 = vpop.xlane.xlu0 %2976
        %2978 = vadd.xlane.f32.xlu0 %v2915
        %v2979 = vpop.xlane.xlu0 %2978
        %2980 = vadd.xlane.f32.xlu0 %v2917
        %v2981 = vpop.xlane.xlu0 %2980
        %v2982 = vrcp.pop %v2919
        %v2983 = vrcp.pop %v2921
        %v2984 = vrcp.pop %v2923
        %v2985 = vrcp.pop %v2925
        %v2986 = vrcp.pop %v2927
        %v2987 = vrcp.pop %v2929
        %v2988 = vrcp.pop %v2931
        %v2989 = vrcp.pop %v2933
        %v2990 = vrcp.pop %v2935
        %v2991 = vrcp.pop %v2937
        %v2992 = vrcp.pop %v2939
        %v2993 = vrcp.pop %v2941
        %v2994 = vrcp.pop %v2943
        %v2995 = vrcp.pop %v2945
        %v2996 = vrcp.pop %v2947
        %v2997 = vrcp.pop %v2949
        %v2998 = vrcp.pop %v2951
        %v2999 = vrcp.pop %v2953
        %v3000 = vrcp.pop %v2955
        %v3001 = vrcp.pop %v2957
        %v3002 = vrcp.pop %v2959
        %v3003 = vrcp.pop %v2961
        %v3004 = vrcp.pop %v2963
        %v3005 = vrcp.pop %v2965
        %v3006 = vrcp.pop %v2967
        %v3007 = vrcp.pop %v2969
        %v3008 = vrcp.pop %v2971
        %v3009 = vrcp.pop %v2973
        %v3010 = vrcp.pop %v2975
        %v3011 = vrcp.pop %v2977
        %v3012 = vrcp.pop %v2979
        %v3013 = vrcp.pop %v2981
        %v3014 = vmul.f32 %v2855, %v2982
        %v3015 = vmul.f32 %v2857, %v2983
        %v3016 = vmul.f32 %v2859, %v2984
        %v3017 = vmul.f32 %v2861, %v2985
        %v3018 = vmul.f32 %v2863, %v2986
        %v3019 = vmul.f32 %v2865, %v2987
        %v3020 = vmul.f32 %v2867, %v2988
        %v3021 = vmul.f32 %v2869, %v2989
        %v3022 = vmul.f32 %v2871, %v2990
        %v3023 = vmul.f32 %v2873, %v2991
        %v3024 = vmul.f32 %v2875, %v2992
        %v3025 = vmul.f32 %v2877, %v2993
        %v3026 = vmul.f32 %v2879, %v2994
        %v3027 = vmul.f32 %v2881, %v2995
        %v3028 = vmul.f32 %v2883, %v2996
        %v3029 = vmul.f32 %v2885, %v2997
        %v3030 = vmul.f32 %v2887, %v2998
        %v3031 = vmul.f32 %v2889, %v2999
        %v3032 = vmul.f32 %v2891, %v3000
        %v3033 = vmul.f32 %v2893, %v3001
        %v3034 = vmul.f32 %v2895, %v3002
        %v3035 = vmul.f32 %v2897, %v3003
        %v3036 = vmul.f32 %v2899, %v3004
        %v3037 = vmul.f32 %v2901, %v3005
        %v3038 = vmul.f32 %v2903, %v3006
        %v3039 = vmul.f32 %v2905, %v3007
        %v3040 = vmul.f32 %v2907, %v3008
        %v3041 = vmul.f32 %v2909, %v3009
        %v3042 = vmul.f32 %v2911, %v3010
        %v3043 = vmul.f32 %v2913, %v3011
        %v3044 = vmul.f32 %v2915, %v3012
        %v3045 = vmul.f32 %v2917, %v3013
        %v3046 = vpack.c.bf16 %v3015, %v3014
        %v3047 = vpack.c.bf16 %v3017, %v3016
        %v3048 = vpack.c.bf16 %v3019, %v3018
        %v3049 = vpack.c.bf16 %v3021, %v3020
        %v3050 = vpack.c.bf16 %v3023, %v3022
        %v3051 = vpack.c.bf16 %v3025, %v3024
        %v3052 = vpack.c.bf16 %v3027, %v3026
        %v3053 = vpack.c.bf16 %v3029, %v3028
        %v3054 = vpack.c.bf16 %v3031, %v3030
        %v3055 = vpack.c.bf16 %v3033, %v3032
        %v3056 = vpack.c.bf16 %v3035, %v3034
        %v3057 = vpack.c.bf16 %v3037, %v3036
        %v3058 = vpack.c.bf16 %v3039, %v3038
        %v3059 = vpack.c.bf16 %v3041, %v3040
        %v3060 = vpack.c.bf16 %v3043, %v3042
        %v3061 = vpack.c.bf16 %v3045, %v3044
        %3070 = vrot.lane.b32.xlu0 %v1567, 96
        %v3071 = vpop.permute.xlu0 %3070
        %3072 = vrot.lane.b32.xlu0 %v1568, 96
        %v3073 = vpop.permute.xlu0 %3072
        %3074 = vrot.lane.b32.xlu0 %v1569, 96
        %v3075 = vpop.permute.xlu0 %3074
        %3076 = vrot.lane.b32.xlu0 %v1570, 96
        %v3077 = vpop.permute.xlu0 %3076
        %3078 = vrot.lane.b32.xlu0 %v1571, 96
        %v3079 = vpop.permute.xlu0 %3078
        %3080 = vrot.lane.b32.xlu0 %v1572, 96
        %v3081 = vpop.permute.xlu0 %3080
        %3082 = vrot.lane.b32.xlu0 %v1573, 96
        %v3083 = vpop.permute.xlu0 %3082
        %3084 = vrot.lane.b32.xlu0 %v1574, 96
        %v3085 = vpop.permute.xlu0 %3084
        %3094 = vmatprep.subr.bf16.mxu0 0
        %3095 = vmatpush1.bf16.msra.mxu0 %v3085
        %3096 = vmatprep.subr.bf16.mxu0 0
        %3097 = vmatpush1.bf16.msra.mxu0 %v3083
        %3098 = vmatprep.subr.bf16.mxu0 0
        %3099 = vmatpush1.bf16.msra.mxu0 %v3081
        %3100 = vmatprep.subr.bf16.mxu0 0
        %3101 = vmatpush1.bf16.msra.mxu0 %v3079
        %3102 = vmatprep.subr.bf16.mxu0 0
        %3103 = vmatpush1.bf16.msra.mxu0 %v3077
        %3104 = vmatprep.subr.bf16.mxu0 0
        %3105 = vmatpush1.bf16.msra.mxu0 %v3075
        %3106 = vmatprep.subr.bf16.mxu0 0
        %3107 = vmatpush1.bf16.msra.mxu0 %v3073
        %3108 = vmatprep.subr.bf16.mxu0 0
        %3109 = vmatpush1.bf16.msra.mxu0 %v3071
        %3110 = vmatprep.subr.bf16.mxu0 0
        %3111 = vmatpush2.bf16.msra.mxu0 0
        %3112 = vmatprep.subr.bf16.mxu0 0
        %3113 = vmatpush2.bf16.msra.mxu0 0
        %3114 = vmatprep.subr.bf16.mxu0 0
        %3115 = vmatpush2.bf16.msra.mxu0 0
        %3116 = vmatprep.subr.bf16.mxu0 0
        %3117 = vmatpush2.bf16.msra.mxu0 0
        %3118 = vmatprep.subr.bf16.mxu0 0
        %3119 = vmatpush2.bf16.msra.mxu0 0
        %3120 = vmatprep.subr.bf16.mxu0 0
        %3121 = vmatpush2.bf16.msra.mxu0 0
        %3122 = vmatprep.subr.bf16.mxu0 0
        %3123 = vmatpush2.bf16.msra.mxu0 0
        %3124 = vmatprep.subr.bf16.mxu0 0
        %3125 = vmatpush2.bf16.msra.mxu0 0
        %3126 = vmatprep.mubr.bf16.mxu0 0
        %3127 = vmatmul.mubr.bf16.gmra.mxu0 %v3046
        %v3128 = vpop.f32.mrf.mxu0
        %v3129 = vadd.f32 0.0, %v3128
        %v3130 = vpop.f32.mrf.mxu0
        %v3131 = vpop.f32.mrf.mxu0
        %v3132 = vadd.f32 0.0, %v3131
        %v3133 = vpop.f32.mrf.mxu0
        %3134 = vmatprep.mubr.bf16.mxu0 0
        %3135 = vmatmul.mubr.bf16.gmra.mxu0 %v3047
        %v3136 = vpop.f32.mrf.mxu0
        %v3137 = vadd.f32 0.0, %v3136
        %v3138 = vpop.f32.mrf.mxu0
        %v3139 = vpop.f32.mrf.mxu0
        %v3140 = vadd.f32 0.0, %v3139
        %v3141 = vpop.f32.mrf.mxu0
        %3142 = vmatprep.mubr.bf16.mxu0 0
        %3143 = vmatmul.mubr.bf16.gmra.mxu0 %v3048
        %v3144 = vpop.f32.mrf.mxu0
        %v3145 = vadd.f32 0.0, %v3144
        %v3146 = vpop.f32.mrf.mxu0
        %v3147 = vpop.f32.mrf.mxu0
        %v3148 = vadd.f32 0.0, %v3147
        %v3149 = vpop.f32.mrf.mxu0
        %3150 = vmatprep.mubr.bf16.mxu0 0
        %3151 = vmatmul.mubr.bf16.gmra.mxu0 %v3049
        %v3152 = vpop.f32.mrf.mxu0
        %v3153 = vadd.f32 0.0, %v3152
        %v3154 = vpop.f32.mrf.mxu0
        %v3155 = vpop.f32.mrf.mxu0
        %v3156 = vadd.f32 0.0, %v3155
        %v3157 = vpop.f32.mrf.mxu0
        %3158 = vmatprep.mubr.bf16.mxu0 0
        %3159 = vmatmul.mubr.bf16.gmra.mxu0 %v3050
        %v3160 = vpop.f32.mrf.mxu0
        %v3161 = vadd.f32 0.0, %v3160
        %v3162 = vpop.f32.mrf.mxu0
        %v3163 = vpop.f32.mrf.mxu0
        %v3164 = vadd.f32 0.0, %v3163
        %v3165 = vpop.f32.mrf.mxu0
        %3166 = vmatprep.mubr.bf16.mxu0 0
        %3167 = vmatmul.mubr.bf16.gmra.mxu0 %v3051
        %v3168 = vpop.f32.mrf.mxu0
        %v3169 = vadd.f32 0.0, %v3168
        %v3170 = vpop.f32.mrf.mxu0
        %v3171 = vpop.f32.mrf.mxu0
        %v3172 = vadd.f32 0.0, %v3171
        %v3173 = vpop.f32.mrf.mxu0
        %3174 = vmatprep.mubr.bf16.mxu0 0
        %3175 = vmatmul.mubr.bf16.gmra.mxu0 %v3052
        %v3176 = vpop.f32.mrf.mxu0
        %v3177 = vadd.f32 0.0, %v3176
        %v3178 = vpop.f32.mrf.mxu0
        %v3179 = vpop.f32.mrf.mxu0
        %v3180 = vadd.f32 0.0, %v3179
        %v3181 = vpop.f32.mrf.mxu0
        %3182 = vmatprep.mubr.bf16.mxu0 0
        %3183 = vmatmul.mubr.bf16.gmra.mxu0 %v3053
        %v3184 = vpop.f32.mrf.mxu0
        %v3185 = vadd.f32 0.0, %v3184
        %v3186 = vpop.f32.mrf.mxu0
        %v3187 = vpop.f32.mrf.mxu0
        %v3188 = vadd.f32 0.0, %v3187
        %v3189 = vpop.f32.mrf.mxu0
        %3190 = vdwg.mxu0
        %3199 = vrot.lane.b32.xlu0 %v1575, 96
        %v3200 = vpop.permute.xlu0 %3199
        %3201 = vrot.lane.b32.xlu0 %v1576, 96
        %v3202 = vpop.permute.xlu0 %3201
        %3203 = vrot.lane.b32.xlu0 %v1577, 96
        %v3204 = vpop.permute.xlu0 %3203
        %3205 = vrot.lane.b32.xlu0 %v1578, 96
        %v3206 = vpop.permute.xlu0 %3205
        %3207 = vrot.lane.b32.xlu0 %v1579, 96
        %v3208 = vpop.permute.xlu0 %3207
        %3209 = vrot.lane.b32.xlu0 %v1580, 96
        %v3210 = vpop.permute.xlu0 %3209
        %3211 = vrot.lane.b32.xlu0 %v1581, 96
        %v3212 = vpop.permute.xlu0 %3211
        %3213 = vrot.lane.b32.xlu0 %v1582, 96
        %v3214 = vpop.permute.xlu0 %3213
        %3223 = vmatprep.subr.bf16.mxu0 0
        %3224 = vmatpush1.bf16.msra.mxu0 %v3214
        %3225 = vmatprep.subr.bf16.mxu0 0
        %3226 = vmatpush1.bf16.msra.mxu0 %v3212
        %3227 = vmatprep.subr.bf16.mxu0 0
        %3228 = vmatpush1.bf16.msra.mxu0 %v3210
        %3229 = vmatprep.subr.bf16.mxu0 0
        %3230 = vmatpush1.bf16.msra.mxu0 %v3208
        %3231 = vmatprep.subr.bf16.mxu0 0
        %3232 = vmatpush1.bf16.msra.mxu0 %v3206
        %3233 = vmatprep.subr.bf16.mxu0 0
        %3234 = vmatpush1.bf16.msra.mxu0 %v3204
        %3235 = vmatprep.subr.bf16.mxu0 0
        %3236 = vmatpush1.bf16.msra.mxu0 %v3202
        %3237 = vmatprep.subr.bf16.mxu0 0
        %3238 = vmatpush1.bf16.msra.mxu0 %v3200
        %3239 = vmatprep.subr.bf16.mxu0 0
        %3240 = vmatpush2.bf16.msra.mxu0 0
        %3241 = vmatprep.subr.bf16.mxu0 0
        %3242 = vmatpush2.bf16.msra.mxu0 0
        %3243 = vmatprep.subr.bf16.mxu0 0
        %3244 = vmatpush2.bf16.msra.mxu0 0
        %3245 = vmatprep.subr.bf16.mxu0 0
        %3246 = vmatpush2.bf16.msra.mxu0 0
        %3247 = vmatprep.subr.bf16.mxu0 0
        %3248 = vmatpush2.bf16.msra.mxu0 0
        %3249 = vmatprep.subr.bf16.mxu0 0
        %3250 = vmatpush2.bf16.msra.mxu0 0
        %3251 = vmatprep.subr.bf16.mxu0 0
        %3252 = vmatpush2.bf16.msra.mxu0 0
        %3253 = vmatprep.subr.bf16.mxu0 0
        %3254 = vmatpush2.bf16.msra.mxu0 0
        %3255 = vmatprep.mubr.bf16.mxu0 0
        %3256 = vmatmul.mubr.bf16.gmra.mxu0 %v3054
        %v3257 = vpop.f32.mrf.mxu0
        %v3258 = vadd.f32 0.0, %v3257
        %v3259 = vpop.f32.mrf.mxu0
        %v3260 = vpop.f32.mrf.mxu0
        %v3261 = vadd.f32 0.0, %v3260
        %v3262 = vpop.f32.mrf.mxu0
        %3263 = vmatprep.mubr.bf16.mxu0 0
        %3264 = vmatmul.mubr.bf16.gmra.mxu0 %v3055
        %v3265 = vpop.f32.mrf.mxu0
        %v3266 = vadd.f32 0.0, %v3265
        %v3267 = vpop.f32.mrf.mxu0
        %v3268 = vpop.f32.mrf.mxu0
        %v3269 = vadd.f32 0.0, %v3268
        %v3270 = vpop.f32.mrf.mxu0
        %3271 = vmatprep.mubr.bf16.mxu0 0
        %3272 = vmatmul.mubr.bf16.gmra.mxu0 %v3056
        %v3273 = vpop.f32.mrf.mxu0
        %v3274 = vadd.f32 0.0, %v3273
        %v3275 = vpop.f32.mrf.mxu0
        %v3276 = vpop.f32.mrf.mxu0
        %v3277 = vadd.f32 0.0, %v3276
        %v3278 = vpop.f32.mrf.mxu0
        %3279 = vmatprep.mubr.bf16.mxu0 0
        %3280 = vmatmul.mubr.bf16.gmra.mxu0 %v3057
        %v3281 = vpop.f32.mrf.mxu0
        %v3282 = vadd.f32 0.0, %v3281
        %v3283 = vpop.f32.mrf.mxu0
        %v3284 = vpop.f32.mrf.mxu0
        %v3285 = vadd.f32 0.0, %v3284
        %v3286 = vpop.f32.mrf.mxu0
        %3287 = vmatprep.mubr.bf16.mxu0 0
        %3288 = vmatmul.mubr.bf16.gmra.mxu0 %v3058
        %v3289 = vpop.f32.mrf.mxu0
        %v3290 = vadd.f32 0.0, %v3289
        %v3291 = vpop.f32.mrf.mxu0
        %v3292 = vpop.f32.mrf.mxu0
        %v3293 = vadd.f32 0.0, %v3292
        %v3294 = vpop.f32.mrf.mxu0
        %3295 = vmatprep.mubr.bf16.mxu0 0
        %3296 = vmatmul.mubr.bf16.gmra.mxu0 %v3059
        %v3297 = vpop.f32.mrf.mxu0
        %v3298 = vadd.f32 0.0, %v3297
        %v3299 = vpop.f32.mrf.mxu0
        %v3300 = vpop.f32.mrf.mxu0
        %v3301 = vadd.f32 0.0, %v3300
        %v3302 = vpop.f32.mrf.mxu0
        %3303 = vmatprep.mubr.bf16.mxu0 0
        %3304 = vmatmul.mubr.bf16.gmra.mxu0 %v3060
        %v3305 = vpop.f32.mrf.mxu0
        %v3306 = vadd.f32 0.0, %v3305
        %v3307 = vpop.f32.mrf.mxu0
        %v3308 = vpop.f32.mrf.mxu0
        %v3309 = vadd.f32 0.0, %v3308
        %v3310 = vpop.f32.mrf.mxu0
        %3311 = vmatprep.mubr.bf16.mxu0 0
        %3312 = vmatmul.mubr.bf16.gmra.mxu0 %v3061
        %v3313 = vpop.f32.mrf.mxu0
        %v3314 = vadd.f32 0.0, %v3313
        %v3315 = vpop.f32.mrf.mxu0
        %v3316 = vpop.f32.mrf.mxu0
        %v3317 = vadd.f32 0.0, %v3316
        %v3318 = vpop.f32.mrf.mxu0
        %3319 = vdwg.mxu0
        %3320 = vrot.lane.b32.xlu0 %v1463, 64
        %v3321 = vpop.permute.xlu0 %3320
        %3322 = vrot.lane.b32.xlu0 %v1464, 64
        %v3323 = vpop.permute.xlu0 %3322
        %3324 = vrot.lane.b32.xlu0 %v1465, 64
        %v3325 = vpop.permute.xlu0 %3324
        %3326 = vrot.lane.b32.xlu0 %v1466, 64
        %v3327 = vpop.permute.xlu0 %3326
        %3328 = vrot.lane.b32.xlu0 %v1467, 64
        %v3329 = vpop.permute.xlu0 %3328
        %3330 = vrot.lane.b32.xlu0 %v1468, 64
        %v3331 = vpop.permute.xlu0 %3330
        %3332 = vrot.lane.b32.xlu0 %v1469, 64
        %v3333 = vpop.permute.xlu0 %3332
        %3334 = vrot.lane.b32.xlu0 %v1470, 64
        %v3335 = vpop.permute.xlu0 %3334
        %3336 = vrot.lane.b32.xlu0 %v1515, 64
        %v3337 = vpop.permute.xlu0 %3336
        %3338 = vrot.lane.b32.xlu0 %v1516, 64
        %v3339 = vpop.permute.xlu0 %3338
        %3340 = vrot.lane.b32.xlu0 %v1517, 64
        %v3341 = vpop.permute.xlu0 %3340
        %3342 = vrot.lane.b32.xlu0 %v1518, 64
        %v3343 = vpop.permute.xlu0 %3342
        %3344 = vrot.lane.b32.xlu0 %v1519, 64
        %v3345 = vpop.permute.xlu0 %3344
        %3346 = vrot.lane.b32.xlu0 %v1520, 64
        %v3347 = vpop.permute.xlu0 %3346
        %3348 = vrot.lane.b32.xlu0 %v1521, 64
        %v3349 = vpop.permute.xlu0 %3348
        %3350 = vrot.lane.b32.xlu0 %v1522, 64
        %v3351 = vpop.permute.xlu0 %3350
        %v3353 = vsel %vm1583, %v3321, 0
        %v3356 = vsel %vm1583, %v3323, 0
        %v3359 = vsel %vm1583, %v3325, 0
        %v3362 = vsel %vm1583, %v3327, 0
        %v3365 = vsel %vm1583, %v3329, 0
        %v3368 = vsel %vm1583, %v3331, 0
        %v3371 = vsel %vm1583, %v3333, 0
        %v3374 = vsel %vm1583, %v3335, 0
        %v3377 = vsel %vm1583, %v3337, 0
        %v3380 = vsel %vm1583, %v3339, 0
        %v3383 = vsel %vm1583, %v3341, 0
        %v3386 = vsel %vm1583, %v3343, 0
        %v3389 = vsel %vm1583, %v3345, 0
        %v3392 = vsel %vm1583, %v3347, 0
        %v3395 = vsel %vm1583, %v3349, 0
        %v3398 = vsel %vm1583, %v3351, 0
        %3400 = vmatprep.subr.bf16.mxu0 0
        %3401 = vmatpush1.bf16.xpose.msra.mxu0 %v3398
        %3402 = vmatprep.subr.bf16.mxu0 0
        %3403 = vmatpush1.bf16.xpose.msra.mxu0 %v3395
        %3404 = vmatprep.subr.bf16.mxu0 0
        %3405 = vmatpush1.bf16.xpose.msra.mxu0 %v3392
        %3406 = vmatprep.subr.bf16.mxu0 0
        %3407 = vmatpush1.bf16.xpose.msra.mxu0 %v3389
        %3408 = vmatprep.subr.bf16.mxu0 0
        %3409 = vmatpush1.bf16.xpose.msra.mxu0 %v3386
        %3410 = vmatprep.subr.bf16.mxu0 0
        %3411 = vmatpush1.bf16.xpose.msra.mxu0 %v3383
        %3412 = vmatprep.subr.bf16.mxu0 0
        %3413 = vmatpush1.bf16.xpose.msra.mxu0 %v3380
        %3414 = vmatprep.subr.bf16.mxu0 0
        %3415 = vmatpush1.bf16.xpose.msra.mxu0 %v3377
        %3416 = vmatprep.subr.bf16.mxu0 0
        %3417 = vmatpush2.bf16.xpose.msra.mxu0 0
        %3418 = vmatprep.subr.bf16.mxu0 0
        %3419 = vmatpush2.bf16.xpose.msra.mxu0 0
        %3420 = vmatprep.subr.bf16.mxu0 0
        %3421 = vmatpush2.bf16.xpose.msra.mxu0 0
        %3422 = vmatprep.subr.bf16.mxu0 0
        %3423 = vmatpush2.bf16.xpose.msra.mxu0 0
        %3424 = vmatprep.subr.bf16.mxu0 0
        %3425 = vmatpush2.bf16.xpose.msra.mxu0 0
        %3426 = vmatprep.subr.bf16.mxu0 0
        %3427 = vmatpush2.bf16.xpose.msra.mxu0 0
        %3428 = vmatprep.subr.bf16.mxu0 0
        %3429 = vmatpush2.bf16.xpose.msra.mxu0 0
        %3430 = vmatprep.subr.bf16.mxu0 0
        %3431 = vmatpush2.bf16.xpose.msra.mxu0 0
        %3432 = vmatprep.mubr.bf16.mxu0 0
        %3433 = vmatmul.mubr.bf16.gmra.mxu0 %v3353
        %v3434 = vpop.f32.mrf.mxu0
        %v3435 = vadd.f32 0.0, %v3434
        %v3436 = vpop.f32.mrf.mxu0
        %v3437 = vpop.f32.mrf.mxu0
        %v3438 = vadd.f32 0.0, %v3437
        %v3439 = vpop.f32.mrf.mxu0
        %3440 = vmatprep.mubr.bf16.mxu0 0
        %3441 = vmatmul.mubr.bf16.gmra.mxu0 %v3356
        %v3442 = vpop.f32.mrf.mxu0
        %v3443 = vadd.f32 0.0, %v3442
        %v3444 = vpop.f32.mrf.mxu0
        %v3445 = vpop.f32.mrf.mxu0
        %v3446 = vadd.f32 0.0, %v3445
        %v3447 = vpop.f32.mrf.mxu0
        %3448 = vmatprep.mubr.bf16.mxu0 0
        %3449 = vmatmul.mubr.bf16.gmra.mxu0 %v3359
        %v3450 = vpop.f32.mrf.mxu0
        %v3451 = vadd.f32 0.0, %v3450
        %v3452 = vpop.f32.mrf.mxu0
        %v3453 = vpop.f32.mrf.mxu0
        %v3454 = vadd.f32 0.0, %v3453
        %v3455 = vpop.f32.mrf.mxu0
        %3456 = vmatprep.mubr.bf16.mxu0 0
        %3457 = vmatmul.mubr.bf16.gmra.mxu0 %v3362
        %v3458 = vpop.f32.mrf.mxu0
        %v3459 = vadd.f32 0.0, %v3458
        %v3460 = vpop.f32.mrf.mxu0
        %v3461 = vpop.f32.mrf.mxu0
        %v3462 = vadd.f32 0.0, %v3461
        %v3463 = vpop.f32.mrf.mxu0
        %3464 = vmatprep.mubr.bf16.mxu0 0
        %3465 = vmatmul.mubr.bf16.gmra.mxu0 %v3365
        %v3466 = vpop.f32.mrf.mxu0
        %v3467 = vadd.f32 0.0, %v3466
        %v3468 = vpop.f32.mrf.mxu0
        %v3469 = vpop.f32.mrf.mxu0
        %v3470 = vadd.f32 0.0, %v3469
        %v3471 = vpop.f32.mrf.mxu0
        %3472 = vmatprep.mubr.bf16.mxu0 0
        %3473 = vmatmul.mubr.bf16.gmra.mxu0 %v3368
        %v3474 = vpop.f32.mrf.mxu0
        %v3475 = vadd.f32 0.0, %v3474
        %v3476 = vpop.f32.mrf.mxu0
        %v3477 = vpop.f32.mrf.mxu0
        %v3478 = vadd.f32 0.0, %v3477
        %v3479 = vpop.f32.mrf.mxu0
        %3480 = vmatprep.mubr.bf16.mxu0 0
        %3481 = vmatmul.mubr.bf16.gmra.mxu0 %v3371
        %v3482 = vpop.f32.mrf.mxu0
        %v3483 = vadd.f32 0.0, %v3482
        %v3484 = vpop.f32.mrf.mxu0
        %v3485 = vpop.f32.mrf.mxu0
        %v3486 = vadd.f32 0.0, %v3485
        %v3487 = vpop.f32.mrf.mxu0
        %3488 = vmatprep.mubr.bf16.mxu0 0
        %3489 = vmatmul.mubr.bf16.gmra.mxu0 %v3374
        %v3490 = vpop.f32.mrf.mxu0
        %v3491 = vadd.f32 0.0, %v3490
        %v3492 = vpop.f32.mrf.mxu0
        %v3493 = vpop.f32.mrf.mxu0
        %v3494 = vadd.f32 0.0, %v3493
        %v3495 = vpop.f32.mrf.mxu0
        %3496 = vdwg.mxu0
        %3497 = vrot.lane.b32.xlu0 %v1471, 64
        %v3498 = vpop.permute.xlu0 %3497
        %3499 = vrot.lane.b32.xlu0 %v1472, 64
        %v3500 = vpop.permute.xlu0 %3499
        %3501 = vrot.lane.b32.xlu0 %v1473, 64
        %v3502 = vpop.permute.xlu0 %3501
        %3503 = vrot.lane.b32.xlu0 %v1474, 64
        %v3504 = vpop.permute.xlu0 %3503
        %3505 = vrot.lane.b32.xlu0 %v1475, 64
        %v3506 = vpop.permute.xlu0 %3505
        %3507 = vrot.lane.b32.xlu0 %v1476, 64
        %v3508 = vpop.permute.xlu0 %3507
        %3509 = vrot.lane.b32.xlu0 %v1477, 64
        %v3510 = vpop.permute.xlu0 %3509
        %3511 = vrot.lane.b32.xlu0 %v1478, 64
        %v3512 = vpop.permute.xlu0 %3511
        %3513 = vrot.lane.b32.xlu0 %v1523, 64
        %v3514 = vpop.permute.xlu0 %3513
        %3515 = vrot.lane.b32.xlu0 %v1524, 64
        %v3516 = vpop.permute.xlu0 %3515
        %3517 = vrot.lane.b32.xlu0 %v1525, 64
        %v3518 = vpop.permute.xlu0 %3517
        %3519 = vrot.lane.b32.xlu0 %v1526, 64
        %v3520 = vpop.permute.xlu0 %3519
        %3521 = vrot.lane.b32.xlu0 %v1527, 64
        %v3522 = vpop.permute.xlu0 %3521
        %3523 = vrot.lane.b32.xlu0 %v1528, 64
        %v3524 = vpop.permute.xlu0 %3523
        %3525 = vrot.lane.b32.xlu0 %v1529, 64
        %v3526 = vpop.permute.xlu0 %3525
        %3527 = vrot.lane.b32.xlu0 %v1530, 64
        %v3528 = vpop.permute.xlu0 %3527
        %v3530 = vsel %vm1583, %v3498, 0
        %v3533 = vsel %vm1583, %v3500, 0
        %v3536 = vsel %vm1583, %v3502, 0
        %v3539 = vsel %vm1583, %v3504, 0
        %v3542 = vsel %vm1583, %v3506, 0
        %v3545 = vsel %vm1583, %v3508, 0
        %v3548 = vsel %vm1583, %v3510, 0
        %v3551 = vsel %vm1583, %v3512, 0
        %v3554 = vsel %vm1583, %v3514, 0
        %v3557 = vsel %vm1583, %v3516, 0
        %v3560 = vsel %vm1583, %v3518, 0
        %v3563 = vsel %vm1583, %v3520, 0
        %v3566 = vsel %vm1583, %v3522, 0
        %v3569 = vsel %vm1583, %v3524, 0
        %v3572 = vsel %vm1583, %v3526, 0
        %v3575 = vsel %vm1583, %v3528, 0
        %3577 = vmatprep.subr.bf16.mxu0 0
        %3578 = vmatpush1.bf16.xpose.msra.mxu0 %v3575
        %3579 = vmatprep.subr.bf16.mxu0 0
        %3580 = vmatpush1.bf16.xpose.msra.mxu0 %v3572
        %3581 = vmatprep.subr.bf16.mxu0 0
        %3582 = vmatpush1.bf16.xpose.msra.mxu0 %v3569
        %3583 = vmatprep.subr.bf16.mxu0 0
        %3584 = vmatpush1.bf16.xpose.msra.mxu0 %v3566
        %3585 = vmatprep.subr.bf16.mxu0 0
        %3586 = vmatpush1.bf16.xpose.msra.mxu0 %v3563
        %3587 = vmatprep.subr.bf16.mxu0 0
        %3588 = vmatpush1.bf16.xpose.msra.mxu0 %v3560
        %3589 = vmatprep.subr.bf16.mxu0 0
        %3590 = vmatpush1.bf16.xpose.msra.mxu0 %v3557
        %3591 = vmatprep.subr.bf16.mxu0 0
        %3592 = vmatpush1.bf16.xpose.msra.mxu0 %v3554
        %3593 = vmatprep.subr.bf16.mxu0 0
        %3594 = vmatpush2.bf16.xpose.msra.mxu0 0
        %3595 = vmatprep.subr.bf16.mxu0 0
        %3596 = vmatpush2.bf16.xpose.msra.mxu0 0
        %3597 = vmatprep.subr.bf16.mxu0 0
        %3598 = vmatpush2.bf16.xpose.msra.mxu0 0
        %3599 = vmatprep.subr.bf16.mxu0 0
        %3600 = vmatpush2.bf16.xpose.msra.mxu0 0
        %3601 = vmatprep.subr.bf16.mxu0 0
        %3602 = vmatpush2.bf16.xpose.msra.mxu0 0
        %3603 = vmatprep.subr.bf16.mxu0 0
        %3604 = vmatpush2.bf16.xpose.msra.mxu0 0
        %3605 = vmatprep.subr.bf16.mxu0 0
        %3606 = vmatpush2.bf16.xpose.msra.mxu0 0
        %3607 = vmatprep.subr.bf16.mxu0 0
        %3608 = vmatpush2.bf16.xpose.msra.mxu0 0
        %3609 = vmatprep.mubr.bf16.mxu0 0
        %3610 = vmatmul.mubr.bf16.gmra.mxu0 %v3530
        %v3611 = vpop.f32.mrf.mxu0
        %v3612 = vadd.f32 0.0, %v3611
        %v3613 = vpop.f32.mrf.mxu0
        %v3614 = vpop.f32.mrf.mxu0
        %v3615 = vadd.f32 0.0, %v3614
        %v3616 = vpop.f32.mrf.mxu0
        %3617 = vmatprep.mubr.bf16.mxu0 0
        %3618 = vmatmul.mubr.bf16.gmra.mxu0 %v3533
        %v3619 = vpop.f32.mrf.mxu0
        %v3620 = vadd.f32 0.0, %v3619
        %v3621 = vpop.f32.mrf.mxu0
        %v3622 = vpop.f32.mrf.mxu0
        %v3623 = vadd.f32 0.0, %v3622
        %v3624 = vpop.f32.mrf.mxu0
        %3625 = vmatprep.mubr.bf16.mxu0 0
        %3626 = vmatmul.mubr.bf16.gmra.mxu0 %v3536
        %v3627 = vpop.f32.mrf.mxu0
        %v3628 = vadd.f32 0.0, %v3627
        %v3629 = vpop.f32.mrf.mxu0
        %v3630 = vpop.f32.mrf.mxu0
        %v3631 = vadd.f32 0.0, %v3630
        %v3632 = vpop.f32.mrf.mxu0
        %3633 = vmatprep.mubr.bf16.mxu0 0
        %3634 = vmatmul.mubr.bf16.gmra.mxu0 %v3539
        %v3635 = vpop.f32.mrf.mxu0
        %v3636 = vadd.f32 0.0, %v3635
        %v3637 = vpop.f32.mrf.mxu0
        %v3638 = vpop.f32.mrf.mxu0
        %v3639 = vadd.f32 0.0, %v3638
        %v3640 = vpop.f32.mrf.mxu0
        %3641 = vmatprep.mubr.bf16.mxu0 0
        %3642 = vmatmul.mubr.bf16.gmra.mxu0 %v3542
        %v3643 = vpop.f32.mrf.mxu0
        %v3644 = vadd.f32 0.0, %v3643
        %v3645 = vpop.f32.mrf.mxu0
        %v3646 = vpop.f32.mrf.mxu0
        %v3647 = vadd.f32 0.0, %v3646
        %v3648 = vpop.f32.mrf.mxu0
        %3649 = vmatprep.mubr.bf16.mxu0 0
        %3650 = vmatmul.mubr.bf16.gmra.mxu0 %v3545
        %v3651 = vpop.f32.mrf.mxu0
        %v3652 = vadd.f32 0.0, %v3651
        %v3653 = vpop.f32.mrf.mxu0
        %v3654 = vpop.f32.mrf.mxu0
        %v3655 = vadd.f32 0.0, %v3654
        %v3656 = vpop.f32.mrf.mxu0
        %3657 = vmatprep.mubr.bf16.mxu0 0
        %3658 = vmatmul.mubr.bf16.gmra.mxu0 %v3548
        %v3659 = vpop.f32.mrf.mxu0
        %v3660 = vadd.f32 0.0, %v3659
        %v3661 = vpop.f32.mrf.mxu0
        %v3662 = vpop.f32.mrf.mxu0
        %v3663 = vadd.f32 0.0, %v3662
        %v3664 = vpop.f32.mrf.mxu0
        %3665 = vmatprep.mubr.bf16.mxu0 0
        %3666 = vmatmul.mubr.bf16.gmra.mxu0 %v3551
        %v3667 = vpop.f32.mrf.mxu0
        %v3668 = vadd.f32 0.0, %v3667
        %v3669 = vpop.f32.mrf.mxu0
        %v3670 = vpop.f32.mrf.mxu0
        %v3671 = vadd.f32 0.0, %v3670
        %v3672 = vpop.f32.mrf.mxu0
        %3673 = vdwg.mxu0
        %3674 = vmax.xlane.f32.xlu0 %v3435
        %v3675 = vpop.xlane.xlu0 %3674
        %3676 = vmax.xlane.f32.xlu0 %v3438
        %v3677 = vpop.xlane.xlu0 %3676
        %3678 = vmax.xlane.f32.xlu0 %v3443
        %v3679 = vpop.xlane.xlu0 %3678
        %3680 = vmax.xlane.f32.xlu0 %v3446
        %v3681 = vpop.xlane.xlu0 %3680
        %3682 = vmax.xlane.f32.xlu0 %v3451
        %v3683 = vpop.xlane.xlu0 %3682
        %3684 = vmax.xlane.f32.xlu0 %v3454
        %v3685 = vpop.xlane.xlu0 %3684
        %3686 = vmax.xlane.f32.xlu0 %v3459
        %v3687 = vpop.xlane.xlu0 %3686
        %3688 = vmax.xlane.f32.xlu0 %v3462
        %v3689 = vpop.xlane.xlu0 %3688
        %3690 = vmax.xlane.f32.xlu0 %v3467
        %v3691 = vpop.xlane.xlu0 %3690
        %3692 = vmax.xlane.f32.xlu0 %v3470
        %v3693 = vpop.xlane.xlu0 %3692
        %3694 = vmax.xlane.f32.xlu0 %v3475
        %v3695 = vpop.xlane.xlu0 %3694
        %3696 = vmax.xlane.f32.xlu0 %v3478
        %v3697 = vpop.xlane.xlu0 %3696
        %3698 = vmax.xlane.f32.xlu0 %v3483
        %v3699 = vpop.xlane.xlu0 %3698
        %3700 = vmax.xlane.f32.xlu0 %v3486
        %v3701 = vpop.xlane.xlu0 %3700
        %3702 = vmax.xlane.f32.xlu0 %v3491
        %v3703 = vpop.xlane.xlu0 %3702
        %3704 = vmax.xlane.f32.xlu0 %v3494
        %v3705 = vpop.xlane.xlu0 %3704
        %3706 = vmax.xlane.f32.xlu0 %v3612
        %v3707 = vpop.xlane.xlu0 %3706
        %3708 = vmax.xlane.f32.xlu0 %v3615
        %v3709 = vpop.xlane.xlu0 %3708
        %3710 = vmax.xlane.f32.xlu0 %v3620
        %v3711 = vpop.xlane.xlu0 %3710
        %3712 = vmax.xlane.f32.xlu0 %v3623
        %v3713 = vpop.xlane.xlu0 %3712
        %3714 = vmax.xlane.f32.xlu0 %v3628
        %v3715 = vpop.xlane.xlu0 %3714
        %3716 = vmax.xlane.f32.xlu0 %v3631
        %v3717 = vpop.xlane.xlu0 %3716
        %3718 = vmax.xlane.f32.xlu0 %v3636
        %v3719 = vpop.xlane.xlu0 %3718
        %3720 = vmax.xlane.f32.xlu0 %v3639
        %v3721 = vpop.xlane.xlu0 %3720
        %3722 = vmax.xlane.f32.xlu0 %v3644
        %v3723 = vpop.xlane.xlu0 %3722
        %3724 = vmax.xlane.f32.xlu0 %v3647
        %v3725 = vpop.xlane.xlu0 %3724
        %3726 = vmax.xlane.f32.xlu0 %v3652
        %v3727 = vpop.xlane.xlu0 %3726
        %3728 = vmax.xlane.f32.xlu0 %v3655
        %v3729 = vpop.xlane.xlu0 %3728
        %3730 = vmax.xlane.f32.xlu0 %v3660
        %v3731 = vpop.xlane.xlu0 %3730
        %3732 = vmax.xlane.f32.xlu0 %v3663
        %v3733 = vpop.xlane.xlu0 %3732
        %3734 = vmax.xlane.f32.xlu0 %v3668
        %v3735 = vpop.xlane.xlu0 %3734
        %3736 = vmax.xlane.f32.xlu0 %v3671
        %v3737 = vpop.xlane.xlu0 %3736
        %v3738 = vsub.f32 %v3435, %v3675
        %v3739 = vsub.f32 %v3438, %v3677
        %v3740 = vsub.f32 %v3443, %v3679
        %v3741 = vsub.f32 %v3446, %v3681
        %v3742 = vsub.f32 %v3451, %v3683
        %v3743 = vsub.f32 %v3454, %v3685
        %v3744 = vsub.f32 %v3459, %v3687
        %v3745 = vsub.f32 %v3462, %v3689
        %v3746 = vsub.f32 %v3467, %v3691
        %v3747 = vsub.f32 %v3470, %v3693
        %v3748 = vsub.f32 %v3475, %v3695
        %v3749 = vsub.f32 %v3478, %v3697
        %v3750 = vsub.f32 %v3483, %v3699
        %v3751 = vsub.f32 %v3486, %v3701
        %v3752 = vsub.f32 %v3491, %v3703
        %v3753 = vsub.f32 %v3494, %v3705
        %v3754 = vsub.f32 %v3612, %v3707
        %v3755 = vsub.f32 %v3615, %v3709
        %v3756 = vsub.f32 %v3620, %v3711
        %v3757 = vsub.f32 %v3623, %v3713
        %v3758 = vsub.f32 %v3628, %v3715
        %v3759 = vsub.f32 %v3631, %v3717
        %v3760 = vsub.f32 %v3636, %v3719
        %v3761 = vsub.f32 %v3639, %v3721
        %v3762 = vsub.f32 %v3644, %v3723
        %v3763 = vsub.f32 %v3647, %v3725
        %v3764 = vsub.f32 %v3652, %v3727
        %v3765 = vsub.f32 %v3655, %v3729
        %v3766 = vsub.f32 %v3660, %v3731
        %v3767 = vsub.f32 %v3663, %v3733
        %v3768 = vsub.f32 %v3668, %v3735
        %v3769 = vsub.f32 %v3671, %v3737
        %v3770 = vmul.f32 %v3738, 1.442695
        %v3771 = vpow.pop %v3770
        %v3772 = vmul.f32 %v3739, 1.442695
        %v3773 = vpow.pop %v3772
        %v3774 = vmul.f32 %v3740, 1.442695
        %v3775 = vpow.pop %v3774
        %v3776 = vmul.f32 %v3741, 1.442695
        %v3777 = vpow.pop %v3776
        %v3778 = vmul.f32 %v3742, 1.442695
        %v3779 = vpow.pop %v3778
        %v3780 = vmul.f32 %v3743, 1.442695
        %v3781 = vpow.pop %v3780
        %v3782 = vmul.f32 %v3744, 1.442695
        %v3783 = vpow.pop %v3782
        %v3784 = vmul.f32 %v3745, 1.442695
        %v3785 = vpow.pop %v3784
        %v3786 = vmul.f32 %v3746, 1.442695
        %v3787 = vpow.pop %v3786
        %v3788 = vmul.f32 %v3747, 1.442695
        %v3789 = vpow.pop %v3788
        %v3790 = vmul.f32 %v3748, 1.442695
        %v3791 = vpow.pop %v3790
        %v3792 = vmul.f32 %v3749, 1.442695
        %v3793 = vpow.pop %v3792
        %v3794 = vmul.f32 %v3750, 1.442695
        %v3795 = vpow.pop %v3794
        %v3796 = vmul.f32 %v3751, 1.442695
        %v3797 = vpow.pop %v3796
        %v3798 = vmul.f32 %v3752, 1.442695
        %v3799 = vpow.pop %v3798
        %v3800 = vmul.f32 %v3753, 1.442695
        %v3801 = vpow.pop %v3800
        %v3802 = vmul.f32 %v3754, 1.442695
        %v3803 = vpow.pop %v3802
        %v3804 = vmul.f32 %v3755, 1.442695
        %v3805 = vpow.pop %v3804
        %v3806 = vmul.f32 %v3756, 1.442695
        %v3807 = vpow.pop %v3806
        %v3808 = vmul.f32 %v3757, 1.442695
        %v3809 = vpow.pop %v3808
        %v3810 = vmul.f32 %v3758, 1.442695
        %v3811 = vpow.pop %v3810
        %v3812 = vmul.f32 %v3759, 1.442695
        %v3813 = vpow.pop %v3812
        %v3814 = vmul.f32 %v3760, 1.442695
        %v3815 = vpow.pop %v3814
        %v3816 = vmul.f32 %v3761, 1.442695
        %v3817 = vpow.pop %v3816
        %v3818 = vmul.f32 %v3762, 1.442695
        %v3819 = vpow.pop %v3818
        %v3820 = vmul.f32 %v3763, 1.442695
        %v3821 = vpow.pop %v3820
        %v3822 = vmul.f32 %v3764, 1.442695
        %v3823 = vpow.pop %v3822
        %v3824 = vmul.f32 %v3765, 1.442695
        %v3825 = vpow.pop %v3824
        %v3826 = vmul.f32 %v3766, 1.442695
        %v3827 = vpow.pop %v3826
        %v3828 = vmul.f32 %v3767, 1.442695
        %v3829 = vpow.pop %v3828
        %v3830 = vmul.f32 %v3768, 1.442695
        %v3831 = vpow.pop %v3830
        %v3832 = vmul.f32 %v3769, 1.442695
        %v3833 = vpow.pop %v3832
        %3834 = vadd.xlane.f32.xlu0 %v3771
        %v3835 = vpop.xlane.xlu0 %3834
        %3836 = vadd.xlane.f32.xlu0 %v3773
        %v3837 = vpop.xlane.xlu0 %3836
        %3838 = vadd.xlane.f32.xlu0 %v3775
        %v3839 = vpop.xlane.xlu0 %3838
        %3840 = vadd.xlane.f32.xlu0 %v3777
        %v3841 = vpop.xlane.xlu0 %3840
        %3842 = vadd.xlane.f32.xlu0 %v3779
        %v3843 = vpop.xlane.xlu0 %3842
        %3844 = vadd.xlane.f32.xlu0 %v3781
        %v3845 = vpop.xlane.xlu0 %3844
        %3846 = vadd.xlane.f32.xlu0 %v3783
        %v3847 = vpop.xlane.xlu0 %3846
        %3848 = vadd.xlane.f32.xlu0 %v3785
        %v3849 = vpop.xlane.xlu0 %3848
        %3850 = vadd.xlane.f32.xlu0 %v3787
        %v3851 = vpop.xlane.xlu0 %3850
        %3852 = vadd.xlane.f32.xlu0 %v3789
        %v3853 = vpop.xlane.xlu0 %3852
        %3854 = vadd.xlane.f32.xlu0 %v3791
        %v3855 = vpop.xlane.xlu0 %3854
        %3856 = vadd.xlane.f32.xlu0 %v3793
        %v3857 = vpop.xlane.xlu0 %3856
        %3858 = vadd.xlane.f32.xlu0 %v3795
        %v3859 = vpop.xlane.xlu0 %3858
        %3860 = vadd.xlane.f32.xlu0 %v3797
        %v3861 = vpop.xlane.xlu0 %3860
        %3862 = vadd.xlane.f32.xlu0 %v3799
        %v3863 = vpop.xlane.xlu0 %3862
        %3864 = vadd.xlane.f32.xlu0 %v3801
        %v3865 = vpop.xlane.xlu0 %3864
        %3866 = vadd.xlane.f32.xlu0 %v3803
        %v3867 = vpop.xlane.xlu0 %3866
        %3868 = vadd.xlane.f32.xlu0 %v3805
        %v3869 = vpop.xlane.xlu0 %3868
        %3870 = vadd.xlane.f32.xlu0 %v3807
        %v3871 = vpop.xlane.xlu0 %3870
        %3872 = vadd.xlane.f32.xlu0 %v3809
        %v3873 = vpop.xlane.xlu0 %3872
        %3874 = vadd.xlane.f32.xlu0 %v3811
        %v3875 = vpop.xlane.xlu0 %3874
        %3876 = vadd.xlane.f32.xlu0 %v3813
        %v3877 = vpop.xlane.xlu0 %3876
        %3878 = vadd.xlane.f32.xlu0 %v3815
        %v3879 = vpop.xlane.xlu0 %3878
        %3880 = vadd.xlane.f32.xlu0 %v3817
        %v3881 = vpop.xlane.xlu0 %3880
        %3882 = vadd.xlane.f32.xlu0 %v3819
        %v3883 = vpop.xlane.xlu0 %3882
        %3884 = vadd.xlane.f32.xlu0 %v3821
        %v3885 = vpop.xlane.xlu0 %3884
        %3886 = vadd.xlane.f32.xlu0 %v3823
        %v3887 = vpop.xlane.xlu0 %3886
        %3888 = vadd.xlane.f32.xlu0 %v3825
        %v3889 = vpop.xlane.xlu0 %3888
        %3890 = vadd.xlane.f32.xlu0 %v3827
        %v3891 = vpop.xlane.xlu0 %3890
        %3892 = vadd.xlane.f32.xlu0 %v3829
        %v3893 = vpop.xlane.xlu0 %3892
        %3894 = vadd.xlane.f32.xlu0 %v3831
        %v3895 = vpop.xlane.xlu0 %3894
        %3896 = vadd.xlane.f32.xlu0 %v3833
        %v3897 = vpop.xlane.xlu0 %3896
        %v3898 = vrcp.pop %v3835
        %v3899 = vrcp.pop %v3837
        %v3900 = vrcp.pop %v3839
        %v3901 = vrcp.pop %v3841
        %v3902 = vrcp.pop %v3843
        %v3903 = vrcp.pop %v3845
        %v3904 = vrcp.pop %v3847
        %v3905 = vrcp.pop %v3849
        %v3906 = vrcp.pop %v3851
        %v3907 = vrcp.pop %v3853
        %v3908 = vrcp.pop %v3855
        %v3909 = vrcp.pop %v3857
        %v3910 = vrcp.pop %v3859
        %v3911 = vrcp.pop %v3861
        %v3912 = vrcp.pop %v3863
        %v3913 = vrcp.pop %v3865
        %v3914 = vrcp.pop %v3867
        %v3915 = vrcp.pop %v3869
        %v3916 = vrcp.pop %v3871
        %v3917 = vrcp.pop %v3873
        %v3918 = vrcp.pop %v3875
        %v3919 = vrcp.pop %v3877
        %v3920 = vrcp.pop %v3879
        %v3921 = vrcp.pop %v3881
        %v3922 = vrcp.pop %v3883
        %v3923 = vrcp.pop %v3885
        %v3924 = vrcp.pop %v3887
        %v3925 = vrcp.pop %v3889
        %v3926 = vrcp.pop %v3891
        %v3927 = vrcp.pop %v3893
        %v3928 = vrcp.pop %v3895
        %v3929 = vrcp.pop %v3897
        %v3930 = vmul.f32 %v3771, %v3898
        %v3931 = vmul.f32 %v3773, %v3899
        %v3932 = vmul.f32 %v3775, %v3900
        %v3933 = vmul.f32 %v3777, %v3901
        %v3934 = vmul.f32 %v3779, %v3902
        %v3935 = vmul.f32 %v3781, %v3903
        %v3936 = vmul.f32 %v3783, %v3904
        %v3937 = vmul.f32 %v3785, %v3905
        %v3938 = vmul.f32 %v3787, %v3906
        %v3939 = vmul.f32 %v3789, %v3907
        %v3940 = vmul.f32 %v3791, %v3908
        %v3941 = vmul.f32 %v3793, %v3909
        %v3942 = vmul.f32 %v3795, %v3910
        %v3943 = vmul.f32 %v3797, %v3911
        %v3944 = vmul.f32 %v3799, %v3912
        %v3945 = vmul.f32 %v3801, %v3913
        %v3946 = vmul.f32 %v3803, %v3914
        %v3947 = vmul.f32 %v3805, %v3915
        %v3948 = vmul.f32 %v3807, %v3916
        %v3949 = vmul.f32 %v3809, %v3917
        %v3950 = vmul.f32 %v3811, %v3918
        %v3951 = vmul.f32 %v3813, %v3919
        %v3952 = vmul.f32 %v3815, %v3920
        %v3953 = vmul.f32 %v3817, %v3921
        %v3954 = vmul.f32 %v3819, %v3922
        %v3955 = vmul.f32 %v3821, %v3923
        %v3956 = vmul.f32 %v3823, %v3924
        %v3957 = vmul.f32 %v3825, %v3925
        %v3958 = vmul.f32 %v3827, %v3926
        %v3959 = vmul.f32 %v3829, %v3927
        %v3960 = vmul.f32 %v3831, %v3928
        %v3961 = vmul.f32 %v3833, %v3929
        %v3962 = vpack.c.bf16 %v3931, %v3930
        %v3963 = vpack.c.bf16 %v3933, %v3932
        %v3964 = vpack.c.bf16 %v3935, %v3934
        %v3965 = vpack.c.bf16 %v3937, %v3936
        %v3966 = vpack.c.bf16 %v3939, %v3938
        %v3967 = vpack.c.bf16 %v3941, %v3940
        %v3968 = vpack.c.bf16 %v3943, %v3942
        %v3969 = vpack.c.bf16 %v3945, %v3944
        %v3970 = vpack.c.bf16 %v3947, %v3946
        %v3971 = vpack.c.bf16 %v3949, %v3948
        %v3972 = vpack.c.bf16 %v3951, %v3950
        %v3973 = vpack.c.bf16 %v3953, %v3952
        %v3974 = vpack.c.bf16 %v3955, %v3954
        %v3975 = vpack.c.bf16 %v3957, %v3956
        %v3976 = vpack.c.bf16 %v3959, %v3958
        %v3977 = vpack.c.bf16 %v3961, %v3960
        %3978 = vrot.lane.b32.xlu0 %v1567, 64
        %v3979 = vpop.permute.xlu0 %3978
        %3980 = vrot.lane.b32.xlu0 %v1568, 64
        %v3981 = vpop.permute.xlu0 %3980
        %3982 = vrot.lane.b32.xlu0 %v1569, 64
        %v3983 = vpop.permute.xlu0 %3982
        %3984 = vrot.lane.b32.xlu0 %v1570, 64
        %v3985 = vpop.permute.xlu0 %3984
        %3986 = vrot.lane.b32.xlu0 %v1571, 64
        %v3987 = vpop.permute.xlu0 %3986
        %3988 = vrot.lane.b32.xlu0 %v1572, 64
        %v3989 = vpop.permute.xlu0 %3988
        %3990 = vrot.lane.b32.xlu0 %v1573, 64
        %v3991 = vpop.permute.xlu0 %3990
        %3992 = vrot.lane.b32.xlu0 %v1574, 64
        %v3993 = vpop.permute.xlu0 %3992
        %4002 = vmatprep.subr.bf16.mxu0 0
        %4003 = vmatpush1.bf16.msra.mxu0 %v3993
        %4004 = vmatprep.subr.bf16.mxu0 0
        %4005 = vmatpush1.bf16.msra.mxu0 %v3991
        %4006 = vmatprep.subr.bf16.mxu0 0
        %4007 = vmatpush1.bf16.msra.mxu0 %v3989
        %4008 = vmatprep.subr.bf16.mxu0 0
        %4009 = vmatpush1.bf16.msra.mxu0 %v3987
        %4010 = vmatprep.subr.bf16.mxu0 0
        %4011 = vmatpush1.bf16.msra.mxu0 %v3985
        %4012 = vmatprep.subr.bf16.mxu0 0
        %4013 = vmatpush1.bf16.msra.mxu0 %v3983
        %4014 = vmatprep.subr.bf16.mxu0 0
        %4015 = vmatpush1.bf16.msra.mxu0 %v3981
        %4016 = vmatprep.subr.bf16.mxu0 0
        %4017 = vmatpush1.bf16.msra.mxu0 %v3979
        %4018 = vmatprep.subr.bf16.mxu0 0
        %4019 = vmatpush2.bf16.msra.mxu0 0
        %4020 = vmatprep.subr.bf16.mxu0 0
        %4021 = vmatpush2.bf16.msra.mxu0 0
        %4022 = vmatprep.subr.bf16.mxu0 0
        %4023 = vmatpush2.bf16.msra.mxu0 0
        %4024 = vmatprep.subr.bf16.mxu0 0
        %4025 = vmatpush2.bf16.msra.mxu0 0
        %4026 = vmatprep.subr.bf16.mxu0 0
        %4027 = vmatpush2.bf16.msra.mxu0 0
        %4028 = vmatprep.subr.bf16.mxu0 0
        %4029 = vmatpush2.bf16.msra.mxu0 0
        %4030 = vmatprep.subr.bf16.mxu0 0
        %4031 = vmatpush2.bf16.msra.mxu0 0
        %4032 = vmatprep.subr.bf16.mxu0 0
        %4033 = vmatpush2.bf16.msra.mxu0 0
        %4034 = vmatprep.mubr.bf16.mxu0 0
        %4035 = vmatmul.mubr.bf16.gmra.mxu0 %v3962
        %v4036 = vpop.f32.mrf.mxu0
        %v4037 = vadd.f32 0.0, %v4036
        %v4038 = vpop.f32.mrf.mxu0
        %v4039 = vpop.f32.mrf.mxu0
        %v4040 = vadd.f32 0.0, %v4039
        %v4041 = vpop.f32.mrf.mxu0
        %4042 = vmatprep.mubr.bf16.mxu0 0
        %4043 = vmatmul.mubr.bf16.gmra.mxu0 %v3963
        %v4044 = vpop.f32.mrf.mxu0
        %v4045 = vadd.f32 0.0, %v4044
        %v4046 = vpop.f32.mrf.mxu0
        %v4047 = vpop.f32.mrf.mxu0
        %v4048 = vadd.f32 0.0, %v4047
        %v4049 = vpop.f32.mrf.mxu0
        %4050 = vmatprep.mubr.bf16.mxu0 0
        %4051 = vmatmul.mubr.bf16.gmra.mxu0 %v3964
        %v4052 = vpop.f32.mrf.mxu0
        %v4053 = vadd.f32 0.0, %v4052
        %v4054 = vpop.f32.mrf.mxu0
        %v4055 = vpop.f32.mrf.mxu0
        %v4056 = vadd.f32 0.0, %v4055
        %v4057 = vpop.f32.mrf.mxu0
        %4058 = vmatprep.mubr.bf16.mxu0 0
        %4059 = vmatmul.mubr.bf16.gmra.mxu0 %v3965
        %v4060 = vpop.f32.mrf.mxu0
        %v4061 = vadd.f32 0.0, %v4060
        %v4062 = vpop.f32.mrf.mxu0
        %v4063 = vpop.f32.mrf.mxu0
        %v4064 = vadd.f32 0.0, %v4063
        %v4065 = vpop.f32.mrf.mxu0
        %4066 = vmatprep.mubr.bf16.mxu0 0
        %4067 = vmatmul.mubr.bf16.gmra.mxu0 %v3966
        %v4068 = vpop.f32.mrf.mxu0
        %v4069 = vadd.f32 0.0, %v4068
        %v4070 = vpop.f32.mrf.mxu0
        %v4071 = vpop.f32.mrf.mxu0
        %v4072 = vadd.f32 0.0, %v4071
        %v4073 = vpop.f32.mrf.mxu0
        %4074 = vmatprep.mubr.bf16.mxu0 0
        %4075 = vmatmul.mubr.bf16.gmra.mxu0 %v3967
        %v4076 = vpop.f32.mrf.mxu0
        %v4077 = vadd.f32 0.0, %v4076
        %v4078 = vpop.f32.mrf.mxu0
        %v4079 = vpop.f32.mrf.mxu0
        %v4080 = vadd.f32 0.0, %v4079
        %v4081 = vpop.f32.mrf.mxu0
        %4082 = vmatprep.mubr.bf16.mxu0 0
        %4083 = vmatmul.mubr.bf16.gmra.mxu0 %v3968
        %v4084 = vpop.f32.mrf.mxu0
        %v4085 = vadd.f32 0.0, %v4084
        %v4086 = vpop.f32.mrf.mxu0
        %v4087 = vpop.f32.mrf.mxu0
        %v4088 = vadd.f32 0.0, %v4087
        %v4089 = vpop.f32.mrf.mxu0
        %4090 = vmatprep.mubr.bf16.mxu0 0
        %4091 = vmatmul.mubr.bf16.gmra.mxu0 %v3969
        %v4092 = vpop.f32.mrf.mxu0
        %v4093 = vadd.f32 0.0, %v4092
        %v4094 = vpop.f32.mrf.mxu0
        %v4095 = vpop.f32.mrf.mxu0
        %v4096 = vadd.f32 0.0, %v4095
        %v4097 = vpop.f32.mrf.mxu0
        %4098 = vdwg.mxu0
        %4099 = vrot.lane.b32.xlu0 %v1575, 64
        %v4100 = vpop.permute.xlu0 %4099
        %4101 = vrot.lane.b32.xlu0 %v1576, 64
        %v4102 = vpop.permute.xlu0 %4101
        %4103 = vrot.lane.b32.xlu0 %v1577, 64
        %v4104 = vpop.permute.xlu0 %4103
        %4105 = vrot.lane.b32.xlu0 %v1578, 64
        %v4106 = vpop.permute.xlu0 %4105
        %4107 = vrot.lane.b32.xlu0 %v1579, 64
        %v4108 = vpop.permute.xlu0 %4107
        %4109 = vrot.lane.b32.xlu0 %v1580, 64
        %v4110 = vpop.permute.xlu0 %4109
        %4111 = vrot.lane.b32.xlu0 %v1581, 64
        %v4112 = vpop.permute.xlu0 %4111
        %4113 = vrot.lane.b32.xlu0 %v1582, 64
        %v4114 = vpop.permute.xlu0 %4113
        %4123 = vmatprep.subr.bf16.mxu0 0
        %4124 = vmatpush1.bf16.msra.mxu0 %v4114
        %4125 = vmatprep.subr.bf16.mxu0 0
        %4126 = vmatpush1.bf16.msra.mxu0 %v4112
        %4127 = vmatprep.subr.bf16.mxu0 0
        %4128 = vmatpush1.bf16.msra.mxu0 %v4110
        %4129 = vmatprep.subr.bf16.mxu0 0
        %4130 = vmatpush1.bf16.msra.mxu0 %v4108
        %4131 = vmatprep.subr.bf16.mxu0 0
        %4132 = vmatpush1.bf16.msra.mxu0 %v4106
        %4133 = vmatprep.subr.bf16.mxu0 0
        %4134 = vmatpush1.bf16.msra.mxu0 %v4104
        %4135 = vmatprep.subr.bf16.mxu0 0
        %4136 = vmatpush1.bf16.msra.mxu0 %v4102
        %4137 = vmatprep.subr.bf16.mxu0 0
        %4138 = vmatpush1.bf16.msra.mxu0 %v4100
        %4139 = vmatprep.subr.bf16.mxu0 0
        %4140 = vmatpush2.bf16.msra.mxu0 0
        %4141 = vmatprep.subr.bf16.mxu0 0
        %4142 = vmatpush2.bf16.msra.mxu0 0
        %4143 = vmatprep.subr.bf16.mxu0 0
        %4144 = vmatpush2.bf16.msra.mxu0 0
        %4145 = vmatprep.subr.bf16.mxu0 0
        %4146 = vmatpush2.bf16.msra.mxu0 0
        %4147 = vmatprep.subr.bf16.mxu0 0
        %4148 = vmatpush2.bf16.msra.mxu0 0
        %4149 = vmatprep.subr.bf16.mxu0 0
        %4150 = vmatpush2.bf16.msra.mxu0 0
        %4151 = vmatprep.subr.bf16.mxu0 0
        %4152 = vmatpush2.bf16.msra.mxu0 0
        %4153 = vmatprep.subr.bf16.mxu0 0
        %4154 = vmatpush2.bf16.msra.mxu0 0
        %4155 = vmatprep.mubr.bf16.mxu0 0
        %4156 = vmatmul.mubr.bf16.gmra.mxu0 %v3970
        %v4157 = vpop.f32.mrf.mxu0
        %v4158 = vadd.f32 0.0, %v4157
        %v4159 = vpop.f32.mrf.mxu0
        %v4160 = vpop.f32.mrf.mxu0
        %v4161 = vadd.f32 0.0, %v4160
        %v4162 = vpop.f32.mrf.mxu0
        %4163 = vmatprep.mubr.bf16.mxu0 0
        %4164 = vmatmul.mubr.bf16.gmra.mxu0 %v3971
        %v4165 = vpop.f32.mrf.mxu0
        %v4166 = vadd.f32 0.0, %v4165
        %v4167 = vpop.f32.mrf.mxu0
        %v4168 = vpop.f32.mrf.mxu0
        %v4169 = vadd.f32 0.0, %v4168
        %v4170 = vpop.f32.mrf.mxu0
        %4171 = vmatprep.mubr.bf16.mxu0 0
        %4172 = vmatmul.mubr.bf16.gmra.mxu0 %v3972
        %v4173 = vpop.f32.mrf.mxu0
        %v4174 = vadd.f32 0.0, %v4173
        %v4175 = vpop.f32.mrf.mxu0
        %v4176 = vpop.f32.mrf.mxu0
        %v4177 = vadd.f32 0.0, %v4176
        %v4178 = vpop.f32.mrf.mxu0
        %4179 = vmatprep.mubr.bf16.mxu0 0
        %4180 = vmatmul.mubr.bf16.gmra.mxu0 %v3973
        %v4181 = vpop.f32.mrf.mxu0
        %v4182 = vadd.f32 0.0, %v4181
        %v4183 = vpop.f32.mrf.mxu0
        %v4184 = vpop.f32.mrf.mxu0
        %v4185 = vadd.f32 0.0, %v4184
        %v4186 = vpop.f32.mrf.mxu0
        %4187 = vmatprep.mubr.bf16.mxu0 0
        %4188 = vmatmul.mubr.bf16.gmra.mxu0 %v3974
        %v4189 = vpop.f32.mrf.mxu0
        %v4190 = vadd.f32 0.0, %v4189
        %v4191 = vpop.f32.mrf.mxu0
        %v4192 = vpop.f32.mrf.mxu0
        %v4193 = vadd.f32 0.0, %v4192
        %v4194 = vpop.f32.mrf.mxu0
        %4195 = vmatprep.mubr.bf16.mxu0 0
        %4196 = vmatmul.mubr.bf16.gmra.mxu0 %v3975
        %v4197 = vpop.f32.mrf.mxu0
        %v4198 = vadd.f32 0.0, %v4197
        %v4199 = vpop.f32.mrf.mxu0
        %v4200 = vpop.f32.mrf.mxu0
        %v4201 = vadd.f32 0.0, %v4200
        %v4202 = vpop.f32.mrf.mxu0
        %4203 = vmatprep.mubr.bf16.mxu0 0
        %4204 = vmatmul.mubr.bf16.gmra.mxu0 %v3976
        %v4205 = vpop.f32.mrf.mxu0
        %v4206 = vadd.f32 0.0, %v4205
        %v4207 = vpop.f32.mrf.mxu0
        %v4208 = vpop.f32.mrf.mxu0
        %v4209 = vadd.f32 0.0, %v4208
        %v4210 = vpop.f32.mrf.mxu0
        %4211 = vmatprep.mubr.bf16.mxu0 0
        %4212 = vmatmul.mubr.bf16.gmra.mxu0 %v3977
        %v4213 = vpop.f32.mrf.mxu0
        %v4214 = vadd.f32 0.0, %v4213
        %v4215 = vpop.f32.mrf.mxu0
        %v4216 = vpop.f32.mrf.mxu0
        %v4217 = vadd.f32 0.0, %v4216
        %v4218 = vpop.f32.mrf.mxu0
        %4219 = vdwg.mxu0
        %4220 = vrot.lane.b32.xlu0 %v1463, 32
        %v4221 = vpop.permute.xlu0 %4220
        %4222 = vrot.lane.b32.xlu0 %v1464, 32
        %v4223 = vpop.permute.xlu0 %4222
        %4224 = vrot.lane.b32.xlu0 %v1465, 32
        %v4225 = vpop.permute.xlu0 %4224
        %4226 = vrot.lane.b32.xlu0 %v1466, 32
        %v4227 = vpop.permute.xlu0 %4226
        %4228 = vrot.lane.b32.xlu0 %v1467, 32
        %v4229 = vpop.permute.xlu0 %4228
        %4230 = vrot.lane.b32.xlu0 %v1468, 32
        %v4231 = vpop.permute.xlu0 %4230
        %4232 = vrot.lane.b32.xlu0 %v1469, 32
        %v4233 = vpop.permute.xlu0 %4232
        %4234 = vrot.lane.b32.xlu0 %v1470, 32
        %v4235 = vpop.permute.xlu0 %4234
        %4236 = vrot.lane.b32.xlu0 %v1515, 32
        %v4237 = vpop.permute.xlu0 %4236
        %4238 = vrot.lane.b32.xlu0 %v1516, 32
        %v4239 = vpop.permute.xlu0 %4238
        %4240 = vrot.lane.b32.xlu0 %v1517, 32
        %v4241 = vpop.permute.xlu0 %4240
        %4242 = vrot.lane.b32.xlu0 %v1518, 32
        %v4243 = vpop.permute.xlu0 %4242
        %4244 = vrot.lane.b32.xlu0 %v1519, 32
        %v4245 = vpop.permute.xlu0 %4244
        %4246 = vrot.lane.b32.xlu0 %v1520, 32
        %v4247 = vpop.permute.xlu0 %4246
        %4248 = vrot.lane.b32.xlu0 %v1521, 32
        %v4249 = vpop.permute.xlu0 %4248
        %4250 = vrot.lane.b32.xlu0 %v1522, 32
        %v4251 = vpop.permute.xlu0 %4250
        %v4253 = vsel %vm1583, %v4221, 0
        %v4256 = vsel %vm1583, %v4223, 0
        %v4259 = vsel %vm1583, %v4225, 0
        %v4262 = vsel %vm1583, %v4227, 0
        %v4265 = vsel %vm1583, %v4229, 0
        %v4268 = vsel %vm1583, %v4231, 0
        %v4271 = vsel %vm1583, %v4233, 0
        %v4274 = vsel %vm1583, %v4235, 0
        %v4277 = vsel %vm1583, %v4237, 0
        %v4280 = vsel %vm1583, %v4239, 0
        %v4283 = vsel %vm1583, %v4241, 0
        %v4286 = vsel %vm1583, %v4243, 0
        %v4289 = vsel %vm1583, %v4245, 0
        %v4292 = vsel %vm1583, %v4247, 0
        %v4295 = vsel %vm1583, %v4249, 0
        %v4298 = vsel %vm1583, %v4251, 0
        %4300 = vmatprep.subr.bf16.mxu0 0
        %4301 = vmatpush1.bf16.xpose.msra.mxu0 %v4298
        %4302 = vmatprep.subr.bf16.mxu0 0
        %4303 = vmatpush1.bf16.xpose.msra.mxu0 %v4295
        %4304 = vmatprep.subr.bf16.mxu0 0
        %4305 = vmatpush1.bf16.xpose.msra.mxu0 %v4292
        %4306 = vmatprep.subr.bf16.mxu0 0
        %4307 = vmatpush1.bf16.xpose.msra.mxu0 %v4289
        %4308 = vmatprep.subr.bf16.mxu0 0
        %4309 = vmatpush1.bf16.xpose.msra.mxu0 %v4286
        %4310 = vmatprep.subr.bf16.mxu0 0
        %4311 = vmatpush1.bf16.xpose.msra.mxu0 %v4283
        %4312 = vmatprep.subr.bf16.mxu0 0
        %4313 = vmatpush1.bf16.xpose.msra.mxu0 %v4280
        %4314 = vmatprep.subr.bf16.mxu0 0
        %4315 = vmatpush1.bf16.xpose.msra.mxu0 %v4277
        %4316 = vmatprep.subr.bf16.mxu0 0
        %4317 = vmatpush2.bf16.xpose.msra.mxu0 0
        %4318 = vmatprep.subr.bf16.mxu0 0
        %4319 = vmatpush2.bf16.xpose.msra.mxu0 0
        %4320 = vmatprep.subr.bf16.mxu0 0
        %4321 = vmatpush2.bf16.xpose.msra.mxu0 0
        %4322 = vmatprep.subr.bf16.mxu0 0
        %4323 = vmatpush2.bf16.xpose.msra.mxu0 0
        %4324 = vmatprep.subr.bf16.mxu0 0
        %4325 = vmatpush2.bf16.xpose.msra.mxu0 0
        %4326 = vmatprep.subr.bf16.mxu0 0
        %4327 = vmatpush2.bf16.xpose.msra.mxu0 0
        %4328 = vmatprep.subr.bf16.mxu0 0
        %4329 = vmatpush2.bf16.xpose.msra.mxu0 0
        %4330 = vmatprep.subr.bf16.mxu0 0
        %4331 = vmatpush2.bf16.xpose.msra.mxu0 0
        %4332 = vmatprep.mubr.bf16.mxu0 0
        %4333 = vmatmul.mubr.bf16.gmra.mxu0 %v4253
        %v4334 = vpop.f32.mrf.mxu0
        %v4335 = vadd.f32 0.0, %v4334
        %v4336 = vpop.f32.mrf.mxu0
        %v4337 = vpop.f32.mrf.mxu0
        %v4338 = vadd.f32 0.0, %v4337
        %v4339 = vpop.f32.mrf.mxu0
        %4340 = vmatprep.mubr.bf16.mxu0 0
        %4341 = vmatmul.mubr.bf16.gmra.mxu0 %v4256
        %v4342 = vpop.f32.mrf.mxu0
        %v4343 = vadd.f32 0.0, %v4342
        %v4344 = vpop.f32.mrf.mxu0
        %v4345 = vpop.f32.mrf.mxu0
        %v4346 = vadd.f32 0.0, %v4345
        %v4347 = vpop.f32.mrf.mxu0
        %4348 = vmatprep.mubr.bf16.mxu0 0
        %4349 = vmatmul.mubr.bf16.gmra.mxu0 %v4259
        %v4350 = vpop.f32.mrf.mxu0
        %v4351 = vadd.f32 0.0, %v4350
        %v4352 = vpop.f32.mrf.mxu0
        %v4353 = vpop.f32.mrf.mxu0
        %v4354 = vadd.f32 0.0, %v4353
        %v4355 = vpop.f32.mrf.mxu0
        %4356 = vmatprep.mubr.bf16.mxu0 0
        %4357 = vmatmul.mubr.bf16.gmra.mxu0 %v4262
        %v4358 = vpop.f32.mrf.mxu0
        %v4359 = vadd.f32 0.0, %v4358
        %v4360 = vpop.f32.mrf.mxu0
        %v4361 = vpop.f32.mrf.mxu0
        %v4362 = vadd.f32 0.0, %v4361
        %v4363 = vpop.f32.mrf.mxu0
        %4364 = vmatprep.mubr.bf16.mxu0 0
        %4365 = vmatmul.mubr.bf16.gmra.mxu0 %v4265
        %v4366 = vpop.f32.mrf.mxu0
        %v4367 = vadd.f32 0.0, %v4366
        %v4368 = vpop.f32.mrf.mxu0
        %v4369 = vpop.f32.mrf.mxu0
        %v4370 = vadd.f32 0.0, %v4369
        %v4371 = vpop.f32.mrf.mxu0
        %4372 = vmatprep.mubr.bf16.mxu0 0
        %4373 = vmatmul.mubr.bf16.gmra.mxu0 %v4268
        %v4374 = vpop.f32.mrf.mxu0
        %v4375 = vadd.f32 0.0, %v4374
        %v4376 = vpop.f32.mrf.mxu0
        %v4377 = vpop.f32.mrf.mxu0
        %v4378 = vadd.f32 0.0, %v4377
        %v4379 = vpop.f32.mrf.mxu0
        %4380 = vmatprep.mubr.bf16.mxu0 0
        %4381 = vmatmul.mubr.bf16.gmra.mxu0 %v4271
        %v4382 = vpop.f32.mrf.mxu0
        %v4383 = vadd.f32 0.0, %v4382
        %v4384 = vpop.f32.mrf.mxu0
        %v4385 = vpop.f32.mrf.mxu0
        %v4386 = vadd.f32 0.0, %v4385
        %v4387 = vpop.f32.mrf.mxu0
        %4388 = vmatprep.mubr.bf16.mxu0 0
        %4389 = vmatmul.mubr.bf16.gmra.mxu0 %v4274
        %v4390 = vpop.f32.mrf.mxu0
        %v4391 = vadd.f32 0.0, %v4390
        %v4392 = vpop.f32.mrf.mxu0
        %v4393 = vpop.f32.mrf.mxu0
        %v4394 = vadd.f32 0.0, %v4393
        %v4395 = vpop.f32.mrf.mxu0
        %4396 = vdwg.mxu0
        %4397 = vrot.lane.b32.xlu0 %v1471, 32
        %v4398 = vpop.permute.xlu0 %4397
        %4399 = vrot.lane.b32.xlu0 %v1472, 32
        %v4400 = vpop.permute.xlu0 %4399
        %4401 = vrot.lane.b32.xlu0 %v1473, 32
        %v4402 = vpop.permute.xlu0 %4401
        %4403 = vrot.lane.b32.xlu0 %v1474, 32
        %v4404 = vpop.permute.xlu0 %4403
        %4405 = vrot.lane.b32.xlu0 %v1475, 32
        %v4406 = vpop.permute.xlu0 %4405
        %4407 = vrot.lane.b32.xlu0 %v1476, 32
        %v4408 = vpop.permute.xlu0 %4407
        %4409 = vrot.lane.b32.xlu0 %v1477, 32
        %v4410 = vpop.permute.xlu0 %4409
        %4411 = vrot.lane.b32.xlu0 %v1478, 32
        %v4412 = vpop.permute.xlu0 %4411
        %4413 = vrot.lane.b32.xlu0 %v1523, 32
        %v4414 = vpop.permute.xlu0 %4413
        %4415 = vrot.lane.b32.xlu0 %v1524, 32
        %v4416 = vpop.permute.xlu0 %4415
        %4417 = vrot.lane.b32.xlu0 %v1525, 32
        %v4418 = vpop.permute.xlu0 %4417
        %4419 = vrot.lane.b32.xlu0 %v1526, 32
        %v4420 = vpop.permute.xlu0 %4419
        %4421 = vrot.lane.b32.xlu0 %v1527, 32
        %v4422 = vpop.permute.xlu0 %4421
        %4423 = vrot.lane.b32.xlu0 %v1528, 32
        %v4424 = vpop.permute.xlu0 %4423
        %4425 = vrot.lane.b32.xlu0 %v1529, 32
        %v4426 = vpop.permute.xlu0 %4425
        %4427 = vrot.lane.b32.xlu0 %v1530, 32
        %v4428 = vpop.permute.xlu0 %4427
        %v4430 = vsel %vm1583, %v4398, 0
        %v4433 = vsel %vm1583, %v4400, 0
        %v4436 = vsel %vm1583, %v4402, 0
        %v4439 = vsel %vm1583, %v4404, 0
        %v4442 = vsel %vm1583, %v4406, 0
        %v4445 = vsel %vm1583, %v4408, 0
        %v4448 = vsel %vm1583, %v4410, 0
        %v4451 = vsel %vm1583, %v4412, 0
        %v4454 = vsel %vm1583, %v4414, 0
        %v4457 = vsel %vm1583, %v4416, 0
        %v4460 = vsel %vm1583, %v4418, 0
        %v4463 = vsel %vm1583, %v4420, 0
        %v4466 = vsel %vm1583, %v4422, 0
        %v4469 = vsel %vm1583, %v4424, 0
        %v4472 = vsel %vm1583, %v4426, 0
        %v4475 = vsel %vm1583, %v4428, 0
        %4477 = vmatprep.subr.bf16.mxu0 0
        %4478 = vmatpush1.bf16.xpose.msra.mxu0 %v4475
        %4479 = vmatprep.subr.bf16.mxu0 0
        %4480 = vmatpush1.bf16.xpose.msra.mxu0 %v4472
        %4481 = vmatprep.subr.bf16.mxu0 0
        %4482 = vmatpush1.bf16.xpose.msra.mxu0 %v4469
        %4483 = vmatprep.subr.bf16.mxu0 0
        %4484 = vmatpush1.bf16.xpose.msra.mxu0 %v4466
        %4485 = vmatprep.subr.bf16.mxu0 0
        %4486 = vmatpush1.bf16.xpose.msra.mxu0 %v4463
        %4487 = vmatprep.subr.bf16.mxu0 0
        %4488 = vmatpush1.bf16.xpose.msra.mxu0 %v4460
        %4489 = vmatprep.subr.bf16.mxu0 0
        %4490 = vmatpush1.bf16.xpose.msra.mxu0 %v4457
        %4491 = vmatprep.subr.bf16.mxu0 0
        %4492 = vmatpush1.bf16.xpose.msra.mxu0 %v4454
        %4493 = vmatprep.subr.bf16.mxu0 0
        %4494 = vmatpush2.bf16.xpose.msra.mxu0 0
        %4495 = vmatprep.subr.bf16.mxu0 0
        %4496 = vmatpush2.bf16.xpose.msra.mxu0 0
        %4497 = vmatprep.subr.bf16.mxu0 0
        %4498 = vmatpush2.bf16.xpose.msra.mxu0 0
        %4499 = vmatprep.subr.bf16.mxu0 0
        %4500 = vmatpush2.bf16.xpose.msra.mxu0 0
        %4501 = vmatprep.subr.bf16.mxu0 0
        %4502 = vmatpush2.bf16.xpose.msra.mxu0 0
        %4503 = vmatprep.subr.bf16.mxu0 0
        %4504 = vmatpush2.bf16.xpose.msra.mxu0 0
        %4505 = vmatprep.subr.bf16.mxu0 0
        %4506 = vmatpush2.bf16.xpose.msra.mxu0 0
        %4507 = vmatprep.subr.bf16.mxu0 0
        %4508 = vmatpush2.bf16.xpose.msra.mxu0 0
        %4509 = vmatprep.mubr.bf16.mxu0 0
        %4510 = vmatmul.mubr.bf16.gmra.mxu0 %v4430
        %v4511 = vpop.f32.mrf.mxu0
        %v4512 = vadd.f32 0.0, %v4511
        %v4513 = vpop.f32.mrf.mxu0
        %v4514 = vpop.f32.mrf.mxu0
        %v4515 = vadd.f32 0.0, %v4514
        %v4516 = vpop.f32.mrf.mxu0
        %4517 = vmatprep.mubr.bf16.mxu0 0
        %4518 = vmatmul.mubr.bf16.gmra.mxu0 %v4433
        %v4519 = vpop.f32.mrf.mxu0
        %v4520 = vadd.f32 0.0, %v4519
        %v4521 = vpop.f32.mrf.mxu0
        %v4522 = vpop.f32.mrf.mxu0
        %v4523 = vadd.f32 0.0, %v4522
        %v4524 = vpop.f32.mrf.mxu0
        %4525 = vmatprep.mubr.bf16.mxu0 0
        %4526 = vmatmul.mubr.bf16.gmra.mxu0 %v4436
        %v4527 = vpop.f32.mrf.mxu0
        %v4528 = vadd.f32 0.0, %v4527
        %v4529 = vpop.f32.mrf.mxu0
        %v4530 = vpop.f32.mrf.mxu0
        %v4531 = vadd.f32 0.0, %v4530
        %v4532 = vpop.f32.mrf.mxu0
        %4533 = vmatprep.mubr.bf16.mxu0 0
        %4534 = vmatmul.mubr.bf16.gmra.mxu0 %v4439
        %v4535 = vpop.f32.mrf.mxu0
        %v4536 = vadd.f32 0.0, %v4535
        %v4537 = vpop.f32.mrf.mxu0
        %v4538 = vpop.f32.mrf.mxu0
        %v4539 = vadd.f32 0.0, %v4538
        %v4540 = vpop.f32.mrf.mxu0
        %4541 = vmatprep.mubr.bf16.mxu0 0
        %4542 = vmatmul.mubr.bf16.gmra.mxu0 %v4442
        %v4543 = vpop.f32.mrf.mxu0
        %v4544 = vadd.f32 0.0, %v4543
        %v4545 = vpop.f32.mrf.mxu0
        %v4546 = vpop.f32.mrf.mxu0
        %v4547 = vadd.f32 0.0, %v4546
        %v4548 = vpop.f32.mrf.mxu0
        %4549 = vmatprep.mubr.bf16.mxu0 0
        %4550 = vmatmul.mubr.bf16.gmra.mxu0 %v4445
        %v4551 = vpop.f32.mrf.mxu0
        %v4552 = vadd.f32 0.0, %v4551
        %v4553 = vpop.f32.mrf.mxu0
        %v4554 = vpop.f32.mrf.mxu0
        %v4555 = vadd.f32 0.0, %v4554
        %v4556 = vpop.f32.mrf.mxu0
        %4557 = vmatprep.mubr.bf16.mxu0 0
        %4558 = vmatmul.mubr.bf16.gmra.mxu0 %v4448
        %v4559 = vpop.f32.mrf.mxu0
        %v4560 = vadd.f32 0.0, %v4559
        %v4561 = vpop.f32.mrf.mxu0
        %v4562 = vpop.f32.mrf.mxu0
        %v4563 = vadd.f32 0.0, %v4562
        %v4564 = vpop.f32.mrf.mxu0
        %4565 = vmatprep.mubr.bf16.mxu0 0
        %4566 = vmatmul.mubr.bf16.gmra.mxu0 %v4451
        %v4567 = vpop.f32.mrf.mxu0
        %v4568 = vadd.f32 0.0, %v4567
        %v4569 = vpop.f32.mrf.mxu0
        %v4570 = vpop.f32.mrf.mxu0
        %v4571 = vadd.f32 0.0, %v4570
        %v4572 = vpop.f32.mrf.mxu0
        %4573 = vdwg.mxu0
        %4574 = vmax.xlane.f32.xlu0 %v4335
        %v4575 = vpop.xlane.xlu0 %4574
        %4576 = vmax.xlane.f32.xlu0 %v4338
        %v4577 = vpop.xlane.xlu0 %4576
        %4578 = vmax.xlane.f32.xlu0 %v4343
        %v4579 = vpop.xlane.xlu0 %4578
        %4580 = vmax.xlane.f32.xlu0 %v4346
        %v4581 = vpop.xlane.xlu0 %4580
        %4582 = vmax.xlane.f32.xlu0 %v4351
        %v4583 = vpop.xlane.xlu0 %4582
        %4584 = vmax.xlane.f32.xlu0 %v4354
        %v4585 = vpop.xlane.xlu0 %4584
        %4586 = vmax.xlane.f32.xlu0 %v4359
        %v4587 = vpop.xlane.xlu0 %4586
        %4588 = vmax.xlane.f32.xlu0 %v4362
        %v4589 = vpop.xlane.xlu0 %4588
        %4590 = vmax.xlane.f32.xlu0 %v4367
        %v4591 = vpop.xlane.xlu0 %4590
        %4592 = vmax.xlane.f32.xlu0 %v4370
        %v4593 = vpop.xlane.xlu0 %4592
        %4594 = vmax.xlane.f32.xlu0 %v4375
        %v4595 = vpop.xlane.xlu0 %4594
        %4596 = vmax.xlane.f32.xlu0 %v4378
        %v4597 = vpop.xlane.xlu0 %4596
        %4598 = vmax.xlane.f32.xlu0 %v4383
        %v4599 = vpop.xlane.xlu0 %4598
        %4600 = vmax.xlane.f32.xlu0 %v4386
        %v4601 = vpop.xlane.xlu0 %4600
        %4602 = vmax.xlane.f32.xlu0 %v4391
        %v4603 = vpop.xlane.xlu0 %4602
        %4604 = vmax.xlane.f32.xlu0 %v4394
        %v4605 = vpop.xlane.xlu0 %4604
        %4606 = vmax.xlane.f32.xlu0 %v4512
        %v4607 = vpop.xlane.xlu0 %4606
        %4608 = vmax.xlane.f32.xlu0 %v4515
        %v4609 = vpop.xlane.xlu0 %4608
        %4610 = vmax.xlane.f32.xlu0 %v4520
        %v4611 = vpop.xlane.xlu0 %4610
        %4612 = vmax.xlane.f32.xlu0 %v4523
        %v4613 = vpop.xlane.xlu0 %4612
        %4614 = vmax.xlane.f32.xlu0 %v4528
        %v4615 = vpop.xlane.xlu0 %4614
        %4616 = vmax.xlane.f32.xlu0 %v4531
        %v4617 = vpop.xlane.xlu0 %4616
        %4618 = vmax.xlane.f32.xlu0 %v4536
        %v4619 = vpop.xlane.xlu0 %4618
        %4620 = vmax.xlane.f32.xlu0 %v4539
        %v4621 = vpop.xlane.xlu0 %4620
        %4622 = vmax.xlane.f32.xlu0 %v4544
        %v4623 = vpop.xlane.xlu0 %4622
        %4624 = vmax.xlane.f32.xlu0 %v4547
        %v4625 = vpop.xlane.xlu0 %4624
        %4626 = vmax.xlane.f32.xlu0 %v4552
        %v4627 = vpop.xlane.xlu0 %4626
        %4628 = vmax.xlane.f32.xlu0 %v4555
        %v4629 = vpop.xlane.xlu0 %4628
        %4630 = vmax.xlane.f32.xlu0 %v4560
        %v4631 = vpop.xlane.xlu0 %4630
        %4632 = vmax.xlane.f32.xlu0 %v4563
        %v4633 = vpop.xlane.xlu0 %4632
        %4634 = vmax.xlane.f32.xlu0 %v4568
        %v4635 = vpop.xlane.xlu0 %4634
        %4636 = vmax.xlane.f32.xlu0 %v4571
        %v4637 = vpop.xlane.xlu0 %4636
        %v4638 = vsub.f32 %v4335, %v4575
        %v4639 = vsub.f32 %v4338, %v4577
        %v4640 = vsub.f32 %v4343, %v4579
        %v4641 = vsub.f32 %v4346, %v4581
        %v4642 = vsub.f32 %v4351, %v4583
        %v4643 = vsub.f32 %v4354, %v4585
        %v4644 = vsub.f32 %v4359, %v4587
        %v4645 = vsub.f32 %v4362, %v4589
        %v4646 = vsub.f32 %v4367, %v4591
        %v4647 = vsub.f32 %v4370, %v4593
        %v4648 = vsub.f32 %v4375, %v4595
        %v4649 = vsub.f32 %v4378, %v4597
        %v4650 = vsub.f32 %v4383, %v4599
        %v4651 = vsub.f32 %v4386, %v4601
        %v4652 = vsub.f32 %v4391, %v4603
        %v4653 = vsub.f32 %v4394, %v4605
        %v4654 = vsub.f32 %v4512, %v4607
        %v4655 = vsub.f32 %v4515, %v4609
        %v4656 = vsub.f32 %v4520, %v4611
        %v4657 = vsub.f32 %v4523, %v4613
        %v4658 = vsub.f32 %v4528, %v4615
        %v4659 = vsub.f32 %v4531, %v4617
        %v4660 = vsub.f32 %v4536, %v4619
        %v4661 = vsub.f32 %v4539, %v4621
        %v4662 = vsub.f32 %v4544, %v4623
        %v4663 = vsub.f32 %v4547, %v4625
        %v4664 = vsub.f32 %v4552, %v4627
        %v4665 = vsub.f32 %v4555, %v4629
        %v4666 = vsub.f32 %v4560, %v4631
        %v4667 = vsub.f32 %v4563, %v4633
        %v4668 = vsub.f32 %v4568, %v4635
        %v4669 = vsub.f32 %v4571, %v4637
        %v4670 = vmul.f32 %v4638, 1.442695
        %v4671 = vpow.pop %v4670
        %v4672 = vmul.f32 %v4639, 1.442695
        %v4673 = vpow.pop %v4672
        %v4674 = vmul.f32 %v4640, 1.442695
        %v4675 = vpow.pop %v4674
        %v4676 = vmul.f32 %v4641, 1.442695
        %v4677 = vpow.pop %v4676
        %v4678 = vmul.f32 %v4642, 1.442695
        %v4679 = vpow.pop %v4678
        %v4680 = vmul.f32 %v4643, 1.442695
        %v4681 = vpow.pop %v4680
        %v4682 = vmul.f32 %v4644, 1.442695
        %v4683 = vpow.pop %v4682
        %v4684 = vmul.f32 %v4645, 1.442695
        %v4685 = vpow.pop %v4684
        %v4686 = vmul.f32 %v4646, 1.442695
        %v4687 = vpow.pop %v4686
        %v4688 = vmul.f32 %v4647, 1.442695
        %v4689 = vpow.pop %v4688
        %v4690 = vmul.f32 %v4648, 1.442695
        %v4691 = vpow.pop %v4690
        %v4692 = vmul.f32 %v4649, 1.442695
        %v4693 = vpow.pop %v4692
        %v4694 = vmul.f32 %v4650, 1.442695
        %v4695 = vpow.pop %v4694
        %v4696 = vmul.f32 %v4651, 1.442695
        %v4697 = vpow.pop %v4696
        %v4698 = vmul.f32 %v4652, 1.442695
        %v4699 = vpow.pop %v4698
        %v4700 = vmul.f32 %v4653, 1.442695
        %v4701 = vpow.pop %v4700
        %v4702 = vmul.f32 %v4654, 1.442695
        %v4703 = vpow.pop %v4702
        %v4704 = vmul.f32 %v4655, 1.442695
        %v4705 = vpow.pop %v4704
        %v4706 = vmul.f32 %v4656, 1.442695
        %v4707 = vpow.pop %v4706
        %v4708 = vmul.f32 %v4657, 1.442695
        %v4709 = vpow.pop %v4708
        %v4710 = vmul.f32 %v4658, 1.442695
        %v4711 = vpow.pop %v4710
        %v4712 = vmul.f32 %v4659, 1.442695
        %v4713 = vpow.pop %v4712
        %v4714 = vmul.f32 %v4660, 1.442695
        %v4715 = vpow.pop %v4714
        %v4716 = vmul.f32 %v4661, 1.442695
        %v4717 = vpow.pop %v4716
        %v4718 = vmul.f32 %v4662, 1.442695
        %v4719 = vpow.pop %v4718
        %v4720 = vmul.f32 %v4663, 1.442695
        %v4721 = vpow.pop %v4720
        %v4722 = vmul.f32 %v4664, 1.442695
        %v4723 = vpow.pop %v4722
        %v4724 = vmul.f32 %v4665, 1.442695
        %v4725 = vpow.pop %v4724
        %v4726 = vmul.f32 %v4666, 1.442695
        %v4727 = vpow.pop %v4726
        %v4728 = vmul.f32 %v4667, 1.442695
        %v4729 = vpow.pop %v4728
        %v4730 = vmul.f32 %v4668, 1.442695
        %v4731 = vpow.pop %v4730
        %v4732 = vmul.f32 %v4669, 1.442695
        %v4733 = vpow.pop %v4732
        %4734 = vadd.xlane.f32.xlu0 %v4671
        %v4735 = vpop.xlane.xlu0 %4734
        %4736 = vadd.xlane.f32.xlu0 %v4673
        %v4737 = vpop.xlane.xlu0 %4736
        %4738 = vadd.xlane.f32.xlu0 %v4675
        %v4739 = vpop.xlane.xlu0 %4738
        %4740 = vadd.xlane.f32.xlu0 %v4677
        %v4741 = vpop.xlane.xlu0 %4740
        %4742 = vadd.xlane.f32.xlu0 %v4679
        %v4743 = vpop.xlane.xlu0 %4742
        %4744 = vadd.xlane.f32.xlu0 %v4681
        %v4745 = vpop.xlane.xlu0 %4744
        %4746 = vadd.xlane.f32.xlu0 %v4683
        %v4747 = vpop.xlane.xlu0 %4746
        %4748 = vadd.xlane.f32.xlu0 %v4685
        %v4749 = vpop.xlane.xlu0 %4748
        %4750 = vadd.xlane.f32.xlu0 %v4687
        %v4751 = vpop.xlane.xlu0 %4750
        %4752 = vadd.xlane.f32.xlu0 %v4689
        %v4753 = vpop.xlane.xlu0 %4752
        %4754 = vadd.xlane.f32.xlu0 %v4691
        %v4755 = vpop.xlane.xlu0 %4754
        %4756 = vadd.xlane.f32.xlu0 %v4693
        %v4757 = vpop.xlane.xlu0 %4756
        %4758 = vadd.xlane.f32.xlu0 %v4695
        %v4759 = vpop.xlane.xlu0 %4758
        %4760 = vadd.xlane.f32.xlu0 %v4697
        %v4761 = vpop.xlane.xlu0 %4760
        %4762 = vadd.xlane.f32.xlu0 %v4699
        %v4763 = vpop.xlane.xlu0 %4762
        %4764 = vadd.xlane.f32.xlu0 %v4701
        %v4765 = vpop.xlane.xlu0 %4764
        %4766 = vadd.xlane.f32.xlu0 %v4703
        %v4767 = vpop.xlane.xlu0 %4766
        %4768 = vadd.xlane.f32.xlu0 %v4705
        %v4769 = vpop.xlane.xlu0 %4768
        %4770 = vadd.xlane.f32.xlu0 %v4707
        %v4771 = vpop.xlane.xlu0 %4770
        %4772 = vadd.xlane.f32.xlu0 %v4709
        %v4773 = vpop.xlane.xlu0 %4772
        %4774 = vadd.xlane.f32.xlu0 %v4711
        %v4775 = vpop.xlane.xlu0 %4774
        %4776 = vadd.xlane.f32.xlu0 %v4713
        %v4777 = vpop.xlane.xlu0 %4776
        %4778 = vadd.xlane.f32.xlu0 %v4715
        %v4779 = vpop.xlane.xlu0 %4778
        %4780 = vadd.xlane.f32.xlu0 %v4717
        %v4781 = vpop.xlane.xlu0 %4780
        %4782 = vadd.xlane.f32.xlu0 %v4719
        %v4783 = vpop.xlane.xlu0 %4782
        %4784 = vadd.xlane.f32.xlu0 %v4721
        %v4785 = vpop.xlane.xlu0 %4784
        %4786 = vadd.xlane.f32.xlu0 %v4723
        %v4787 = vpop.xlane.xlu0 %4786
        %4788 = vadd.xlane.f32.xlu0 %v4725
        %v4789 = vpop.xlane.xlu0 %4788
        %4790 = vadd.xlane.f32.xlu0 %v4727
        %v4791 = vpop.xlane.xlu0 %4790
        %4792 = vadd.xlane.f32.xlu0 %v4729
        %v4793 = vpop.xlane.xlu0 %4792
        %4794 = vadd.xlane.f32.xlu0 %v4731
        %v4795 = vpop.xlane.xlu0 %4794
        %4796 = vadd.xlane.f32.xlu0 %v4733
        %v4797 = vpop.xlane.xlu0 %4796
        %v4798 = vrcp.pop %v4735
        %v4799 = vrcp.pop %v4737
        %v4800 = vrcp.pop %v4739
        %v4801 = vrcp.pop %v4741
        %v4802 = vrcp.pop %v4743
        %v4803 = vrcp.pop %v4745
        %v4804 = vrcp.pop %v4747
        %v4805 = vrcp.pop %v4749
        %v4806 = vrcp.pop %v4751
        %v4807 = vrcp.pop %v4753
        %v4808 = vrcp.pop %v4755
        %v4809 = vrcp.pop %v4757
        %v4810 = vrcp.pop %v4759
        %v4811 = vrcp.pop %v4761
        %v4812 = vrcp.pop %v4763
        %v4813 = vrcp.pop %v4765
        %v4814 = vrcp.pop %v4767
        %v4815 = vrcp.pop %v4769
        %v4816 = vrcp.pop %v4771
        %v4817 = vrcp.pop %v4773
        %v4818 = vrcp.pop %v4775
        %v4819 = vrcp.pop %v4777
        %v4820 = vrcp.pop %v4779
        %v4821 = vrcp.pop %v4781
        %v4822 = vrcp.pop %v4783
        %v4823 = vrcp.pop %v4785
        %v4824 = vrcp.pop %v4787
        %v4825 = vrcp.pop %v4789
        %v4826 = vrcp.pop %v4791
        %v4827 = vrcp.pop %v4793
        %v4828 = vrcp.pop %v4795
        %v4829 = vrcp.pop %v4797
        %v4830 = vmul.f32 %v4671, %v4798
        %v4831 = vmul.f32 %v4673, %v4799
        %v4832 = vmul.f32 %v4675, %v4800
        %v4833 = vmul.f32 %v4677, %v4801
        %v4834 = vmul.f32 %v4679, %v4802
        %v4835 = vmul.f32 %v4681, %v4803
        %v4836 = vmul.f32 %v4683, %v4804
        %v4837 = vmul.f32 %v4685, %v4805
        %v4838 = vmul.f32 %v4687, %v4806
        %v4839 = vmul.f32 %v4689, %v4807
        %v4840 = vmul.f32 %v4691, %v4808
        %v4841 = vmul.f32 %v4693, %v4809
        %v4842 = vmul.f32 %v4695, %v4810
        %v4843 = vmul.f32 %v4697, %v4811
        %v4844 = vmul.f32 %v4699, %v4812
        %v4845 = vmul.f32 %v4701, %v4813
        %v4846 = vmul.f32 %v4703, %v4814
        %v4847 = vmul.f32 %v4705, %v4815
        %v4848 = vmul.f32 %v4707, %v4816
        %v4849 = vmul.f32 %v4709, %v4817
        %v4850 = vmul.f32 %v4711, %v4818
        %v4851 = vmul.f32 %v4713, %v4819
        %v4852 = vmul.f32 %v4715, %v4820
        %v4853 = vmul.f32 %v4717, %v4821
        %v4854 = vmul.f32 %v4719, %v4822
        %v4855 = vmul.f32 %v4721, %v4823
        %v4856 = vmul.f32 %v4723, %v4824
        %v4857 = vmul.f32 %v4725, %v4825
        %v4858 = vmul.f32 %v4727, %v4826
        %v4859 = vmul.f32 %v4729, %v4827
        %v4860 = vmul.f32 %v4731, %v4828
        %v4861 = vmul.f32 %v4733, %v4829
        %v4862 = vpack.c.bf16 %v4831, %v4830
        %v4863 = vpack.c.bf16 %v4833, %v4832
        %v4864 = vpack.c.bf16 %v4835, %v4834
        %v4865 = vpack.c.bf16 %v4837, %v4836
        %v4866 = vpack.c.bf16 %v4839, %v4838
        %v4867 = vpack.c.bf16 %v4841, %v4840
        %v4868 = vpack.c.bf16 %v4843, %v4842
        %v4869 = vpack.c.bf16 %v4845, %v4844
        %v4870 = vpack.c.bf16 %v4847, %v4846
        %v4871 = vpack.c.bf16 %v4849, %v4848
        %v4872 = vpack.c.bf16 %v4851, %v4850
        %v4873 = vpack.c.bf16 %v4853, %v4852
        %v4874 = vpack.c.bf16 %v4855, %v4854
        %v4875 = vpack.c.bf16 %v4857, %v4856
        %v4876 = vpack.c.bf16 %v4859, %v4858
        %v4877 = vpack.c.bf16 %v4861, %v4860
        %4878 = vrot.lane.b32.xlu0 %v1567, 32
        %v4879 = vpop.permute.xlu0 %4878
        %4880 = vrot.lane.b32.xlu0 %v1568, 32
        %v4881 = vpop.permute.xlu0 %4880
        %4882 = vrot.lane.b32.xlu0 %v1569, 32
        %v4883 = vpop.permute.xlu0 %4882
        %4884 = vrot.lane.b32.xlu0 %v1570, 32
        %v4885 = vpop.permute.xlu0 %4884
        %4886 = vrot.lane.b32.xlu0 %v1571, 32
        %v4887 = vpop.permute.xlu0 %4886
        %4888 = vrot.lane.b32.xlu0 %v1572, 32
        %v4889 = vpop.permute.xlu0 %4888
        %4890 = vrot.lane.b32.xlu0 %v1573, 32
        %v4891 = vpop.permute.xlu0 %4890
        %4892 = vrot.lane.b32.xlu0 %v1574, 32
        %v4893 = vpop.permute.xlu0 %4892
        %4902 = vmatprep.subr.bf16.mxu0 0
        %4903 = vmatpush1.bf16.msra.mxu0 %v4893
        %4904 = vmatprep.subr.bf16.mxu0 0
        %4905 = vmatpush1.bf16.msra.mxu0 %v4891
        %4906 = vmatprep.subr.bf16.mxu0 0
        %4907 = vmatpush1.bf16.msra.mxu0 %v4889
        %4908 = vmatprep.subr.bf16.mxu0 0
        %4909 = vmatpush1.bf16.msra.mxu0 %v4887
        %4910 = vmatprep.subr.bf16.mxu0 0
        %4911 = vmatpush1.bf16.msra.mxu0 %v4885
        %4912 = vmatprep.subr.bf16.mxu0 0
        %4913 = vmatpush1.bf16.msra.mxu0 %v4883
        %4914 = vmatprep.subr.bf16.mxu0 0
        %4915 = vmatpush1.bf16.msra.mxu0 %v4881
        %4916 = vmatprep.subr.bf16.mxu0 0
        %4917 = vmatpush1.bf16.msra.mxu0 %v4879
        %4918 = vmatprep.subr.bf16.mxu0 0
        %4919 = vmatpush2.bf16.msra.mxu0 0
        %4920 = vmatprep.subr.bf16.mxu0 0
        %4921 = vmatpush2.bf16.msra.mxu0 0
        %4922 = vmatprep.subr.bf16.mxu0 0
        %4923 = vmatpush2.bf16.msra.mxu0 0
        %4924 = vmatprep.subr.bf16.mxu0 0
        %4925 = vmatpush2.bf16.msra.mxu0 0
        %4926 = vmatprep.subr.bf16.mxu0 0
        %4927 = vmatpush2.bf16.msra.mxu0 0
        %4928 = vmatprep.subr.bf16.mxu0 0
        %4929 = vmatpush2.bf16.msra.mxu0 0
        %4930 = vmatprep.subr.bf16.mxu0 0
        %4931 = vmatpush2.bf16.msra.mxu0 0
        %4932 = vmatprep.subr.bf16.mxu0 0
        %4933 = vmatpush2.bf16.msra.mxu0 0
        %4934 = vmatprep.mubr.bf16.mxu0 0
        %4935 = vmatmul.mubr.bf16.gmra.mxu0 %v4862
        %v4936 = vpop.f32.mrf.mxu0
        %v4937 = vadd.f32 0.0, %v4936
        %v4938 = vpop.f32.mrf.mxu0
        %v4939 = vpop.f32.mrf.mxu0
        %v4940 = vadd.f32 0.0, %v4939
        %v4941 = vpop.f32.mrf.mxu0
        %4942 = vmatprep.mubr.bf16.mxu0 0
        %4943 = vmatmul.mubr.bf16.gmra.mxu0 %v4863
        %v4944 = vpop.f32.mrf.mxu0
        %v4945 = vadd.f32 0.0, %v4944
        %v4946 = vpop.f32.mrf.mxu0
        %v4947 = vpop.f32.mrf.mxu0
        %v4948 = vadd.f32 0.0, %v4947
        %v4949 = vpop.f32.mrf.mxu0
        %4950 = vmatprep.mubr.bf16.mxu0 0
        %4951 = vmatmul.mubr.bf16.gmra.mxu0 %v4864
        %v4952 = vpop.f32.mrf.mxu0
        %v4953 = vadd.f32 0.0, %v4952
        %v4954 = vpop.f32.mrf.mxu0
        %v4955 = vpop.f32.mrf.mxu0
        %v4956 = vadd.f32 0.0, %v4955
        %v4957 = vpop.f32.mrf.mxu0
        %4958 = vmatprep.mubr.bf16.mxu0 0
        %4959 = vmatmul.mubr.bf16.gmra.mxu0 %v4865
        %v4960 = vpop.f32.mrf.mxu0
        %v4961 = vadd.f32 0.0, %v4960
        %v4962 = vpop.f32.mrf.mxu0
        %v4963 = vpop.f32.mrf.mxu0
        %v4964 = vadd.f32 0.0, %v4963
        %v4965 = vpop.f32.mrf.mxu0
        %4966 = vmatprep.mubr.bf16.mxu0 0
        %4967 = vmatmul.mubr.bf16.gmra.mxu0 %v4866
        %v4968 = vpop.f32.mrf.mxu0
        %v4969 = vadd.f32 0.0, %v4968
        %v4970 = vpop.f32.mrf.mxu0
        %v4971 = vpop.f32.mrf.mxu0
        %v4972 = vadd.f32 0.0, %v4971
        %v4973 = vpop.f32.mrf.mxu0
        %4974 = vmatprep.mubr.bf16.mxu0 0
        %4975 = vmatmul.mubr.bf16.gmra.mxu0 %v4867
        %v4976 = vpop.f32.mrf.mxu0
        %v4977 = vadd.f32 0.0, %v4976
        %v4978 = vpop.f32.mrf.mxu0
        %v4979 = vpop.f32.mrf.mxu0
        %v4980 = vadd.f32 0.0, %v4979
        %v4981 = vpop.f32.mrf.mxu0
        %4982 = vmatprep.mubr.bf16.mxu0 0
        %4983 = vmatmul.mubr.bf16.gmra.mxu0 %v4868
        %v4984 = vpop.f32.mrf.mxu0
        %v4985 = vadd.f32 0.0, %v4984
        %v4986 = vpop.f32.mrf.mxu0
        %v4987 = vpop.f32.mrf.mxu0
        %v4988 = vadd.f32 0.0, %v4987
        %v4989 = vpop.f32.mrf.mxu0
        %4990 = vmatprep.mubr.bf16.mxu0 0
        %4991 = vmatmul.mubr.bf16.gmra.mxu0 %v4869
        %v4992 = vpop.f32.mrf.mxu0
        %v4993 = vadd.f32 0.0, %v4992
        %v4994 = vpop.f32.mrf.mxu0
        %v4995 = vpop.f32.mrf.mxu0
        %v4996 = vadd.f32 0.0, %v4995
        %v4997 = vpop.f32.mrf.mxu0
        %4998 = vdwg.mxu0
        %4999 = vrot.lane.b32.xlu0 %v1575, 32
        %v5000 = vpop.permute.xlu0 %4999
        %5001 = vrot.lane.b32.xlu0 %v1576, 32
        %v5002 = vpop.permute.xlu0 %5001
        %5003 = vrot.lane.b32.xlu0 %v1577, 32
        %v5004 = vpop.permute.xlu0 %5003
        %5005 = vrot.lane.b32.xlu0 %v1578, 32
        %v5006 = vpop.permute.xlu0 %5005
        %5007 = vrot.lane.b32.xlu0 %v1579, 32
        %v5008 = vpop.permute.xlu0 %5007
        %5009 = vrot.lane.b32.xlu0 %v1580, 32
        %v5010 = vpop.permute.xlu0 %5009
        %5011 = vrot.lane.b32.xlu0 %v1581, 32
        %v5012 = vpop.permute.xlu0 %5011
        %5013 = vrot.lane.b32.xlu0 %v1582, 32
        %v5014 = vpop.permute.xlu0 %5013
        %5023 = vmatprep.subr.bf16.mxu0 0
        %5024 = vmatpush1.bf16.msra.mxu0 %v5014
        %5025 = vmatprep.subr.bf16.mxu0 0
        %5026 = vmatpush1.bf16.msra.mxu0 %v5012
        %5027 = vmatprep.subr.bf16.mxu0 0
        %5028 = vmatpush1.bf16.msra.mxu0 %v5010
        %5029 = vmatprep.subr.bf16.mxu0 0
        %5030 = vmatpush1.bf16.msra.mxu0 %v5008
        %5031 = vmatprep.subr.bf16.mxu0 0
        %5032 = vmatpush1.bf16.msra.mxu0 %v5006
        %5033 = vmatprep.subr.bf16.mxu0 0
        %5034 = vmatpush1.bf16.msra.mxu0 %v5004
        %5035 = vmatprep.subr.bf16.mxu0 0
        %5036 = vmatpush1.bf16.msra.mxu0 %v5002
        %5037 = vmatprep.subr.bf16.mxu0 0
        %5038 = vmatpush1.bf16.msra.mxu0 %v5000
        %5039 = vmatprep.subr.bf16.mxu0 0
        %5040 = vmatpush2.bf16.msra.mxu0 0
        %5041 = vmatprep.subr.bf16.mxu0 0
        %5042 = vmatpush2.bf16.msra.mxu0 0
        %5043 = vmatprep.subr.bf16.mxu0 0
        %5044 = vmatpush2.bf16.msra.mxu0 0
        %5045 = vmatprep.subr.bf16.mxu0 0
        %5046 = vmatpush2.bf16.msra.mxu0 0
        %5047 = vmatprep.subr.bf16.mxu0 0
        %5048 = vmatpush2.bf16.msra.mxu0 0
        %5049 = vmatprep.subr.bf16.mxu0 0
        %5050 = vmatpush2.bf16.msra.mxu0 0
        %5051 = vmatprep.subr.bf16.mxu0 0
        %5052 = vmatpush2.bf16.msra.mxu0 0
        %5053 = vmatprep.subr.bf16.mxu0 0
        %5054 = vmatpush2.bf16.msra.mxu0 0
        %5055 = vmatprep.mubr.bf16.mxu0 0
        %5056 = vmatmul.mubr.bf16.gmra.mxu0 %v4870
        %v5057 = vpop.f32.mrf.mxu0
        %v5058 = vadd.f32 0.0, %v5057
        %v5059 = vpop.f32.mrf.mxu0
        %v5060 = vpop.f32.mrf.mxu0
        %v5061 = vadd.f32 0.0, %v5060
        %v5062 = vpop.f32.mrf.mxu0
        %5063 = vmatprep.mubr.bf16.mxu0 0
        %5064 = vmatmul.mubr.bf16.gmra.mxu0 %v4871
        %v5065 = vpop.f32.mrf.mxu0
        %v5066 = vadd.f32 0.0, %v5065
        %v5067 = vpop.f32.mrf.mxu0
        %v5068 = vpop.f32.mrf.mxu0
        %v5069 = vadd.f32 0.0, %v5068
        %v5070 = vpop.f32.mrf.mxu0
        %5071 = vmatprep.mubr.bf16.mxu0 0
        %5072 = vmatmul.mubr.bf16.gmra.mxu0 %v4872
        %v5073 = vpop.f32.mrf.mxu0
        %v5074 = vadd.f32 0.0, %v5073
        %v5075 = vpop.f32.mrf.mxu0
        %v5076 = vpop.f32.mrf.mxu0
        %v5077 = vadd.f32 0.0, %v5076
        %v5078 = vpop.f32.mrf.mxu0
        %5079 = vmatprep.mubr.bf16.mxu0 0
        %5080 = vmatmul.mubr.bf16.gmra.mxu0 %v4873
        %v5081 = vpop.f32.mrf.mxu0
        %v5082 = vadd.f32 0.0, %v5081
        %v5083 = vpop.f32.mrf.mxu0
        %v5084 = vpop.f32.mrf.mxu0
        %v5085 = vadd.f32 0.0, %v5084
        %v5086 = vpop.f32.mrf.mxu0
        %5087 = vmatprep.mubr.bf16.mxu0 0
        %5088 = vmatmul.mubr.bf16.gmra.mxu0 %v4874
        %v5089 = vpop.f32.mrf.mxu0
        %v5090 = vadd.f32 0.0, %v5089
        %v5091 = vpop.f32.mrf.mxu0
        %v5092 = vpop.f32.mrf.mxu0
        %v5093 = vadd.f32 0.0, %v5092
        %v5094 = vpop.f32.mrf.mxu0
        %5095 = vmatprep.mubr.bf16.mxu0 0
        %5096 = vmatmul.mubr.bf16.gmra.mxu0 %v4875
        %v5097 = vpop.f32.mrf.mxu0
        %v5098 = vadd.f32 0.0, %v5097
        %v5099 = vpop.f32.mrf.mxu0
        %v5100 = vpop.f32.mrf.mxu0
        %v5101 = vadd.f32 0.0, %v5100
        %v5102 = vpop.f32.mrf.mxu0
        %5103 = vmatprep.mubr.bf16.mxu0 0
        %5104 = vmatmul.mubr.bf16.gmra.mxu0 %v4876
        %v5105 = vpop.f32.mrf.mxu0
        %v5106 = vadd.f32 0.0, %v5105
        %v5107 = vpop.f32.mrf.mxu0
        %v5108 = vpop.f32.mrf.mxu0
        %v5109 = vadd.f32 0.0, %v5108
        %v5110 = vpop.f32.mrf.mxu0
        %5111 = vmatprep.mubr.bf16.mxu0 0
        %5112 = vmatmul.mubr.bf16.gmra.mxu0 %v4877
        %v5113 = vpop.f32.mrf.mxu0
        %v5114 = vadd.f32 0.0, %v5113
        %v5115 = vpop.f32.mrf.mxu0
        %v5116 = vpop.f32.mrf.mxu0
        %v5117 = vadd.f32 0.0, %v5116
        %v5118 = vpop.f32.mrf.mxu0
        %5119 = vdwg.mxu0
        %5152 = vrot.lane.b32.xlu0 %v3129, 32
        %v5153 = vpop.permute.xlu0 %5152
        %5154 = vrot.lane.b32.xlu0 %v3132, 32
        %v5155 = vpop.permute.xlu0 %5154
        %5156 = vrot.lane.b32.xlu0 %v3137, 32
        %v5157 = vpop.permute.xlu0 %5156
        %5158 = vrot.lane.b32.xlu0 %v3140, 32
        %v5159 = vpop.permute.xlu0 %5158
        %5160 = vrot.lane.b32.xlu0 %v3145, 32
        %v5161 = vpop.permute.xlu0 %5160
        %5162 = vrot.lane.b32.xlu0 %v3148, 32
        %v5163 = vpop.permute.xlu0 %5162
        %5164 = vrot.lane.b32.xlu0 %v3153, 32
        %v5165 = vpop.permute.xlu0 %5164
        %5166 = vrot.lane.b32.xlu0 %v3156, 32
        %v5167 = vpop.permute.xlu0 %5166
        %5168 = vrot.lane.b32.xlu0 %v3161, 32
        %v5169 = vpop.permute.xlu0 %5168
        %5170 = vrot.lane.b32.xlu0 %v3164, 32
        %v5171 = vpop.permute.xlu0 %5170
        %5172 = vrot.lane.b32.xlu0 %v3169, 32
        %v5173 = vpop.permute.xlu0 %5172
        %5174 = vrot.lane.b32.xlu0 %v3172, 32
        %v5175 = vpop.permute.xlu0 %5174
        %5176 = vrot.lane.b32.xlu0 %v3177, 32
        %v5177 = vpop.permute.xlu0 %5176
        %5178 = vrot.lane.b32.xlu0 %v3180, 32
        %v5179 = vpop.permute.xlu0 %5178
        %5180 = vrot.lane.b32.xlu0 %v3185, 32
        %v5181 = vpop.permute.xlu0 %5180
        %5182 = vrot.lane.b32.xlu0 %v3188, 32
        %v5183 = vpop.permute.xlu0 %5182
        %5184 = vrot.lane.b32.xlu0 %v3258, 32
        %v5185 = vpop.permute.xlu0 %5184
        %5186 = vrot.lane.b32.xlu0 %v3261, 32
        %v5187 = vpop.permute.xlu0 %5186
        %5188 = vrot.lane.b32.xlu0 %v3266, 32
        %v5189 = vpop.permute.xlu0 %5188
        %5190 = vrot.lane.b32.xlu0 %v3269, 32
        %v5191 = vpop.permute.xlu0 %5190
        %5192 = vrot.lane.b32.xlu0 %v3274, 32
        %v5193 = vpop.permute.xlu0 %5192
        %5194 = vrot.lane.b32.xlu0 %v3277, 32
        %v5195 = vpop.permute.xlu0 %5194
        %5196 = vrot.lane.b32.xlu0 %v3282, 32
        %v5197 = vpop.permute.xlu0 %5196
        %5198 = vrot.lane.b32.xlu0 %v3285, 32
        %v5199 = vpop.permute.xlu0 %5198
        %5200 = vrot.lane.b32.xlu0 %v3290, 32
        %v5201 = vpop.permute.xlu0 %5200
        %5202 = vrot.lane.b32.xlu0 %v3293, 32
        %v5203 = vpop.permute.xlu0 %5202
        %5204 = vrot.lane.b32.xlu0 %v3298, 32
        %v5205 = vpop.permute.xlu0 %5204
        %5206 = vrot.lane.b32.xlu0 %v3301, 32
        %v5207 = vpop.permute.xlu0 %5206
        %5208 = vrot.lane.b32.xlu0 %v3306, 32
        %v5209 = vpop.permute.xlu0 %5208
        %5210 = vrot.lane.b32.xlu0 %v3309, 32
        %v5211 = vpop.permute.xlu0 %5210
        %5212 = vrot.lane.b32.xlu0 %v3314, 32
        %v5213 = vpop.permute.xlu0 %5212
        %5214 = vrot.lane.b32.xlu0 %v3317, 32
        %v5215 = vpop.permute.xlu0 %5214
        %5280 = vrot.lane.b32.xlu0 %v4037, 64
        %v5281 = vpop.permute.xlu0 %5280
        %5282 = vrot.lane.b32.xlu0 %v4040, 64
        %v5283 = vpop.permute.xlu0 %5282
        %5284 = vrot.lane.b32.xlu0 %v4045, 64
        %v5285 = vpop.permute.xlu0 %5284
        %5286 = vrot.lane.b32.xlu0 %v4048, 64
        %v5287 = vpop.permute.xlu0 %5286
        %5288 = vrot.lane.b32.xlu0 %v4053, 64
        %v5289 = vpop.permute.xlu0 %5288
        %5290 = vrot.lane.b32.xlu0 %v4056, 64
        %v5291 = vpop.permute.xlu0 %5290
        %5292 = vrot.lane.b32.xlu0 %v4061, 64
        %v5293 = vpop.permute.xlu0 %5292
        %5294 = vrot.lane.b32.xlu0 %v4064, 64
        %v5295 = vpop.permute.xlu0 %5294
        %5296 = vrot.lane.b32.xlu0 %v4069, 64
        %v5297 = vpop.permute.xlu0 %5296
        %5298 = vrot.lane.b32.xlu0 %v4072, 64
        %v5299 = vpop.permute.xlu0 %5298
        %5300 = vrot.lane.b32.xlu0 %v4077, 64
        %v5301 = vpop.permute.xlu0 %5300
        %5302 = vrot.lane.b32.xlu0 %v4080, 64
        %v5303 = vpop.permute.xlu0 %5302
        %5304 = vrot.lane.b32.xlu0 %v4085, 64
        %v5305 = vpop.permute.xlu0 %5304
        %5306 = vrot.lane.b32.xlu0 %v4088, 64
        %v5307 = vpop.permute.xlu0 %5306
        %5308 = vrot.lane.b32.xlu0 %v4093, 64
        %v5309 = vpop.permute.xlu0 %5308
        %5310 = vrot.lane.b32.xlu0 %v4096, 64
        %v5311 = vpop.permute.xlu0 %5310
        %5312 = vrot.lane.b32.xlu0 %v4158, 64
        %v5313 = vpop.permute.xlu0 %5312
        %5314 = vrot.lane.b32.xlu0 %v4161, 64
        %v5315 = vpop.permute.xlu0 %5314
        %5316 = vrot.lane.b32.xlu0 %v4166, 64
        %v5317 = vpop.permute.xlu0 %5316
        %5318 = vrot.lane.b32.xlu0 %v4169, 64
        %v5319 = vpop.permute.xlu0 %5318
        %5320 = vrot.lane.b32.xlu0 %v4174, 64
        %v5321 = vpop.permute.xlu0 %5320
        %5322 = vrot.lane.b32.xlu0 %v4177, 64
        %v5323 = vpop.permute.xlu0 %5322
        %5324 = vrot.lane.b32.xlu0 %v4182, 64
        %v5325 = vpop.permute.xlu0 %5324
        %5326 = vrot.lane.b32.xlu0 %v4185, 64
        %v5327 = vpop.permute.xlu0 %5326
        %5328 = vrot.lane.b32.xlu0 %v4190, 64
        %v5329 = vpop.permute.xlu0 %5328
        %5330 = vrot.lane.b32.xlu0 %v4193, 64
        %v5331 = vpop.permute.xlu0 %5330
        %5332 = vrot.lane.b32.xlu0 %v4198, 64
        %v5333 = vpop.permute.xlu0 %5332
        %5334 = vrot.lane.b32.xlu0 %v4201, 64
        %v5335 = vpop.permute.xlu0 %5334
        %5336 = vrot.lane.b32.xlu0 %v4206, 64
        %v5337 = vpop.permute.xlu0 %5336
        %5338 = vrot.lane.b32.xlu0 %v4209, 64
        %v5339 = vpop.permute.xlu0 %5338
        %5340 = vrot.lane.b32.xlu0 %v4214, 64
        %v5341 = vpop.permute.xlu0 %5340
        %5342 = vrot.lane.b32.xlu0 %v4217, 64
        %v5343 = vpop.permute.xlu0 %5342
        %5408 = vrot.lane.b32.xlu0 %v4937, 96
        %v5409 = vpop.permute.xlu0 %5408
        %5410 = vrot.lane.b32.xlu0 %v4940, 96
        %v5411 = vpop.permute.xlu0 %5410
        %5412 = vrot.lane.b32.xlu0 %v4945, 96
        %v5413 = vpop.permute.xlu0 %5412
        %5414 = vrot.lane.b32.xlu0 %v4948, 96
        %v5415 = vpop.permute.xlu0 %5414
        %5416 = vrot.lane.b32.xlu0 %v4953, 96
        %v5417 = vpop.permute.xlu0 %5416
        %5418 = vrot.lane.b32.xlu0 %v4956, 96
        %v5419 = vpop.permute.xlu0 %5418
        %5420 = vrot.lane.b32.xlu0 %v4961, 96
        %v5421 = vpop.permute.xlu0 %5420
        %5422 = vrot.lane.b32.xlu0 %v4964, 96
        %v5423 = vpop.permute.xlu0 %5422
        %5424 = vrot.lane.b32.xlu0 %v4969, 96
        %v5425 = vpop.permute.xlu0 %5424
        %5426 = vrot.lane.b32.xlu0 %v4972, 96
        %v5427 = vpop.permute.xlu0 %5426
        %5428 = vrot.lane.b32.xlu0 %v4977, 96
        %v5429 = vpop.permute.xlu0 %5428
        %5430 = vrot.lane.b32.xlu0 %v4980, 96
        %v5431 = vpop.permute.xlu0 %5430
        %5432 = vrot.lane.b32.xlu0 %v4985, 96
        %v5433 = vpop.permute.xlu0 %5432
        %5434 = vrot.lane.b32.xlu0 %v4988, 96
        %v5435 = vpop.permute.xlu0 %5434
        %5436 = vrot.lane.b32.xlu0 %v4993, 96
        %v5437 = vpop.permute.xlu0 %5436
        %5438 = vrot.lane.b32.xlu0 %v4996, 96
        %v5439 = vpop.permute.xlu0 %5438
        %5440 = vrot.lane.b32.xlu0 %v5058, 96
        %v5441 = vpop.permute.xlu0 %5440
        %5442 = vrot.lane.b32.xlu0 %v5061, 96
        %v5443 = vpop.permute.xlu0 %5442
        %5444 = vrot.lane.b32.xlu0 %v5066, 96
        %v5445 = vpop.permute.xlu0 %5444
        %5446 = vrot.lane.b32.xlu0 %v5069, 96
        %v5447 = vpop.permute.xlu0 %5446
        %5448 = vrot.lane.b32.xlu0 %v5074, 96
        %v5449 = vpop.permute.xlu0 %5448
        %5450 = vrot.lane.b32.xlu0 %v5077, 96
        %v5451 = vpop.permute.xlu0 %5450
        %5452 = vrot.lane.b32.xlu0 %v5082, 96
        %v5453 = vpop.permute.xlu0 %5452
        %5454 = vrot.lane.b32.xlu0 %v5085, 96
        %v5455 = vpop.permute.xlu0 %5454
        %5456 = vrot.lane.b32.xlu0 %v5090, 96
        %v5457 = vpop.permute.xlu0 %5456
        %5458 = vrot.lane.b32.xlu0 %v5093, 96
        %v5459 = vpop.permute.xlu0 %5458
        %5460 = vrot.lane.b32.xlu0 %v5098, 96
        %v5461 = vpop.permute.xlu0 %5460
        %5462 = vrot.lane.b32.xlu0 %v5101, 96
        %v5463 = vpop.permute.xlu0 %5462
        %5464 = vrot.lane.b32.xlu0 %v5106, 96
        %v5465 = vpop.permute.xlu0 %5464
        %5466 = vrot.lane.b32.xlu0 %v5109, 96
        %v5467 = vpop.permute.xlu0 %5466
        %5468 = vrot.lane.b32.xlu0 %v5114, 96
        %v5469 = vpop.permute.xlu0 %5468
        %5470 = vrot.lane.b32.xlu0 %v5117, 96
        %v5471 = vpop.permute.xlu0 %5470
        %v5504 = vsel %vm1583, %v2213, %v5153
        %v5505 = vsel %vm1583, %v2216, %v5155
        %v5506 = vsel %vm1583, %v2221, %v5157
        %v5507 = vsel %vm1583, %v2224, %v5159
        %v5508 = vsel %vm1583, %v2229, %v5161
        %v5509 = vsel %vm1583, %v2232, %v5163
        %v5510 = vsel %vm1583, %v2237, %v5165
        %v5511 = vsel %vm1583, %v2240, %v5167
        %v5512 = vsel %vm1583, %v2245, %v5169
        %v5513 = vsel %vm1583, %v2248, %v5171
        %v5514 = vsel %vm1583, %v2253, %v5173
        %v5515 = vsel %vm1583, %v2256, %v5175
        %v5516 = vsel %vm1583, %v2261, %v5177
        %v5517 = vsel %vm1583, %v2264, %v5179
        %v5518 = vsel %vm1583, %v2269, %v5181
        %v5519 = vsel %vm1583, %v2272, %v5183
        %v5520 = vsel %vm1583, %v2310, %v5185
        %v5521 = vsel %vm1583, %v2313, %v5187
        %v5522 = vsel %vm1583, %v2318, %v5189
        %v5523 = vsel %vm1583, %v2321, %v5191
        %v5524 = vsel %vm1583, %v2326, %v5193
        %v5525 = vsel %vm1583, %v2329, %v5195
        %v5526 = vsel %vm1583, %v2334, %v5197
        %v5527 = vsel %vm1583, %v2337, %v5199
        %v5528 = vsel %vm1583, %v2342, %v5201
        %v5529 = vsel %vm1583, %v2345, %v5203
        %v5530 = vsel %vm1583, %v2350, %v5205
        %v5531 = vsel %vm1583, %v2353, %v5207
        %v5532 = vsel %vm1583, %v2358, %v5209
        %v5533 = vsel %vm1583, %v2361, %v5211
        %v5534 = vsel %vm1583, %v2366, %v5213
        %v5535 = vsel %vm1583, %v2369, %v5215
        %vm5536 = vcmask 523264
        %v5537 = vsel %vm5536, %v5504, %v5281
        %v5538 = vsel %vm5536, %v5505, %v5283
        %v5539 = vsel %vm5536, %v5506, %v5285
        %v5540 = vsel %vm5536, %v5507, %v5287
        %v5541 = vsel %vm5536, %v5508, %v5289
        %v5542 = vsel %vm5536, %v5509, %v5291
        %v5543 = vsel %vm5536, %v5510, %v5293
        %v5544 = vsel %vm5536, %v5511, %v5295
        %v5545 = vsel %vm5536, %v5512, %v5297
        %v5546 = vsel %vm5536, %v5513, %v5299
        %v5547 = vsel %vm5536, %v5514, %v5301
        %v5548 = vsel %vm5536, %v5515, %v5303
        %v5549 = vsel %vm5536, %v5516, %v5305
        %v5550 = vsel %vm5536, %v5517, %v5307
        %v5551 = vsel %vm5536, %v5518, %v5309
        %v5552 = vsel %vm5536, %v5519, %v5311
        %v5553 = vsel %vm5536, %v5520, %v5313
        %v5554 = vsel %vm5536, %v5521, %v5315
        %v5555 = vsel %vm5536, %v5522, %v5317
        %v5556 = vsel %vm5536, %v5523, %v5319
        %v5557 = vsel %vm5536, %v5524, %v5321
        %v5558 = vsel %vm5536, %v5525, %v5323
        %v5559 = vsel %vm5536, %v5526, %v5325
        %v5560 = vsel %vm5536, %v5527, %v5327
        %v5561 = vsel %vm5536, %v5528, %v5329
        %v5562 = vsel %vm5536, %v5529, %v5331
        %v5563 = vsel %vm5536, %v5530, %v5333
        %v5564 = vsel %vm5536, %v5531, %v5335
        %v5565 = vsel %vm5536, %v5532, %v5337
        %v5566 = vsel %vm5536, %v5533, %v5339
        %v5567 = vsel %vm5536, %v5534, %v5341
        %v5568 = vsel %vm5536, %v5535, %v5343
        %vm5569 = vcmask 785408
        %v5570 = vsel %vm5569, %v5537, %v5409
        %v5571 = vsel %vm5569, %v5538, %v5411
        %v5572 = vsel %vm5569, %v5539, %v5413
        %v5573 = vsel %vm5569, %v5540, %v5415
        %v5574 = vsel %vm5569, %v5541, %v5417
        %v5575 = vsel %vm5569, %v5542, %v5419
        %v5576 = vsel %vm5569, %v5543, %v5421
        %v5577 = vsel %vm5569, %v5544, %v5423
        %v5578 = vsel %vm5569, %v5545, %v5425
        %v5579 = vsel %vm5569, %v5546, %v5427
        %v5580 = vsel %vm5569, %v5547, %v5429
        %v5581 = vsel %vm5569, %v5548, %v5431
        %v5582 = vsel %vm5569, %v5549, %v5433
        %v5583 = vsel %vm5569, %v5550, %v5435
        %v5584 = vsel %vm5569, %v5551, %v5437
        %v5585 = vsel %vm5569, %v5552, %v5439
        %v5586 = vsel %vm5569, %v5553, %v5441
        %v5587 = vsel %vm5569, %v5554, %v5443
        %v5588 = vsel %vm5569, %v5555, %v5445
        %v5589 = vsel %vm5569, %v5556, %v5447
        %v5590 = vsel %vm5569, %v5557, %v5449
        %v5591 = vsel %vm5569, %v5558, %v5451
        %v5592 = vsel %vm5569, %v5559, %v5453
        %v5593 = vsel %vm5569, %v5560, %v5455
        %v5594 = vsel %vm5569, %v5561, %v5457
        %v5595 = vsel %vm5569, %v5562, %v5459
        %v5596 = vsel %vm5569, %v5563, %v5461
        %v5597 = vsel %vm5569, %v5564, %v5463
        %v5598 = vsel %vm5569, %v5565, %v5465
        %v5599 = vsel %vm5569, %v5566, %v5467
        %v5600 = vsel %vm5569, %v5567, %v5469
        %v5601 = vsel %vm5569, %v5568, %v5471
        %v5602 = vpack.c.bf16 %v5571, %v5570
        %v5603 = vpack.c.bf16 %v5573, %v5572
        %v5604 = vpack.c.bf16 %v5575, %v5574
        %v5605 = vpack.c.bf16 %v5577, %v5576
        %v5606 = vpack.c.bf16 %v5579, %v5578
        %v5607 = vpack.c.bf16 %v5581, %v5580
        %v5608 = vpack.c.bf16 %v5583, %v5582
        %v5609 = vpack.c.bf16 %v5585, %v5584
        %v5610 = vpack.c.bf16 %v5587, %v5586
        %v5611 = vpack.c.bf16 %v5589, %v5588
        %v5612 = vpack.c.bf16 %v5591, %v5590
        %v5613 = vpack.c.bf16 %v5593, %v5592
        %v5614 = vpack.c.bf16 %v5595, %v5594
        %v5615 = vpack.c.bf16 %v5597, %v5596
        %v5616 = vpack.c.bf16 %v5599, %v5598
        %v5617 = vpack.c.bf16 %v5601, %v5600
        %v5618 = vld [vmem:[#allocation2] sm:$0xf]
        %v5619 = vld [vmem:[#allocation2 + $0x4] sm:$0xf]
        %v5620 = vld [vmem:[#allocation2 + $0x8] sm:$0xf]
        %v5621 = vld [vmem:[#allocation2 + $0xc] sm:$0xf]
        %v5622 = vld [vmem:[#allocation2 + $0x10] sm:$0xf]
        %v5623 = vld [vmem:[#allocation2 + $0x14] sm:$0xf]
        %v5624 = vld [vmem:[#allocation2 + $0x18] sm:$0xf]
        %v5625 = vld [vmem:[#allocation2 + $0x1c] sm:$0xf]
        %v5626 = vld [vmem:[#allocation2 + $0x20] sm:$0xf]
        %v5627 = vld [vmem:[#allocation2 + $0x24] sm:$0xf]
        %v5628 = vld [vmem:[#allocation2 + $0x28] sm:$0xf]
        %v5629 = vld [vmem:[#allocation2 + $0x2c] sm:$0xf]
        %v5630 = vld [vmem:[#allocation2 + $0x30] sm:$0xf]
        %v5631 = vld [vmem:[#allocation2 + $0x34] sm:$0xf]
        %v5632 = vld [vmem:[#allocation2 + $0x38] sm:$0xf]
        %v5633 = vld [vmem:[#allocation2 + $0x3c] sm:$0xf]
        %v5650 = vunpack.c.l.b16 %v5618
        %v5651 = vunpack.c.l.b16 %v5619
        %v5652 = vunpack.c.l.b16 %v5620
        %v5653 = vunpack.c.l.b16 %v5621
        %v5654 = vunpack.c.l.b16 %v5622
        %v5655 = vunpack.c.l.b16 %v5623
        %v5656 = vunpack.c.l.b16 %v5624
        %v5657 = vunpack.c.l.b16 %v5625
        %v5658 = vunpack.c.l.b16 %v5626
        %v5659 = vunpack.c.l.b16 %v5627
        %v5660 = vunpack.c.l.b16 %v5628
        %v5661 = vunpack.c.l.b16 %v5629
        %v5662 = vunpack.c.l.b16 %v5630
        %v5663 = vunpack.c.l.b16 %v5631
        %v5664 = vunpack.c.l.b16 %v5632
        %v5665 = vunpack.c.l.b16 %v5633
        %v5666 = vpack.c.b16 %v5651, %v5650
        %v5667 = vpack.c.b16 %v5653, %v5652
        %v5668 = vpack.c.b16 %v5655, %v5654
        %v5669 = vpack.c.b16 %v5657, %v5656
        %v5670 = vpack.c.b16 %v5659, %v5658
        %v5671 = vpack.c.b16 %v5661, %v5660
        %v5672 = vpack.c.b16 %v5663, %v5662
        %v5673 = vpack.c.b16 %v5665, %v5664
        %5682 = vmatprep.subr.bf16.mxu0 0
        %5683 = vmatpush1.bf16.msra.mxu0 %v5673
        %5684 = vmatprep.subr.bf16.mxu0 0
        %5685 = vmatpush1.bf16.msra.mxu0 %v5672
        %5686 = vmatprep.subr.bf16.mxu0 0
        %5687 = vmatpush1.bf16.msra.mxu0 %v5671
        %5688 = vmatprep.subr.bf16.mxu0 0
        %5689 = vmatpush1.bf16.msra.mxu0 %v5670
        %5690 = vmatprep.subr.bf16.mxu0 0
        %5691 = vmatpush1.bf16.msra.mxu0 %v5669
        %5692 = vmatprep.subr.bf16.mxu0 0
        %5693 = vmatpush1.bf16.msra.mxu0 %v5668
        %5694 = vmatprep.subr.bf16.mxu0 0
        %5695 = vmatpush1.bf16.msra.mxu0 %v5667
        %5696 = vmatprep.subr.bf16.mxu0 0
        %5697 = vmatpush1.bf16.msra.mxu0 %v5666
        %5698 = vmatprep.subr.bf16.mxu0 0
        %5699 = vmatpush2.bf16.msra.mxu0 0
        %5700 = vmatprep.subr.bf16.mxu0 0
        %5701 = vmatpush2.bf16.msra.mxu0 0
        %5702 = vmatprep.subr.bf16.mxu0 0
        %5703 = vmatpush2.bf16.msra.mxu0 0
        %5704 = vmatprep.subr.bf16.mxu0 0
        %5705 = vmatpush2.bf16.msra.mxu0 0
        %5706 = vmatprep.subr.bf16.mxu0 0
        %5707 = vmatpush2.bf16.msra.mxu0 0
        %5708 = vmatprep.subr.bf16.mxu0 0
        %5709 = vmatpush2.bf16.msra.mxu0 0
        %5710 = vmatprep.subr.bf16.mxu0 0
        %5711 = vmatpush2.bf16.msra.mxu0 0
        %5712 = vmatprep.subr.bf16.mxu0 0
        %5713 = vmatpush2.bf16.msra.mxu0 0
        %5714 = vmatprep.mubr.bf16.mxu0 0
        %5715 = vmatmul.mubr.bf16.gmra.mxu0 %v5602
        %v5716 = vpop.f32.mrf.mxu0
        %v5717 = vadd.f32 0.0, %v5716
        %v5718 = vpop.f32.mrf.mxu0
        %v5719 = vpop.f32.mrf.mxu0
        %v5720 = vadd.f32 0.0, %v5719
        %v5721 = vpop.f32.mrf.mxu0
        %5722 = vmatprep.mubr.bf16.mxu0 0
        %5723 = vmatmul.mubr.bf16.gmra.mxu0 %v5603
        %v5724 = vpop.f32.mrf.mxu0
        %v5725 = vadd.f32 0.0, %v5724
        %v5726 = vpop.f32.mrf.mxu0
        %v5727 = vpop.f32.mrf.mxu0
        %v5728 = vadd.f32 0.0, %v5727
        %v5729 = vpop.f32.mrf.mxu0
        %5730 = vmatprep.mubr.bf16.mxu0 0
        %5731 = vmatmul.mubr.bf16.gmra.mxu0 %v5604
        %v5732 = vpop.f32.mrf.mxu0
        %v5733 = vadd.f32 0.0, %v5732
        %v5734 = vpop.f32.mrf.mxu0
        %v5735 = vpop.f32.mrf.mxu0
        %v5736 = vadd.f32 0.0, %v5735
        %v5737 = vpop.f32.mrf.mxu0
        %5738 = vmatprep.mubr.bf16.mxu0 0
        %5739 = vmatmul.mubr.bf16.gmra.mxu0 %v5605
        %v5740 = vpop.f32.mrf.mxu0
        %v5741 = vadd.f32 0.0, %v5740
        %v5742 = vpop.f32.mrf.mxu0
        %v5743 = vpop.f32.mrf.mxu0
        %v5744 = vadd.f32 0.0, %v5743
        %v5745 = vpop.f32.mrf.mxu0
        %5746 = vmatprep.mubr.bf16.mxu0 0
        %5747 = vmatmul.mubr.bf16.gmra.mxu0 %v5606
        %v5748 = vpop.f32.mrf.mxu0
        %v5749 = vadd.f32 0.0, %v5748
        %v5750 = vpop.f32.mrf.mxu0
        %v5751 = vpop.f32.mrf.mxu0
        %v5752 = vadd.f32 0.0, %v5751
        %v5753 = vpop.f32.mrf.mxu0
        %5754 = vmatprep.mubr.bf16.mxu0 0
        %5755 = vmatmul.mubr.bf16.gmra.mxu0 %v5607
        %v5756 = vpop.f32.mrf.mxu0
        %v5757 = vadd.f32 0.0, %v5756
        %v5758 = vpop.f32.mrf.mxu0
        %v5759 = vpop.f32.mrf.mxu0
        %v5760 = vadd.f32 0.0, %v5759
        %v5761 = vpop.f32.mrf.mxu0
        %5762 = vmatprep.mubr.bf16.mxu0 0
        %5763 = vmatmul.mubr.bf16.gmra.mxu0 %v5608
        %v5764 = vpop.f32.mrf.mxu0
        %v5765 = vadd.f32 0.0, %v5764
        %v5766 = vpop.f32.mrf.mxu0
        %v5767 = vpop.f32.mrf.mxu0
        %v5768 = vadd.f32 0.0, %v5767
        %v5769 = vpop.f32.mrf.mxu0
        %5770 = vmatprep.mubr.bf16.mxu0 0
        %5771 = vmatmul.mubr.bf16.gmra.mxu0 %v5609
        %v5772 = vpop.f32.mrf.mxu0
        %v5773 = vadd.f32 0.0, %v5772
        %v5774 = vpop.f32.mrf.mxu0
        %v5775 = vpop.f32.mrf.mxu0
        %v5776 = vadd.f32 0.0, %v5775
        %v5777 = vpop.f32.mrf.mxu0
        %5778 = vmatprep.mubr.bf16.mxu0 0
        %5779 = vmatmul.mubr.bf16.gmra.mxu0 %v5610
        %v5780 = vpop.f32.mrf.mxu0
        %v5781 = vadd.f32 0.0, %v5780
        %v5782 = vpop.f32.mrf.mxu0
        %v5783 = vpop.f32.mrf.mxu0
        %v5784 = vadd.f32 0.0, %v5783
        %v5785 = vpop.f32.mrf.mxu0
        %5786 = vmatprep.mubr.bf16.mxu0 0
        %5787 = vmatmul.mubr.bf16.gmra.mxu0 %v5611
        %v5788 = vpop.f32.mrf.mxu0
        %v5789 = vadd.f32 0.0, %v5788
        %v5790 = vpop.f32.mrf.mxu0
        %v5791 = vpop.f32.mrf.mxu0
        %v5792 = vadd.f32 0.0, %v5791
        %v5793 = vpop.f32.mrf.mxu0
        %5794 = vmatprep.mubr.bf16.mxu0 0
        %5795 = vmatmul.mubr.bf16.gmra.mxu0 %v5612
        %v5796 = vpop.f32.mrf.mxu0
        %v5797 = vadd.f32 0.0, %v5796
        %v5798 = vpop.f32.mrf.mxu0
        %v5799 = vpop.f32.mrf.mxu0
        %v5800 = vadd.f32 0.0, %v5799
        %v5801 = vpop.f32.mrf.mxu0
        %5802 = vmatprep.mubr.bf16.mxu0 0
        %5803 = vmatmul.mubr.bf16.gmra.mxu0 %v5613
        %v5804 = vpop.f32.mrf.mxu0
        %v5805 = vadd.f32 0.0, %v5804
        %v5806 = vpop.f32.mrf.mxu0
        %v5807 = vpop.f32.mrf.mxu0
        %v5808 = vadd.f32 0.0, %v5807
        %v5809 = vpop.f32.mrf.mxu0
        %5810 = vmatprep.mubr.bf16.mxu0 0
        %5811 = vmatmul.mubr.bf16.gmra.mxu0 %v5614
        %v5812 = vpop.f32.mrf.mxu0
        %v5813 = vadd.f32 0.0, %v5812
        %v5814 = vpop.f32.mrf.mxu0
        %v5815 = vpop.f32.mrf.mxu0
        %v5816 = vadd.f32 0.0, %v5815
        %v5817 = vpop.f32.mrf.mxu0
        %5818 = vmatprep.mubr.bf16.mxu0 0
        %5819 = vmatmul.mubr.bf16.gmra.mxu0 %v5615
        %v5820 = vpop.f32.mrf.mxu0
        %v5821 = vadd.f32 0.0, %v5820
        %v5822 = vpop.f32.mrf.mxu0
        %v5823 = vpop.f32.mrf.mxu0
        %v5824 = vadd.f32 0.0, %v5823
        %v5825 = vpop.f32.mrf.mxu0
        %5826 = vmatprep.mubr.bf16.mxu0 0
        %5827 = vmatmul.mubr.bf16.gmra.mxu0 %v5616
        %v5828 = vpop.f32.mrf.mxu0
        %v5829 = vadd.f32 0.0, %v5828
        %v5830 = vpop.f32.mrf.mxu0
        %v5831 = vpop.f32.mrf.mxu0
        %v5832 = vadd.f32 0.0, %v5831
        %v5833 = vpop.f32.mrf.mxu0
        %5834 = vmatprep.mubr.bf16.mxu0 0
        %5835 = vmatmul.mubr.bf16.gmra.mxu0 %v5617
        %v5836 = vpop.f32.mrf.mxu0
        %v5837 = vadd.f32 0.0, %v5836
        %v5838 = vpop.f32.mrf.mxu0
        %v5839 = vpop.f32.mrf.mxu0
        %v5840 = vadd.f32 0.0, %v5839
        %v5841 = vpop.f32.mrf.mxu0
        %5842 = vdwg.mxu0
        %v5843 = vadd.f32 %v373, %v5717
        %v5844 = vadd.f32 %v374, %v5720
        %v5845 = vadd.f32 %v375, %v5725
        %v5846 = vadd.f32 %v376, %v5728
        %v5847 = vadd.f32 %v377, %v5733
        %v5848 = vadd.f32 %v378, %v5736
        %v5849 = vadd.f32 %v379, %v5741
        %v5850 = vadd.f32 %v380, %v5744
        %v5851 = vadd.f32 %v381, %v5749
        %v5852 = vadd.f32 %v382, %v5752
        %v5853 = vadd.f32 %v383, %v5757
        %v5854 = vadd.f32 %v384, %v5760
        %v5855 = vadd.f32 %v385, %v5765
        %v5856 = vadd.f32 %v386, %v5768
        %v5857 = vadd.f32 %v387, %v5773
        %v5858 = vadd.f32 %v388, %v5776
        %v5859 = vadd.f32 %v389, %v5781
        %v5860 = vadd.f32 %v390, %v5784
        %v5861 = vadd.f32 %v391, %v5789
        %v5862 = vadd.f32 %v392, %v5792
        %v5863 = vadd.f32 %v393, %v5797
        %v5864 = vadd.f32 %v394, %v5800
        %v5865 = vadd.f32 %v395, %v5805
        %v5866 = vadd.f32 %v396, %v5808
        %v5867 = vadd.f32 %v397, %v5813
        %v5868 = vadd.f32 %v398, %v5816
        %v5869 = vadd.f32 %v399, %v5821
        %v5870 = vadd.f32 %v400, %v5824
        %v5871 = vadd.f32 %v401, %v5829
        %v5872 = vadd.f32 %v402, %v5832
        %v5873 = vadd.f32 %v403, %v5837
        %v5874 = vadd.f32 %v404, %v5840
        %v5875 = vlaneseq
        %v5876 = vshrl.u32 %v5875, 7
        %v5877 = vsub.s32 3, %v5876
        %v5878 = vrot.slane %v405, %v5877
        %v5879 = vadd.f32 %v5843, %v5878
        %v5880 = vadd.f32 %v5844, %v5878
        %v5881 = vadd.f32 %v5845, %v5878
        %v5882 = vadd.f32 %v5846, %v5878
        %v5883 = vadd.f32 %v5847, %v5878
        %v5884 = vadd.f32 %v5848, %v5878
        %v5885 = vadd.f32 %v5849, %v5878
        %v5886 = vadd.f32 %v5850, %v5878
        %v5887 = vadd.f32 %v5851, %v5878
        %v5888 = vadd.f32 %v5852, %v5878
        %v5889 = vadd.f32 %v5853, %v5878
        %v5890 = vadd.f32 %v5854, %v5878
        %v5891 = vadd.f32 %v5855, %v5878
        %v5892 = vadd.f32 %v5856, %v5878
        %v5893 = vadd.f32 %v5857, %v5878
        %v5894 = vadd.f32 %v5858, %v5878
        %v5895 = vadd.f32 %v5859, %v5878
        %v5896 = vadd.f32 %v5860, %v5878
        %v5897 = vadd.f32 %v5861, %v5878
        %v5898 = vadd.f32 %v5862, %v5878
        %v5899 = vadd.f32 %v5863, %v5878
        %v5900 = vadd.f32 %v5864, %v5878
        %v5901 = vadd.f32 %v5865, %v5878
        %v5902 = vadd.f32 %v5866, %v5878
        %v5903 = vadd.f32 %v5867, %v5878
        %v5904 = vadd.f32 %v5868, %v5878
        %v5905 = vadd.f32 %v5869, %v5878
        %v5906 = vadd.f32 %v5870, %v5878
        %v5907 = vadd.f32 %v5871, %v5878
        %v5908 = vadd.f32 %v5872, %v5878
        %v5909 = vadd.f32 %v5873, %v5878
        %v5910 = vadd.f32 %v5874, %v5878
        %5911 = vadd.xlane.f32.xlu0 %v5879
        %v5912 = vpop.xlane.xlu0 %5911
        %5913 = vadd.xlane.f32.xlu0 %v5880
        %v5914 = vpop.xlane.xlu0 %5913
        %5915 = vadd.xlane.f32.xlu0 %v5881
        %v5916 = vpop.xlane.xlu0 %5915
        %5917 = vadd.xlane.f32.xlu0 %v5882
        %v5918 = vpop.xlane.xlu0 %5917
        %5919 = vadd.xlane.f32.xlu0 %v5883
        %v5920 = vpop.xlane.xlu0 %5919
        %5921 = vadd.xlane.f32.xlu0 %v5884
        %v5922 = vpop.xlane.xlu0 %5921
        %5923 = vadd.xlane.f32.xlu0 %v5885
        %v5924 = vpop.xlane.xlu0 %5923
        %5925 = vadd.xlane.f32.xlu0 %v5886
        %v5926 = vpop.xlane.xlu0 %5925
        %5927 = vadd.xlane.f32.xlu0 %v5887
        %v5928 = vpop.xlane.xlu0 %5927
        %5929 = vadd.xlane.f32.xlu0 %v5888
        %v5930 = vpop.xlane.xlu0 %5929
        %5931 = vadd.xlane.f32.xlu0 %v5889
        %v5932 = vpop.xlane.xlu0 %5931
        %5933 = vadd.xlane.f32.xlu0 %v5890
        %v5934 = vpop.xlane.xlu0 %5933
        %5935 = vadd.xlane.f32.xlu0 %v5891
        %v5936 = vpop.xlane.xlu0 %5935
        %5937 = vadd.xlane.f32.xlu0 %v5892
        %v5938 = vpop.xlane.xlu0 %5937
        %5939 = vadd.xlane.f32.xlu0 %v5893
        %v5940 = vpop.xlane.xlu0 %5939
        %5941 = vadd.xlane.f32.xlu0 %v5894
        %v5942 = vpop.xlane.xlu0 %5941
        %5943 = vadd.xlane.f32.xlu0 %v5895
        %v5944 = vpop.xlane.xlu0 %5943
        %5945 = vadd.xlane.f32.xlu0 %v5896
        %v5946 = vpop.xlane.xlu0 %5945
        %5947 = vadd.xlane.f32.xlu0 %v5897
        %v5948 = vpop.xlane.xlu0 %5947
        %5949 = vadd.xlane.f32.xlu0 %v5898
        %v5950 = vpop.xlane.xlu0 %5949
        %5951 = vadd.xlane.f32.xlu0 %v5899
        %v5952 = vpop.xlane.xlu0 %5951
        %5953 = vadd.xlane.f32.xlu0 %v5900
        %v5954 = vpop.xlane.xlu0 %5953
        %5955 = vadd.xlane.f32.xlu0 %v5901
        %v5956 = vpop.xlane.xlu0 %5955
        %5957 = vadd.xlane.f32.xlu0 %v5902
        %v5958 = vpop.xlane.xlu0 %5957
        %5959 = vadd.xlane.f32.xlu0 %v5903
        %v5960 = vpop.xlane.xlu0 %5959
        %5961 = vadd.xlane.f32.xlu0 %v5904
        %v5962 = vpop.xlane.xlu0 %5961
        %5963 = vadd.xlane.f32.xlu0 %v5905
        %v5964 = vpop.xlane.xlu0 %5963
        %5965 = vadd.xlane.f32.xlu0 %v5906
        %v5966 = vpop.xlane.xlu0 %5965
        %5967 = vadd.xlane.f32.xlu0 %v5907
        %v5968 = vpop.xlane.xlu0 %5967
        %5969 = vadd.xlane.f32.xlu0 %v5908
        %v5970 = vpop.xlane.xlu0 %5969
        %5971 = vadd.xlane.f32.xlu0 %v5909
        %v5972 = vpop.xlane.xlu0 %5971
        %5973 = vadd.xlane.f32.xlu0 %v5910
        %v5974 = vpop.xlane.xlu0 %5973
        %v5975 = vmul.f32 %v5912, %v472
        %v5976 = vmul.f32 %v5914, %v472
        %v5977 = vmul.f32 %v5916, %v472
        %v5978 = vmul.f32 %v5918, %v472
        %v5979 = vmul.f32 %v5920, %v472
        %v5980 = vmul.f32 %v5922, %v472
        %v5981 = vmul.f32 %v5924, %v472
        %v5982 = vmul.f32 %v5926, %v472
        %v5983 = vmul.f32 %v5928, %v472
        %v5984 = vmul.f32 %v5930, %v472
        %v5985 = vmul.f32 %v5932, %v472
        %v5986 = vmul.f32 %v5934, %v472
        %v5987 = vmul.f32 %v5936, %v472
        %v5988 = vmul.f32 %v5938, %v472
        %v5989 = vmul.f32 %v5940, %v472
        %v5990 = vmul.f32 %v5942, %v472
        %v5991 = vmul.f32 %v5944, %v472
        %v5992 = vmul.f32 %v5946, %v472
        %v5993 = vmul.f32 %v5948, %v472
        %v5994 = vmul.f32 %v5950, %v472
        %v5995 = vmul.f32 %v5952, %v472
        %v5996 = vmul.f32 %v5954, %v472
        %v5997 = vmul.f32 %v5956, %v472
        %v5998 = vmul.f32 %v5958, %v472
        %v5999 = vmul.f32 %v5960, %v472
        %v6000 = vmul.f32 %v5962, %v472
        %v6001 = vmul.f32 %v5964, %v472
        %v6002 = vmul.f32 %v5966, %v472
        %v6003 = vmul.f32 %v5968, %v472
        %v6004 = vmul.f32 %v5970, %v472
        %v6005 = vmul.f32 %v5972, %v472
        %v6006 = vmul.f32 %v5974, %v472
        %v6007 = vmul.f32 %v5879, %v5879
        %v6008 = vmul.f32 %v5880, %v5880
        %v6009 = vmul.f32 %v5881, %v5881
        %v6010 = vmul.f32 %v5882, %v5882
        %v6011 = vmul.f32 %v5883, %v5883
        %v6012 = vmul.f32 %v5884, %v5884
        %v6013 = vmul.f32 %v5885, %v5885
        %v6014 = vmul.f32 %v5886, %v5886
        %v6015 = vmul.f32 %v5887, %v5887
        %v6016 = vmul.f32 %v5888, %v5888
        %v6017 = vmul.f32 %v5889, %v5889
        %v6018 = vmul.f32 %v5890, %v5890
        %v6019 = vmul.f32 %v5891, %v5891
        %v6020 = vmul.f32 %v5892, %v5892
        %v6021 = vmul.f32 %v5893, %v5893
        %v6022 = vmul.f32 %v5894, %v5894
        %v6023 = vmul.f32 %v5895, %v5895
        %v6024 = vmul.f32 %v5896, %v5896
        %v6025 = vmul.f32 %v5897, %v5897
        %v6026 = vmul.f32 %v5898, %v5898
        %v6027 = vmul.f32 %v5899, %v5899
        %v6028 = vmul.f32 %v5900, %v5900
        %v6029 = vmul.f32 %v5901, %v5901
        %v6030 = vmul.f32 %v5902, %v5902
        %v6031 = vmul.f32 %v5903, %v5903
        %v6032 = vmul.f32 %v5904, %v5904
        %v6033 = vmul.f32 %v5905, %v5905
        %v6034 = vmul.f32 %v5906, %v5906
        %v6035 = vmul.f32 %v5907, %v5907
        %v6036 = vmul.f32 %v5908, %v5908
        %v6037 = vmul.f32 %v5909, %v5909
        %v6038 = vmul.f32 %v5910, %v5910
        %6039 = vadd.xlane.f32.xlu0 %v6007
        %v6040 = vpop.xlane.xlu0 %6039
        %6041 = vadd.xlane.f32.xlu0 %v6008
        %v6042 = vpop.xlane.xlu0 %6041
        %6043 = vadd.xlane.f32.xlu0 %v6009
        %v6044 = vpop.xlane.xlu0 %6043
        %6045 = vadd.xlane.f32.xlu0 %v6010
        %v6046 = vpop.xlane.xlu0 %6045
        %6047 = vadd.xlane.f32.xlu0 %v6011
        %v6048 = vpop.xlane.xlu0 %6047
        %6049 = vadd.xlane.f32.xlu0 %v6012
        %v6050 = vpop.xlane.xlu0 %6049
        %6051 = vadd.xlane.f32.xlu0 %v6013
        %v6052 = vpop.xlane.xlu0 %6051
        %6053 = vadd.xlane.f32.xlu0 %v6014
        %v6054 = vpop.xlane.xlu0 %6053
        %6055 = vadd.xlane.f32.xlu0 %v6015
        %v6056 = vpop.xlane.xlu0 %6055
        %6057 = vadd.xlane.f32.xlu0 %v6016
        %v6058 = vpop.xlane.xlu0 %6057
        %6059 = vadd.xlane.f32.xlu0 %v6017
        %v6060 = vpop.xlane.xlu0 %6059
        %6061 = vadd.xlane.f32.xlu0 %v6018
        %v6062 = vpop.xlane.xlu0 %6061
        %6063 = vadd.xlane.f32.xlu0 %v6019
        %v6064 = vpop.xlane.xlu0 %6063
        %6065 = vadd.xlane.f32.xlu0 %v6020
        %v6066 = vpop.xlane.xlu0 %6065
        %6067 = vadd.xlane.f32.xlu0 %v6021
        %v6068 = vpop.xlane.xlu0 %6067
        %6069 = vadd.xlane.f32.xlu0 %v6022
        %v6070 = vpop.xlane.xlu0 %6069
        %6071 = vadd.xlane.f32.xlu0 %v6023
        %v6072 = vpop.xlane.xlu0 %6071
        %6073 = vadd.xlane.f32.xlu0 %v6024
        %v6074 = vpop.xlane.xlu0 %6073
        %6075 = vadd.xlane.f32.xlu0 %v6025
        %v6076 = vpop.xlane.xlu0 %6075
        %6077 = vadd.xlane.f32.xlu0 %v6026
        %v6078 = vpop.xlane.xlu0 %6077
        %6079 = vadd.xlane.f32.xlu0 %v6027
        %v6080 = vpop.xlane.xlu0 %6079
        %6081 = vadd.xlane.f32.xlu0 %v6028
        %v6082 = vpop.xlane.xlu0 %6081
        %6083 = vadd.xlane.f32.xlu0 %v6029
        %v6084 = vpop.xlane.xlu0 %6083
        %6085 = vadd.xlane.f32.xlu0 %v6030
        %v6086 = vpop.xlane.xlu0 %6085
        %6087 = vadd.xlane.f32.xlu0 %v6031
        %v6088 = vpop.xlane.xlu0 %6087
        %6089 = vadd.xlane.f32.xlu0 %v6032
        %v6090 = vpop.xlane.xlu0 %6089
        %6091 = vadd.xlane.f32.xlu0 %v6033
        %v6092 = vpop.xlane.xlu0 %6091
        %6093 = vadd.xlane.f32.xlu0 %v6034
        %v6094 = vpop.xlane.xlu0 %6093
        %6095 = vadd.xlane.f32.xlu0 %v6035
        %v6096 = vpop.xlane.xlu0 %6095
        %6097 = vadd.xlane.f32.xlu0 %v6036
        %v6098 = vpop.xlane.xlu0 %6097
        %6099 = vadd.xlane.f32.xlu0 %v6037
        %v6100 = vpop.xlane.xlu0 %6099
        %6101 = vadd.xlane.f32.xlu0 %v6038
        %v6102 = vpop.xlane.xlu0 %6101
        %v6103 = vmul.f32 %v6040, %v472
        %v6104 = vmul.f32 %v6042, %v472
        %v6105 = vmul.f32 %v6044, %v472
        %v6106 = vmul.f32 %v6046, %v472
        %v6107 = vmul.f32 %v6048, %v472
        %v6108 = vmul.f32 %v6050, %v472
        %v6109 = vmul.f32 %v6052, %v472
        %v6110 = vmul.f32 %v6054, %v472
        %v6111 = vmul.f32 %v6056, %v472
        %v6112 = vmul.f32 %v6058, %v472
        %v6113 = vmul.f32 %v6060, %v472
        %v6114 = vmul.f32 %v6062, %v472
        %v6115 = vmul.f32 %v6064, %v472
        %v6116 = vmul.f32 %v6066, %v472
        %v6117 = vmul.f32 %v6068, %v472
        %v6118 = vmul.f32 %v6070, %v472
        %v6119 = vmul.f32 %v6072, %v472
        %v6120 = vmul.f32 %v6074, %v472
        %v6121 = vmul.f32 %v6076, %v472
        %v6122 = vmul.f32 %v6078, %v472
        %v6123 = vmul.f32 %v6080, %v472
        %v6124 = vmul.f32 %v6082, %v472
        %v6125 = vmul.f32 %v6084, %v472
        %v6126 = vmul.f32 %v6086, %v472
        %v6127 = vmul.f32 %v6088, %v472
        %v6128 = vmul.f32 %v6090, %v472
        %v6129 = vmul.f32 %v6092, %v472
        %v6130 = vmul.f32 %v6094, %v472
        %v6131 = vmul.f32 %v6096, %v472
        %v6132 = vmul.f32 %v6098, %v472
        %v6133 = vmul.f32 %v6100, %v472
        %v6134 = vmul.f32 %v6102, %v472
        %v6135 = vsub.f32 %v5879, %v5975
        %v6136 = vsub.f32 %v5880, %v5976
        %v6137 = vsub.f32 %v5881, %v5977
        %v6138 = vsub.f32 %v5882, %v5978
        %v6139 = vsub.f32 %v5883, %v5979
        %v6140 = vsub.f32 %v5884, %v5980
        %v6141 = vsub.f32 %v5885, %v5981
        %v6142 = vsub.f32 %v5886, %v5982
        %v6143 = vsub.f32 %v5887, %v5983
        %v6144 = vsub.f32 %v5888, %v5984
        %v6145 = vsub.f32 %v5889, %v5985
        %v6146 = vsub.f32 %v5890, %v5986
        %v6147 = vsub.f32 %v5891, %v5987
        %v6148 = vsub.f32 %v5892, %v5988
        %v6149 = vsub.f32 %v5893, %v5989
        %v6150 = vsub.f32 %v5894, %v5990
        %v6151 = vsub.f32 %v5895, %v5991
        %v6152 = vsub.f32 %v5896, %v5992
        %v6153 = vsub.f32 %v5897, %v5993
        %v6154 = vsub.f32 %v5898, %v5994
        %v6155 = vsub.f32 %v5899, %v5995
        %v6156 = vsub.f32 %v5900, %v5996
        %v6157 = vsub.f32 %v5901, %v5997
        %v6158 = vsub.f32 %v5902, %v5998
        %v6159 = vsub.f32 %v5903, %v5999
        %v6160 = vsub.f32 %v5904, %v6000
        %v6161 = vsub.f32 %v5905, %v6001
        %v6162 = vsub.f32 %v5906, %v6002
        %v6163 = vsub.f32 %v5907, %v6003
        %v6164 = vsub.f32 %v5908, %v6004
        %v6165 = vsub.f32 %v5909, %v6005
        %v6166 = vsub.f32 %v5910, %v6006
        %v6167 = vmul.f32 %v5975, %v5975
        %v6168 = vmul.f32 %v5976, %v5976
        %v6169 = vmul.f32 %v5977, %v5977
        %v6170 = vmul.f32 %v5978, %v5978
        %v6171 = vmul.f32 %v5979, %v5979
        %v6172 = vmul.f32 %v5980, %v5980
        %v6173 = vmul.f32 %v5981, %v5981
        %v6174 = vmul.f32 %v5982, %v5982
        %v6175 = vmul.f32 %v5983, %v5983
        %v6176 = vmul.f32 %v5984, %v5984
        %v6177 = vmul.f32 %v5985, %v5985
        %v6178 = vmul.f32 %v5986, %v5986
        %v6179 = vmul.f32 %v5987, %v5987
        %v6180 = vmul.f32 %v5988, %v5988
        %v6181 = vmul.f32 %v5989, %v5989
        %v6182 = vmul.f32 %v5990, %v5990
        %v6183 = vmul.f32 %v5991, %v5991
        %v6184 = vmul.f32 %v5992, %v5992
        %v6185 = vmul.f32 %v5993, %v5993
        %v6186 = vmul.f32 %v5994, %v5994
        %v6187 = vmul.f32 %v5995, %v5995
        %v6188 = vmul.f32 %v5996, %v5996
        %v6189 = vmul.f32 %v5997, %v5997
        %v6190 = vmul.f32 %v5998, %v5998
        %v6191 = vmul.f32 %v5999, %v5999
        %v6192 = vmul.f32 %v6000, %v6000
        %v6193 = vmul.f32 %v6001, %v6001
        %v6194 = vmul.f32 %v6002, %v6002
        %v6195 = vmul.f32 %v6003, %v6003
        %v6196 = vmul.f32 %v6004, %v6004
        %v6197 = vmul.f32 %v6005, %v6005
        %v6198 = vmul.f32 %v6006, %v6006
        %v6199 = vsub.f32 %v6103, %v6167
        %v6200 = vsub.f32 %v6104, %v6168
        %v6201 = vsub.f32 %v6105, %v6169
        %v6202 = vsub.f32 %v6106, %v6170
        %v6203 = vsub.f32 %v6107, %v6171
        %v6204 = vsub.f32 %v6108, %v6172
        %v6205 = vsub.f32 %v6109, %v6173
        %v6206 = vsub.f32 %v6110, %v6174
        %v6207 = vsub.f32 %v6111, %v6175
        %v6208 = vsub.f32 %v6112, %v6176
        %v6209 = vsub.f32 %v6113, %v6177
        %v6210 = vsub.f32 %v6114, %v6178
        %v6211 = vsub.f32 %v6115, %v6179
        %v6212 = vsub.f32 %v6116, %v6180
        %v6213 = vsub.f32 %v6117, %v6181
        %v6214 = vsub.f32 %v6118, %v6182
        %v6215 = vsub.f32 %v6119, %v6183
        %v6216 = vsub.f32 %v6120, %v6184
        %v6217 = vsub.f32 %v6121, %v6185
        %v6218 = vsub.f32 %v6122, %v6186
        %v6219 = vsub.f32 %v6123, %v6187
        %v6220 = vsub.f32 %v6124, %v6188
        %v6221 = vsub.f32 %v6125, %v6189
        %v6222 = vsub.f32 %v6126, %v6190
        %v6223 = vsub.f32 %v6127, %v6191
        %v6224 = vsub.f32 %v6128, %v6192
        %v6225 = vsub.f32 %v6129, %v6193
        %v6226 = vsub.f32 %v6130, %v6194
        %v6227 = vsub.f32 %v6131, %v6195
        %v6228 = vsub.f32 %v6132, %v6196
        %v6229 = vsub.f32 %v6133, %v6197
        %v6230 = vsub.f32 %v6134, %v6198
        %v6231 = vadd.f32 %v6199, 1e-05
        %v6232 = vadd.f32 %v6200, 1e-05
        %v6233 = vadd.f32 %v6201, 1e-05
        %v6234 = vadd.f32 %v6202, 1e-05
        %v6235 = vadd.f32 %v6203, 1e-05
        %v6236 = vadd.f32 %v6204, 1e-05
        %v6237 = vadd.f32 %v6205, 1e-05
        %v6238 = vadd.f32 %v6206, 1e-05
        %v6239 = vadd.f32 %v6207, 1e-05
        %v6240 = vadd.f32 %v6208, 1e-05
        %v6241 = vadd.f32 %v6209, 1e-05
        %v6242 = vadd.f32 %v6210, 1e-05
        %v6243 = vadd.f32 %v6211, 1e-05
        %v6244 = vadd.f32 %v6212, 1e-05
        %v6245 = vadd.f32 %v6213, 1e-05
        %v6246 = vadd.f32 %v6214, 1e-05
        %v6247 = vadd.f32 %v6215, 1e-05
        %v6248 = vadd.f32 %v6216, 1e-05
        %v6249 = vadd.f32 %v6217, 1e-05
        %v6250 = vadd.f32 %v6218, 1e-05
        %v6251 = vadd.f32 %v6219, 1e-05
        %v6252 = vadd.f32 %v6220, 1e-05
        %v6253 = vadd.f32 %v6221, 1e-05
        %v6254 = vadd.f32 %v6222, 1e-05
        %v6255 = vadd.f32 %v6223, 1e-05
        %v6256 = vadd.f32 %v6224, 1e-05
        %v6257 = vadd.f32 %v6225, 1e-05
        %v6258 = vadd.f32 %v6226, 1e-05
        %v6259 = vadd.f32 %v6227, 1e-05
        %v6260 = vadd.f32 %v6228, 1e-05
        %v6261 = vadd.f32 %v6229, 1e-05
        %v6262 = vadd.f32 %v6230, 1e-05
        %v6263 = vrsqrt.pop %v6231
        %v6264 = vrsqrt.pop %v6232
        %v6265 = vrsqrt.pop %v6233
        %v6266 = vrsqrt.pop %v6234
        %v6267 = vrsqrt.pop %v6235
        %v6268 = vrsqrt.pop %v6236
        %v6269 = vrsqrt.pop %v6237
        %v6270 = vrsqrt.pop %v6238
        %v6271 = vrsqrt.pop %v6239
        %v6272 = vrsqrt.pop %v6240
        %v6273 = vrsqrt.pop %v6241
        %v6274 = vrsqrt.pop %v6242
        %v6275 = vrsqrt.pop %v6243
        %v6276 = vrsqrt.pop %v6244
        %v6277 = vrsqrt.pop %v6245
        %v6278 = vrsqrt.pop %v6246
        %v6279 = vrsqrt.pop %v6247
        %v6280 = vrsqrt.pop %v6248
        %v6281 = vrsqrt.pop %v6249
        %v6282 = vrsqrt.pop %v6250
        %v6283 = vrsqrt.pop %v6251
        %v6284 = vrsqrt.pop %v6252
        %v6285 = vrsqrt.pop %v6253
        %v6286 = vrsqrt.pop %v6254
        %v6287 = vrsqrt.pop %v6255
        %v6288 = vrsqrt.pop %v6256
        %v6289 = vrsqrt.pop %v6257
        %v6290 = vrsqrt.pop %v6258
        %v6291 = vrsqrt.pop %v6259
        %v6292 = vrsqrt.pop %v6260
        %v6293 = vrsqrt.pop %v6261
        %v6294 = vrsqrt.pop %v6262
        %v6295 = vmul.f32 %v6135, %v6263
        %v6296 = vmul.f32 %v6136, %v6264
        %v6297 = vmul.f32 %v6137, %v6265
        %v6298 = vmul.f32 %v6138, %v6266
        %v6299 = vmul.f32 %v6139, %v6267
        %v6300 = vmul.f32 %v6140, %v6268
        %v6301 = vmul.f32 %v6141, %v6269
        %v6302 = vmul.f32 %v6142, %v6270
        %v6303 = vmul.f32 %v6143, %v6271
        %v6304 = vmul.f32 %v6144, %v6272
        %v6305 = vmul.f32 %v6145, %v6273
        %v6306 = vmul.f32 %v6146, %v6274
        %v6307 = vmul.f32 %v6147, %v6275
        %v6308 = vmul.f32 %v6148, %v6276
        %v6309 = vmul.f32 %v6149, %v6277
        %v6310 = vmul.f32 %v6150, %v6278
        %v6311 = vmul.f32 %v6151, %v6279
        %v6312 = vmul.f32 %v6152, %v6280
        %v6313 = vmul.f32 %v6153, %v6281
        %v6314 = vmul.f32 %v6154, %v6282
        %v6315 = vmul.f32 %v6155, %v6283
        %v6316 = vmul.f32 %v6156, %v6284
        %v6317 = vmul.f32 %v6157, %v6285
        %v6318 = vmul.f32 %v6158, %v6286
        %v6319 = vmul.f32 %v6159, %v6287
        %v6320 = vmul.f32 %v6160, %v6288
        %v6321 = vmul.f32 %v6161, %v6289
        %v6322 = vmul.f32 %v6162, %v6290
        %v6323 = vmul.f32 %v6163, %v6291
        %v6324 = vmul.f32 %v6164, %v6292
        %v6325 = vmul.f32 %v6165, %v6293
        %v6326 = vmul.f32 %v6166, %v6294
        %v6327 = vlaneseq
        %v6328 = vshrl.u32 %v6327, 7
        %v6329 = vsub.s32 6, %v6328
        %v6330 = vrot.slane %v405, %v6329
        %v6331 = vmul.f32 %v6295, %v6330
        %v6332 = vmul.f32 %v6296, %v6330
        %v6333 = vmul.f32 %v6297, %v6330
        %v6334 = vmul.f32 %v6298, %v6330
        %v6335 = vmul.f32 %v6299, %v6330
        %v6336 = vmul.f32 %v6300, %v6330
        %v6337 = vmul.f32 %v6301, %v6330
        %v6338 = vmul.f32 %v6302, %v6330
        %v6339 = vmul.f32 %v6303, %v6330
        %v6340 = vmul.f32 %v6304, %v6330
        %v6341 = vmul.f32 %v6305, %v6330
        %v6342 = vmul.f32 %v6306, %v6330
        %v6343 = vmul.f32 %v6307, %v6330
        %v6344 = vmul.f32 %v6308, %v6330
        %v6345 = vmul.f32 %v6309, %v6330
        %v6346 = vmul.f32 %v6310, %v6330
        %v6347 = vmul.f32 %v6311, %v6330
        %v6348 = vmul.f32 %v6312, %v6330
        %v6349 = vmul.f32 %v6313, %v6330
        %v6350 = vmul.f32 %v6314, %v6330
        %v6351 = vmul.f32 %v6315, %v6330
        %v6352 = vmul.f32 %v6316, %v6330
        %v6353 = vmul.f32 %v6317, %v6330
        %v6354 = vmul.f32 %v6318, %v6330
        %v6355 = vmul.f32 %v6319, %v6330
        %v6356 = vmul.f32 %v6320, %v6330
        %v6357 = vmul.f32 %v6321, %v6330
        %v6358 = vmul.f32 %v6322, %v6330
        %v6359 = vmul.f32 %v6323, %v6330
        %v6360 = vmul.f32 %v6324, %v6330
        %v6361 = vmul.f32 %v6325, %v6330
        %v6362 = vmul.f32 %v6326, %v6330
        %v6363 = vlaneseq
        %v6364 = vshrl.u32 %v6363, 7
        %v6365 = vsub.s32 7, %v6364
        %v6366 = vrot.slane %v405, %v6365
        %v6367 = vadd.f32 %v6331, %v6366
        %v6368 = vadd.f32 %v6332, %v6366
        %v6369 = vadd.f32 %v6333, %v6366
        %v6370 = vadd.f32 %v6334, %v6366
        %v6371 = vadd.f32 %v6335, %v6366
        %v6372 = vadd.f32 %v6336, %v6366
        %v6373 = vadd.f32 %v6337, %v6366
        %v6374 = vadd.f32 %v6338, %v6366
        %v6375 = vadd.f32 %v6339, %v6366
        %v6376 = vadd.f32 %v6340, %v6366
        %v6377 = vadd.f32 %v6341, %v6366
        %v6378 = vadd.f32 %v6342, %v6366
        %v6379 = vadd.f32 %v6343, %v6366
        %v6380 = vadd.f32 %v6344, %v6366
        %v6381 = vadd.f32 %v6345, %v6366
        %v6382 = vadd.f32 %v6346, %v6366
        %v6383 = vadd.f32 %v6347, %v6366
        %v6384 = vadd.f32 %v6348, %v6366
        %v6385 = vadd.f32 %v6349, %v6366
        %v6386 = vadd.f32 %v6350, %v6366
        %v6387 = vadd.f32 %v6351, %v6366
        %v6388 = vadd.f32 %v6352, %v6366
        %v6389 = vadd.f32 %v6353, %v6366
        %v6390 = vadd.f32 %v6354, %v6366
        %v6391 = vadd.f32 %v6355, %v6366
        %v6392 = vadd.f32 %v6356, %v6366
        %v6393 = vadd.f32 %v6357, %v6366
        %v6394 = vadd.f32 %v6358, %v6366
        %v6395 = vadd.f32 %v6359, %v6366
        %v6396 = vadd.f32 %v6360, %v6366
        %v6397 = vadd.f32 %v6361, %v6366
        %v6398 = vadd.f32 %v6362, %v6366
        %v6399 = vpack.c.bf16 %v6368, %v6367
        %v6400 = vpack.c.bf16 %v6370, %v6369
        %v6401 = vpack.c.bf16 %v6372, %v6371
        %v6402 = vpack.c.bf16 %v6374, %v6373
        %v6403 = vpack.c.bf16 %v6376, %v6375
        %v6404 = vpack.c.bf16 %v6378, %v6377
        %v6405 = vpack.c.bf16 %v6380, %v6379
        %v6406 = vpack.c.bf16 %v6382, %v6381
        %v6407 = vpack.c.bf16 %v6384, %v6383
        %v6408 = vpack.c.bf16 %v6386, %v6385
        %v6409 = vpack.c.bf16 %v6388, %v6387
        %v6410 = vpack.c.bf16 %v6390, %v6389
        %v6411 = vpack.c.bf16 %v6392, %v6391
        %v6412 = vpack.c.bf16 %v6394, %v6393
        %v6413 = vpack.c.bf16 %v6396, %v6395
        %v6414 = vpack.c.bf16 %v6398, %v6397
        %v6415 = vld [vmem:[%s3] sm:$0xff]
        %v6416 = vld [vmem:[%s3 + $0x8] sm:$0xff]
        %v6417 = vld [vmem:[%s3 + $0x10] sm:$0xff]
        %v6418 = vld [vmem:[%s3 + $0x18] sm:$0xff]
        %v6419 = vld [vmem:[%s3 + $0x20] sm:$0xff]
        %v6420 = vld [vmem:[%s3 + $0x28] sm:$0xff]
        %v6421 = vld [vmem:[%s3 + $0x30] sm:$0xff]
        %v6422 = vld [vmem:[%s3 + $0x38] sm:$0xff]
        %v6423 = vld [vmem:[%s3 + $0x40] sm:$0xff]
        %v6424 = vld [vmem:[%s3 + $0x48] sm:$0xff]
        %v6425 = vld [vmem:[%s3 + $0x50] sm:$0xff]
        %v6426 = vld [vmem:[%s3 + $0x58] sm:$0xff]
        %v6427 = vld [vmem:[%s3 + $0x60] sm:$0xff]
        %v6428 = vld [vmem:[%s3 + $0x68] sm:$0xff]
        %v6429 = vld [vmem:[%s3 + $0x70] sm:$0xff]
        %v6430 = vld [vmem:[%s3 + $0x78] sm:$0xff]
        %v6431 = vld [vmem:[%s3 + $0x80] sm:$0xff]
        %v6432 = vld [vmem:[%s3 + $0x88] sm:$0xff]
        %v6433 = vld [vmem:[%s3 + $0x90] sm:$0xff]
        %v6434 = vld [vmem:[%s3 + $0x98] sm:$0xff]
        %v6435 = vld [vmem:[%s3 + $0xa0] sm:$0xff]
        %v6436 = vld [vmem:[%s3 + $0xa8] sm:$0xff]
        %v6437 = vld [vmem:[%s3 + $0xb0] sm:$0xff]
        %v6438 = vld [vmem:[%s3 + $0xb8] sm:$0xff]
        %v6439 = vld [vmem:[%s3 + $0xc0] sm:$0xff]
        %v6440 = vld [vmem:[%s3 + $0xc8] sm:$0xff]
        %v6441 = vld [vmem:[%s3 + $0xd0] sm:$0xff]
        %v6442 = vld [vmem:[%s3 + $0xd8] sm:$0xff]
        %v6443 = vld [vmem:[%s3 + $0xe0] sm:$0xff]
        %v6444 = vld [vmem:[%s3 + $0xe8] sm:$0xff]
        %v6445 = vld [vmem:[%s3 + $0xf0] sm:$0xff]
        %v6446 = vld [vmem:[%s3 + $0xf8] sm:$0xff]
        %v6448 = vlaneseq
        %v6449 = vshrl.u32 %v6448, 7
        %v6450 = vsub.s32 0, %v6449
        %v6451 = vrot.slane %v407, %v6450
        %v6452 = vlaneseq
        %v6453 = vshrl.u32 %v6452, 7
        %v6454 = vsub.s32 1, %v6453
        %v6455 = vrot.slane %v407, %v6454
        %v6456 = vlaneseq
        %v6457 = vshrl.u32 %v6456, 7
        %v6458 = vsub.s32 2, %v6457
        %v6459 = vrot.slane %v407, %v6458
        %v6460 = vlaneseq
        %v6461 = vshrl.u32 %v6460, 7
        %v6462 = vsub.s32 3, %v6461
        %v6463 = vrot.slane %v407, %v6462
        %v6500 = vunpack.c.l.b16 %v6415
        %v6501 = vunpack.c.h.b16 %v6415
        %v6502 = vunpack.c.l.b16 %v6416
        %v6503 = vunpack.c.h.b16 %v6416
        %v6504 = vunpack.c.l.b16 %v6417
        %v6505 = vunpack.c.h.b16 %v6417
        %v6506 = vunpack.c.l.b16 %v6418
        %v6507 = vunpack.c.h.b16 %v6418
        %v6508 = vunpack.c.l.b16 %v6419
        %v6509 = vunpack.c.h.b16 %v6419
        %v6510 = vunpack.c.l.b16 %v6420
        %v6511 = vunpack.c.h.b16 %v6420
        %v6512 = vunpack.c.l.b16 %v6421
        %v6513 = vunpack.c.h.b16 %v6421
        %v6514 = vunpack.c.l.b16 %v6422
        %v6515 = vunpack.c.h.b16 %v6422
        %v6516 = vunpack.c.l.b16 %v6423
        %v6517 = vunpack.c.h.b16 %v6423
        %v6518 = vunpack.c.l.b16 %v6424
        %v6519 = vunpack.c.h.b16 %v6424
        %v6520 = vunpack.c.l.b16 %v6425
        %v6521 = vunpack.c.h.b16 %v6425
        %v6522 = vunpack.c.l.b16 %v6426
        %v6523 = vunpack.c.h.b16 %v6426
        %v6524 = vunpack.c.l.b16 %v6427
        %v6525 = vunpack.c.h.b16 %v6427
        %v6526 = vunpack.c.l.b16 %v6428
        %v6527 = vunpack.c.h.b16 %v6428
        %v6528 = vunpack.c.l.b16 %v6429
        %v6529 = vunpack.c.h.b16 %v6429
        %v6530 = vunpack.c.l.b16 %v6430
        %v6531 = vunpack.c.h.b16 %v6430
        %v6532 = vunpack.c.l.b16 %v6431
        %v6533 = vunpack.c.h.b16 %v6431
        %v6534 = vunpack.c.l.b16 %v6432
        %v6535 = vunpack.c.h.b16 %v6432
        %v6536 = vunpack.c.l.b16 %v6433
        %v6537 = vunpack.c.h.b16 %v6433
        %v6538 = vunpack.c.l.b16 %v6434
        %v6539 = vunpack.c.h.b16 %v6434
        %v6540 = vunpack.c.l.b16 %v6435
        %v6541 = vunpack.c.h.b16 %v6435
        %v6542 = vunpack.c.l.b16 %v6436
        %v6543 = vunpack.c.h.b16 %v6436
        %v6544 = vunpack.c.l.b16 %v6437
        %v6545 = vunpack.c.h.b16 %v6437
        %v6546 = vunpack.c.l.b16 %v6438
        %v6547 = vunpack.c.h.b16 %v6438
        %v6548 = vunpack.c.l.b16 %v6439
        %v6549 = vunpack.c.h.b16 %v6439
        %v6550 = vunpack.c.l.b16 %v6440
        %v6551 = vunpack.c.h.b16 %v6440
        %v6552 = vunpack.c.l.b16 %v6441
        %v6553 = vunpack.c.h.b16 %v6441
        %v6554 = vunpack.c.l.b16 %v6442
        %v6555 = vunpack.c.h.b16 %v6442
        %v6556 = vunpack.c.l.b16 %v6443
        %v6557 = vunpack.c.h.b16 %v6443
        %v6558 = vunpack.c.l.b16 %v6444
        %v6559 = vunpack.c.h.b16 %v6444
        %v6560 = vunpack.c.l.b16 %v6445
        %v6561 = vunpack.c.h.b16 %v6445
        %v6562 = vunpack.c.l.b16 %v6446
        %v6563 = vunpack.c.h.b16 %v6446
        %v6564 = vpack.c.b16 %v6504, %v6500
        %v6565 = vpack.c.b16 %v6505, %v6501
        %v6566 = vpack.c.b16 %v6506, %v6502
        %v6567 = vpack.c.b16 %v6507, %v6503
        %v6568 = vpack.c.b16 %v6512, %v6508
        %v6569 = vpack.c.b16 %v6513, %v6509
        %v6570 = vpack.c.b16 %v6514, %v6510
        %v6571 = vpack.c.b16 %v6515, %v6511
        %v6572 = vpack.c.b16 %v6520, %v6516
        %v6573 = vpack.c.b16 %v6521, %v6517
        %v6574 = vpack.c.b16 %v6522, %v6518
        %v6575 = vpack.c.b16 %v6523, %v6519
        %v6576 = vpack.c.b16 %v6528, %v6524
        %v6577 = vpack.c.b16 %v6529, %v6525
        %v6578 = vpack.c.b16 %v6530, %v6526
        %v6579 = vpack.c.b16 %v6531, %v6527
        %v6580 = vpack.c.b16 %v6536, %v6532
        %v6581 = vpack.c.b16 %v6537, %v6533
        %v6582 = vpack.c.b16 %v6538, %v6534
        %v6583 = vpack.c.b16 %v6539, %v6535
        %v6584 = vpack.c.b16 %v6544, %v6540
        %v6585 = vpack.c.b16 %v6545, %v6541
        %v6586 = vpack.c.b16 %v6546, %v6542
        %v6587 = vpack.c.b16 %v6547, %v6543
        %v6588 = vpack.c.b16 %v6552, %v6548
        %v6589 = vpack.c.b16 %v6553, %v6549
        %v6590 = vpack.c.b16 %v6554, %v6550
        %v6591 = vpack.c.b16 %v6555, %v6551
        %v6592 = vpack.c.b16 %v6560, %v6556
        %v6593 = vpack.c.b16 %v6561, %v6557
        %v6594 = vpack.c.b16 %v6562, %v6558
        %v6595 = vpack.c.b16 %v6563, %v6559
        %6628 = vmatprep.subr.bf16.mxu0 %v6593
        %6629 = vmatpush1.bf16.msra.mxu0 %v6592
        %6630 = vmatprep.subr.bf16.mxu0 %v6589
        %6631 = vmatpush1.bf16.msra.mxu0 %v6588
        %6632 = vmatprep.subr.bf16.mxu0 %v6585
        %6633 = vmatpush1.bf16.msra.mxu0 %v6584
        %6634 = vmatprep.subr.bf16.mxu0 %v6581
        %6635 = vmatpush1.bf16.msra.mxu0 %v6580
        %6636 = vmatprep.subr.bf16.mxu0 %v6577
        %6637 = vmatpush1.bf16.msra.mxu0 %v6576
        %6638 = vmatprep.subr.bf16.mxu0 %v6573
        %6639 = vmatpush1.bf16.msra.mxu0 %v6572
        %6640 = vmatprep.subr.bf16.mxu0 %v6569
        %6641 = vmatpush1.bf16.msra.mxu0 %v6568
        %6642 = vmatprep.subr.bf16.mxu0 %v6565
        %6643 = vmatpush1.bf16.msra.mxu0 %v6564
        %6644 = vmatprep.subr.bf16.mxu0 0
        %6645 = vmatpush2.bf16.msra.mxu0 0
        %6646 = vmatprep.subr.bf16.mxu0 0
        %6647 = vmatpush2.bf16.msra.mxu0 0
        %6648 = vmatprep.subr.bf16.mxu0 0
        %6649 = vmatpush2.bf16.msra.mxu0 0
        %6650 = vmatprep.subr.bf16.mxu0 0
        %6651 = vmatpush2.bf16.msra.mxu0 0
        %6652 = vmatprep.subr.bf16.mxu0 0
        %6653 = vmatpush2.bf16.msra.mxu0 0
        %6654 = vmatprep.subr.bf16.mxu0 0
        %6655 = vmatpush2.bf16.msra.mxu0 0
        %6656 = vmatprep.subr.bf16.mxu0 0
        %6657 = vmatpush2.bf16.msra.mxu0 0
        %6658 = vmatprep.subr.bf16.mxu0 0
        %6659 = vmatpush2.bf16.msra.mxu0 0
        %6660 = vmatprep.mubr.bf16.mxu0 0
        %6661 = vmatmul.mubr.bf16.gmra.mxu0 %v6399
        %v6662 = vpop.f32.mrf.mxu0
        %v6663 = vadd.f32 %v6451, %v6662
        %v6664 = vpop.f32.mrf.mxu0
        %v6665 = vadd.f32 %v6455, %v6664
        %v6666 = vpop.f32.mrf.mxu0
        %v6667 = vadd.f32 %v6451, %v6666
        %v6668 = vpop.f32.mrf.mxu0
        %v6669 = vadd.f32 %v6455, %v6668
        %6670 = vmatprep.mubr.bf16.mxu0 0
        %6671 = vmatmul.mubr.bf16.gmra.mxu0 %v6400
        %v6672 = vpop.f32.mrf.mxu0
        %v6673 = vadd.f32 %v6451, %v6672
        %v6674 = vpop.f32.mrf.mxu0
        %v6675 = vadd.f32 %v6455, %v6674
        %v6676 = vpop.f32.mrf.mxu0
        %v6677 = vadd.f32 %v6451, %v6676
        %v6678 = vpop.f32.mrf.mxu0
        %v6679 = vadd.f32 %v6455, %v6678
        %6680 = vmatprep.mubr.bf16.mxu0 0
        %6681 = vmatmul.mubr.bf16.gmra.mxu0 %v6401
        %v6682 = vpop.f32.mrf.mxu0
        %v6683 = vadd.f32 %v6451, %v6682
        %v6684 = vpop.f32.mrf.mxu0
        %v6685 = vadd.f32 %v6455, %v6684
        %v6686 = vpop.f32.mrf.mxu0
        %v6687 = vadd.f32 %v6451, %v6686
        %v6688 = vpop.f32.mrf.mxu0
        %v6689 = vadd.f32 %v6455, %v6688
        %6690 = vmatprep.mubr.bf16.mxu0 0
        %6691 = vmatmul.mubr.bf16.gmra.mxu0 %v6402
        %v6692 = vpop.f32.mrf.mxu0
        %v6693 = vadd.f32 %v6451, %v6692
        %v6694 = vpop.f32.mrf.mxu0
        %v6695 = vadd.f32 %v6455, %v6694
        %v6696 = vpop.f32.mrf.mxu0
        %v6697 = vadd.f32 %v6451, %v6696
        %v6698 = vpop.f32.mrf.mxu0
        %v6699 = vadd.f32 %v6455, %v6698
        %6700 = vmatprep.mubr.bf16.mxu0 0
        %6701 = vmatmul.mubr.bf16.gmra.mxu0 %v6403
        %v6702 = vpop.f32.mrf.mxu0
        %v6703 = vadd.f32 %v6451, %v6702
        %v6704 = vpop.f32.mrf.mxu0
        %v6705 = vadd.f32 %v6455, %v6704
        %v6706 = vpop.f32.mrf.mxu0
        %v6707 = vadd.f32 %v6451, %v6706
        %v6708 = vpop.f32.mrf.mxu0
        %v6709 = vadd.f32 %v6455, %v6708
        %6710 = vmatprep.mubr.bf16.mxu0 0
        %6711 = vmatmul.mubr.bf16.gmra.mxu0 %v6404
        %v6712 = vpop.f32.mrf.mxu0
        %v6713 = vadd.f32 %v6451, %v6712
        %v6714 = vpop.f32.mrf.mxu0
        %v6715 = vadd.f32 %v6455, %v6714
        %v6716 = vpop.f32.mrf.mxu0
        %v6717 = vadd.f32 %v6451, %v6716
        %v6718 = vpop.f32.mrf.mxu0
        %v6719 = vadd.f32 %v6455, %v6718
        %6720 = vmatprep.mubr.bf16.mxu0 0
        %6721 = vmatmul.mubr.bf16.gmra.mxu0 %v6405
        %v6722 = vpop.f32.mrf.mxu0
        %v6723 = vadd.f32 %v6451, %v6722
        %v6724 = vpop.f32.mrf.mxu0
        %v6725 = vadd.f32 %v6455, %v6724
        %v6726 = vpop.f32.mrf.mxu0
        %v6727 = vadd.f32 %v6451, %v6726
        %v6728 = vpop.f32.mrf.mxu0
        %v6729 = vadd.f32 %v6455, %v6728
        %6730 = vmatprep.mubr.bf16.mxu0 0
        %6731 = vmatmul.mubr.bf16.gmra.mxu0 %v6406
        %v6732 = vpop.f32.mrf.mxu0
        %v6733 = vadd.f32 %v6451, %v6732
        %v6734 = vpop.f32.mrf.mxu0
        %v6735 = vadd.f32 %v6455, %v6734
        %v6736 = vpop.f32.mrf.mxu0
        %v6737 = vadd.f32 %v6451, %v6736
        %v6738 = vpop.f32.mrf.mxu0
        %v6739 = vadd.f32 %v6455, %v6738
        %6740 = vmatprep.mubr.bf16.mxu0 0
        %6741 = vmatmul.mubr.bf16.gmra.mxu0 %v6407
        %v6742 = vpop.f32.mrf.mxu0
        %v6743 = vadd.f32 %v6451, %v6742
        %v6744 = vpop.f32.mrf.mxu0
        %v6745 = vadd.f32 %v6455, %v6744
        %v6746 = vpop.f32.mrf.mxu0
        %v6747 = vadd.f32 %v6451, %v6746
        %v6748 = vpop.f32.mrf.mxu0
        %v6749 = vadd.f32 %v6455, %v6748
        %6750 = vmatprep.mubr.bf16.mxu0 0
        %6751 = vmatmul.mubr.bf16.gmra.mxu0 %v6408
        %v6752 = vpop.f32.mrf.mxu0
        %v6753 = vadd.f32 %v6451, %v6752
        %v6754 = vpop.f32.mrf.mxu0
        %v6755 = vadd.f32 %v6455, %v6754
        %v6756 = vpop.f32.mrf.mxu0
        %v6757 = vadd.f32 %v6451, %v6756
        %v6758 = vpop.f32.mrf.mxu0
        %v6759 = vadd.f32 %v6455, %v6758
        %6760 = vmatprep.mubr.bf16.mxu0 0
        %6761 = vmatmul.mubr.bf16.gmra.mxu0 %v6409
        %v6762 = vpop.f32.mrf.mxu0
        %v6763 = vadd.f32 %v6451, %v6762
        %v6764 = vpop.f32.mrf.mxu0
        %v6765 = vadd.f32 %v6455, %v6764
        %v6766 = vpop.f32.mrf.mxu0
        %v6767 = vadd.f32 %v6451, %v6766
        %v6768 = vpop.f32.mrf.mxu0
        %v6769 = vadd.f32 %v6455, %v6768
        %6770 = vmatprep.mubr.bf16.mxu0 0
        %6771 = vmatmul.mubr.bf16.gmra.mxu0 %v6410
        %v6772 = vpop.f32.mrf.mxu0
        %v6773 = vadd.f32 %v6451, %v6772
        %v6774 = vpop.f32.mrf.mxu0
        %v6775 = vadd.f32 %v6455, %v6774
        %v6776 = vpop.f32.mrf.mxu0
        %v6777 = vadd.f32 %v6451, %v6776
        %v6778 = vpop.f32.mrf.mxu0
        %v6779 = vadd.f32 %v6455, %v6778
        %6780 = vmatprep.mubr.bf16.mxu0 0
        %6781 = vmatmul.mubr.bf16.gmra.mxu0 %v6411
        %v6782 = vpop.f32.mrf.mxu0
        %v6783 = vadd.f32 %v6451, %v6782
        %v6784 = vpop.f32.mrf.mxu0
        %v6785 = vadd.f32 %v6455, %v6784
        %v6786 = vpop.f32.mrf.mxu0
        %v6787 = vadd.f32 %v6451, %v6786
        %v6788 = vpop.f32.mrf.mxu0
        %v6789 = vadd.f32 %v6455, %v6788
        %6790 = vmatprep.mubr.bf16.mxu0 0
        %6791 = vmatmul.mubr.bf16.gmra.mxu0 %v6412
        %v6792 = vpop.f32.mrf.mxu0
        %v6793 = vadd.f32 %v6451, %v6792
        %v6794 = vpop.f32.mrf.mxu0
        %v6795 = vadd.f32 %v6455, %v6794
        %v6796 = vpop.f32.mrf.mxu0
        %v6797 = vadd.f32 %v6451, %v6796
        %v6798 = vpop.f32.mrf.mxu0
        %v6799 = vadd.f32 %v6455, %v6798
        %6800 = vmatprep.mubr.bf16.mxu0 0
        %6801 = vmatmul.mubr.bf16.gmra.mxu0 %v6413
        %v6802 = vpop.f32.mrf.mxu0
        %v6803 = vadd.f32 %v6451, %v6802
        %v6804 = vpop.f32.mrf.mxu0
        %v6805 = vadd.f32 %v6455, %v6804
        %v6806 = vpop.f32.mrf.mxu0
        %v6807 = vadd.f32 %v6451, %v6806
        %v6808 = vpop.f32.mrf.mxu0
        %v6809 = vadd.f32 %v6455, %v6808
        %6810 = vmatprep.mubr.bf16.mxu0 0
        %6811 = vmatmul.mubr.bf16.gmra.mxu0 %v6414
        %v6812 = vpop.f32.mrf.mxu0
        %v6813 = vadd.f32 %v6451, %v6812
        %v6814 = vpop.f32.mrf.mxu0
        %v6815 = vadd.f32 %v6455, %v6814
        %v6816 = vpop.f32.mrf.mxu0
        %v6817 = vadd.f32 %v6451, %v6816
        %v6818 = vpop.f32.mrf.mxu0
        %v6819 = vadd.f32 %v6455, %v6818
        %6820 = vdwg.mxu0
        %6821 = vmatprep.subr.bf16.mxu0 %v6595
        %6822 = vmatpush1.bf16.msra.mxu0 %v6594
        %6823 = vmatprep.subr.bf16.mxu0 %v6591
        %6824 = vmatpush1.bf16.msra.mxu0 %v6590
        %6825 = vmatprep.subr.bf16.mxu0 %v6587
        %6826 = vmatpush1.bf16.msra.mxu0 %v6586
        %6827 = vmatprep.subr.bf16.mxu0 %v6583
        %6828 = vmatpush1.bf16.msra.mxu0 %v6582
        %6829 = vmatprep.subr.bf16.mxu0 %v6579
        %6830 = vmatpush1.bf16.msra.mxu0 %v6578
        %6831 = vmatprep.subr.bf16.mxu0 %v6575
        %6832 = vmatpush1.bf16.msra.mxu0 %v6574
        %6833 = vmatprep.subr.bf16.mxu0 %v6571
        %6834 = vmatpush1.bf16.msra.mxu0 %v6570
        %6835 = vmatprep.subr.bf16.mxu0 %v6567
        %6836 = vmatpush1.bf16.msra.mxu0 %v6566
        %6837 = vmatprep.subr.bf16.mxu0 0
        %6838 = vmatpush2.bf16.msra.mxu0 0
        %6839 = vmatprep.subr.bf16.mxu0 0
        %6840 = vmatpush2.bf16.msra.mxu0 0
        %6841 = vmatprep.subr.bf16.mxu0 0
        %6842 = vmatpush2.bf16.msra.mxu0 0
        %6843 = vmatprep.subr.bf16.mxu0 0
        %6844 = vmatpush2.bf16.msra.mxu0 0
        %6845 = vmatprep.subr.bf16.mxu0 0
        %6846 = vmatpush2.bf16.msra.mxu0 0
        %6847 = vmatprep.subr.bf16.mxu0 0
        %6848 = vmatpush2.bf16.msra.mxu0 0
        %6849 = vmatprep.subr.bf16.mxu0 0
        %6850 = vmatpush2.bf16.msra.mxu0 0
        %6851 = vmatprep.subr.bf16.mxu0 0
        %6852 = vmatpush2.bf16.msra.mxu0 0
        %6853 = vmatprep.mubr.bf16.mxu0 0
        %6854 = vmatmul.mubr.bf16.gmra.mxu0 %v6399
        %v6855 = vpop.f32.mrf.mxu0
        %v6856 = vadd.f32 %v6459, %v6855
        %v6857 = vpop.f32.mrf.mxu0
        %v6858 = vadd.f32 %v6463, %v6857
        %v6859 = vpop.f32.mrf.mxu0
        %v6860 = vadd.f32 %v6459, %v6859
        %v6861 = vpop.f32.mrf.mxu0
        %v6862 = vadd.f32 %v6463, %v6861
        %6863 = vmatprep.mubr.bf16.mxu0 0
        %6864 = vmatmul.mubr.bf16.gmra.mxu0 %v6400
        %v6865 = vpop.f32.mrf.mxu0
        %v6866 = vadd.f32 %v6459, %v6865
        %v6867 = vpop.f32.mrf.mxu0
        %v6868 = vadd.f32 %v6463, %v6867
        %v6869 = vpop.f32.mrf.mxu0
        %v6870 = vadd.f32 %v6459, %v6869
        %v6871 = vpop.f32.mrf.mxu0
        %v6872 = vadd.f32 %v6463, %v6871
        %6873 = vmatprep.mubr.bf16.mxu0 0
        %6874 = vmatmul.mubr.bf16.gmra.mxu0 %v6401
        %v6875 = vpop.f32.mrf.mxu0
        %v6876 = vadd.f32 %v6459, %v6875
        %v6877 = vpop.f32.mrf.mxu0
        %v6878 = vadd.f32 %v6463, %v6877
        %v6879 = vpop.f32.mrf.mxu0
        %v6880 = vadd.f32 %v6459, %v6879
        %v6881 = vpop.f32.mrf.mxu0
        %v6882 = vadd.f32 %v6463, %v6881
        %6883 = vmatprep.mubr.bf16.mxu0 0
        %6884 = vmatmul.mubr.bf16.gmra.mxu0 %v6402
        %v6885 = vpop.f32.mrf.mxu0
        %v6886 = vadd.f32 %v6459, %v6885
        %v6887 = vpop.f32.mrf.mxu0
        %v6888 = vadd.f32 %v6463, %v6887
        %v6889 = vpop.f32.mrf.mxu0
        %v6890 = vadd.f32 %v6459, %v6889
        %v6891 = vpop.f32.mrf.mxu0
        %v6892 = vadd.f32 %v6463, %v6891
        %6893 = vmatprep.mubr.bf16.mxu0 0
        %6894 = vmatmul.mubr.bf16.gmra.mxu0 %v6403
        %v6895 = vpop.f32.mrf.mxu0
        %v6896 = vadd.f32 %v6459, %v6895
        %v6897 = vpop.f32.mrf.mxu0
        %v6898 = vadd.f32 %v6463, %v6897
        %v6899 = vpop.f32.mrf.mxu0
        %v6900 = vadd.f32 %v6459, %v6899
        %v6901 = vpop.f32.mrf.mxu0
        %v6902 = vadd.f32 %v6463, %v6901
        %6903 = vmatprep.mubr.bf16.mxu0 0
        %6904 = vmatmul.mubr.bf16.gmra.mxu0 %v6404
        %v6905 = vpop.f32.mrf.mxu0
        %v6906 = vadd.f32 %v6459, %v6905
        %v6907 = vpop.f32.mrf.mxu0
        %v6908 = vadd.f32 %v6463, %v6907
        %v6909 = vpop.f32.mrf.mxu0
        %v6910 = vadd.f32 %v6459, %v6909
        %v6911 = vpop.f32.mrf.mxu0
        %v6912 = vadd.f32 %v6463, %v6911
        %6913 = vmatprep.mubr.bf16.mxu0 0
        %6914 = vmatmul.mubr.bf16.gmra.mxu0 %v6405
        %v6915 = vpop.f32.mrf.mxu0
        %v6916 = vadd.f32 %v6459, %v6915
        %v6917 = vpop.f32.mrf.mxu0
        %v6918 = vadd.f32 %v6463, %v6917
        %v6919 = vpop.f32.mrf.mxu0
        %v6920 = vadd.f32 %v6459, %v6919
        %v6921 = vpop.f32.mrf.mxu0
        %v6922 = vadd.f32 %v6463, %v6921
        %6923 = vmatprep.mubr.bf16.mxu0 0
        %6924 = vmatmul.mubr.bf16.gmra.mxu0 %v6406
        %v6925 = vpop.f32.mrf.mxu0
        %v6926 = vadd.f32 %v6459, %v6925
        %v6927 = vpop.f32.mrf.mxu0
        %v6928 = vadd.f32 %v6463, %v6927
        %v6929 = vpop.f32.mrf.mxu0
        %v6930 = vadd.f32 %v6459, %v6929
        %v6931 = vpop.f32.mrf.mxu0
        %v6932 = vadd.f32 %v6463, %v6931
        %6933 = vmatprep.mubr.bf16.mxu0 0
        %6934 = vmatmul.mubr.bf16.gmra.mxu0 %v6407
        %v6935 = vpop.f32.mrf.mxu0
        %v6936 = vadd.f32 %v6459, %v6935
        %v6937 = vpop.f32.mrf.mxu0
        %v6938 = vadd.f32 %v6463, %v6937
        %v6939 = vpop.f32.mrf.mxu0
        %v6940 = vadd.f32 %v6459, %v6939
        %v6941 = vpop.f32.mrf.mxu0
        %v6942 = vadd.f32 %v6463, %v6941
        %6943 = vmatprep.mubr.bf16.mxu0 0
        %6944 = vmatmul.mubr.bf16.gmra.mxu0 %v6408
        %v6945 = vpop.f32.mrf.mxu0
        %v6946 = vadd.f32 %v6459, %v6945
        %v6947 = vpop.f32.mrf.mxu0
        %v6948 = vadd.f32 %v6463, %v6947
        %v6949 = vpop.f32.mrf.mxu0
        %v6950 = vadd.f32 %v6459, %v6949
        %v6951 = vpop.f32.mrf.mxu0
        %v6952 = vadd.f32 %v6463, %v6951
        %6953 = vmatprep.mubr.bf16.mxu0 0
        %6954 = vmatmul.mubr.bf16.gmra.mxu0 %v6409
        %v6955 = vpop.f32.mrf.mxu0
        %v6956 = vadd.f32 %v6459, %v6955
        %v6957 = vpop.f32.mrf.mxu0
        %v6958 = vadd.f32 %v6463, %v6957
        %v6959 = vpop.f32.mrf.mxu0
        %v6960 = vadd.f32 %v6459, %v6959
        %v6961 = vpop.f32.mrf.mxu0
        %v6962 = vadd.f32 %v6463, %v6961
        %6963 = vmatprep.mubr.bf16.mxu0 0
        %6964 = vmatmul.mubr.bf16.gmra.mxu0 %v6410
        %v6965 = vpop.f32.mrf.mxu0
        %v6966 = vadd.f32 %v6459, %v6965
        %v6967 = vpop.f32.mrf.mxu0
        %v6968 = vadd.f32 %v6463, %v6967
        %v6969 = vpop.f32.mrf.mxu0
        %v6970 = vadd.f32 %v6459, %v6969
        %v6971 = vpop.f32.mrf.mxu0
        %v6972 = vadd.f32 %v6463, %v6971
        %6973 = vmatprep.mubr.bf16.mxu0 0
        %6974 = vmatmul.mubr.bf16.gmra.mxu0 %v6411
        %v6975 = vpop.f32.mrf.mxu0
        %v6976 = vadd.f32 %v6459, %v6975
        %v6977 = vpop.f32.mrf.mxu0
        %v6978 = vadd.f32 %v6463, %v6977
        %v6979 = vpop.f32.mrf.mxu0
        %v6980 = vadd.f32 %v6459, %v6979
        %v6981 = vpop.f32.mrf.mxu0
        %v6982 = vadd.f32 %v6463, %v6981
        %6983 = vmatprep.mubr.bf16.mxu0 0
        %6984 = vmatmul.mubr.bf16.gmra.mxu0 %v6412
        %v6985 = vpop.f32.mrf.mxu0
        %v6986 = vadd.f32 %v6459, %v6985
        %v6987 = vpop.f32.mrf.mxu0
        %v6988 = vadd.f32 %v6463, %v6987
        %v6989 = vpop.f32.mrf.mxu0
        %v6990 = vadd.f32 %v6459, %v6989
        %v6991 = vpop.f32.mrf.mxu0
        %v6992 = vadd.f32 %v6463, %v6991
        %6993 = vmatprep.mubr.bf16.mxu0 0
        %6994 = vmatmul.mubr.bf16.gmra.mxu0 %v6413
        %v6995 = vpop.f32.mrf.mxu0
        %v6996 = vadd.f32 %v6459, %v6995
        %v6997 = vpop.f32.mrf.mxu0
        %v6998 = vadd.f32 %v6463, %v6997
        %v6999 = vpop.f32.mrf.mxu0
        %v7000 = vadd.f32 %v6459, %v6999
        %v7001 = vpop.f32.mrf.mxu0
        %v7002 = vadd.f32 %v6463, %v7001
        %7003 = vmatprep.mubr.bf16.mxu0 0
        %7004 = vmatmul.mubr.bf16.gmra.mxu0 %v6414
        %v7005 = vpop.f32.mrf.mxu0
        %v7006 = vadd.f32 %v6459, %v7005
        %v7007 = vpop.f32.mrf.mxu0
        %v7008 = vadd.f32 %v6463, %v7007
        %v7009 = vpop.f32.mrf.mxu0
        %v7010 = vadd.f32 %v6459, %v7009
        %v7011 = vpop.f32.mrf.mxu0
        %v7012 = vadd.f32 %v6463, %v7011
        %7013 = vdwg.mxu0
        %v7014 = vmul.f32 %v6663, %v6663
        %v7015 = vmul.f32 %v6665, %v6665
        %v7016 = vmul.f32 %v6856, %v6856
        %v7017 = vmul.f32 %v6858, %v6858
        %v7018 = vmul.f32 %v6667, %v6667
        %v7019 = vmul.f32 %v6669, %v6669
        %v7020 = vmul.f32 %v6860, %v6860
        %v7021 = vmul.f32 %v6862, %v6862
        %v7022 = vmul.f32 %v6673, %v6673
        %v7023 = vmul.f32 %v6675, %v6675
        %v7024 = vmul.f32 %v6866, %v6866
        %v7025 = vmul.f32 %v6868, %v6868
        %v7026 = vmul.f32 %v6677, %v6677
        %v7027 = vmul.f32 %v6679, %v6679
        %v7028 = vmul.f32 %v6870, %v6870
        %v7029 = vmul.f32 %v6872, %v6872
        %v7030 = vmul.f32 %v6683, %v6683
        %v7031 = vmul.f32 %v6685, %v6685
        %v7032 = vmul.f32 %v6876, %v6876
        %v7033 = vmul.f32 %v6878, %v6878
        %v7034 = vmul.f32 %v6687, %v6687
        %v7035 = vmul.f32 %v6689, %v6689
        %v7036 = vmul.f32 %v6880, %v6880
        %v7037 = vmul.f32 %v6882, %v6882
        %v7038 = vmul.f32 %v6693, %v6693
        %v7039 = vmul.f32 %v6695, %v6695
        %v7040 = vmul.f32 %v6886, %v6886
        %v7041 = vmul.f32 %v6888, %v6888
        %v7042 = vmul.f32 %v6697, %v6697
        %v7043 = vmul.f32 %v6699, %v6699
        %v7044 = vmul.f32 %v6890, %v6890
        %v7045 = vmul.f32 %v6892, %v6892
        %v7046 = vmul.f32 %v6703, %v6703
        %v7047 = vmul.f32 %v6705, %v6705
        %v7048 = vmul.f32 %v6896, %v6896
        %v7049 = vmul.f32 %v6898, %v6898
        %v7050 = vmul.f32 %v6707, %v6707
        %v7051 = vmul.f32 %v6709, %v6709
        %v7052 = vmul.f32 %v6900, %v6900
        %v7053 = vmul.f32 %v6902, %v6902
        %v7054 = vmul.f32 %v6713, %v6713
        %v7055 = vmul.f32 %v6715, %v6715
        %v7056 = vmul.f32 %v6906, %v6906
        %v7057 = vmul.f32 %v6908, %v6908
        %v7058 = vmul.f32 %v6717, %v6717
        %v7059 = vmul.f32 %v6719, %v6719
        %v7060 = vmul.f32 %v6910, %v6910
        %v7061 = vmul.f32 %v6912, %v6912
        %v7062 = vmul.f32 %v6723, %v6723
        %v7063 = vmul.f32 %v6725, %v6725
        %v7064 = vmul.f32 %v6916, %v6916
        %v7065 = vmul.f32 %v6918, %v6918
        %v7066 = vmul.f32 %v6727, %v6727
        %v7067 = vmul.f32 %v6729, %v6729
        %v7068 = vmul.f32 %v6920, %v6920
        %v7069 = vmul.f32 %v6922, %v6922
        %v7070 = vmul.f32 %v6733, %v6733
        %v7071 = vmul.f32 %v6735, %v6735
        %v7072 = vmul.f32 %v6926, %v6926
        %v7073 = vmul.f32 %v6928, %v6928
        %v7074 = vmul.f32 %v6737, %v6737
        %v7075 = vmul.f32 %v6739, %v6739
        %v7076 = vmul.f32 %v6930, %v6930
        %v7077 = vmul.f32 %v6932, %v6932
        %v7078 = vmul.f32 %v6743, %v6743
        %v7079 = vmul.f32 %v6745, %v6745
        %v7080 = vmul.f32 %v6936, %v6936
        %v7081 = vmul.f32 %v6938, %v6938
        %v7082 = vmul.f32 %v6747, %v6747
        %v7083 = vmul.f32 %v6749, %v6749
        %v7084 = vmul.f32 %v6940, %v6940
        %v7085 = vmul.f32 %v6942, %v6942
        %v7086 = vmul.f32 %v6753, %v6753
        %v7087 = vmul.f32 %v6755, %v6755
        %v7088 = vmul.f32 %v6946, %v6946
        %v7089 = vmul.f32 %v6948, %v6948
        %v7090 = vmul.f32 %v6757, %v6757
        %v7091 = vmul.f32 %v6759, %v6759
        %v7092 = vmul.f32 %v6950, %v6950
        %v7093 = vmul.f32 %v6952, %v6952
        %v7094 = vmul.f32 %v6763, %v6763
        %v7095 = vmul.f32 %v6765, %v6765
        %v7096 = vmul.f32 %v6956, %v6956
        %v7097 = vmul.f32 %v6958, %v6958
        %v7098 = vmul.f32 %v6767, %v6767
        %v7099 = vmul.f32 %v6769, %v6769
        %v7100 = vmul.f32 %v6960, %v6960
        %v7101 = vmul.f32 %v6962, %v6962
        %v7102 = vmul.f32 %v6773, %v6773
        %v7103 = vmul.f32 %v6775, %v6775
        %v7104 = vmul.f32 %v6966, %v6966
        %v7105 = vmul.f32 %v6968, %v6968
        %v7106 = vmul.f32 %v6777, %v6777
        %v7107 = vmul.f32 %v6779, %v6779
        %v7108 = vmul.f32 %v6970, %v6970
        %v7109 = vmul.f32 %v6972, %v6972
        %v7110 = vmul.f32 %v6783, %v6783
        %v7111 = vmul.f32 %v6785, %v6785
        %v7112 = vmul.f32 %v6976, %v6976
        %v7113 = vmul.f32 %v6978, %v6978
        %v7114 = vmul.f32 %v6787, %v6787
        %v7115 = vmul.f32 %v6789, %v6789
        %v7116 = vmul.f32 %v6980, %v6980
        %v7117 = vmul.f32 %v6982, %v6982
        %v7118 = vmul.f32 %v6793, %v6793
        %v7119 = vmul.f32 %v6795, %v6795
        %v7120 = vmul.f32 %v6986, %v6986
        %v7121 = vmul.f32 %v6988, %v6988
        %v7122 = vmul.f32 %v6797, %v6797
        %v7123 = vmul.f32 %v6799, %v6799
        %v7124 = vmul.f32 %v6990, %v6990
        %v7125 = vmul.f32 %v6992, %v6992
        %v7126 = vmul.f32 %v6803, %v6803
        %v7127 = vmul.f32 %v6805, %v6805
        %v7128 = vmul.f32 %v6996, %v6996
        %v7129 = vmul.f32 %v6998, %v6998
        %v7130 = vmul.f32 %v6807, %v6807
        %v7131 = vmul.f32 %v6809, %v6809
        %v7132 = vmul.f32 %v7000, %v7000
        %v7133 = vmul.f32 %v7002, %v7002
        %v7134 = vmul.f32 %v6813, %v6813
        %v7135 = vmul.f32 %v6815, %v6815
        %v7136 = vmul.f32 %v7006, %v7006
        %v7137 = vmul.f32 %v7008, %v7008
        %v7138 = vmul.f32 %v6817, %v6817
        %v7139 = vmul.f32 %v6819, %v6819
        %v7140 = vmul.f32 %v7010, %v7010
        %v7141 = vmul.f32 %v7012, %v7012
        %v7142 = vmul.f32 %v6663, %v7014
        %v7143 = vmul.f32 %v6665, %v7015
        %v7144 = vmul.f32 %v6856, %v7016
        %v7145 = vmul.f32 %v6858, %v7017
        %v7146 = vmul.f32 %v6667, %v7018
        %v7147 = vmul.f32 %v6669, %v7019
        %v7148 = vmul.f32 %v6860, %v7020
        %v7149 = vmul.f32 %v6862, %v7021
        %v7150 = vmul.f32 %v6673, %v7022
        %v7151 = vmul.f32 %v6675, %v7023
        %v7152 = vmul.f32 %v6866, %v7024
        %v7153 = vmul.f32 %v6868, %v7025
        %v7154 = vmul.f32 %v6677, %v7026
        %v7155 = vmul.f32 %v6679, %v7027
        %v7156 = vmul.f32 %v6870, %v7028
        %v7157 = vmul.f32 %v6872, %v7029
        %v7158 = vmul.f32 %v6683, %v7030
        %v7159 = vmul.f32 %v6685, %v7031
        %v7160 = vmul.f32 %v6876, %v7032
        %v7161 = vmul.f32 %v6878, %v7033
        %v7162 = vmul.f32 %v6687, %v7034
        %v7163 = vmul.f32 %v6689, %v7035
        %v7164 = vmul.f32 %v6880, %v7036
        %v7165 = vmul.f32 %v6882, %v7037
        %v7166 = vmul.f32 %v6693, %v7038
        %v7167 = vmul.f32 %v6695, %v7039
        %v7168 = vmul.f32 %v6886, %v7040
        %v7169 = vmul.f32 %v6888, %v7041
        %v7170 = vmul.f32 %v6697, %v7042
        %v7171 = vmul.f32 %v6699, %v7043
        %v7172 = vmul.f32 %v6890, %v7044
        %v7173 = vmul.f32 %v6892, %v7045
        %v7174 = vmul.f32 %v6703, %v7046
        %v7175 = vmul.f32 %v6705, %v7047
        %v7176 = vmul.f32 %v6896, %v7048
        %v7177 = vmul.f32 %v6898, %v7049
        %v7178 = vmul.f32 %v6707, %v7050
        %v7179 = vmul.f32 %v6709, %v7051
        %v7180 = vmul.f32 %v6900, %v7052
        %v7181 = vmul.f32 %v6902, %v7053
        %v7182 = vmul.f32 %v6713, %v7054
        %v7183 = vmul.f32 %v6715, %v7055
        %v7184 = vmul.f32 %v6906, %v7056
        %v7185 = vmul.f32 %v6908, %v7057
        %v7186 = vmul.f32 %v6717, %v7058
        %v7187 = vmul.f32 %v6719, %v7059
        %v7188 = vmul.f32 %v6910, %v7060
        %v7189 = vmul.f32 %v6912, %v7061
        %v7190 = vmul.f32 %v6723, %v7062
        %v7191 = vmul.f32 %v6725, %v7063
        %v7192 = vmul.f32 %v6916, %v7064
        %v7193 = vmul.f32 %v6918, %v7065
        %v7194 = vmul.f32 %v6727, %v7066
        %v7195 = vmul.f32 %v6729, %v7067
        %v7196 = vmul.f32 %v6920, %v7068
        %v7197 = vmul.f32 %v6922, %v7069
        %v7198 = vmul.f32 %v6733, %v7070
        %v7199 = vmul.f32 %v6735, %v7071
        %v7200 = vmul.f32 %v6926, %v7072
        %v7201 = vmul.f32 %v6928, %v7073
        %v7202 = vmul.f32 %v6737, %v7074
        %v7203 = vmul.f32 %v6739, %v7075
        %v7204 = vmul.f32 %v6930, %v7076
        %v7205 = vmul.f32 %v6932, %v7077
        %v7206 = vmul.f32 %v6743, %v7078
        %v7207 = vmul.f32 %v6745, %v7079
        %v7208 = vmul.f32 %v6936, %v7080
        %v7209 = vmul.f32 %v6938, %v7081
        %v7210 = vmul.f32 %v6747, %v7082
        %v7211 = vmul.f32 %v6749, %v7083
        %v7212 = vmul.f32 %v6940, %v7084
        %v7213 = vmul.f32 %v6942, %v7085
        %v7214 = vmul.f32 %v6753, %v7086
        %v7215 = vmul.f32 %v6755, %v7087
        %v7216 = vmul.f32 %v6946, %v7088
        %v7217 = vmul.f32 %v6948, %v7089
        %v7218 = vmul.f32 %v6757, %v7090
        %v7219 = vmul.f32 %v6759, %v7091
        %v7220 = vmul.f32 %v6950, %v7092
        %v7221 = vmul.f32 %v6952, %v7093
        %v7222 = vmul.f32 %v6763, %v7094
        %v7223 = vmul.f32 %v6765, %v7095
        %v7224 = vmul.f32 %v6956, %v7096
        %v7225 = vmul.f32 %v6958, %v7097
        %v7226 = vmul.f32 %v6767, %v7098
        %v7227 = vmul.f32 %v6769, %v7099
        %v7228 = vmul.f32 %v6960, %v7100
        %v7229 = vmul.f32 %v6962, %v7101
        %v7230 = vmul.f32 %v6773, %v7102
        %v7231 = vmul.f32 %v6775, %v7103
        %v7232 = vmul.f32 %v6966, %v7104
        %v7233 = vmul.f32 %v6968, %v7105
        %v7234 = vmul.f32 %v6777, %v7106
        %v7235 = vmul.f32 %v6779, %v7107
        %v7236 = vmul.f32 %v6970, %v7108
        %v7237 = vmul.f32 %v6972, %v7109
        %v7238 = vmul.f32 %v6783, %v7110
        %v7239 = vmul.f32 %v6785, %v7111
        %v7240 = vmul.f32 %v6976, %v7112
        %v7241 = vmul.f32 %v6978, %v7113
        %v7242 = vmul.f32 %v6787, %v7114
        %v7243 = vmul.f32 %v6789, %v7115
        %v7244 = vmul.f32 %v6980, %v7116
        %v7245 = vmul.f32 %v6982, %v7117
        %v7246 = vmul.f32 %v6793, %v7118
        %v7247 = vmul.f32 %v6795, %v7119
        %v7248 = vmul.f32 %v6986, %v7120
        %v7249 = vmul.f32 %v6988, %v7121
        %v7250 = vmul.f32 %v6797, %v7122
        %v7251 = vmul.f32 %v6799, %v7123
        %v7252 = vmul.f32 %v6990, %v7124
        %v7253 = vmul.f32 %v6992, %v7125
        %v7254 = vmul.f32 %v6803, %v7126
        %v7255 = vmul.f32 %v6805, %v7127
        %v7256 = vmul.f32 %v6996, %v7128
        %v7257 = vmul.f32 %v6998, %v7129
        %v7258 = vmul.f32 %v6807, %v7130
        %v7259 = vmul.f32 %v6809, %v7131
        %v7260 = vmul.f32 %v7000, %v7132
        %v7261 = vmul.f32 %v7002, %v7133
        %v7262 = vmul.f32 %v6813, %v7134
        %v7263 = vmul.f32 %v6815, %v7135
        %v7264 = vmul.f32 %v7006, %v7136
        %v7265 = vmul.f32 %v7008, %v7137
        %v7266 = vmul.f32 %v6817, %v7138
        %v7267 = vmul.f32 %v6819, %v7139
        %v7268 = vmul.f32 %v7010, %v7140
        %v7269 = vmul.f32 %v7012, %v7141
        %v7270 = vmul.f32 %v7142, 0.044715
        %v7271 = vmul.f32 %v7143, 0.044715
        %v7272 = vmul.f32 %v7144, 0.044715
        %v7273 = vmul.f32 %v7145, 0.044715
        %v7274 = vmul.f32 %v7146, 0.044715
        %v7275 = vmul.f32 %v7147, 0.044715
        %v7276 = vmul.f32 %v7148, 0.044715
        %v7277 = vmul.f32 %v7149, 0.044715
        %v7278 = vmul.f32 %v7150, 0.044715
        %v7279 = vmul.f32 %v7151, 0.044715
        %v7280 = vmul.f32 %v7152, 0.044715
        %v7281 = vmul.f32 %v7153, 0.044715
        %v7282 = vmul.f32 %v7154, 0.044715
        %v7283 = vmul.f32 %v7155, 0.044715
        %v7284 = vmul.f32 %v7156, 0.044715
        %v7285 = vmul.f32 %v7157, 0.044715
        %v7286 = vmul.f32 %v7158, 0.044715
        %v7287 = vmul.f32 %v7159, 0.044715
        %v7288 = vmul.f32 %v7160, 0.044715
        %v7289 = vmul.f32 %v7161, 0.044715
        %v7290 = vmul.f32 %v7162, 0.044715
        %v7291 = vmul.f32 %v7163, 0.044715
        %v7292 = vmul.f32 %v7164, 0.044715
        %v7293 = vmul.f32 %v7165, 0.044715
        %v7294 = vmul.f32 %v7166, 0.044715
        %v7295 = vmul.f32 %v7167, 0.044715
        %v7296 = vmul.f32 %v7168, 0.044715
        %v7297 = vmul.f32 %v7169, 0.044715
        %v7298 = vmul.f32 %v7170, 0.044715
        %v7299 = vmul.f32 %v7171, 0.044715
        %v7300 = vmul.f32 %v7172, 0.044715
        %v7301 = vmul.f32 %v7173, 0.044715
        %v7302 = vmul.f32 %v7174, 0.044715
        %v7303 = vmul.f32 %v7175, 0.044715
        %v7304 = vmul.f32 %v7176, 0.044715
        %v7305 = vmul.f32 %v7177, 0.044715
        %v7306 = vmul.f32 %v7178, 0.044715
        %v7307 = vmul.f32 %v7179, 0.044715
        %v7308 = vmul.f32 %v7180, 0.044715
        %v7309 = vmul.f32 %v7181, 0.044715
        %v7310 = vmul.f32 %v7182, 0.044715
        %v7311 = vmul.f32 %v7183, 0.044715
        %v7312 = vmul.f32 %v7184, 0.044715
        %v7313 = vmul.f32 %v7185, 0.044715
        %v7314 = vmul.f32 %v7186, 0.044715
        %v7315 = vmul.f32 %v7187, 0.044715
        %v7316 = vmul.f32 %v7188, 0.044715
        %v7317 = vmul.f32 %v7189, 0.044715
        %v7318 = vmul.f32 %v7190, 0.044715
        %v7319 = vmul.f32 %v7191, 0.044715
        %v7320 = vmul.f32 %v7192, 0.044715
        %v7321 = vmul.f32 %v7193, 0.044715
        %v7322 = vmul.f32 %v7194, 0.044715
        %v7323 = vmul.f32 %v7195, 0.044715
        %v7324 = vmul.f32 %v7196, 0.044715
        %v7325 = vmul.f32 %v7197, 0.044715
        %v7326 = vmul.f32 %v7198, 0.044715
        %v7327 = vmul.f32 %v7199, 0.044715
        %v7328 = vmul.f32 %v7200, 0.044715
        %v7329 = vmul.f32 %v7201, 0.044715
        %v7330 = vmul.f32 %v7202, 0.044715
        %v7331 = vmul.f32 %v7203, 0.044715
        %v7332 = vmul.f32 %v7204, 0.044715
        %v7333 = vmul.f32 %v7205, 0.044715
        %v7334 = vmul.f32 %v7206, 0.044715
        %v7335 = vmul.f32 %v7207, 0.044715
        %v7336 = vmul.f32 %v7208, 0.044715
        %v7337 = vmul.f32 %v7209, 0.044715
        %v7338 = vmul.f32 %v7210, 0.044715
        %v7339 = vmul.f32 %v7211, 0.044715
        %v7340 = vmul.f32 %v7212, 0.044715
        %v7341 = vmul.f32 %v7213, 0.044715
        %v7342 = vmul.f32 %v7214, 0.044715
        %v7343 = vmul.f32 %v7215, 0.044715
        %v7344 = vmul.f32 %v7216, 0.044715
        %v7345 = vmul.f32 %v7217, 0.044715
        %v7346 = vmul.f32 %v7218, 0.044715
        %v7347 = vmul.f32 %v7219, 0.044715
        %v7348 = vmul.f32 %v7220, 0.044715
        %v7349 = vmul.f32 %v7221, 0.044715
        %v7350 = vmul.f32 %v7222, 0.044715
        %v7351 = vmul.f32 %v7223, 0.044715
        %v7352 = vmul.f32 %v7224, 0.044715
        %v7353 = vmul.f32 %v7225, 0.044715
        %v7354 = vmul.f32 %v7226, 0.044715
        %v7355 = vmul.f32 %v7227, 0.044715
        %v7356 = vmul.f32 %v7228, 0.044715
        %v7357 = vmul.f32 %v7229, 0.044715
        %v7358 = vmul.f32 %v7230, 0.044715
        %v7359 = vmul.f32 %v7231, 0.044715
        %v7360 = vmul.f32 %v7232, 0.044715
        %v7361 = vmul.f32 %v7233, 0.044715
        %v7362 = vmul.f32 %v7234, 0.044715
        %v7363 = vmul.f32 %v7235, 0.044715
        %v7364 = vmul.f32 %v7236, 0.044715
        %v7365 = vmul.f32 %v7237, 0.044715
        %v7366 = vmul.f32 %v7238, 0.044715
        %v7367 = vmul.f32 %v7239, 0.044715
        %v7368 = vmul.f32 %v7240, 0.044715
        %v7369 = vmul.f32 %v7241, 0.044715
        %v7370 = vmul.f32 %v7242, 0.044715
        %v7371 = vmul.f32 %v7243, 0.044715
        %v7372 = vmul.f32 %v7244, 0.044715
        %v7373 = vmul.f32 %v7245, 0.044715
        %v7374 = vmul.f32 %v7246, 0.044715
        %v7375 = vmul.f32 %v7247, 0.044715
        %v7376 = vmul.f32 %v7248, 0.044715
        %v7377 = vmul.f32 %v7249, 0.044715
        %v7378 = vmul.f32 %v7250, 0.044715
        %v7379 = vmul.f32 %v7251, 0.044715
        %v7380 = vmul.f32 %v7252, 0.044715
        %v7381 = vmul.f32 %v7253, 0.044715
        %v7382 = vmul.f32 %v7254, 0.044715
        %v7383 = vmul.f32 %v7255, 0.044715
        %v7384 = vmul.f32 %v7256, 0.044715
        %v7385 = vmul.f32 %v7257, 0.044715
        %v7386 = vmul.f32 %v7258, 0.044715
        %v7387 = vmul.f32 %v7259, 0.044715
        %v7388 = vmul.f32 %v7260, 0.044715
        %v7389 = vmul.f32 %v7261, 0.044715
        %v7390 = vmul.f32 %v7262, 0.044715
        %v7391 = vmul.f32 %v7263, 0.044715
        %v7392 = vmul.f32 %v7264, 0.044715
        %v7393 = vmul.f32 %v7265, 0.044715
        %v7394 = vmul.f32 %v7266, 0.044715
        %v7395 = vmul.f32 %v7267, 0.044715
        %v7396 = vmul.f32 %v7268, 0.044715
        %v7397 = vmul.f32 %v7269, 0.044715
        %v7398 = vadd.f32 %v6663, %v7270
        %v7399 = vadd.f32 %v6665, %v7271
        %v7400 = vadd.f32 %v6856, %v7272
        %v7401 = vadd.f32 %v6858, %v7273
        %v7402 = vadd.f32 %v6667, %v7274
        %v7403 = vadd.f32 %v6669, %v7275
        %v7404 = vadd.f32 %v6860, %v7276
        %v7405 = vadd.f32 %v6862, %v7277
        %v7406 = vadd.f32 %v6673, %v7278
        %v7407 = vadd.f32 %v6675, %v7279
        %v7408 = vadd.f32 %v6866, %v7280
        %v7409 = vadd.f32 %v6868, %v7281
        %v7410 = vadd.f32 %v6677, %v7282
        %v7411 = vadd.f32 %v6679, %v7283
        %v7412 = vadd.f32 %v6870, %v7284
        %v7413 = vadd.f32 %v6872, %v7285
        %v7414 = vadd.f32 %v6683, %v7286
        %v7415 = vadd.f32 %v6685, %v7287
        %v7416 = vadd.f32 %v6876, %v7288
        %v7417 = vadd.f32 %v6878, %v7289
        %v7418 = vadd.f32 %v6687, %v7290
        %v7419 = vadd.f32 %v6689, %v7291
        %v7420 = vadd.f32 %v6880, %v7292
        %v7421 = vadd.f32 %v6882, %v7293
        %v7422 = vadd.f32 %v6693, %v7294
        %v7423 = vadd.f32 %v6695, %v7295
        %v7424 = vadd.f32 %v6886, %v7296
        %v7425 = vadd.f32 %v6888, %v7297
        %v7426 = vadd.f32 %v6697, %v7298
        %v7427 = vadd.f32 %v6699, %v7299
        %v7428 = vadd.f32 %v6890, %v7300
        %v7429 = vadd.f32 %v6892, %v7301
        %v7430 = vadd.f32 %v6703, %v7302
        %v7431 = vadd.f32 %v6705, %v7303
        %v7432 = vadd.f32 %v6896, %v7304
        %v7433 = vadd.f32 %v6898, %v7305
        %v7434 = vadd.f32 %v6707, %v7306
        %v7435 = vadd.f32 %v6709, %v7307
        %v7436 = vadd.f32 %v6900, %v7308
        %v7437 = vadd.f32 %v6902, %v7309
        %v7438 = vadd.f32 %v6713, %v7310
        %v7439 = vadd.f32 %v6715, %v7311
        %v7440 = vadd.f32 %v6906, %v7312
        %v7441 = vadd.f32 %v6908, %v7313
        %v7442 = vadd.f32 %v6717, %v7314
        %v7443 = vadd.f32 %v6719, %v7315
        %v7444 = vadd.f32 %v6910, %v7316
        %v7445 = vadd.f32 %v6912, %v7317
        %v7446 = vadd.f32 %v6723, %v7318
        %v7447 = vadd.f32 %v6725, %v7319
        %v7448 = vadd.f32 %v6916, %v7320
        %v7449 = vadd.f32 %v6918, %v7321
        %v7450 = vadd.f32 %v6727, %v7322
        %v7451 = vadd.f32 %v6729, %v7323
        %v7452 = vadd.f32 %v6920, %v7324
        %v7453 = vadd.f32 %v6922, %v7325
        %v7454 = vadd.f32 %v6733, %v7326
        %v7455 = vadd.f32 %v6735, %v7327
        %v7456 = vadd.f32 %v6926, %v7328
        %v7457 = vadd.f32 %v6928, %v7329
        %v7458 = vadd.f32 %v6737, %v7330
        %v7459 = vadd.f32 %v6739, %v7331
        %v7460 = vadd.f32 %v6930, %v7332
        %v7461 = vadd.f32 %v6932, %v7333
        %v7462 = vadd.f32 %v6743, %v7334
        %v7463 = vadd.f32 %v6745, %v7335
        %v7464 = vadd.f32 %v6936, %v7336
        %v7465 = vadd.f32 %v6938, %v7337
        %v7466 = vadd.f32 %v6747, %v7338
        %v7467 = vadd.f32 %v6749, %v7339
        %v7468 = vadd.f32 %v6940, %v7340
        %v7469 = vadd.f32 %v6942, %v7341
        %v7470 = vadd.f32 %v6753, %v7342
        %v7471 = vadd.f32 %v6755, %v7343
        %v7472 = vadd.f32 %v6946, %v7344
        %v7473 = vadd.f32 %v6948, %v7345
        %v7474 = vadd.f32 %v6757, %v7346
        %v7475 = vadd.f32 %v6759, %v7347
        %v7476 = vadd.f32 %v6950, %v7348
        %v7477 = vadd.f32 %v6952, %v7349
        %v7478 = vadd.f32 %v6763, %v7350
        %v7479 = vadd.f32 %v6765, %v7351
        %v7480 = vadd.f32 %v6956, %v7352
        %v7481 = vadd.f32 %v6958, %v7353
        %v7482 = vadd.f32 %v6767, %v7354
        %v7483 = vadd.f32 %v6769, %v7355
        %v7484 = vadd.f32 %v6960, %v7356
        %v7485 = vadd.f32 %v6962, %v7357
        %v7486 = vadd.f32 %v6773, %v7358
        %v7487 = vadd.f32 %v6775, %v7359
        %v7488 = vadd.f32 %v6966, %v7360
        %v7489 = vadd.f32 %v6968, %v7361
        %v7490 = vadd.f32 %v6777, %v7362
        %v7491 = vadd.f32 %v6779, %v7363
        %v7492 = vadd.f32 %v6970, %v7364
        %v7493 = vadd.f32 %v6972, %v7365
        %v7494 = vadd.f32 %v6783, %v7366
        %v7495 = vadd.f32 %v6785, %v7367
        %v7496 = vadd.f32 %v6976, %v7368
        %v7497 = vadd.f32 %v6978, %v7369
        %v7498 = vadd.f32 %v6787, %v7370
        %v7499 = vadd.f32 %v6789, %v7371
        %v7500 = vadd.f32 %v6980, %v7372
        %v7501 = vadd.f32 %v6982, %v7373
        %v7502 = vadd.f32 %v6793, %v7374
        %v7503 = vadd.f32 %v6795, %v7375
        %v7504 = vadd.f32 %v6986, %v7376
        %v7505 = vadd.f32 %v6988, %v7377
        %v7506 = vadd.f32 %v6797, %v7378
        %v7507 = vadd.f32 %v6799, %v7379
        %v7508 = vadd.f32 %v6990, %v7380
        %v7509 = vadd.f32 %v6992, %v7381
        %v7510 = vadd.f32 %v6803, %v7382
        %v7511 = vadd.f32 %v6805, %v7383
        %v7512 = vadd.f32 %v6996, %v7384
        %v7513 = vadd.f32 %v6998, %v7385
        %v7514 = vadd.f32 %v6807, %v7386
        %v7515 = vadd.f32 %v6809, %v7387
        %v7516 = vadd.f32 %v7000, %v7388
        %v7517 = vadd.f32 %v7002, %v7389
        %v7518 = vadd.f32 %v6813, %v7390
        %v7519 = vadd.f32 %v6815, %v7391
        %v7520 = vadd.f32 %v7006, %v7392
        %v7521 = vadd.f32 %v7008, %v7393
        %v7522 = vadd.f32 %v6817, %v7394
        %v7523 = vadd.f32 %v6819, %v7395
        %v7524 = vadd.f32 %v7010, %v7396
        %v7525 = vadd.f32 %v7012, %v7397
        %v7526 = vmul.f32 %v7398, 0.7978846
        %v7527 = vmul.f32 %v7399, 0.7978846
        %v7528 = vmul.f32 %v7400, 0.7978846
        %v7529 = vmul.f32 %v7401, 0.7978846
        %v7530 = vmul.f32 %v7402, 0.7978846
        %v7531 = vmul.f32 %v7403, 0.7978846
        %v7532 = vmul.f32 %v7404, 0.7978846
        %v7533 = vmul.f32 %v7405, 0.7978846
        %v7534 = vmul.f32 %v7406, 0.7978846
        %v7535 = vmul.f32 %v7407, 0.7978846
        %v7536 = vmul.f32 %v7408, 0.7978846
        %v7537 = vmul.f32 %v7409, 0.7978846
        %v7538 = vmul.f32 %v7410, 0.7978846
        %v7539 = vmul.f32 %v7411, 0.7978846
        %v7540 = vmul.f32 %v7412, 0.7978846
        %v7541 = vmul.f32 %v7413, 0.7978846
        %v7542 = vmul.f32 %v7414, 0.7978846
        %v7543 = vmul.f32 %v7415, 0.7978846
        %v7544 = vmul.f32 %v7416, 0.7978846
        %v7545 = vmul.f32 %v7417, 0.7978846
        %v7546 = vmul.f32 %v7418, 0.7978846
        %v7547 = vmul.f32 %v7419, 0.7978846
        %v7548 = vmul.f32 %v7420, 0.7978846
        %v7549 = vmul.f32 %v7421, 0.7978846
        %v7550 = vmul.f32 %v7422, 0.7978846
        %v7551 = vmul.f32 %v7423, 0.7978846
        %v7552 = vmul.f32 %v7424, 0.7978846
        %v7553 = vmul.f32 %v7425, 0.7978846
        %v7554 = vmul.f32 %v7426, 0.7978846
        %v7555 = vmul.f32 %v7427, 0.7978846
        %v7556 = vmul.f32 %v7428, 0.7978846
        %v7557 = vmul.f32 %v7429, 0.7978846
        %v7558 = vmul.f32 %v7430, 0.7978846
        %v7559 = vmul.f32 %v7431, 0.7978846
        %v7560 = vmul.f32 %v7432, 0.7978846
        %v7561 = vmul.f32 %v7433, 0.7978846
        %v7562 = vmul.f32 %v7434, 0.7978846
        %v7563 = vmul.f32 %v7435, 0.7978846
        %v7564 = vmul.f32 %v7436, 0.7978846
        %v7565 = vmul.f32 %v7437, 0.7978846
        %v7566 = vmul.f32 %v7438, 0.7978846
        %v7567 = vmul.f32 %v7439, 0.7978846
        %v7568 = vmul.f32 %v7440, 0.7978846
        %v7569 = vmul.f32 %v7441, 0.7978846
        %v7570 = vmul.f32 %v7442, 0.7978846
        %v7571 = vmul.f32 %v7443, 0.7978846
        %v7572 = vmul.f32 %v7444, 0.7978846
        %v7573 = vmul.f32 %v7445, 0.7978846
        %v7574 = vmul.f32 %v7446, 0.7978846
        %v7575 = vmul.f32 %v7447, 0.7978846
        %v7576 = vmul.f32 %v7448, 0.7978846
        %v7577 = vmul.f32 %v7449, 0.7978846
        %v7578 = vmul.f32 %v7450, 0.7978846
        %v7579 = vmul.f32 %v7451, 0.7978846
        %v7580 = vmul.f32 %v7452, 0.7978846
        %v7581 = vmul.f32 %v7453, 0.7978846
        %v7582 = vmul.f32 %v7454, 0.7978846
        %v7583 = vmul.f32 %v7455, 0.7978846
        %v7584 = vmul.f32 %v7456, 0.7978846
        %v7585 = vmul.f32 %v7457, 0.7978846
        %v7586 = vmul.f32 %v7458, 0.7978846
        %v7587 = vmul.f32 %v7459, 0.7978846
        %v7588 = vmul.f32 %v7460, 0.7978846
        %v7589 = vmul.f32 %v7461, 0.7978846
        %v7590 = vmul.f32 %v7462, 0.7978846
        %v7591 = vmul.f32 %v7463, 0.7978846
        %v7592 = vmul.f32 %v7464, 0.7978846
        %v7593 = vmul.f32 %v7465, 0.7978846
        %v7594 = vmul.f32 %v7466, 0.7978846
        %v7595 = vmul.f32 %v7467, 0.7978846
        %v7596 = vmul.f32 %v7468, 0.7978846
        %v7597 = vmul.f32 %v7469, 0.7978846
        %v7598 = vmul.f32 %v7470, 0.7978846
        %v7599 = vmul.f32 %v7471, 0.7978846
        %v7600 = vmul.f32 %v7472, 0.7978846
        %v7601 = vmul.f32 %v7473, 0.7978846
        %v7602 = vmul.f32 %v7474, 0.7978846
        %v7603 = vmul.f32 %v7475, 0.7978846
        %v7604 = vmul.f32 %v7476, 0.7978846
        %v7605 = vmul.f32 %v7477, 0.7978846
        %v7606 = vmul.f32 %v7478, 0.7978846
        %v7607 = vmul.f32 %v7479, 0.7978846
        %v7608 = vmul.f32 %v7480, 0.7978846
        %v7609 = vmul.f32 %v7481, 0.7978846
        %v7610 = vmul.f32 %v7482, 0.7978846
        %v7611 = vmul.f32 %v7483, 0.7978846
        %v7612 = vmul.f32 %v7484, 0.7978846
        %v7613 = vmul.f32 %v7485, 0.7978846
        %v7614 = vmul.f32 %v7486, 0.7978846
        %v7615 = vmul.f32 %v7487, 0.7978846
        %v7616 = vmul.f32 %v7488, 0.7978846
        %v7617 = vmul.f32 %v7489, 0.7978846
        %v7618 = vmul.f32 %v7490, 0.7978846
        %v7619 = vmul.f32 %v7491, 0.7978846
        %v7620 = vmul.f32 %v7492, 0.7978846
        %v7621 = vmul.f32 %v7493, 0.7978846
        %v7622 = vmul.f32 %v7494, 0.7978846
        %v7623 = vmul.f32 %v7495, 0.7978846
        %v7624 = vmul.f32 %v7496, 0.7978846
        %v7625 = vmul.f32 %v7497, 0.7978846
        %v7626 = vmul.f32 %v7498, 0.7978846
        %v7627 = vmul.f32 %v7499, 0.7978846
        %v7628 = vmul.f32 %v7500, 0.7978846
        %v7629 = vmul.f32 %v7501, 0.7978846
        %v7630 = vmul.f32 %v7502, 0.7978846
        %v7631 = vmul.f32 %v7503, 0.7978846
        %v7632 = vmul.f32 %v7504, 0.7978846
        %v7633 = vmul.f32 %v7505, 0.7978846
        %v7634 = vmul.f32 %v7506, 0.7978846
        %v7635 = vmul.f32 %v7507, 0.7978846
        %v7636 = vmul.f32 %v7508, 0.7978846
        %v7637 = vmul.f32 %v7509, 0.7978846
        %v7638 = vmul.f32 %v7510, 0.7978846
        %v7639 = vmul.f32 %v7511, 0.7978846
        %v7640 = vmul.f32 %v7512, 0.7978846
        %v7641 = vmul.f32 %v7513, 0.7978846
        %v7642 = vmul.f32 %v7514, 0.7978846
        %v7643 = vmul.f32 %v7515, 0.7978846
        %v7644 = vmul.f32 %v7516, 0.7978846
        %v7645 = vmul.f32 %v7517, 0.7978846
        %v7646 = vmul.f32 %v7518, 0.7978846
        %v7647 = vmul.f32 %v7519, 0.7978846
        %v7648 = vmul.f32 %v7520, 0.7978846
        %v7649 = vmul.f32 %v7521, 0.7978846
        %v7650 = vmul.f32 %v7522, 0.7978846
        %v7651 = vmul.f32 %v7523, 0.7978846
        %v7652 = vmul.f32 %v7524, 0.7978846
        %v7653 = vmul.f32 %v7525, 0.7978846
        %v7654 = vtanh.pop %v7526
        %v7655 = vtanh.pop %v7527
        %v7656 = vtanh.pop %v7528
        %v7657 = vtanh.pop %v7529
        %v7658 = vtanh.pop %v7530
        %v7659 = vtanh.pop %v7531
        %v7660 = vtanh.pop %v7532
        %v7661 = vtanh.pop %v7533
        %v7662 = vtanh.pop %v7534
        %v7663 = vtanh.pop %v7535
        %v7664 = vtanh.pop %v7536
        %v7665 = vtanh.pop %v7537
        %v7666 = vtanh.pop %v7538
        %v7667 = vtanh.pop %v7539
        %v7668 = vtanh.pop %v7540
        %v7669 = vtanh.pop %v7541
        %v7670 = vtanh.pop %v7542
        %v7671 = vtanh.pop %v7543
        %v7672 = vtanh.pop %v7544
        %v7673 = vtanh.pop %v7545
        %v7674 = vtanh.pop %v7546
        %v7675 = vtanh.pop %v7547
        %v7676 = vtanh.pop %v7548
        %v7677 = vtanh.pop %v7549
        %v7678 = vtanh.pop %v7550
        %v7679 = vtanh.pop %v7551
        %v7680 = vtanh.pop %v7552
        %v7681 = vtanh.pop %v7553
        %v7682 = vtanh.pop %v7554
        %v7683 = vtanh.pop %v7555
        %v7684 = vtanh.pop %v7556
        %v7685 = vtanh.pop %v7557
        %v7686 = vtanh.pop %v7558
        %v7687 = vtanh.pop %v7559
        %v7688 = vtanh.pop %v7560
        %v7689 = vtanh.pop %v7561
        %v7690 = vtanh.pop %v7562
        %v7691 = vtanh.pop %v7563
        %v7692 = vtanh.pop %v7564
        %v7693 = vtanh.pop %v7565
        %v7694 = vtanh.pop %v7566
        %v7695 = vtanh.pop %v7567
        %v7696 = vtanh.pop %v7568
        %v7697 = vtanh.pop %v7569
        %v7698 = vtanh.pop %v7570
        %v7699 = vtanh.pop %v7571
        %v7700 = vtanh.pop %v7572
        %v7701 = vtanh.pop %v7573
        %v7702 = vtanh.pop %v7574
        %v7703 = vtanh.pop %v7575
        %v7704 = vtanh.pop %v7576
        %v7705 = vtanh.pop %v7577
        %v7706 = vtanh.pop %v7578
        %v7707 = vtanh.pop %v7579
        %v7708 = vtanh.pop %v7580
        %v7709 = vtanh.pop %v7581
        %v7710 = vtanh.pop %v7582
        %v7711 = vtanh.pop %v7583
        %v7712 = vtanh.pop %v7584
        %v7713 = vtanh.pop %v7585
        %v7714 = vtanh.pop %v7586
        %v7715 = vtanh.pop %v7587
        %v7716 = vtanh.pop %v7588
        %v7717 = vtanh.pop %v7589
        %v7718 = vtanh.pop %v7590
        %v7719 = vtanh.pop %v7591
        %v7720 = vtanh.pop %v7592
        %v7721 = vtanh.pop %v7593
        %v7722 = vtanh.pop %v7594
        %v7723 = vtanh.pop %v7595
        %v7724 = vtanh.pop %v7596
        %v7725 = vtanh.pop %v7597
        %v7726 = vtanh.pop %v7598
        %v7727 = vtanh.pop %v7599
        %v7728 = vtanh.pop %v7600
        %v7729 = vtanh.pop %v7601
        %v7730 = vtanh.pop %v7602
        %v7731 = vtanh.pop %v7603
        %v7732 = vtanh.pop %v7604
        %v7733 = vtanh.pop %v7605
        %v7734 = vtanh.pop %v7606
        %v7735 = vtanh.pop %v7607
        %v7736 = vtanh.pop %v7608
        %v7737 = vtanh.pop %v7609
        %v7738 = vtanh.pop %v7610
        %v7739 = vtanh.pop %v7611
        %v7740 = vtanh.pop %v7612
        %v7741 = vtanh.pop %v7613
        %v7742 = vtanh.pop %v7614
        %v7743 = vtanh.pop %v7615
        %v7744 = vtanh.pop %v7616
        %v7745 = vtanh.pop %v7617
        %v7746 = vtanh.pop %v7618
        %v7747 = vtanh.pop %v7619
        %v7748 = vtanh.pop %v7620
        %v7749 = vtanh.pop %v7621
        %v7750 = vtanh.pop %v7622
        %v7751 = vtanh.pop %v7623
        %v7752 = vtanh.pop %v7624
        %v7753 = vtanh.pop %v7625
        %v7754 = vtanh.pop %v7626
        %v7755 = vtanh.pop %v7627
        %v7756 = vtanh.pop %v7628
        %v7757 = vtanh.pop %v7629
        %v7758 = vtanh.pop %v7630
        %v7759 = vtanh.pop %v7631
        %v7760 = vtanh.pop %v7632
        %v7761 = vtanh.pop %v7633
        %v7762 = vtanh.pop %v7634
        %v7763 = vtanh.pop %v7635
        %v7764 = vtanh.pop %v7636
        %v7765 = vtanh.pop %v7637
        %v7766 = vtanh.pop %v7638
        %v7767 = vtanh.pop %v7639
        %v7768 = vtanh.pop %v7640
        %v7769 = vtanh.pop %v7641
        %v7770 = vtanh.pop %v7642
        %v7771 = vtanh.pop %v7643
        %v7772 = vtanh.pop %v7644
        %v7773 = vtanh.pop %v7645
        %v7774 = vtanh.pop %v7646
        %v7775 = vtanh.pop %v7647
        %v7776 = vtanh.pop %v7648
        %v7777 = vtanh.pop %v7649
        %v7778 = vtanh.pop %v7650
        %v7779 = vtanh.pop %v7651
        %v7780 = vtanh.pop %v7652
        %v7781 = vtanh.pop %v7653
        %v7782 = vadd.f32 %v7654, 1.0
        %v7783 = vadd.f32 %v7655, 1.0
        %v7784 = vadd.f32 %v7656, 1.0
        %v7785 = vadd.f32 %v7657, 1.0
        %v7786 = vadd.f32 %v7658, 1.0
        %v7787 = vadd.f32 %v7659, 1.0
        %v7788 = vadd.f32 %v7660, 1.0
        %v7789 = vadd.f32 %v7661, 1.0
        %v7790 = vadd.f32 %v7662, 1.0
        %v7791 = vadd.f32 %v7663, 1.0
        %v7792 = vadd.f32 %v7664, 1.0
        %v7793 = vadd.f32 %v7665, 1.0
        %v7794 = vadd.f32 %v7666, 1.0
        %v7795 = vadd.f32 %v7667, 1.0
        %v7796 = vadd.f32 %v7668, 1.0
        %v7797 = vadd.f32 %v7669, 1.0
        %v7798 = vadd.f32 %v7670, 1.0
        %v7799 = vadd.f32 %v7671, 1.0
        %v7800 = vadd.f32 %v7672, 1.0
        %v7801 = vadd.f32 %v7673, 1.0
        %v7802 = vadd.f32 %v7674, 1.0
        %v7803 = vadd.f32 %v7675, 1.0
        %v7804 = vadd.f32 %v7676, 1.0
        %v7805 = vadd.f32 %v7677, 1.0
        %v7806 = vadd.f32 %v7678, 1.0
        %v7807 = vadd.f32 %v7679, 1.0
        %v7808 = vadd.f32 %v7680, 1.0
        %v7809 = vadd.f32 %v7681, 1.0
        %v7810 = vadd.f32 %v7682, 1.0
        %v7811 = vadd.f32 %v7683, 1.0
        %v7812 = vadd.f32 %v7684, 1.0
        %v7813 = vadd.f32 %v7685, 1.0
        %v7814 = vadd.f32 %v7686, 1.0
        %v7815 = vadd.f32 %v7687, 1.0
        %v7816 = vadd.f32 %v7688, 1.0
        %v7817 = vadd.f32 %v7689, 1.0
        %v7818 = vadd.f32 %v7690, 1.0
        %v7819 = vadd.f32 %v7691, 1.0
        %v7820 = vadd.f32 %v7692, 1.0
        %v7821 = vadd.f32 %v7693, 1.0
        %v7822 = vadd.f32 %v7694, 1.0
        %v7823 = vadd.f32 %v7695, 1.0
        %v7824 = vadd.f32 %v7696, 1.0
        %v7825 = vadd.f32 %v7697, 1.0
        %v7826 = vadd.f32 %v7698, 1.0
        %v7827 = vadd.f32 %v7699, 1.0
        %v7828 = vadd.f32 %v7700, 1.0
        %v7829 = vadd.f32 %v7701, 1.0
        %v7830 = vadd.f32 %v7702, 1.0
        %v7831 = vadd.f32 %v7703, 1.0
        %v7832 = vadd.f32 %v7704, 1.0
        %v7833 = vadd.f32 %v7705, 1.0
        %v7834 = vadd.f32 %v7706, 1.0
        %v7835 = vadd.f32 %v7707, 1.0
        %v7836 = vadd.f32 %v7708, 1.0
        %v7837 = vadd.f32 %v7709, 1.0
        %v7838 = vadd.f32 %v7710, 1.0
        %v7839 = vadd.f32 %v7711, 1.0
        %v7840 = vadd.f32 %v7712, 1.0
        %v7841 = vadd.f32 %v7713, 1.0
        %v7842 = vadd.f32 %v7714, 1.0
        %v7843 = vadd.f32 %v7715, 1.0
        %v7844 = vadd.f32 %v7716, 1.0
        %v7845 = vadd.f32 %v7717, 1.0
        %v7846 = vadd.f32 %v7718, 1.0
        %v7847 = vadd.f32 %v7719, 1.0
        %v7848 = vadd.f32 %v7720, 1.0
        %v7849 = vadd.f32 %v7721, 1.0
        %v7850 = vadd.f32 %v7722, 1.0
        %v7851 = vadd.f32 %v7723, 1.0
        %v7852 = vadd.f32 %v7724, 1.0
        %v7853 = vadd.f32 %v7725, 1.0
        %v7854 = vadd.f32 %v7726, 1.0
        %v7855 = vadd.f32 %v7727, 1.0
        %v7856 = vadd.f32 %v7728, 1.0
        %v7857 = vadd.f32 %v7729, 1.0
        %v7858 = vadd.f32 %v7730, 1.0
        %v7859 = vadd.f32 %v7731, 1.0
        %v7860 = vadd.f32 %v7732, 1.0
        %v7861 = vadd.f32 %v7733, 1.0
        %v7862 = vadd.f32 %v7734, 1.0
        %v7863 = vadd.f32 %v7735, 1.0
        %v7864 = vadd.f32 %v7736, 1.0
        %v7865 = vadd.f32 %v7737, 1.0
        %v7866 = vadd.f32 %v7738, 1.0
        %v7867 = vadd.f32 %v7739, 1.0
        %v7868 = vadd.f32 %v7740, 1.0
        %v7869 = vadd.f32 %v7741, 1.0
        %v7870 = vadd.f32 %v7742, 1.0
        %v7871 = vadd.f32 %v7743, 1.0
        %v7872 = vadd.f32 %v7744, 1.0
        %v7873 = vadd.f32 %v7745, 1.0
        %v7874 = vadd.f32 %v7746, 1.0
        %v7875 = vadd.f32 %v7747, 1.0
        %v7876 = vadd.f32 %v7748, 1.0
        %v7877 = vadd.f32 %v7749, 1.0
        %v7878 = vadd.f32 %v7750, 1.0
        %v7879 = vadd.f32 %v7751, 1.0
        %v7880 = vadd.f32 %v7752, 1.0
        %v7881 = vadd.f32 %v7753, 1.0
        %v7882 = vadd.f32 %v7754, 1.0
        %v7883 = vadd.f32 %v7755, 1.0
        %v7884 = vadd.f32 %v7756, 1.0
        %v7885 = vadd.f32 %v7757, 1.0
        %v7886 = vadd.f32 %v7758, 1.0
        %v7887 = vadd.f32 %v7759, 1.0
        %v7888 = vadd.f32 %v7760, 1.0
        %v7889 = vadd.f32 %v7761, 1.0
        %v7890 = vadd.f32 %v7762, 1.0
        %v7891 = vadd.f32 %v7763, 1.0
        %v7892 = vadd.f32 %v7764, 1.0
        %v7893 = vadd.f32 %v7765, 1.0
        %v7894 = vadd.f32 %v7766, 1.0
        %v7895 = vadd.f32 %v7767, 1.0
        %v7896 = vadd.f32 %v7768, 1.0
        %v7897 = vadd.f32 %v7769, 1.0
        %v7898 = vadd.f32 %v7770, 1.0
        %v7899 = vadd.f32 %v7771, 1.0
        %v7900 = vadd.f32 %v7772, 1.0
        %v7901 = vadd.f32 %v7773, 1.0
        %v7902 = vadd.f32 %v7774, 1.0
        %v7903 = vadd.f32 %v7775, 1.0
        %v7904 = vadd.f32 %v7776, 1.0
        %v7905 = vadd.f32 %v7777, 1.0
        %v7906 = vadd.f32 %v7778, 1.0
        %v7907 = vadd.f32 %v7779, 1.0
        %v7908 = vadd.f32 %v7780, 1.0
        %v7909 = vadd.f32 %v7781, 1.0
        %v7910 = vmul.f32 %v7782, 0.5
        %v7911 = vmul.f32 %v7783, 0.5
        %v7912 = vmul.f32 %v7784, 0.5
        %v7913 = vmul.f32 %v7785, 0.5
        %v7914 = vmul.f32 %v7786, 0.5
        %v7915 = vmul.f32 %v7787, 0.5
        %v7916 = vmul.f32 %v7788, 0.5
        %v7917 = vmul.f32 %v7789, 0.5
        %v7918 = vmul.f32 %v7790, 0.5
        %v7919 = vmul.f32 %v7791, 0.5
        %v7920 = vmul.f32 %v7792, 0.5
        %v7921 = vmul.f32 %v7793, 0.5
        %v7922 = vmul.f32 %v7794, 0.5
        %v7923 = vmul.f32 %v7795, 0.5
        %v7924 = vmul.f32 %v7796, 0.5
        %v7925 = vmul.f32 %v7797, 0.5
        %v7926 = vmul.f32 %v7798, 0.5
        %v7927 = vmul.f32 %v7799, 0.5
        %v7928 = vmul.f32 %v7800, 0.5
        %v7929 = vmul.f32 %v7801, 0.5
        %v7930 = vmul.f32 %v7802, 0.5
        %v7931 = vmul.f32 %v7803, 0.5
        %v7932 = vmul.f32 %v7804, 0.5
        %v7933 = vmul.f32 %v7805, 0.5
        %v7934 = vmul.f32 %v7806, 0.5
        %v7935 = vmul.f32 %v7807, 0.5
        %v7936 = vmul.f32 %v7808, 0.5
        %v7937 = vmul.f32 %v7809, 0.5
        %v7938 = vmul.f32 %v7810, 0.5
        %v7939 = vmul.f32 %v7811, 0.5
        %v7940 = vmul.f32 %v7812, 0.5
        %v7941 = vmul.f32 %v7813, 0.5
        %v7942 = vmul.f32 %v7814, 0.5
        %v7943 = vmul.f32 %v7815, 0.5
        %v7944 = vmul.f32 %v7816, 0.5
        %v7945 = vmul.f32 %v7817, 0.5
        %v7946 = vmul.f32 %v7818, 0.5
        %v7947 = vmul.f32 %v7819, 0.5
        %v7948 = vmul.f32 %v7820, 0.5
        %v7949 = vmul.f32 %v7821, 0.5
        %v7950 = vmul.f32 %v7822, 0.5
        %v7951 = vmul.f32 %v7823, 0.5
        %v7952 = vmul.f32 %v7824, 0.5
        %v7953 = vmul.f32 %v7825, 0.5
        %v7954 = vmul.f32 %v7826, 0.5
        %v7955 = vmul.f32 %v7827, 0.5
        %v7956 = vmul.f32 %v7828, 0.5
        %v7957 = vmul.f32 %v7829, 0.5
        %v7958 = vmul.f32 %v7830, 0.5
        %v7959 = vmul.f32 %v7831, 0.5
        %v7960 = vmul.f32 %v7832, 0.5
        %v7961 = vmul.f32 %v7833, 0.5
        %v7962 = vmul.f32 %v7834, 0.5
        %v7963 = vmul.f32 %v7835, 0.5
        %v7964 = vmul.f32 %v7836, 0.5
        %v7965 = vmul.f32 %v7837, 0.5
        %v7966 = vmul.f32 %v7838, 0.5
        %v7967 = vmul.f32 %v7839, 0.5
        %v7968 = vmul.f32 %v7840, 0.5
        %v7969 = vmul.f32 %v7841, 0.5
        %v7970 = vmul.f32 %v7842, 0.5
        %v7971 = vmul.f32 %v7843, 0.5
        %v7972 = vmul.f32 %v7844, 0.5
        %v7973 = vmul.f32 %v7845, 0.5
        %v7974 = vmul.f32 %v7846, 0.5
        %v7975 = vmul.f32 %v7847, 0.5
        %v7976 = vmul.f32 %v7848, 0.5
        %v7977 = vmul.f32 %v7849, 0.5
        %v7978 = vmul.f32 %v7850, 0.5
        %v7979 = vmul.f32 %v7851, 0.5
        %v7980 = vmul.f32 %v7852, 0.5
        %v7981 = vmul.f32 %v7853, 0.5
        %v7982 = vmul.f32 %v7854, 0.5
        %v7983 = vmul.f32 %v7855, 0.5
        %v7984 = vmul.f32 %v7856, 0.5
        %v7985 = vmul.f32 %v7857, 0.5
        %v7986 = vmul.f32 %v7858, 0.5
        %v7987 = vmul.f32 %v7859, 0.5
        %v7988 = vmul.f32 %v7860, 0.5
        %v7989 = vmul.f32 %v7861, 0.5
        %v7990 = vmul.f32 %v7862, 0.5
        %v7991 = vmul.f32 %v7863, 0.5
        %v7992 = vmul.f32 %v7864, 0.5
        %v7993 = vmul.f32 %v7865, 0.5
        %v7994 = vmul.f32 %v7866, 0.5
        %v7995 = vmul.f32 %v7867, 0.5
        %v7996 = vmul.f32 %v7868, 0.5
        %v7997 = vmul.f32 %v7869, 0.5
        %v7998 = vmul.f32 %v7870, 0.5
        %v7999 = vmul.f32 %v7871, 0.5
        %v8000 = vmul.f32 %v7872, 0.5
        %v8001 = vmul.f32 %v7873, 0.5
        %v8002 = vmul.f32 %v7874, 0.5
        %v8003 = vmul.f32 %v7875, 0.5
        %v8004 = vmul.f32 %v7876, 0.5
        %v8005 = vmul.f32 %v7877, 0.5
        %v8006 = vmul.f32 %v7878, 0.5
        %v8007 = vmul.f32 %v7879, 0.5
        %v8008 = vmul.f32 %v7880, 0.5
        %v8009 = vmul.f32 %v7881, 0.5
        %v8010 = vmul.f32 %v7882, 0.5
        %v8011 = vmul.f32 %v7883, 0.5
        %v8012 = vmul.f32 %v7884, 0.5
        %v8013 = vmul.f32 %v7885, 0.5
        %v8014 = vmul.f32 %v7886, 0.5
        %v8015 = vmul.f32 %v7887, 0.5
        %v8016 = vmul.f32 %v7888, 0.5
        %v8017 = vmul.f32 %v7889, 0.5
        %v8018 = vmul.f32 %v7890, 0.5
        %v8019 = vmul.f32 %v7891, 0.5
        %v8020 = vmul.f32 %v7892, 0.5
        %v8021 = vmul.f32 %v7893, 0.5
        %v8022 = vmul.f32 %v7894, 0.5
        %v8023 = vmul.f32 %v7895, 0.5
        %v8024 = vmul.f32 %v7896, 0.5
        %v8025 = vmul.f32 %v7897, 0.5
        %v8026 = vmul.f32 %v7898, 0.5
        %v8027 = vmul.f32 %v7899, 0.5
        %v8028 = vmul.f32 %v7900, 0.5
        %v8029 = vmul.f32 %v7901, 0.5
        %v8030 = vmul.f32 %v7902, 0.5
        %v8031 = vmul.f32 %v7903, 0.5
        %v8032 = vmul.f32 %v7904, 0.5
        %v8033 = vmul.f32 %v7905, 0.5
        %v8034 = vmul.f32 %v7906, 0.5
        %v8035 = vmul.f32 %v7907, 0.5
        %v8036 = vmul.f32 %v7908, 0.5
        %v8037 = vmul.f32 %v7909, 0.5
        %v8038 = vmul.f32 %v6663, %v7910
        %v8039 = vmul.f32 %v6665, %v7911
        %v8040 = vmul.f32 %v6856, %v7912
        %v8041 = vmul.f32 %v6858, %v7913
        %v8042 = vmul.f32 %v6667, %v7914
        %v8043 = vmul.f32 %v6669, %v7915
        %v8044 = vmul.f32 %v6860, %v7916
        %v8045 = vmul.f32 %v6862, %v7917
        %v8046 = vmul.f32 %v6673, %v7918
        %v8047 = vmul.f32 %v6675, %v7919
        %v8048 = vmul.f32 %v6866, %v7920
        %v8049 = vmul.f32 %v6868, %v7921
        %v8050 = vmul.f32 %v6677, %v7922
        %v8051 = vmul.f32 %v6679, %v7923
        %v8052 = vmul.f32 %v6870, %v7924
        %v8053 = vmul.f32 %v6872, %v7925
        %v8054 = vmul.f32 %v6683, %v7926
        %v8055 = vmul.f32 %v6685, %v7927
        %v8056 = vmul.f32 %v6876, %v7928
        %v8057 = vmul.f32 %v6878, %v7929
        %v8058 = vmul.f32 %v6687, %v7930
        %v8059 = vmul.f32 %v6689, %v7931
        %v8060 = vmul.f32 %v6880, %v7932
        %v8061 = vmul.f32 %v6882, %v7933
        %v8062 = vmul.f32 %v6693, %v7934
        %v8063 = vmul.f32 %v6695, %v7935
        %v8064 = vmul.f32 %v6886, %v7936
        %v8065 = vmul.f32 %v6888, %v7937
        %v8066 = vmul.f32 %v6697, %v7938
        %v8067 = vmul.f32 %v6699, %v7939
        %v8068 = vmul.f32 %v6890, %v7940
        %v8069 = vmul.f32 %v6892, %v7941
        %v8070 = vmul.f32 %v6703, %v7942
        %v8071 = vmul.f32 %v6705, %v7943
        %v8072 = vmul.f32 %v6896, %v7944
        %v8073 = vmul.f32 %v6898, %v7945
        %v8074 = vmul.f32 %v6707, %v7946
        %v8075 = vmul.f32 %v6709, %v7947
        %v8076 = vmul.f32 %v6900, %v7948
        %v8077 = vmul.f32 %v6902, %v7949
        %v8078 = vmul.f32 %v6713, %v7950
        %v8079 = vmul.f32 %v6715, %v7951
        %v8080 = vmul.f32 %v6906, %v7952
        %v8081 = vmul.f32 %v6908, %v7953
        %v8082 = vmul.f32 %v6717, %v7954
        %v8083 = vmul.f32 %v6719, %v7955
        %v8084 = vmul.f32 %v6910, %v7956
        %v8085 = vmul.f32 %v6912, %v7957
        %v8086 = vmul.f32 %v6723, %v7958
        %v8087 = vmul.f32 %v6725, %v7959
        %v8088 = vmul.f32 %v6916, %v7960
        %v8089 = vmul.f32 %v6918, %v7961
        %v8090 = vmul.f32 %v6727, %v7962
        %v8091 = vmul.f32 %v6729, %v7963
        %v8092 = vmul.f32 %v6920, %v7964
        %v8093 = vmul.f32 %v6922, %v7965
        %v8094 = vmul.f32 %v6733, %v7966
        %v8095 = vmul.f32 %v6735, %v7967
        %v8096 = vmul.f32 %v6926, %v7968
        %v8097 = vmul.f32 %v6928, %v7969
        %v8098 = vmul.f32 %v6737, %v7970
        %v8099 = vmul.f32 %v6739, %v7971
        %v8100 = vmul.f32 %v6930, %v7972
        %v8101 = vmul.f32 %v6932, %v7973
        %v8102 = vmul.f32 %v6743, %v7974
        %v8103 = vmul.f32 %v6745, %v7975
        %v8104 = vmul.f32 %v6936, %v7976
        %v8105 = vmul.f32 %v6938, %v7977
        %v8106 = vmul.f32 %v6747, %v7978
        %v8107 = vmul.f32 %v6749, %v7979
        %v8108 = vmul.f32 %v6940, %v7980
        %v8109 = vmul.f32 %v6942, %v7981
        %v8110 = vmul.f32 %v6753, %v7982
        %v8111 = vmul.f32 %v6755, %v7983
        %v8112 = vmul.f32 %v6946, %v7984
        %v8113 = vmul.f32 %v6948, %v7985
        %v8114 = vmul.f32 %v6757, %v7986
        %v8115 = vmul.f32 %v6759, %v7987
        %v8116 = vmul.f32 %v6950, %v7988
        %v8117 = vmul.f32 %v6952, %v7989
        %v8118 = vmul.f32 %v6763, %v7990
        %v8119 = vmul.f32 %v6765, %v7991
        %v8120 = vmul.f32 %v6956, %v7992
        %v8121 = vmul.f32 %v6958, %v7993
        %v8122 = vmul.f32 %v6767, %v7994
        %v8123 = vmul.f32 %v6769, %v7995
        %v8124 = vmul.f32 %v6960, %v7996
        %v8125 = vmul.f32 %v6962, %v7997
        %v8126 = vmul.f32 %v6773, %v7998
        %v8127 = vmul.f32 %v6775, %v7999
        %v8128 = vmul.f32 %v6966, %v8000
        %v8129 = vmul.f32 %v6968, %v8001
        %v8130 = vmul.f32 %v6777, %v8002
        %v8131 = vmul.f32 %v6779, %v8003
        %v8132 = vmul.f32 %v6970, %v8004
        %v8133 = vmul.f32 %v6972, %v8005
        %v8134 = vmul.f32 %v6783, %v8006
        %v8135 = vmul.f32 %v6785, %v8007
        %v8136 = vmul.f32 %v6976, %v8008
        %v8137 = vmul.f32 %v6978, %v8009
        %v8138 = vmul.f32 %v6787, %v8010
        %v8139 = vmul.f32 %v6789, %v8011
        %v8140 = vmul.f32 %v6980, %v8012
        %v8141 = vmul.f32 %v6982, %v8013
        %v8142 = vmul.f32 %v6793, %v8014
        %v8143 = vmul.f32 %v6795, %v8015
        %v8144 = vmul.f32 %v6986, %v8016
        %v8145 = vmul.f32 %v6988, %v8017
        %v8146 = vmul.f32 %v6797, %v8018
        %v8147 = vmul.f32 %v6799, %v8019
        %v8148 = vmul.f32 %v6990, %v8020
        %v8149 = vmul.f32 %v6992, %v8021
        %v8150 = vmul.f32 %v6803, %v8022
        %v8151 = vmul.f32 %v6805, %v8023
        %v8152 = vmul.f32 %v6996, %v8024
        %v8153 = vmul.f32 %v6998, %v8025
        %v8154 = vmul.f32 %v6807, %v8026
        %v8155 = vmul.f32 %v6809, %v8027
        %v8156 = vmul.f32 %v7000, %v8028
        %v8157 = vmul.f32 %v7002, %v8029
        %v8158 = vmul.f32 %v6813, %v8030
        %v8159 = vmul.f32 %v6815, %v8031
        %v8160 = vmul.f32 %v7006, %v8032
        %v8161 = vmul.f32 %v7008, %v8033
        %v8162 = vmul.f32 %v6817, %v8034
        %v8163 = vmul.f32 %v6819, %v8035
        %v8164 = vmul.f32 %v7010, %v8036
        %v8165 = vmul.f32 %v7012, %v8037
        %v8166 = vpack.c.bf16 %v8042, %v8038
        %v8167 = vpack.c.bf16 %v8043, %v8039
        %v8168 = vpack.c.bf16 %v8044, %v8040
        %v8169 = vpack.c.bf16 %v8045, %v8041
        %v8170 = vpack.c.bf16 %v8050, %v8046
        %v8171 = vpack.c.bf16 %v8051, %v8047
        %v8172 = vpack.c.bf16 %v8052, %v8048
        %v8173 = vpack.c.bf16 %v8053, %v8049
        %v8174 = vpack.c.bf16 %v8058, %v8054
        %v8175 = vpack.c.bf16 %v8059, %v8055
        %v8176 = vpack.c.bf16 %v8060, %v8056
        %v8177 = vpack.c.bf16 %v8061, %v8057
        %v8178 = vpack.c.bf16 %v8066, %v8062
        %v8179 = vpack.c.bf16 %v8067, %v8063
        %v8180 = vpack.c.bf16 %v8068, %v8064
        %v8181 = vpack.c.bf16 %v8069, %v8065
        %v8182 = vpack.c.bf16 %v8074, %v8070
        %v8183 = vpack.c.bf16 %v8075, %v8071
        %v8184 = vpack.c.bf16 %v8076, %v8072
        %v8185 = vpack.c.bf16 %v8077, %v8073
        %v8186 = vpack.c.bf16 %v8082, %v8078
        %v8187 = vpack.c.bf16 %v8083, %v8079
        %v8188 = vpack.c.bf16 %v8084, %v8080
        %v8189 = vpack.c.bf16 %v8085, %v8081
        %v8190 = vpack.c.bf16 %v8090, %v8086
        %v8191 = vpack.c.bf16 %v8091, %v8087
        %v8192 = vpack.c.bf16 %v8092, %v8088
        %v8193 = vpack.c.bf16 %v8093, %v8089
        %v8194 = vpack.c.bf16 %v8098, %v8094
        %v8195 = vpack.c.bf16 %v8099, %v8095
        %v8196 = vpack.c.bf16 %v8100, %v8096
        %v8197 = vpack.c.bf16 %v8101, %v8097
        %v8198 = vpack.c.bf16 %v8106, %v8102
        %v8199 = vpack.c.bf16 %v8107, %v8103
        %v8200 = vpack.c.bf16 %v8108, %v8104
        %v8201 = vpack.c.bf16 %v8109, %v8105
        %v8202 = vpack.c.bf16 %v8114, %v8110
        %v8203 = vpack.c.bf16 %v8115, %v8111
        %v8204 = vpack.c.bf16 %v8116, %v8112
        %v8205 = vpack.c.bf16 %v8117, %v8113
        %v8206 = vpack.c.bf16 %v8122, %v8118
        %v8207 = vpack.c.bf16 %v8123, %v8119
        %v8208 = vpack.c.bf16 %v8124, %v8120
        %v8209 = vpack.c.bf16 %v8125, %v8121
        %v8210 = vpack.c.bf16 %v8130, %v8126
        %v8211 = vpack.c.bf16 %v8131, %v8127
        %v8212 = vpack.c.bf16 %v8132, %v8128
        %v8213 = vpack.c.bf16 %v8133, %v8129
        %v8214 = vpack.c.bf16 %v8138, %v8134
        %v8215 = vpack.c.bf16 %v8139, %v8135
        %v8216 = vpack.c.bf16 %v8140, %v8136
        %v8217 = vpack.c.bf16 %v8141, %v8137
        %v8218 = vpack.c.bf16 %v8146, %v8142
        %v8219 = vpack.c.bf16 %v8147, %v8143
        %v8220 = vpack.c.bf16 %v8148, %v8144
        %v8221 = vpack.c.bf16 %v8149, %v8145
        %v8222 = vpack.c.bf16 %v8154, %v8150
        %v8223 = vpack.c.bf16 %v8155, %v8151
        %v8224 = vpack.c.bf16 %v8156, %v8152
        %v8225 = vpack.c.bf16 %v8157, %v8153
        %v8226 = vpack.c.bf16 %v8162, %v8158
        %v8227 = vpack.c.bf16 %v8163, %v8159
        %v8228 = vpack.c.bf16 %v8164, %v8160
        %v8229 = vpack.c.bf16 %v8165, %v8161
        %v8230 = vld [vmem:[%s4] sm:$0xf]
        %v8231 = vld [vmem:[%s4 + $0x4] sm:$0xf]
        %v8232 = vld [vmem:[%s4 + $0x8] sm:$0xf]
        %v8233 = vld [vmem:[%s4 + $0xc] sm:$0xf]
        %v8234 = vld [vmem:[%s4 + $0x10] sm:$0xf]
        %v8235 = vld [vmem:[%s4 + $0x14] sm:$0xf]
        %v8236 = vld [vmem:[%s4 + $0x18] sm:$0xf]
        %v8237 = vld [vmem:[%s4 + $0x1c] sm:$0xf]
        %v8238 = vld [vmem:[%s4 + $0x20] sm:$0xf]
        %v8239 = vld [vmem:[%s4 + $0x24] sm:$0xf]
        %v8240 = vld [vmem:[%s4 + $0x28] sm:$0xf]
        %v8241 = vld [vmem:[%s4 + $0x2c] sm:$0xf]
        %v8242 = vld [vmem:[%s4 + $0x30] sm:$0xf]
        %v8243 = vld [vmem:[%s4 + $0x34] sm:$0xf]
        %v8244 = vld [vmem:[%s4 + $0x38] sm:$0xf]
        %v8245 = vld [vmem:[%s4 + $0x3c] sm:$0xf]
        %v8246 = vld [vmem:[%s4 + $0x40] sm:$0xf]
        %v8247 = vld [vmem:[%s4 + $0x44] sm:$0xf]
        %v8248 = vld [vmem:[%s4 + $0x48] sm:$0xf]
        %v8249 = vld [vmem:[%s4 + $0x4c] sm:$0xf]
        %v8250 = vld [vmem:[%s4 + $0x50] sm:$0xf]
        %v8251 = vld [vmem:[%s4 + $0x54] sm:$0xf]
        %v8252 = vld [vmem:[%s4 + $0x58] sm:$0xf]
        %v8253 = vld [vmem:[%s4 + $0x5c] sm:$0xf]
        %v8254 = vld [vmem:[%s4 + $0x60] sm:$0xf]
        %v8255 = vld [vmem:[%s4 + $0x64] sm:$0xf]
        %v8256 = vld [vmem:[%s4 + $0x68] sm:$0xf]
        %v8257 = vld [vmem:[%s4 + $0x6c] sm:$0xf]
        %v8258 = vld [vmem:[%s4 + $0x70] sm:$0xf]
        %v8259 = vld [vmem:[%s4 + $0x74] sm:$0xf]
        %v8260 = vld [vmem:[%s4 + $0x78] sm:$0xf]
        %v8261 = vld [vmem:[%s4 + $0x7c] sm:$0xf]
        %v8262 = vld [vmem:[%s4 + $0x80] sm:$0xf]
        %v8263 = vld [vmem:[%s4 + $0x84] sm:$0xf]
        %v8264 = vld [vmem:[%s4 + $0x88] sm:$0xf]
        %v8265 = vld [vmem:[%s4 + $0x8c] sm:$0xf]
        %v8266 = vld [vmem:[%s4 + $0x90] sm:$0xf]
        %v8267 = vld [vmem:[%s4 + $0x94] sm:$0xf]
        %v8268 = vld [vmem:[%s4 + $0x98] sm:$0xf]
        %v8269 = vld [vmem:[%s4 + $0x9c] sm:$0xf]
        %v8270 = vld [vmem:[%s4 + $0xa0] sm:$0xf]
        %v8271 = vld [vmem:[%s4 + $0xa4] sm:$0xf]
        %v8272 = vld [vmem:[%s4 + $0xa8] sm:$0xf]
        %v8273 = vld [vmem:[%s4 + $0xac] sm:$0xf]
        %v8274 = vld [vmem:[%s4 + $0xb0] sm:$0xf]
        %v8275 = vld [vmem:[%s4 + $0xb4] sm:$0xf]
        %v8276 = vld [vmem:[%s4 + $0xb8] sm:$0xf]
        %v8277 = vld [vmem:[%s4 + $0xbc] sm:$0xf]
        %v8278 = vld [vmem:[%s4 + $0xc0] sm:$0xf]
        %v8279 = vld [vmem:[%s4 + $0xc4] sm:$0xf]
        %v8280 = vld [vmem:[%s4 + $0xc8] sm:$0xf]
        %v8281 = vld [vmem:[%s4 + $0xcc] sm:$0xf]
        %v8282 = vld [vmem:[%s4 + $0xd0] sm:$0xf]
        %v8283 = vld [vmem:[%s4 + $0xd4] sm:$0xf]
        %v8284 = vld [vmem:[%s4 + $0xd8] sm:$0xf]
        %v8285 = vld [vmem:[%s4 + $0xdc] sm:$0xf]
        %v8286 = vld [vmem:[%s4 + $0xe0] sm:$0xf]
        %v8287 = vld [vmem:[%s4 + $0xe4] sm:$0xf]
        %v8288 = vld [vmem:[%s4 + $0xe8] sm:$0xf]
        %v8289 = vld [vmem:[%s4 + $0xec] sm:$0xf]
        %v8290 = vld [vmem:[%s4 + $0xf0] sm:$0xf]
        %v8291 = vld [vmem:[%s4 + $0xf4] sm:$0xf]
        %v8292 = vld [vmem:[%s4 + $0xf8] sm:$0xf]
        %v8293 = vld [vmem:[%s4 + $0xfc] sm:$0xf]
        %v8358 = vunpack.c.l.b16 %v8230
        %v8359 = vunpack.c.l.b16 %v8231
        %v8360 = vunpack.c.l.b16 %v8232
        %v8361 = vunpack.c.l.b16 %v8233
        %v8362 = vunpack.c.l.b16 %v8234
        %v8363 = vunpack.c.l.b16 %v8235
        %v8364 = vunpack.c.l.b16 %v8236
        %v8365 = vunpack.c.l.b16 %v8237
        %v8366 = vunpack.c.l.b16 %v8238
        %v8367 = vunpack.c.l.b16 %v8239
        %v8368 = vunpack.c.l.b16 %v8240
        %v8369 = vunpack.c.l.b16 %v8241
        %v8370 = vunpack.c.l.b16 %v8242
        %v8371 = vunpack.c.l.b16 %v8243
        %v8372 = vunpack.c.l.b16 %v8244
        %v8373 = vunpack.c.l.b16 %v8245
        %v8374 = vunpack.c.l.b16 %v8246
        %v8375 = vunpack.c.l.b16 %v8247
        %v8376 = vunpack.c.l.b16 %v8248
        %v8377 = vunpack.c.l.b16 %v8249
        %v8378 = vunpack.c.l.b16 %v8250
        %v8379 = vunpack.c.l.b16 %v8251
        %v8380 = vunpack.c.l.b16 %v8252
        %v8381 = vunpack.c.l.b16 %v8253
        %v8382 = vunpack.c.l.b16 %v8254
        %v8383 = vunpack.c.l.b16 %v8255
        %v8384 = vunpack.c.l.b16 %v8256
        %v8385 = vunpack.c.l.b16 %v8257
        %v8386 = vunpack.c.l.b16 %v8258
        %v8387 = vunpack.c.l.b16 %v8259
        %v8388 = vunpack.c.l.b16 %v8260
        %v8389 = vunpack.c.l.b16 %v8261
        %v8390 = vunpack.c.l.b16 %v8262
        %v8391 = vunpack.c.l.b16 %v8263
        %v8392 = vunpack.c.l.b16 %v8264
        %v8393 = vunpack.c.l.b16 %v8265
        %v8394 = vunpack.c.l.b16 %v8266
        %v8395 = vunpack.c.l.b16 %v8267
        %v8396 = vunpack.c.l.b16 %v8268
        %v8397 = vunpack.c.l.b16 %v8269
        %v8398 = vunpack.c.l.b16 %v8270
        %v8399 = vunpack.c.l.b16 %v8271
        %v8400 = vunpack.c.l.b16 %v8272
        %v8401 = vunpack.c.l.b16 %v8273
        %v8402 = vunpack.c.l.b16 %v8274
        %v8403 = vunpack.c.l.b16 %v8275
        %v8404 = vunpack.c.l.b16 %v8276
        %v8405 = vunpack.c.l.b16 %v8277
        %v8406 = vunpack.c.l.b16 %v8278
        %v8407 = vunpack.c.l.b16 %v8279
        %v8408 = vunpack.c.l.b16 %v8280
        %v8409 = vunpack.c.l.b16 %v8281
        %v8410 = vunpack.c.l.b16 %v8282
        %v8411 = vunpack.c.l.b16 %v8283
        %v8412 = vunpack.c.l.b16 %v8284
        %v8413 = vunpack.c.l.b16 %v8285
        %v8414 = vunpack.c.l.b16 %v8286
        %v8415 = vunpack.c.l.b16 %v8287
        %v8416 = vunpack.c.l.b16 %v8288
        %v8417 = vunpack.c.l.b16 %v8289
        %v8418 = vunpack.c.l.b16 %v8290
        %v8419 = vunpack.c.l.b16 %v8291
        %v8420 = vunpack.c.l.b16 %v8292
        %v8421 = vunpack.c.l.b16 %v8293
        %v8422 = vpack.c.b16 %v8359, %v8358
        %v8423 = vpack.c.b16 %v8361, %v8360
        %v8424 = vpack.c.b16 %v8363, %v8362
        %v8425 = vpack.c.b16 %v8365, %v8364
        %v8426 = vpack.c.b16 %v8367, %v8366
        %v8427 = vpack.c.b16 %v8369, %v8368
        %v8428 = vpack.c.b16 %v8371, %v8370
        %v8429 = vpack.c.b16 %v8373, %v8372
        %v8430 = vpack.c.b16 %v8375, %v8374
        %v8431 = vpack.c.b16 %v8377, %v8376
        %v8432 = vpack.c.b16 %v8379, %v8378
        %v8433 = vpack.c.b16 %v8381, %v8380
        %v8434 = vpack.c.b16 %v8383, %v8382
        %v8435 = vpack.c.b16 %v8385, %v8384
        %v8436 = vpack.c.b16 %v8387, %v8386
        %v8437 = vpack.c.b16 %v8389, %v8388
        %v8438 = vpack.c.b16 %v8391, %v8390
        %v8439 = vpack.c.b16 %v8393, %v8392
        %v8440 = vpack.c.b16 %v8395, %v8394
        %v8441 = vpack.c.b16 %v8397, %v8396
        %v8442 = vpack.c.b16 %v8399, %v8398
        %v8443 = vpack.c.b16 %v8401, %v8400
        %v8444 = vpack.c.b16 %v8403, %v8402
        %v8445 = vpack.c.b16 %v8405, %v8404
        %v8446 = vpack.c.b16 %v8407, %v8406
        %v8447 = vpack.c.b16 %v8409, %v8408
        %v8448 = vpack.c.b16 %v8411, %v8410
        %v8449 = vpack.c.b16 %v8413, %v8412
        %v8450 = vpack.c.b16 %v8415, %v8414
        %v8451 = vpack.c.b16 %v8417, %v8416
        %v8452 = vpack.c.b16 %v8419, %v8418
        %v8453 = vpack.c.b16 %v8421, %v8420
        %8486 = vmatprep.subr.bf16.mxu0 0
        %8487 = vmatpush1.bf16.msra.mxu0 %v8429
        %8488 = vmatprep.subr.bf16.mxu0 0
        %8489 = vmatpush1.bf16.msra.mxu0 %v8428
        %8490 = vmatprep.subr.bf16.mxu0 0
        %8491 = vmatpush1.bf16.msra.mxu0 %v8427
        %8492 = vmatprep.subr.bf16.mxu0 0
        %8493 = vmatpush1.bf16.msra.mxu0 %v8426
        %8494 = vmatprep.subr.bf16.mxu0 0
        %8495 = vmatpush1.bf16.msra.mxu0 %v8425
        %8496 = vmatprep.subr.bf16.mxu0 0
        %8497 = vmatpush1.bf16.msra.mxu0 %v8424
        %8498 = vmatprep.subr.bf16.mxu0 0
        %8499 = vmatpush1.bf16.msra.mxu0 %v8423
        %8500 = vmatprep.subr.bf16.mxu0 0
        %8501 = vmatpush1.bf16.msra.mxu0 %v8422
        %8502 = vmatprep.subr.bf16.mxu0 0
        %8503 = vmatpush2.bf16.msra.mxu0 %v8437
        %8504 = vmatprep.subr.bf16.mxu0 0
        %8505 = vmatpush2.bf16.msra.mxu0 %v8436
        %8506 = vmatprep.subr.bf16.mxu0 0
        %8507 = vmatpush2.bf16.msra.mxu0 %v8435
        %8508 = vmatprep.subr.bf16.mxu0 0
        %8509 = vmatpush2.bf16.msra.mxu0 %v8434
        %8510 = vmatprep.subr.bf16.mxu0 0
        %8511 = vmatpush2.bf16.msra.mxu0 %v8433
        %8512 = vmatprep.subr.bf16.mxu0 0
        %8513 = vmatpush2.bf16.msra.mxu0 %v8432
        %8514 = vmatprep.subr.bf16.mxu0 0
        %8515 = vmatpush2.bf16.msra.mxu0 %v8431
        %8516 = vmatprep.subr.bf16.mxu0 0
        %8517 = vmatpush2.bf16.msra.mxu0 %v8430
        %8518 = vmatprep.mubr.bf16.mxu0 %v8167
        %8519 = vmatmul.mubr.bf16.gmra.mxu0 %v8166
        %v8520 = vpop.f32.mrf.mxu0
        %v8521 = vadd.f32 0.0, %v8520
        %v8522 = vpop.f32.mrf.mxu0
        %v8523 = vpop.f32.mrf.mxu0
        %v8524 = vadd.f32 0.0, %v8523
        %v8525 = vpop.f32.mrf.mxu0
        %8526 = vmatprep.mubr.bf16.mxu0 %v8171
        %8527 = vmatmul.mubr.bf16.gmra.mxu0 %v8170
        %v8528 = vpop.f32.mrf.mxu0
        %v8529 = vadd.f32 0.0, %v8528
        %v8530 = vpop.f32.mrf.mxu0
        %v8531 = vpop.f32.mrf.mxu0
        %v8532 = vadd.f32 0.0, %v8531
        %v8533 = vpop.f32.mrf.mxu0
        %8534 = vmatprep.mubr.bf16.mxu0 %v8175
        %8535 = vmatmul.mubr.bf16.gmra.mxu0 %v8174
        %v8536 = vpop.f32.mrf.mxu0
        %v8537 = vadd.f32 0.0, %v8536
        %v8538 = vpop.f32.mrf.mxu0
        %v8539 = vpop.f32.mrf.mxu0
        %v8540 = vadd.f32 0.0, %v8539
        %v8541 = vpop.f32.mrf.mxu0
        %8542 = vmatprep.mubr.bf16.mxu0 %v8179
        %8543 = vmatmul.mubr.bf16.gmra.mxu0 %v8178
        %v8544 = vpop.f32.mrf.mxu0
        %v8545 = vadd.f32 0.0, %v8544
        %v8546 = vpop.f32.mrf.mxu0
        %v8547 = vpop.f32.mrf.mxu0
        %v8548 = vadd.f32 0.0, %v8547
        %v8549 = vpop.f32.mrf.mxu0
        %8550 = vmatprep.mubr.bf16.mxu0 %v8183
        %8551 = vmatmul.mubr.bf16.gmra.mxu0 %v8182
        %v8552 = vpop.f32.mrf.mxu0
        %v8553 = vadd.f32 0.0, %v8552
        %v8554 = vpop.f32.mrf.mxu0
        %v8555 = vpop.f32.mrf.mxu0
        %v8556 = vadd.f32 0.0, %v8555
        %v8557 = vpop.f32.mrf.mxu0
        %8558 = vmatprep.mubr.bf16.mxu0 %v8187
        %8559 = vmatmul.mubr.bf16.gmra.mxu0 %v8186
        %v8560 = vpop.f32.mrf.mxu0
        %v8561 = vadd.f32 0.0, %v8560
        %v8562 = vpop.f32.mrf.mxu0
        %v8563 = vpop.f32.mrf.mxu0
        %v8564 = vadd.f32 0.0, %v8563
        %v8565 = vpop.f32.mrf.mxu0
        %8566 = vmatprep.mubr.bf16.mxu0 %v8191
        %8567 = vmatmul.mubr.bf16.gmra.mxu0 %v8190
        %v8568 = vpop.f32.mrf.mxu0
        %v8569 = vadd.f32 0.0, %v8568
        %v8570 = vpop.f32.mrf.mxu0
        %v8571 = vpop.f32.mrf.mxu0
        %v8572 = vadd.f32 0.0, %v8571
        %v8573 = vpop.f32.mrf.mxu0
        %8574 = vmatprep.mubr.bf16.mxu0 %v8195
        %8575 = vmatmul.mubr.bf16.gmra.mxu0 %v8194
        %v8576 = vpop.f32.mrf.mxu0
        %v8577 = vadd.f32 0.0, %v8576
        %v8578 = vpop.f32.mrf.mxu0
        %v8579 = vpop.f32.mrf.mxu0
        %v8580 = vadd.f32 0.0, %v8579
        %v8581 = vpop.f32.mrf.mxu0
        %8582 = vmatprep.mubr.bf16.mxu0 %v8199
        %8583 = vmatmul.mubr.bf16.gmra.mxu0 %v8198
        %v8584 = vpop.f32.mrf.mxu0
        %v8585 = vadd.f32 0.0, %v8584
        %v8586 = vpop.f32.mrf.mxu0
        %v8587 = vpop.f32.mrf.mxu0
        %v8588 = vadd.f32 0.0, %v8587
        %v8589 = vpop.f32.mrf.mxu0
        %8590 = vmatprep.mubr.bf16.mxu0 %v8203
        %8591 = vmatmul.mubr.bf16.gmra.mxu0 %v8202
        %v8592 = vpop.f32.mrf.mxu0
        %v8593 = vadd.f32 0.0, %v8592
        %v8594 = vpop.f32.mrf.mxu0
        %v8595 = vpop.f32.mrf.mxu0
        %v8596 = vadd.f32 0.0, %v8595
        %v8597 = vpop.f32.mrf.mxu0
        %8598 = vmatprep.mubr.bf16.mxu0 %v8207
        %8599 = vmatmul.mubr.bf16.gmra.mxu0 %v8206
        %v8600 = vpop.f32.mrf.mxu0
        %v8601 = vadd.f32 0.0, %v8600
        %v8602 = vpop.f32.mrf.mxu0
        %v8603 = vpop.f32.mrf.mxu0
        %v8604 = vadd.f32 0.0, %v8603
        %v8605 = vpop.f32.mrf.mxu0
        %8606 = vmatprep.mubr.bf16.mxu0 %v8211
        %8607 = vmatmul.mubr.bf16.gmra.mxu0 %v8210
        %v8608 = vpop.f32.mrf.mxu0
        %v8609 = vadd.f32 0.0, %v8608
        %v8610 = vpop.f32.mrf.mxu0
        %v8611 = vpop.f32.mrf.mxu0
        %v8612 = vadd.f32 0.0, %v8611
        %v8613 = vpop.f32.mrf.mxu0
        %8614 = vmatprep.mubr.bf16.mxu0 %v8215
        %8615 = vmatmul.mubr.bf16.gmra.mxu0 %v8214
        %v8616 = vpop.f32.mrf.mxu0
        %v8617 = vadd.f32 0.0, %v8616
        %v8618 = vpop.f32.mrf.mxu0
        %v8619 = vpop.f32.mrf.mxu0
        %v8620 = vadd.f32 0.0, %v8619
        %v8621 = vpop.f32.mrf.mxu0
        %8622 = vmatprep.mubr.bf16.mxu0 %v8219
        %8623 = vmatmul.mubr.bf16.gmra.mxu0 %v8218
        %v8624 = vpop.f32.mrf.mxu0
        %v8625 = vadd.f32 0.0, %v8624
        %v8626 = vpop.f32.mrf.mxu0
        %v8627 = vpop.f32.mrf.mxu0
        %v8628 = vadd.f32 0.0, %v8627
        %v8629 = vpop.f32.mrf.mxu0
        %8630 = vmatprep.mubr.bf16.mxu0 %v8223
        %8631 = vmatmul.mubr.bf16.gmra.mxu0 %v8222
        %v8632 = vpop.f32.mrf.mxu0
        %v8633 = vadd.f32 0.0, %v8632
        %v8634 = vpop.f32.mrf.mxu0
        %v8635 = vpop.f32.mrf.mxu0
        %v8636 = vadd.f32 0.0, %v8635
        %v8637 = vpop.f32.mrf.mxu0
        %8638 = vmatprep.mubr.bf16.mxu0 %v8227
        %8639 = vmatmul.mubr.bf16.gmra.mxu0 %v8226
        %v8640 = vpop.f32.mrf.mxu0
        %v8641 = vadd.f32 0.0, %v8640
        %v8642 = vpop.f32.mrf.mxu0
        %v8643 = vpop.f32.mrf.mxu0
        %v8644 = vadd.f32 0.0, %v8643
        %v8645 = vpop.f32.mrf.mxu0
        %8646 = vdwg.mxu0
        %8647 = vmatprep.subr.bf16.mxu0 0
        %8648 = vmatpush1.bf16.msra.mxu0 %v8445
        %8649 = vmatprep.subr.bf16.mxu0 0
        %8650 = vmatpush1.bf16.msra.mxu0 %v8444
        %8651 = vmatprep.subr.bf16.mxu0 0
        %8652 = vmatpush1.bf16.msra.mxu0 %v8443
        %8653 = vmatprep.subr.bf16.mxu0 0
        %8654 = vmatpush1.bf16.msra.mxu0 %v8442
        %8655 = vmatprep.subr.bf16.mxu0 0
        %8656 = vmatpush1.bf16.msra.mxu0 %v8441
        %8657 = vmatprep.subr.bf16.mxu0 0
        %8658 = vmatpush1.bf16.msra.mxu0 %v8440
        %8659 = vmatprep.subr.bf16.mxu0 0
        %8660 = vmatpush1.bf16.msra.mxu0 %v8439
        %8661 = vmatprep.subr.bf16.mxu0 0
        %8662 = vmatpush1.bf16.msra.mxu0 %v8438
        %8663 = vmatprep.subr.bf16.mxu0 0
        %8664 = vmatpush2.bf16.msra.mxu0 %v8453
        %8665 = vmatprep.subr.bf16.mxu0 0
        %8666 = vmatpush2.bf16.msra.mxu0 %v8452
        %8667 = vmatprep.subr.bf16.mxu0 0
        %8668 = vmatpush2.bf16.msra.mxu0 %v8451
        %8669 = vmatprep.subr.bf16.mxu0 0
        %8670 = vmatpush2.bf16.msra.mxu0 %v8450
        %8671 = vmatprep.subr.bf16.mxu0 0
        %8672 = vmatpush2.bf16.msra.mxu0 %v8449
        %8673 = vmatprep.subr.bf16.mxu0 0
        %8674 = vmatpush2.bf16.msra.mxu0 %v8448
        %8675 = vmatprep.subr.bf16.mxu0 0
        %8676 = vmatpush2.bf16.msra.mxu0 %v8447
        %8677 = vmatprep.subr.bf16.mxu0 0
        %8678 = vmatpush2.bf16.msra.mxu0 %v8446
        %8679 = vmatprep.mubr.bf16.mxu0 %v8169
        %8680 = vmatmul.mubr.bf16.gmra.mxu0 %v8168
        %v8681 = vpop.f32.mrf.mxu0
        %v8682 = vadd.f32 %v8521, %v8681
        %v8683 = vpop.f32.mrf.mxu0
        %v8684 = vpop.f32.mrf.mxu0
        %v8685 = vadd.f32 %v8524, %v8684
        %v8686 = vpop.f32.mrf.mxu0
        %8687 = vmatprep.mubr.bf16.mxu0 %v8173
        %8688 = vmatmul.mubr.bf16.gmra.mxu0 %v8172
        %v8689 = vpop.f32.mrf.mxu0
        %v8690 = vadd.f32 %v8529, %v8689
        %v8691 = vpop.f32.mrf.mxu0
        %v8692 = vpop.f32.mrf.mxu0
        %v8693 = vadd.f32 %v8532, %v8692
        %v8694 = vpop.f32.mrf.mxu0
        %8695 = vmatprep.mubr.bf16.mxu0 %v8177
        %8696 = vmatmul.mubr.bf16.gmra.mxu0 %v8176
        %v8697 = vpop.f32.mrf.mxu0
        %v8698 = vadd.f32 %v8537, %v8697
        %v8699 = vpop.f32.mrf.mxu0
        %v8700 = vpop.f32.mrf.mxu0
        %v8701 = vadd.f32 %v8540, %v8700
        %v8702 = vpop.f32.mrf.mxu0
        %8703 = vmatprep.mubr.bf16.mxu0 %v8181
        %8704 = vmatmul.mubr.bf16.gmra.mxu0 %v8180
        %v8705 = vpop.f32.mrf.mxu0
        %v8706 = vadd.f32 %v8545, %v8705
        %v8707 = vpop.f32.mrf.mxu0
        %v8708 = vpop.f32.mrf.mxu0
        %v8709 = vadd.f32 %v8548, %v8708
        %v8710 = vpop.f32.mrf.mxu0
        %8711 = vmatprep.mubr.bf16.mxu0 %v8185
        %8712 = vmatmul.mubr.bf16.gmra.mxu0 %v8184
        %v8713 = vpop.f32.mrf.mxu0
        %v8714 = vadd.f32 %v8553, %v8713
        %v8715 = vpop.f32.mrf.mxu0
        %v8716 = vpop.f32.mrf.mxu0
        %v8717 = vadd.f32 %v8556, %v8716
        %v8718 = vpop.f32.mrf.mxu0
        %8719 = vmatprep.mubr.bf16.mxu0 %v8189
        %8720 = vmatmul.mubr.bf16.gmra.mxu0 %v8188
        %v8721 = vpop.f32.mrf.mxu0
        %v8722 = vadd.f32 %v8561, %v8721
        %v8723 = vpop.f32.mrf.mxu0
        %v8724 = vpop.f32.mrf.mxu0
        %v8725 = vadd.f32 %v8564, %v8724
        %v8726 = vpop.f32.mrf.mxu0
        %8727 = vmatprep.mubr.bf16.mxu0 %v8193
        %8728 = vmatmul.mubr.bf16.gmra.mxu0 %v8192
        %v8729 = vpop.f32.mrf.mxu0
        %v8730 = vadd.f32 %v8569, %v8729
        %v8731 = vpop.f32.mrf.mxu0
        %v8732 = vpop.f32.mrf.mxu0
        %v8733 = vadd.f32 %v8572, %v8732
        %v8734 = vpop.f32.mrf.mxu0
        %8735 = vmatprep.mubr.bf16.mxu0 %v8197
        %8736 = vmatmul.mubr.bf16.gmra.mxu0 %v8196
        %v8737 = vpop.f32.mrf.mxu0
        %v8738 = vadd.f32 %v8577, %v8737
        %v8739 = vpop.f32.mrf.mxu0
        %v8740 = vpop.f32.mrf.mxu0
        %v8741 = vadd.f32 %v8580, %v8740
        %v8742 = vpop.f32.mrf.mxu0
        %8743 = vmatprep.mubr.bf16.mxu0 %v8201
        %8744 = vmatmul.mubr.bf16.gmra.mxu0 %v8200
        %v8745 = vpop.f32.mrf.mxu0
        %v8746 = vadd.f32 %v8585, %v8745
        %v8747 = vpop.f32.mrf.mxu0
        %v8748 = vpop.f32.mrf.mxu0
        %v8749 = vadd.f32 %v8588, %v8748
        %v8750 = vpop.f32.mrf.mxu0
        %8751 = vmatprep.mubr.bf16.mxu0 %v8205
        %8752 = vmatmul.mubr.bf16.gmra.mxu0 %v8204
        %v8753 = vpop.f32.mrf.mxu0
        %v8754 = vadd.f32 %v8593, %v8753
        %v8755 = vpop.f32.mrf.mxu0
        %v8756 = vpop.f32.mrf.mxu0
        %v8757 = vadd.f32 %v8596, %v8756
        %v8758 = vpop.f32.mrf.mxu0
        %8759 = vmatprep.mubr.bf16.mxu0 %v8209
        %8760 = vmatmul.mubr.bf16.gmra.mxu0 %v8208
        %v8761 = vpop.f32.mrf.mxu0
        %v8762 = vadd.f32 %v8601, %v8761
        %v8763 = vpop.f32.mrf.mxu0
        %v8764 = vpop.f32.mrf.mxu0
        %v8765 = vadd.f32 %v8604, %v8764
        %v8766 = vpop.f32.mrf.mxu0
        %8767 = vmatprep.mubr.bf16.mxu0 %v8213
        %8768 = vmatmul.mubr.bf16.gmra.mxu0 %v8212
        %v8769 = vpop.f32.mrf.mxu0
        %v8770 = vadd.f32 %v8609, %v8769
        %v8771 = vpop.f32.mrf.mxu0
        %v8772 = vpop.f32.mrf.mxu0
        %v8773 = vadd.f32 %v8612, %v8772
        %v8774 = vpop.f32.mrf.mxu0
        %8775 = vmatprep.mubr.bf16.mxu0 %v8217
        %8776 = vmatmul.mubr.bf16.gmra.mxu0 %v8216
        %v8777 = vpop.f32.mrf.mxu0
        %v8778 = vadd.f32 %v8617, %v8777
        %v8779 = vpop.f32.mrf.mxu0
        %v8780 = vpop.f32.mrf.mxu0
        %v8781 = vadd.f32 %v8620, %v8780
        %v8782 = vpop.f32.mrf.mxu0
        %8783 = vmatprep.mubr.bf16.mxu0 %v8221
        %8784 = vmatmul.mubr.bf16.gmra.mxu0 %v8220
        %v8785 = vpop.f32.mrf.mxu0
        %v8786 = vadd.f32 %v8625, %v8785
        %v8787 = vpop.f32.mrf.mxu0
        %v8788 = vpop.f32.mrf.mxu0
        %v8789 = vadd.f32 %v8628, %v8788
        %v8790 = vpop.f32.mrf.mxu0
        %8791 = vmatprep.mubr.bf16.mxu0 %v8225
        %8792 = vmatmul.mubr.bf16.gmra.mxu0 %v8224
        %v8793 = vpop.f32.mrf.mxu0
        %v8794 = vadd.f32 %v8633, %v8793
        %v8795 = vpop.f32.mrf.mxu0
        %v8796 = vpop.f32.mrf.mxu0
        %v8797 = vadd.f32 %v8636, %v8796
        %v8798 = vpop.f32.mrf.mxu0
        %8799 = vmatprep.mubr.bf16.mxu0 %v8229
        %8800 = vmatmul.mubr.bf16.gmra.mxu0 %v8228
        %v8801 = vpop.f32.mrf.mxu0
        %v8802 = vadd.f32 %v8641, %v8801
        %v8803 = vpop.f32.mrf.mxu0
        %v8804 = vpop.f32.mrf.mxu0
        %v8805 = vadd.f32 %v8644, %v8804
        %v8806 = vpop.f32.mrf.mxu0
        %8807 = vdwg.mxu0
        %v8808 = vadd.f32 %v5879, %v8682
        %v8809 = vadd.f32 %v5880, %v8685
        %v8810 = vadd.f32 %v5881, %v8690
        %v8811 = vadd.f32 %v5882, %v8693
        %v8812 = vadd.f32 %v5883, %v8698
        %v8813 = vadd.f32 %v5884, %v8701
        %v8814 = vadd.f32 %v5885, %v8706
        %v8815 = vadd.f32 %v5886, %v8709
        %v8816 = vadd.f32 %v5887, %v8714
        %v8817 = vadd.f32 %v5888, %v8717
        %v8818 = vadd.f32 %v5889, %v8722
        %v8819 = vadd.f32 %v5890, %v8725
        %v8820 = vadd.f32 %v5891, %v8730
        %v8821 = vadd.f32 %v5892, %v8733
        %v8822 = vadd.f32 %v5893, %v8738
        %v8823 = vadd.f32 %v5894, %v8741
        %v8824 = vadd.f32 %v5895, %v8746
        %v8825 = vadd.f32 %v5896, %v8749
        %v8826 = vadd.f32 %v5897, %v8754
        %v8827 = vadd.f32 %v5898, %v8757
        %v8828 = vadd.f32 %v5899, %v8762
        %v8829 = vadd.f32 %v5900, %v8765
        %v8830 = vadd.f32 %v5901, %v8770
        %v8831 = vadd.f32 %v5902, %v8773
        %v8832 = vadd.f32 %v5903, %v8778
        %v8833 = vadd.f32 %v5904, %v8781
        %v8834 = vadd.f32 %v5905, %v8786
        %v8835 = vadd.f32 %v5906, %v8789
        %v8836 = vadd.f32 %v5907, %v8794
        %v8837 = vadd.f32 %v5908, %v8797
        %v8838 = vadd.f32 %v5909, %v8802
        %v8839 = vadd.f32 %v5910, %v8805
        %v8840 = vlaneseq
        %v8841 = vshrl.u32 %v8840, 7
        %v8842 = vsub.s32 0, %v8841
        %v8843 = vrot.slane %v406, %v8842
        %v8844 = vadd.f32 %v8808, %v8843
        %v8845 = vadd.f32 %v8809, %v8843
        %v8846 = vadd.f32 %v8810, %v8843
        %v8847 = vadd.f32 %v8811, %v8843
        %v8848 = vadd.f32 %v8812, %v8843
        %v8849 = vadd.f32 %v8813, %v8843
        %v8850 = vadd.f32 %v8814, %v8843
        %v8851 = vadd.f32 %v8815, %v8843
        %v8852 = vadd.f32 %v8816, %v8843
        %v8853 = vadd.f32 %v8817, %v8843
        %v8854 = vadd.f32 %v8818, %v8843
        %v8855 = vadd.f32 %v8819, %v8843
        %v8856 = vadd.f32 %v8820, %v8843
        %v8857 = vadd.f32 %v8821, %v8843
        %v8858 = vadd.f32 %v8822, %v8843
        %v8859 = vadd.f32 %v8823, %v8843
        %v8860 = vadd.f32 %v8824, %v8843
        %v8861 = vadd.f32 %v8825, %v8843
        %v8862 = vadd.f32 %v8826, %v8843
        %v8863 = vadd.f32 %v8827, %v8843
        %v8864 = vadd.f32 %v8828, %v8843
        %v8865 = vadd.f32 %v8829, %v8843
        %v8866 = vadd.f32 %v8830, %v8843
        %v8867 = vadd.f32 %v8831, %v8843
        %v8868 = vadd.f32 %v8832, %v8843
        %v8869 = vadd.f32 %v8833, %v8843
        %v8870 = vadd.f32 %v8834, %v8843
        %v8871 = vadd.f32 %v8835, %v8843
        %v8872 = vadd.f32 %v8836, %v8843
        %v8873 = vadd.f32 %v8837, %v8843
        %v8874 = vadd.f32 %v8838, %v8843
        %v8875 = vadd.f32 %v8839, %v8843
        %v8876 = vpack.c.bf16 %v8845, %v8844
        %v8877 = vpack.c.bf16 %v8847, %v8846
        %v8878 = vpack.c.bf16 %v8849, %v8848
        %v8879 = vpack.c.bf16 %v8851, %v8850
        %v8880 = vpack.c.bf16 %v8853, %v8852
        %v8881 = vpack.c.bf16 %v8855, %v8854
        %v8882 = vpack.c.bf16 %v8857, %v8856
        %v8883 = vpack.c.bf16 %v8859, %v8858
        %v8884 = vpack.c.bf16 %v8861, %v8860
        %v8885 = vpack.c.bf16 %v8863, %v8862
        %v8886 = vpack.c.bf16 %v8865, %v8864
        %v8887 = vpack.c.bf16 %v8867, %v8866
        %v8888 = vpack.c.bf16 %v8869, %v8868
        %v8889 = vpack.c.bf16 %v8871, %v8870
        %v8890 = vpack.c.bf16 %v8873, %v8872
        %v8891 = vpack.c.bf16 %v8875, %v8874
        %v8892 = vld [vmem:[%s5] sm:$0xf]
        %v8893 = vld [vmem:[%s5 + $0x4] sm:$0xf]
        %v8894 = vld [vmem:[%s5 + $0x8] sm:$0xf]
        %v8895 = vld [vmem:[%s5 + $0xc] sm:$0xf]
        %v8896 = vld [vmem:[%s5 + $0x10] sm:$0xf]
        %v8897 = vld [vmem:[%s5 + $0x14] sm:$0xf]
        %v8898 = vld [vmem:[%s5 + $0x18] sm:$0xf]
        %v8899 = vld [vmem:[%s5 + $0x1c] sm:$0xf]
        %v8900 = vld [vmem:[%s5 + $0x20] sm:$0xf]
        %v8901 = vld [vmem:[%s5 + $0x24] sm:$0xf]
        %v8902 = vld [vmem:[%s5 + $0x28] sm:$0xf]
        %v8903 = vld [vmem:[%s5 + $0x2c] sm:$0xf]
        %v8904 = vld [vmem:[%s5 + $0x30] sm:$0xf]
        %v8905 = vld [vmem:[%s5 + $0x34] sm:$0xf]
        %v8906 = vld [vmem:[%s5 + $0x38] sm:$0xf]
        %v8907 = vld [vmem:[%s5 + $0x3c] sm:$0xf]
        %v8908 = vlaneseq
        %v8909 = vshrl.u32 %v8908, 7
        %v8910 = vsub.s32 1, %v8909
        %v8911 = vrot.slane %v406, %v8910
        %v8928 = vunpack.c.l.b16 %v8892
        %v8929 = vunpack.c.l.b16 %v8893
        %v8930 = vunpack.c.l.b16 %v8894
        %v8931 = vunpack.c.l.b16 %v8895
        %v8932 = vunpack.c.l.b16 %v8896
        %v8933 = vunpack.c.l.b16 %v8897
        %v8934 = vunpack.c.l.b16 %v8898
        %v8935 = vunpack.c.l.b16 %v8899
        %v8936 = vunpack.c.l.b16 %v8900
        %v8937 = vunpack.c.l.b16 %v8901
        %v8938 = vunpack.c.l.b16 %v8902
        %v8939 = vunpack.c.l.b16 %v8903
        %v8940 = vunpack.c.l.b16 %v8904
        %v8941 = vunpack.c.l.b16 %v8905
        %v8942 = vunpack.c.l.b16 %v8906
        %v8943 = vunpack.c.l.b16 %v8907
        %v8944 = vpack.c.b16 %v8929, %v8928
        %v8945 = vpack.c.b16 %v8931, %v8930
        %v8946 = vpack.c.b16 %v8933, %v8932
        %v8947 = vpack.c.b16 %v8935, %v8934
        %v8948 = vpack.c.b16 %v8937, %v8936
        %v8949 = vpack.c.b16 %v8939, %v8938
        %v8950 = vpack.c.b16 %v8941, %v8940
        %v8951 = vpack.c.b16 %v8943, %v8942
        %8960 = vmatprep.subr.bf16.mxu0 0
        %8961 = vmatpush1.bf16.msra.mxu0 %v8951
        %8962 = vmatprep.subr.bf16.mxu0 0
        %8963 = vmatpush1.bf16.msra.mxu0 %v8950
        %8964 = vmatprep.subr.bf16.mxu0 0
        %8965 = vmatpush1.bf16.msra.mxu0 %v8949
        %8966 = vmatprep.subr.bf16.mxu0 0
        %8967 = vmatpush1.bf16.msra.mxu0 %v8948
        %8968 = vmatprep.subr.bf16.mxu0 0
        %8969 = vmatpush1.bf16.msra.mxu0 %v8947
        %8970 = vmatprep.subr.bf16.mxu0 0
        %8971 = vmatpush1.bf16.msra.mxu0 %v8946
        %8972 = vmatprep.subr.bf16.mxu0 0
        %8973 = vmatpush1.bf16.msra.mxu0 %v8945
        %8974 = vmatprep.subr.bf16.mxu0 0
        %8975 = vmatpush1.bf16.msra.mxu0 %v8944
        %8976 = vmatprep.subr.bf16.mxu0 0
        %8977 = vmatpush2.bf16.msra.mxu0 0
        %8978 = vmatprep.subr.bf16.mxu0 0
        %8979 = vmatpush2.bf16.msra.mxu0 0
        %8980 = vmatprep.subr.bf16.mxu0 0
        %8981 = vmatpush2.bf16.msra.mxu0 0
        %8982 = vmatprep.subr.bf16.mxu0 0
        %8983 = vmatpush2.bf16.msra.mxu0 0
        %8984 = vmatprep.subr.bf16.mxu0 0
        %8985 = vmatpush2.bf16.msra.mxu0 0
        %8986 = vmatprep.subr.bf16.mxu0 0
        %8987 = vmatpush2.bf16.msra.mxu0 0
        %8988 = vmatprep.subr.bf16.mxu0 0
        %8989 = vmatpush2.bf16.msra.mxu0 0
        %8990 = vmatprep.subr.bf16.mxu0 0
        %8991 = vmatpush2.bf16.msra.mxu0 0
        %8992 = vmatprep.mubr.bf16.mxu0 0
        %8993 = vmatmul.mubr.bf16.gmra.mxu0 %v8876
        %v8994 = vpop.f32.mrf.mxu0
        %v8995 = vadd.f32 %v8911, %v8994
        %v8996 = vpop.f32.mrf.mxu0
        %v8997 = vpop.f32.mrf.mxu0
        %v8998 = vadd.f32 %v8911, %v8997
        %v8999 = vpop.f32.mrf.mxu0
        %9000 = vmatprep.mubr.bf16.mxu0 0
        %9001 = vmatmul.mubr.bf16.gmra.mxu0 %v8877
        %v9002 = vpop.f32.mrf.mxu0
        %v9003 = vadd.f32 %v8911, %v9002
        %v9004 = vpop.f32.mrf.mxu0
        %v9005 = vpop.f32.mrf.mxu0
        %v9006 = vadd.f32 %v8911, %v9005
        %v9007 = vpop.f32.mrf.mxu0
        %9008 = vmatprep.mubr.bf16.mxu0 0
        %9009 = vmatmul.mubr.bf16.gmra.mxu0 %v8878
        %v9010 = vpop.f32.mrf.mxu0
        %v9011 = vadd.f32 %v8911, %v9010
        %v9012 = vpop.f32.mrf.mxu0
        %v9013 = vpop.f32.mrf.mxu0
        %v9014 = vadd.f32 %v8911, %v9013
        %v9015 = vpop.f32.mrf.mxu0
        %9016 = vmatprep.mubr.bf16.mxu0 0
        %9017 = vmatmul.mubr.bf16.gmra.mxu0 %v8879
        %v9018 = vpop.f32.mrf.mxu0
        %v9019 = vadd.f32 %v8911, %v9018
        %v9020 = vpop.f32.mrf.mxu0
        %v9021 = vpop.f32.mrf.mxu0
        %v9022 = vadd.f32 %v8911, %v9021
        %v9023 = vpop.f32.mrf.mxu0
        %9024 = vmatprep.mubr.bf16.mxu0 0
        %9025 = vmatmul.mubr.bf16.gmra.mxu0 %v8880
        %v9026 = vpop.f32.mrf.mxu0
        %v9027 = vadd.f32 %v8911, %v9026
        %v9028 = vpop.f32.mrf.mxu0
        %v9029 = vpop.f32.mrf.mxu0
        %v9030 = vadd.f32 %v8911, %v9029
        %v9031 = vpop.f32.mrf.mxu0
        %9032 = vmatprep.mubr.bf16.mxu0 0
        %9033 = vmatmul.mubr.bf16.gmra.mxu0 %v8881
        %v9034 = vpop.f32.mrf.mxu0
        %v9035 = vadd.f32 %v8911, %v9034
        %v9036 = vpop.f32.mrf.mxu0
        %v9037 = vpop.f32.mrf.mxu0
        %v9038 = vadd.f32 %v8911, %v9037
        %v9039 = vpop.f32.mrf.mxu0
        %9040 = vmatprep.mubr.bf16.mxu0 0
        %9041 = vmatmul.mubr.bf16.gmra.mxu0 %v8882
        %v9042 = vpop.f32.mrf.mxu0
        %v9043 = vadd.f32 %v8911, %v9042
        %v9044 = vpop.f32.mrf.mxu0
        %v9045 = vpop.f32.mrf.mxu0
        %v9046 = vadd.f32 %v8911, %v9045
        %v9047 = vpop.f32.mrf.mxu0
        %9048 = vmatprep.mubr.bf16.mxu0 0
        %9049 = vmatmul.mubr.bf16.gmra.mxu0 %v8883
        %v9050 = vpop.f32.mrf.mxu0
        %v9051 = vadd.f32 %v8911, %v9050
        %v9052 = vpop.f32.mrf.mxu0
        %v9053 = vpop.f32.mrf.mxu0
        %v9054 = vadd.f32 %v8911, %v9053
        %v9055 = vpop.f32.mrf.mxu0
        %9056 = vmatprep.mubr.bf16.mxu0 0
        %9057 = vmatmul.mubr.bf16.gmra.mxu0 %v8884
        %v9058 = vpop.f32.mrf.mxu0
        %v9059 = vadd.f32 %v8911, %v9058
        %v9060 = vpop.f32.mrf.mxu0
        %v9061 = vpop.f32.mrf.mxu0
        %v9062 = vadd.f32 %v8911, %v9061
        %v9063 = vpop.f32.mrf.mxu0
        %9064 = vmatprep.mubr.bf16.mxu0 0
        %9065 = vmatmul.mubr.bf16.gmra.mxu0 %v8885
        %v9066 = vpop.f32.mrf.mxu0
        %v9067 = vadd.f32 %v8911, %v9066
        %v9068 = vpop.f32.mrf.mxu0
        %v9069 = vpop.f32.mrf.mxu0
        %v9070 = vadd.f32 %v8911, %v9069
        %v9071 = vpop.f32.mrf.mxu0
        %9072 = vmatprep.mubr.bf16.mxu0 0
        %9073 = vmatmul.mubr.bf16.gmra.mxu0 %v8886
        %v9074 = vpop.f32.mrf.mxu0
        %v9075 = vadd.f32 %v8911, %v9074
        %v9076 = vpop.f32.mrf.mxu0
        %v9077 = vpop.f32.mrf.mxu0
        %v9078 = vadd.f32 %v8911, %v9077
        %v9079 = vpop.f32.mrf.mxu0
        %9080 = vmatprep.mubr.bf16.mxu0 0
        %9081 = vmatmul.mubr.bf16.gmra.mxu0 %v8887
        %v9082 = vpop.f32.mrf.mxu0
        %v9083 = vadd.f32 %v8911, %v9082
        %v9084 = vpop.f32.mrf.mxu0
        %v9085 = vpop.f32.mrf.mxu0
        %v9086 = vadd.f32 %v8911, %v9085
        %v9087 = vpop.f32.mrf.mxu0
        %9088 = vmatprep.mubr.bf16.mxu0 0
        %9089 = vmatmul.mubr.bf16.gmra.mxu0 %v8888
        %v9090 = vpop.f32.mrf.mxu0
        %v9091 = vadd.f32 %v8911, %v9090
        %v9092 = vpop.f32.mrf.mxu0
        %v9093 = vpop.f32.mrf.mxu0
        %v9094 = vadd.f32 %v8911, %v9093
        %v9095 = vpop.f32.mrf.mxu0
        %9096 = vmatprep.mubr.bf16.mxu0 0
        %9097 = vmatmul.mubr.bf16.gmra.mxu0 %v8889
        %v9098 = vpop.f32.mrf.mxu0
        %v9099 = vadd.f32 %v8911, %v9098
        %v9100 = vpop.f32.mrf.mxu0
        %v9101 = vpop.f32.mrf.mxu0
        %v9102 = vadd.f32 %v8911, %v9101
        %v9103 = vpop.f32.mrf.mxu0
        %9104 = vmatprep.mubr.bf16.mxu0 0
        %9105 = vmatmul.mubr.bf16.gmra.mxu0 %v8890
        %v9106 = vpop.f32.mrf.mxu0
        %v9107 = vadd.f32 %v8911, %v9106
        %v9108 = vpop.f32.mrf.mxu0
        %v9109 = vpop.f32.mrf.mxu0
        %v9110 = vadd.f32 %v8911, %v9109
        %v9111 = vpop.f32.mrf.mxu0
        %9112 = vmatprep.mubr.bf16.mxu0 0
        %9113 = vmatmul.mubr.bf16.gmra.mxu0 %v8891
        %v9114 = vpop.f32.mrf.mxu0
        %v9115 = vadd.f32 %v8911, %v9114
        %v9116 = vpop.f32.mrf.mxu0
        %v9117 = vpop.f32.mrf.mxu0
        %v9118 = vadd.f32 %v8911, %v9117
        %v9119 = vpop.f32.mrf.mxu0
        %9120 = vdwg.mxu0
        %v9121 = vpack.c.bf16 %v8998, %v8995
        %v9122 = vpack.c.bf16 %v9006, %v9003
        %v9123 = vpack.c.bf16 %v9014, %v9011
        %v9124 = vpack.c.bf16 %v9022, %v9019
        %v9125 = vpack.c.bf16 %v9030, %v9027
        %v9126 = vpack.c.bf16 %v9038, %v9035
        %v9127 = vpack.c.bf16 %v9046, %v9043
        %v9128 = vpack.c.bf16 %v9054, %v9051
        %v9129 = vpack.c.bf16 %v9062, %v9059
        %v9130 = vpack.c.bf16 %v9070, %v9067
        %v9131 = vpack.c.bf16 %v9078, %v9075
        %v9132 = vpack.c.bf16 %v9086, %v9083
        %v9133 = vpack.c.bf16 %v9094, %v9091
        %v9134 = vpack.c.bf16 %v9102, %v9099
        %v9135 = vpack.c.bf16 %v9110, %v9107
        %v9136 = vpack.c.bf16 %v9118, %v9115
        %v9153 = vunpack.c.l.b16 %v9121
        %v9154 = vunpack.c.h.b16 %v9121
        %v9155 = vunpack.c.l.b16 %v9122
        %v9156 = vunpack.c.h.b16 %v9122
        %v9157 = vunpack.c.l.b16 %v9123
        %v9158 = vunpack.c.h.b16 %v9123
        %v9159 = vunpack.c.l.b16 %v9124
        %v9160 = vunpack.c.h.b16 %v9124
        %v9161 = vunpack.c.l.b16 %v9125
        %v9162 = vunpack.c.h.b16 %v9125
        %v9163 = vunpack.c.l.b16 %v9126
        %v9164 = vunpack.c.h.b16 %v9126
        %v9165 = vunpack.c.l.b16 %v9127
        %v9166 = vunpack.c.h.b16 %v9127
        %v9167 = vunpack.c.l.b16 %v9128
        %v9168 = vunpack.c.h.b16 %v9128
        %v9169 = vunpack.c.l.b16 %v9129
        %v9170 = vunpack.c.h.b16 %v9129
        %v9171 = vunpack.c.l.b16 %v9130
        %v9172 = vunpack.c.h.b16 %v9130
        %v9173 = vunpack.c.l.b16 %v9131
        %v9174 = vunpack.c.h.b16 %v9131
        %v9175 = vunpack.c.l.b16 %v9132
        %v9176 = vunpack.c.h.b16 %v9132
        %v9177 = vunpack.c.l.b16 %v9133
        %v9178 = vunpack.c.h.b16 %v9133
        %v9179 = vunpack.c.l.b16 %v9134
        %v9180 = vunpack.c.h.b16 %v9134
        %v9181 = vunpack.c.l.b16 %v9135
        %v9182 = vunpack.c.h.b16 %v9135
        %v9183 = vunpack.c.l.b16 %v9136
        %v9184 = vunpack.c.h.b16 %v9136
        %v9185 = vpack.c.b16 %v9153, %v9153
        %v9186 = vpack.c.b16 %v9154, %v9154
        %v9187 = vpack.c.b16 %v9155, %v9155
        %v9188 = vpack.c.b16 %v9156, %v9156
        %v9189 = vpack.c.b16 %v9157, %v9157
        %v9190 = vpack.c.b16 %v9158, %v9158
        %v9191 = vpack.c.b16 %v9159, %v9159
        %v9192 = vpack.c.b16 %v9160, %v9160
        %v9193 = vpack.c.b16 %v9161, %v9161
        %v9194 = vpack.c.b16 %v9162, %v9162
        %v9195 = vpack.c.b16 %v9163, %v9163
        %v9196 = vpack.c.b16 %v9164, %v9164
        %v9197 = vpack.c.b16 %v9165, %v9165
        %v9198 = vpack.c.b16 %v9166, %v9166
        %v9199 = vpack.c.b16 %v9167, %v9167
        %v9200 = vpack.c.b16 %v9168, %v9168
        %v9201 = vpack.c.b16 %v9169, %v9169
        %v9202 = vpack.c.b16 %v9170, %v9170
        %v9203 = vpack.c.b16 %v9171, %v9171
        %v9204 = vpack.c.b16 %v9172, %v9172
        %v9205 = vpack.c.b16 %v9173, %v9173
        %v9206 = vpack.c.b16 %v9174, %v9174
        %v9207 = vpack.c.b16 %v9175, %v9175
        %v9208 = vpack.c.b16 %v9176, %v9176
        %v9209 = vpack.c.b16 %v9177, %v9177
        %v9210 = vpack.c.b16 %v9178, %v9178
        %v9211 = vpack.c.b16 %v9179, %v9179
        %v9212 = vpack.c.b16 %v9180, %v9180
        %v9213 = vpack.c.b16 %v9181, %v9181
        %v9214 = vpack.c.b16 %v9182, %v9182
        %v9215 = vpack.c.b16 %v9183, %v9183
        %v9216 = vpack.c.b16 %v9184, %v9184
        %9249 = vst [vmem:[%s331] sm:$0xf] %v9185
        %9250 = vst [vmem:[%s331 + $0x4] sm:$0xf] %v9186
        %9251 = vst [vmem:[%s331 + $0x8] sm:$0xf] %v9187
        %9252 = vst [vmem:[%s331 + $0xc] sm:$0xf] %v9188
        %9253 = vst [vmem:[%s331 + $0x10] sm:$0xf] %v9189
        %9254 = vst [vmem:[%s331 + $0x14] sm:$0xf] %v9190
        %9255 = vst [vmem:[%s331 + $0x18] sm:$0xf] %v9191
        %9256 = vst [vmem:[%s331 + $0x1c] sm:$0xf] %v9192
        %9257 = vst [vmem:[%s331 + $0x20] sm:$0xf] %v9193
        %9258 = vst [vmem:[%s331 + $0x24] sm:$0xf] %v9194
        %9259 = vst [vmem:[%s331 + $0x28] sm:$0xf] %v9195
        %9260 = vst [vmem:[%s331 + $0x2c] sm:$0xf] %v9196
        %9261 = vst [vmem:[%s331 + $0x30] sm:$0xf] %v9197
        %9262 = vst [vmem:[%s331 + $0x34] sm:$0xf] %v9198
        %9263 = vst [vmem:[%s331 + $0x38] sm:$0xf] %v9199
        %9264 = vst [vmem:[%s331 + $0x3c] sm:$0xf] %v9200
        %9265 = vst [vmem:[%s331 + $0x40] sm:$0xf] %v9201
        %9266 = vst [vmem:[%s331 + $0x44] sm:$0xf] %v9202
        %9267 = vst [vmem:[%s331 + $0x48] sm:$0xf] %v9203
        %9268 = vst [vmem:[%s331 + $0x4c] sm:$0xf] %v9204
        %9269 = vst [vmem:[%s331 + $0x50] sm:$0xf] %v9205
        %9270 = vst [vmem:[%s331 + $0x54] sm:$0xf] %v9206
        %9271 = vst [vmem:[%s331 + $0x58] sm:$0xf] %v9207
        %9272 = vst [vmem:[%s331 + $0x5c] sm:$0xf] %v9208
        %9273 = vst [vmem:[%s331 + $0x60] sm:$0xf] %v9209
        %9274 = vst [vmem:[%s331 + $0x64] sm:$0xf] %v9210
        %9275 = vst [vmem:[%s331 + $0x68] sm:$0xf] %v9211
        %9276 = vst [vmem:[%s331 + $0x6c] sm:$0xf] %v9212
        %9277 = vst [vmem:[%s331 + $0x70] sm:$0xf] %v9213
        %9278 = vst [vmem:[%s331 + $0x74] sm:$0xf] %v9214
        %9279 = vst [vmem:[%s331 + $0x78] sm:$0xf] %v9215
        %9280 = vst [vmem:[%s331 + $0x7c] sm:$0xf] %v9216
        %s9281 = sand.u32 %s205, 1
        %s9282 = scalar_lea.sflag [#allocation4], %s9281
        %s9283 = sand.u32 %s205, 1
        %s9284 = smul.addr %s9283, 128
        %s9285 = scalar_lea.vmem [#allocation7], %s9284
        // Predicated region
        $region61: #{_lambda_.1} parent=51 // pred_check
          %p9286 = pneg %p215
        $region62: #{_lambda_.1} parent=51 // pred_check_branch
          %9288 = sbr.rel (%p9286) target = $region64
        $region63: #{_lambda_.1} parent=51 // pred_region
          %s9289 = smul.u32 2, %s24
          %s9291 = ssub.s32 2048, 2048
          %9292 = vsyncadd %s9282, %s9291
          %s9293 = smul.addr %s9289, 16
          %s9294 = smul.addr %s9293, 64
          %s9295 = scalar_lea.hbm %s8, %s9294
          %s9296 = sshll.u32 %s9285, 4
          %s9297 = int_to_ptr.vmem [resolvable:$true] %s9296
          %9302 = dma.vmem_to_hbm [thread:$0]  %s9297, 2048, %s9295, %s9282, 64, 64, 4
        $region64: #{_lambda_.1} parent=51 // pred_fallthru
          _
      $region52: #{_lambda_.1} parent=5 // pred_fallthru
        _
      %p9303 = scmp.le.s32.totalorder 2, %s19
      // Predicated region
      $region65: #{_lambda_.1} parent=5 // pred_check
        %p9304 = pneg %p9303
      $region66: #{_lambda_.1} parent=5 // pred_check_branch
        %9306 = sbr.rel (%p9304) target = $region68
      $region67: #{_lambda_.1} parent=5 // pred_region
        %s9307 = ssub.s32 %s19, 2
        // Predicated region
        $region69: #{_lambda_.1} parent=67 // pred_check
          %p9308 = pneg %p221
        $region70: #{_lambda_.1} parent=67 // pred_check_branch
          %9310 = sbr.rel (%p9308) target = $region72
        $region71: #{_lambda_.1} parent=67 // pred_region
          %s9311 = sand.u32 %s206, 1
          %s9312 = scalar_lea.sflag [#allocation4], %s9311
          %s9313 = sand.u32 %s206, 1
          %s9314 = smul.addr %s9313, 128
          %s9315 = scalar_lea.vmem [#allocation7], %s9314
          %9316 = dma.done %s9312, 2048
        $region72: #{_lambda_.1} parent=67 // pred_fallthru
          _
      $region68: #{_lambda_.1} parent=5 // pred_fallthru
        _
    $region6: #{_lambda_.1} parent=1 // loop_footer
      %s23 = sadd.s32 1, %s19
    $region7: #{_lambda_.1} parent=1 // loop_footer_branch
      %18 = sbr.rel target = $region3
    $region8: #{_lambda_.1} parent=1 // loop_exit
      _
    %9317 = vsyncpa [#allocation3], 1
    %s9318 = scalar_lea.sflag [#allocation3], 1
    %9319 = vsyncpa %s9318, 1
    %9320 = vsyncpa [#allocation6], 1
    %9321 = vsyncpa [#allocation4], 1
    %s9322 = scalar_lea.sflag [#allocation4], 1
    %9323 = vsyncpa %s9322, 1

</llo_original>
